<compile_context>
chip_gen: v5e
topology: v5e:2x2
jax: 0.10.0
libtpu: 0.0.40
codegen_flags: <defaults>
</compile_context>

<pallas_src>
import functools

import jax
import jax.numpy as jnp
from jax.experimental import pallas as pl
from jax.experimental.pallas import tpu as pltpu

ACT_NONE, ACT_LRELU, ACT_RELU, ACT_TANH = 0, 1, 2, 3

_PHASES = ((0, 0), (0, 1), (1, 0), (1, 1))


def _round_up(x, m):
    return ((x + m - 1) // m) * m


def _apply_act(y, act_id):
    if act_id == ACT_LRELU:
        return jnp.where(y >= 0, y, 0.2 * y)
    if act_id == ACT_RELU:
        return jnp.maximum(y, 0)
    if act_id == ACT_TANH:
        return jnp.tanh(y)
    return y


# ----------------------------------------------------------------------------
# Pallas kernels
# ----------------------------------------------------------------------------

def _mm_kernel(*refs, pre_act, post_act, with_stats, multi_k):
    """Fused matmul: post_act(pre_act(A) @ B + bias) (+ BN sum/sumsq stats).

    Ref order: a, b, bias, out[, stats][, acc_scratch]."""
    if multi_k:
        if with_stats:
            a_ref, b_ref, bias_ref, o_ref, stats_ref, acc_ref = refs
        else:
            a_ref, b_ref, bias_ref, o_ref, acc_ref = refs
            stats_ref = None
    else:
        if with_stats:
            a_ref, b_ref, bias_ref, o_ref, stats_ref = refs
        else:
            a_ref, b_ref, bias_ref, o_ref = refs
            stats_ref = None

    # Pre-activation on the A tile (VALU slots are idle under the MXU).
    a = _apply_act(a_ref[...], pre_act)

    def finalize(acc):
        y = acc + bias_ref[...]
        if with_stats:
            # Two narrow sub-stores (rows 0/1); remaining rows are never read.
            stats_ref[0, 0:1, :] = jnp.sum(y, axis=0, keepdims=True)
            stats_ref[0, 1:2, :] = jnp.sum(y * y, axis=0, keepdims=True)
        o_ref[...] = _apply_act(y, post_act).astype(o_ref.dtype)

    if multi_k:
        k = pl.program_id(3)

        @pl.when(k == 0)
        def _init():
            acc_ref[...] = jnp.zeros_like(acc_ref)

        acc_ref[...] += jnp.dot(a, b_ref[...],
                                preferred_element_type=jnp.float32)

        @pl.when(k == pl.num_programs(3) - 1)
        def _fin():
            finalize(acc_ref[...])
    else:
        # kb == 1 fast path: no scratch, no zero-init, direct epilogue.
        finalize(jnp.dot(a, b_ref[...], preferred_element_type=jnp.float32))


def _affine_kernel(x_ref, s_ref, t_ref, o_ref):
    # y = x * scale + shift (f32 math, bf16 in/out), scale/shift broadcast.
    y = x_ref[...].astype(jnp.float32) * s_ref[...] + t_ref[...]
    o_ref[...] = y.astype(o_ref.dtype)


# ----------------------------------------------------------------------------
# Kernel wrappers
# ----------------------------------------------------------------------------

def pallas_matmul_fused(a, b, bias, *, pre_act=ACT_NONE, post_act=ACT_NONE,
                        with_stats=True, tm_max=512, tn_max=256, tk_max=2048,
                        out_dtype=jnp.bfloat16):
    """Batched (over a leading phase axis) fused MXU matmul.

    a: (P, M, K) bf16, b: (P, K, N) bf16, bias: (N,) f32.
    Returns out (P, M, N) bf16 and optionally (csum, csumsq) of the
    pre-(post_act) output summed over phases and rows (for BatchNorm).
    """
    P, M, K = a.shape
    P2, K2, N = b.shape
    assert K == K2 and P == P2

    tm = min(tm_max, _round_up(M, 16))
    tn = min(tn_max, _round_up(N, 128))
    tk = min(tk_max, _round_up(K, 128))
    Mp = _round_up(M, tm)
    # Prefer >= 2 M-blocks so megacore (v7x) can shard the parallel axes.
    if Mp // tm < 2 and M > 128:
        tm = _round_up(-(-M // 2), 16)
        Mp = _round_up(M, tm)
    Np, Kp = _round_up(N, tn), _round_up(K, tk)
    mb, nb, kb = Mp // tm, Np // tn, Kp // tk

    a_p = jnp.pad(a.astype(jnp.bfloat16), ((0, 0), (0, Mp - M), (0, Kp - K)))
    b_p = jnp.pad(b.astype(jnp.bfloat16), ((0, 0), (0, Kp - K), (0, Np - N)))
    bias_p = jnp.pad(bias.astype(jnp.float32).reshape(1, -1),
                     ((0, 0), (0, Np - N)))

    out_shapes = [jax.ShapeDtypeStruct((P, Mp, Np), out_dtype)]
    out_specs = [pl.BlockSpec((pl.Squeezed(), tm, tn),
                              lambda p, i, j, k: (p, i, j))]
    if with_stats:
        out_shapes.append(jax.ShapeDtypeStruct((P, mb, 8, Np), jnp.float32))
        out_specs.append(pl.BlockSpec((pl.Squeezed(), 1, 8, tn),
                                      lambda p, i, j, k: (p, i, 0, j)))

    scratch = [] if kb == 1 else [pltpu.VMEM((tm, tn), jnp.float32)]

    outs = pl.pallas_call(
        functools.partial(_mm_kernel, pre_act=pre_act, post_act=post_act,
                          with_stats=with_stats, multi_k=(kb > 1)),
        out_shape=tuple(out_shapes),
        grid=(P, mb, nb, kb),
        in_specs=[
            pl.BlockSpec((pl.Squeezed(), tm, tk), lambda p, i, j, k: (p, i, k)),
            pl.BlockSpec((pl.Squeezed(), tk, tn), lambda p, i, j, k: (p, k, j)),
            pl.BlockSpec((1, tn), lambda p, i, j, k: (0, j)),
        ],
        out_specs=tuple(out_specs),
        scratch_shapes=scratch,
        compiler_params=pltpu.CompilerParams(
            dimension_semantics=("parallel", "parallel", "parallel",
                                 "arbitrary")),
    )(a_p, b_p, bias_p)

    out = outs[0][:, :M, :N]
    if with_stats:
        stats = outs[1]
        csum = jnp.sum(stats[:, :, 0, :N], axis=(0, 1))
        csumsq = jnp.sum(stats[:, :, 1, :N], axis=(0, 1))
        return out, csum, csumsq
    return out


def _ew_rows(m, width, cap_bytes=8 * 1024 * 1024):
    """Row-tile size for elementwise kernels (~8 MiB blocks)."""
    tm = cap_bytes // (width * 4)
    tm = max(8, min(2048, (tm // 8) * 8))
    return min(tm, _round_up(m, 8))


def pallas_bn_apply(x, scale, shift):
    """y = x * scale + shift, per-channel, x is NHWC bf16.

    Folds W into the lane axis (scale/shift tiled W times) so small channel
    counts still produce lane-dense blocks.
    """
    n, h, w, c = x.shape
    lane = w * c
    x2d = x.reshape(n * h, lane)
    s = jnp.tile(scale.astype(jnp.float32), w).reshape(1, lane)
    t = jnp.tile(shift.astype(jnp.float32), w).reshape(1, lane)
    m = n * h
    lane_p = _round_up(lane, 128)
    tm = _ew_rows(m, lane_p)
    mp = _round_up(m, tm)
    x_p = jnp.pad(x2d, ((0, mp - m), (0, lane_p - lane)))
    s_p = jnp.pad(s, ((0, 0), (0, lane_p - lane)))
    t_p = jnp.pad(t, ((0, 0), (0, lane_p - lane)))
    out = pl.pallas_call(
        _affine_kernel,
        out_shape=jax.ShapeDtypeStruct((mp, lane_p), x.dtype),
        grid=(mp // tm,),
        in_specs=[pl.BlockSpec((tm, lane_p), lambda i: (i, 0)),
                  pl.BlockSpec((1, lane_p), lambda i: (0, 0)),
                  pl.BlockSpec((1, lane_p), lambda i: (0, 0))],
        out_specs=pl.BlockSpec((tm, lane_p), lambda i: (i, 0)),
        compiler_params=pltpu.CompilerParams(dimension_semantics=("parallel",)),
    )(x_p, s_p, t_p)
    return out[:m, :lane].reshape(n, h, w, c)


# ----------------------------------------------------------------------------
# Conv / ConvTranspose / BatchNorm built on the kernels (NHWC bf16 internally)
# ----------------------------------------------------------------------------

def conv2d_down(x, w_mat, pre_act=ACT_NONE, with_stats=True):
    """Conv2d(k=4, s=2, p=1, bias=False). x: NHWC bf16, w_mat: (16*Cin, Cout)."""
    n, hgt, wid, cin = x.shape
    ho, wo = hgt // 2, wid // 2
    cout = w_mat.shape[1]
    xp = jnp.pad(x, ((0, 0), (1, 1), (1, 1), (0, 0)))
    taps = []
    for i in range(4):
        for j in range(4):
            taps.append(xp[:, i:i + 2 * ho - 1:2, j:j + 2 * wo - 1:2, :])
    patches = jnp.stack(taps, axis=3).reshape(1, n * ho * wo, 16 * cin)
    res = pallas_matmul_fused(patches, w_mat[None],
                              jnp.zeros((cout,), jnp.float32),
                              pre_act=pre_act, post_act=ACT_NONE,
                              with_stats=with_stats)
    if with_stats:
        out, csum, csq = res
        return out[0].reshape(n, ho, wo, cout), csum, csq
    return res[0].reshape(n, ho, wo, cout)


def conv_transpose2d_up(x, w_phase, bias, pre_act=ACT_RELU, post_act=ACT_NONE,
                        with_stats=True):
    """ConvTranspose2d(k=4, s=2, p=1) via 4-phase decomposition in ONE call.

    x: NHWC (N,H,W,Cin) bf16; w_phase: (4, 4*Cin, Cout) bf16; bias: (Cout,) f32.
    Each output parity phase (oh%2, ow%2) is a stride-1 2x2 sub-convolution of
    the (un-dilated) input; all 4 phases run as a leading grid axis of the
    fused matmul and are interleaved afterwards.
    """
    n, hgt, wid, cin = x.shape
    cout = w_phase.shape[-1]
    xp = jnp.pad(x, ((0, 0), (1, 1), (1, 1), (0, 0)))
    phase_patches = []
    for (a, b) in _PHASES:
        taps = []
        for pr in range(2):
            for pc in range(2):
                taps.append(xp[:, a + pr:a + pr + hgt, b + pc:b + pc + wid, :])
        phase_patches.append(
            jnp.stack(taps, axis=3).reshape(n * hgt * wid, 4 * cin))
    patches = jnp.stack(phase_patches, axis=0)             # (4, N*H*W, 4*Cin)
    res = pallas_matmul_fused(patches, w_phase, bias,
                              pre_act=pre_act, post_act=post_act,
                              with_stats=with_stats)
    out = res[0] if with_stats else res                    # (4, N*H*W, Cout)
    y = jnp.transpose(out, (1, 0, 2))                      # (N*H*W, 4, Cout)
    y = y.reshape(n, hgt, wid, 2, 2, cout)
    y = jnp.transpose(y, (0, 1, 3, 2, 4, 5)).reshape(n, 2 * hgt, 2 * wid, cout)
    if with_stats:
        return y, res[1], res[2]
    return y


def _bn_scale_shift(csum, csumsq, count, gamma, beta, eps=1e-5):
    """Training-mode (biased-variance) BatchNorm scale/shift from sum/sumsq."""
    mean = csum / count
    var = jnp.maximum(csumsq / count - mean * mean, 0.0)
    scale = gamma / jnp.sqrt(var + eps)
    shift = beta - mean * scale
    return scale, shift


# ----------------------------------------------------------------------------
# UnetGenerator parameters + forward (recursive, mirrors the PyTorch module)
# ----------------------------------------------------------------------------

def _conv_w_to_mat(w):
    # w: (Cout, Cin, 4, 4) -> (16*Cin, Cout) in (kh, kw, cin) row order, bf16.
    cout, cin = w.shape[0], w.shape[1]
    return jnp.transpose(w, (2, 3, 1, 0)).reshape(16 * cin, cout).astype(
        jnp.bfloat16)


def _convT_w_to_phase_mats(w):
    # w: (Cin, Cout, 4, 4) PyTorch ConvTranspose2d layout.
    # For output phase (a, b) and 2x2 patch position (pr, pc):
    #   kernel tap is w[:, :, 3 - a - 2*pr, 3 - b - 2*pc].
    cin, cout = w.shape[0], w.shape[1]
    mats = []
    for a, b in _PHASES:
        taps = []
        for pr in range(2):
            for pc in range(2):
                kh = 3 - a - 2 * pr
                kw = 3 - b - 2 * pc
                taps.append(w[:, :, kh, kw])                 # (Cin, Cout)
        mats.append(jnp.stack(taps, axis=0).reshape(4 * cin, cout))
    return jnp.stack(mats, axis=0).astype(jnp.bfloat16)      # (4, 4*Cin, Cout)


def _init_block(key, outer_nc, inner_nc, input_nc, innermost, outermost):
    if input_nc is None:
        input_nc = outer_nc
    up_in = inner_nc if innermost else inner_nc * 2
    k1, k2, k3 = jax.random.split(key, 3)
    down_w = 0.05 * jax.random.normal(k1, (inner_nc, input_nc, 4, 4),
                                      jnp.float32)
    up_w = 0.05 * jax.random.normal(k2, (up_in, outer_nc, 4, 4), jnp.float32)
    p = {
        "down_w": _conv_w_to_mat(down_w),           # (16*input_nc, inner_nc)
        "up_w": _convT_w_to_phase_mats(up_w),       # (4, 4*up_in, outer_nc)
    }
    if outermost:
        p["up_b"] = 0.05 * jax.random.normal(k3, (outer_nc,), jnp.float32)
    if (not outermost) and (not innermost):
        p["dn_gamma"] = jnp.ones((inner_nc,), jnp.float32)
        p["dn_beta"] = jnp.zeros((inner_nc,), jnp.float32)
    if not outermost:
        p["up_gamma"] = jnp.ones((outer_nc,), jnp.float32)
        p["up_beta"] = jnp.zeros((outer_nc,), jnp.float32)
    return p


def make_unet_params(key, input_nc, output_nc, num_downs, ngf):
    keys = list(jax.random.split(key, num_downs + 1))
    ki = iter(keys)
    blk = _init_block(next(ki), ngf * 8, ngf * 8, None, innermost=True,
                      outermost=False)
    for _ in range(num_downs - 5):
        outer = _init_block(next(ki), ngf * 8, ngf * 8, None, False, False)
        outer["submodule"] = blk
        blk = outer
    for mult in (4, 2, 1):
        outer = _init_block(next(ki), ngf * mult, ngf * mult * 2, None,
                            False, False)
        outer["submodule"] = blk
        blk = outer
    top = _init_block(next(ki), output_nc, ngf, input_nc, innermost=False,
                      outermost=True)
    top["submodule"] = blk
    return top


def unet_block_forward(p, x):
    """x: NHWC bf16.  Mirrors UnetSkipConnectionBlock.forward.

    Static structure flags are inferred from the pytree keys so the whole
    forward jit-compiles with the params pytree as input.  All pre-conv
    activations (LeakyReLU / ReLU) are fused into the matmul prologue; the
    outermost Tanh into its epilogue; BN stats come from the matmul epilogue.
    """
    innermost = "submodule" not in p
    outermost = "up_gamma" not in p

    down_pre = ACT_NONE if outermost else ACT_LRELU        # downrelu fused
    if "dn_gamma" in p:                                    # downconv + downnorm
        h, dsum, dsq = conv2d_down(x, p["down_w"], pre_act=down_pre,
                                   with_stats=True)
        cnt = h.shape[0] * h.shape[1] * h.shape[2]
        scale, shift = _bn_scale_shift(dsum, dsq, cnt,
                                       p["dn_gamma"], p["dn_beta"])
        h = pallas_bn_apply(h, scale, shift)
    else:                                                  # downconv only
        h = conv2d_down(x, p["down_w"], pre_act=down_pre, with_stats=False)

    if not innermost:
        h = unet_block_forward(p["submodule"], h)          # submodule (cat)

    if outermost:
        # uprelu (prologue) + upconv with bias + Tanh (epilogue), one kernel
        return conv_transpose2d_up(h, p["up_w"], p["up_b"],
                                   pre_act=ACT_RELU, post_act=ACT_TANH,
                                   with_stats=False)

    cout = p["up_w"].shape[-1]
    h, usum, usq = conv_transpose2d_up(h, p["up_w"],
                                       jnp.zeros((cout,), jnp.float32),
                                       pre_act=ACT_RELU, post_act=ACT_NONE,
                                       with_stats=True)    # uprelu + upconv
    cnt = h.shape[0] * h.shape[1] * h.shape[2]
    scale, shift = _bn_scale_shift(usum, usq, cnt,
                                   p["up_gamma"], p["up_beta"])
    h = pallas_bn_apply(h, scale, shift)                   # upnorm
    # TODO(synk): skip concat stays in jnp glue; removing it would need the
    # consuming upconv matmul to read two A/B operand pairs (K-split accum).
    return jnp.concatenate([x, h], axis=-1)


def unet_generator_forward(params, x_nchw):
    # NCHW in / NCHW out (PyTorch); NHWC bf16 inside.
    x = jnp.transpose(x_nchw, (0, 2, 3, 1)).astype(jnp.bfloat16)
    y = unet_block_forward(params, x)
    return jnp.transpose(y, (0, 3, 1, 2)).astype(jnp.float32)


if __name__ == "__main__":
    key = jax.random.PRNGKey(0)
    k_params, k_x = jax.random.split(key)

    input_nc, output_nc, num_downs, ngf = 3, 3, 5, 8
    params = make_unet_params(k_params, input_nc, output_nc, num_downs, ngf)

    # num_downs=5 halves 32 -> 1 at the bottleneck, matching the module.
    x = jax.random.normal(k_x, (2, input_nc, 32, 32), jnp.float32)

    fwd = jax.jit(unet_generator_forward)
    y = jax.block_until_ready(fwd(params, x))
    assert y.shape == (2, output_nc, 32, 32), y.shape
    assert bool(jnp.all(jnp.isfinite(y)))
    print("KERNEL_OK")
</pallas_src>

<mosaic_0001>
module attributes {stable_mosaic.version = 11 : i64} {
  func.func @_mm_kernel(%arg0: i32, %arg1: i32, %arg2: i32, %arg3: i32, %arg4: memref<1x256x128xbf16, #tpu.memory_space<vmem>>, %arg5: memref<1x128x128xbf16, #tpu.memory_space<vmem>>, %arg6: memref<1x128xf32, #tpu.memory_space<vmem>>, %arg7: memref<1x256x128xbf16, #tpu.memory_space<vmem>>) attributes {dimension_semantics = [#tpu.dimension_semantics<parallel>, #tpu.dimension_semantics<parallel>, #tpu.dimension_semantics<parallel>, #tpu.dimension_semantics<arbitrary>], iteration_bounds = array<i64: 1, 2, 1, 1>, scalar_prefetch = 0 : i64, scratch_operands = 0 : i64, tpu.core_type = #tpu.core_type<tc>, window_params = [{transform_indices = @transform_0, window_bounds = array<i64: 1, 256, 128>}, {transform_indices = @transform_1, window_bounds = array<i64: 1, 128, 128>}, {transform_indices = @transform_2, window_bounds = array<i64: 1, 128>}, {transform_indices = @transform_3, window_bounds = array<i64: 1, 256, 128>}]} {
    %c0 = arith.constant 0 : index
    %c0_0 = arith.constant 0 : index
    %c0_1 = arith.constant 0 : index
    %0 = vector.load %arg4[%c0, %c0_0, %c0_1] : memref<1x256x128xbf16, #tpu.memory_space<vmem>>, vector<1x256x128xbf16>
    %1 = vector.shape_cast %0 : vector<1x256x128xbf16> to vector<256x128xbf16>
    %c0_2 = arith.constant 0 : index
    %c0_3 = arith.constant 0 : index
    %c0_4 = arith.constant 0 : index
    %2 = vector.load %arg5[%c0_2, %c0_3, %c0_4] : memref<1x128x128xbf16, #tpu.memory_space<vmem>>, vector<1x128x128xbf16>
    %3 = vector.shape_cast %2 : vector<1x128x128xbf16> to vector<128x128xbf16>
    %cst = arith.constant dense<0.000000e+00> : vector<256x128xf32>
    %4 = tpu.matmul %1, %3, %cst {dimension_numbers = #tpu.dot_dimension_numbers<[1], [0], [0], [1], [0, 0, 1, 1], [], []>} : vector<256x128xbf16>, vector<128x128xbf16>, vector<256x128xf32> -> vector<256x128xf32>
    %c0_5 = arith.constant 0 : index
    %c0_6 = arith.constant 0 : index
    %5 = vector.load %arg6[%c0_5, %c0_6] : memref<1x128xf32, #tpu.memory_space<vmem>>, vector<1x128xf32>
    %6 = vector.broadcast %5 : vector<1x128xf32> to vector<256x128xf32>
    %7 = arith.addf %4, %6 : vector<256x128xf32>
    %8 = arith.truncf %7 : vector<256x128xf32> to vector<256x128xbf16>
    %c0_7 = arith.constant 0 : index
    %c0_8 = arith.constant 0 : index
    %c0_9 = arith.constant 0 : index
    %9 = vector.load %arg7[%c0_7, %c0_8, %c0_9] : memref<1x256x128xbf16, #tpu.memory_space<vmem>>, vector<1x256x128xbf16>
    %10 = vector.shape_cast %9 : vector<1x256x128xbf16> to vector<256x128xbf16>
    %11 = vector.shape_cast %8 : vector<256x128xbf16> to vector<1x256x128xbf16>
    tpu.vector_store %arg7[%c0_7, %c0_8, %c0_9], %11 {strides = array<i32>} : memref<1x256x128xbf16, #tpu.memory_space<vmem>>, vector<1x256x128xbf16>,
    return
  }
  func.func @transform_0(%arg0: i32, %arg1: i32, %arg2: i32, %arg3: i32) -> (i32, i32, i32) {
    %c0_i32 = arith.constant 0 : i32
    return %arg0, %arg1, %arg3 : i32, i32, i32
  }
  func.func @transform_1(%arg0: i32, %arg1: i32, %arg2: i32, %arg3: i32) -> (i32, i32, i32) {
    %c0_i32 = arith.constant 0 : i32
    return %arg0, %arg3, %arg2 : i32, i32, i32
  }
  func.func @transform_2(%arg0: i32, %arg1: i32, %arg2: i32, %arg3: i32) -> (i32, i32) {
    %c0_i32 = arith.constant 0 : i32
    %c0_i32_0 = arith.constant 0 : i32
    return %c0_i32, %arg2 : i32, i32
  }
  func.func @transform_3(%arg0: i32, %arg1: i32, %arg2: i32, %arg3: i32) -> (i32, i32, i32) {
    %c0_i32 = arith.constant 0 : i32
    return %arg0, %arg1, %arg2 : i32, i32, i32
  }
}

module attributes {stable_mosaic.version = 11 : i64} {
  func.func @_mm_kernel(%arg0: i32, %arg1: i32, %arg2: i32, %arg3: i32, %arg4: memref<1x128x128xbf16, #tpu.memory_space<vmem>>, %arg5: memref<1x128x128xbf16, #tpu.memory_space<vmem>>, %arg6: memref<1x128xf32, #tpu.memory_space<vmem>>, %arg7: memref<1x128x128xbf16, #tpu.memory_space<vmem>>, %arg8: memref<1x1x8x128xf32, #tpu.memory_space<vmem>>) attributes {dimension_semantics = [#tpu.dimension_semantics<parallel>, #tpu.dimension_semantics<parallel>, #tpu.dimension_semantics<parallel>, #tpu.dimension_semantics<arbitrary>], iteration_bounds = array<i64: 1, 1, 1, 1>, scalar_prefetch = 0 : i64, scratch_operands = 0 : i64, tpu.core_type = #tpu.core_type<tc>, window_params = [{transform_indices = @transform_0, window_bounds = array<i64: 1, 128, 128>}, {transform_indices = @transform_1, window_bounds = array<i64: 1, 128, 128>}, {transform_indices = @transform_2, window_bounds = array<i64: 1, 128>}, {transform_indices = @transform_3, window_bounds = array<i64: 1, 128, 128>}, {transform_indices = @transform_4, window_bounds = array<i64: 1, 1, 8, 128>}]} {
    %c0 = arith.constant 0 : index
    %c0_0 = arith.constant 0 : index
    %c0_1 = arith.constant 0 : index
    %0 = vector.load %arg4[%c0, %c0_0, %c0_1] : memref<1x128x128xbf16, #tpu.memory_space<vmem>>, vector<1x128x128xbf16>
    %1 = vector.shape_cast %0 : vector<1x128x128xbf16> to vector<128x128xbf16>
    %cst = arith.constant 0.000000e+00 : bf16
    %2 = vector.broadcast %cst : bf16 to vector<128x128xbf16>
    %3 = arith.cmpf oge, %1, %2 : vector<128x128xbf16>
    %cst_2 = arith.constant 2.001950e-01 : bf16
    %4 = vector.broadcast %cst_2 : bf16 to vector<128x128xbf16>
    %5 = arith.mulf %4, %1 : vector<128x128xbf16>
    %6 = arith.select %3, %1, %5 : vector<128x128xi1>, vector<128x128xbf16>
    %c0_3 = arith.constant 0 : index
    %c0_4 = arith.constant 0 : index
    %c0_5 = arith.constant 0 : index
    %7 = vector.load %arg5[%c0_3, %c0_4, %c0_5] : memref<1x128x128xbf16, #tpu.memory_space<vmem>>, vector<1x128x128xbf16>
    %8 = vector.shape_cast %7 : vector<1x128x128xbf16> to vector<128x128xbf16>
    %cst_6 = arith.constant dense<0.000000e+00> : vector<128x128xf32>
    %9 = tpu.matmul %6, %8, %cst_6 {dimension_numbers = #tpu.dot_dimension_numbers<[1], [0], [0], [1], [0, 0, 1, 1], [], []>} : vector<128x128xbf16>, vector<128x128xbf16>, vector<128x128xf32> -> vector<128x128xf32>
    %c0_7 = arith.constant 0 : index
    %c0_8 = arith.constant 0 : index
    %10 = vector.load %arg6[%c0_7, %c0_8] : memref<1x128xf32, #tpu.memory_space<vmem>>, vector<1x128xf32>
    %11 = vector.broadcast %10 : vector<1x128xf32> to vector<128x128xf32>
    %12 = arith.addf %9, %11 : vector<128x128xf32>
    %cst_9 = arith.constant dense<0.000000e+00> : vector<128xf32>
    %13 = vector.multi_reduction <add>, %12, %cst_9 [0] : vector<128x128xf32> to vector<128xf32>
    %14 = vector.shape_cast %13 : vector<128xf32> to vector<1x128xf32>
    %c0_10 = arith.constant 0 : index
    %c0_11 = arith.constant 0 : index
    %c0_12 = arith.constant 0 : index
    %c0_13 = arith.constant 0 : index
    %15 = vector.load %arg8[%c0_10, %c0_11, %c0_12, %c0_13] : memref<1x1x8x128xf32, #tpu.memory_space<vmem>>, vector<1x1x1x128xf32>
    %16 = vector.shape_cast %15 : vector<1x1x1x128xf32> to vector<1x128xf32>
    %17 = vector.shape_cast %14 : vector<1x128xf32> to vector<1x1x1x128xf32>
    tpu.vector_store %arg8[%c0_10, %c0_11, %c0_12, %c0_13], %17 {strides = array<i32>} : memref<1x1x8x128xf32, #tpu.memory_space<vmem>>, vector<1x1x1x128xf32>,
    %18 = arith.mulf %12, %12 : vector<128x128xf32>
    %cst_14 = arith.constant dense<0.000000e+00> : vector<128xf32>
    %19 = vector.multi_reduction <add>, %18, %cst_14 [0] : vector<128x128xf32> to vector<128xf32>
    %20 = vector.shape_cast %19 : vector<128xf32> to vector<1x128xf32>
    %c0_15 = arith.constant 0 : index
    %c0_16 = arith.constant 0 : index
    %c1 = arith.constant 1 : index
    %c0_17 = arith.constant 0 : index
    %21 = vector.load %arg8[%c0_15, %c0_16, %c1, %c0_17] : memref<1x1x8x128xf32, #tpu.memory_space<vmem>>, vector<1x1x1x128xf32>
    %22 = vector.shape_cast %21 : vector<1x1x1x128xf32> to vector<1x128xf32>
    %23 = vector.shape_cast %20 : vector<1x128xf32> to vector<1x1x1x128xf32>
    tpu.vector_store %arg8[%c0_15, %c0_16, %c1, %c0_17], %23 {strides = array<i32>} : memref<1x1x8x128xf32, #tpu.memory_space<vmem>>, vector<1x1x1x128xf32>,
    %24 = arith.truncf %12 : vector<128x128xf32> to vector<128x128xbf16>
    %c0_18 = arith.constant 0 : index
    %c0_19 = arith.constant 0 : index
    %c0_20 = arith.constant 0 : index
    %25 = vector.load %arg7[%c0_18, %c0_19, %c0_20] : memref<1x128x128xbf16, #tpu.memory_space<vmem>>, vector<1x128x128xbf16>
    %26 = vector.shape_cast %25 : vector<1x128x128xbf16> to vector<128x128xbf16>
    %27 = vector.shape_cast %24 : vector<128x128xbf16> to vector<1x128x128xbf16>
    tpu.vector_store %arg7[%c0_18, %c0_19, %c0_20], %27 {strides = array<i32>} : memref<1x128x128xbf16, #tpu.memory_space<vmem>>, vector<1x128x128xbf16>,
    return
  }
  func.func @transform_0(%arg0: i32, %arg1: i32, %arg2: i32, %arg3: i32) -> (i32, i32, i32) {
    %c0_i32 = arith.constant 0 : i32
    return %arg0, %arg1, %arg3 : i32, i32, i32
  }
  func.func @transform_1(%arg0: i32, %arg1: i32, %arg2: i32, %arg3: i32) -> (i32, i32, i32) {
    %c0_i32 = arith.constant 0 : i32
    return %arg0, %arg3, %arg2 : i32, i32, i32
  }
  func.func @transform_2(%arg0: i32, %arg1: i32, %arg2: i32, %arg3: i32) -> (i32, i32) {
    %c0_i32 = arith.constant 0 : i32
    %c0_i32_0 = arith.constant 0 : i32
    return %c0_i32, %arg2 : i32, i32
  }
  func.func @transform_3(%arg0: i32, %arg1: i32, %arg2: i32, %arg3: i32) -> (i32, i32, i32) {
    %c0_i32 = arith.constant 0 : i32
    return %arg0, %arg1, %arg2 : i32, i32, i32
  }
  func.func @transform_4(%arg0: i32, %arg1: i32, %arg2: i32, %arg3: i32) -> (i32, i32, i32, i32) {
    %c0_i32 = arith.constant 0 : i32
    %c0_i32_0 = arith.constant 0 : i32
    return %arg0, %arg1, %c0_i32, %arg2 : i32, i32, i32, i32
  }
}

module attributes {stable_mosaic.version = 11 : i64} {
  func.func @_affine_kernel(%arg0: i32, %arg1: memref<16x128xbf16, #tpu.memory_space<vmem>>, %arg2: memref<1x128xf32, #tpu.memory_space<vmem>>, %arg3: memref<1x128xf32, #tpu.memory_space<vmem>>, %arg4: memref<16x128xbf16, #tpu.memory_space<vmem>>) attributes {dimension_semantics = [#tpu.dimension_semantics<parallel>], iteration_bounds = array<i64: 1>, scalar_prefetch = 0 : i64, scratch_operands = 0 : i64, tpu.core_type = #tpu.core_type<tc>, window_params = [{transform_indices = @transform_0, window_bounds = array<i64: 16, 128>}, {pipeline_mode = #tpu.pipeline_mode<synchronous>, transform_indices = @transform_1, window_bounds = array<i64: 1, 128>}, {pipeline_mode = #tpu.pipeline_mode<synchronous>, transform_indices = @transform_2, window_bounds = array<i64: 1, 128>}, {transform_indices = @transform_3, window_bounds = array<i64: 16, 128>}]} {
    %c0 = arith.constant 0 : index
    %c0_0 = arith.constant 0 : index
    %0 = vector.load %arg1[%c0, %c0_0] : memref<16x128xbf16, #tpu.memory_space<vmem>>, vector<16x128xbf16>
    %1 = arith.extf %0 : vector<16x128xbf16> to vector<16x128xf32>
    %c0_1 = arith.constant 0 : index
    %c0_2 = arith.constant 0 : index
    %2 = vector.load %arg2[%c0_1, %c0_2] : memref<1x128xf32, #tpu.memory_space<vmem>>, vector<1x128xf32>
    %3 = vector.broadcast %2 : vector<1x128xf32> to vector<16x128xf32>
    %4 = arith.mulf %1, %3 : vector<16x128xf32>
    %c0_3 = arith.constant 0 : index
    %c0_4 = arith.constant 0 : index
    %5 = vector.load %arg3[%c0_3, %c0_4] : memref<1x128xf32, #tpu.memory_space<vmem>>, vector<1x128xf32>
    %6 = vector.broadcast %5 : vector<1x128xf32> to vector<16x128xf32>
    %7 = arith.addf %4, %6 : vector<16x128xf32>
    %8 = arith.truncf %7 : vector<16x128xf32> to vector<16x128xbf16>
    %c0_5 = arith.constant 0 : index
    %c0_6 = arith.constant 0 : index
    %9 = vector.load %arg4[%c0_5, %c0_6] : memref<16x128xbf16, #tpu.memory_space<vmem>>, vector<16x128xbf16>
    tpu.vector_store %arg4[%c0_5, %c0_6], %8 {strides = array<i32>} : memref<16x128xbf16, #tpu.memory_space<vmem>>, vector<16x128xbf16>,
    return
  }
  func.func @transform_0(%arg0: i32) -> (i32, i32) {
    %c0_i32 = arith.constant 0 : i32
    %c0_i32_0 = arith.constant 0 : i32
    return %arg0, %c0_i32 : i32, i32
  }
  func.func @transform_1(%arg0: i32) -> (i32, i32) {
    %c0_i32 = arith.constant 0 : i32
    %c0_i32_0 = arith.constant 0 : i32
    %c0_i32_1 = arith.constant 0 : i32
    return %c0_i32, %c0_i32_0 : i32, i32
  }
  func.func @transform_2(%arg0: i32) -> (i32, i32) {
    %c0_i32 = arith.constant 0 : i32
    %c0_i32_0 = arith.constant 0 : i32
    %c0_i32_1 = arith.constant 0 : i32
    return %c0_i32, %c0_i32_0 : i32, i32
  }
  func.func @transform_3(%arg0: i32) -> (i32, i32) {
    %c0_i32 = arith.constant 0 : i32
    %c0_i32_0 = arith.constant 0 : i32
    return %arg0, %c0_i32 : i32, i32
  }
}

module attributes {stable_mosaic.version = 11 : i64} {
  func.func @_mm_kernel(%arg0: i32, %arg1: i32, %arg2: i32, %arg3: i32, %arg4: memref<1x32x256xbf16, #tpu.memory_space<vmem>>, %arg5: memref<1x256x128xbf16, #tpu.memory_space<vmem>>, %arg6: memref<1x128xf32, #tpu.memory_space<vmem>>, %arg7: memref<1x32x128xbf16, #tpu.memory_space<vmem>>, %arg8: memref<1x1x8x128xf32, #tpu.memory_space<vmem>>) attributes {dimension_semantics = [#tpu.dimension_semantics<parallel>, #tpu.dimension_semantics<parallel>, #tpu.dimension_semantics<parallel>, #tpu.dimension_semantics<arbitrary>], iteration_bounds = array<i64: 1, 1, 1, 1>, scalar_prefetch = 0 : i64, scratch_operands = 0 : i64, tpu.core_type = #tpu.core_type<tc>, window_params = [{transform_indices = @transform_0, window_bounds = array<i64: 1, 32, 256>}, {transform_indices = @transform_1, window_bounds = array<i64: 1, 256, 128>}, {transform_indices = @transform_2, window_bounds = array<i64: 1, 128>}, {transform_indices = @transform_3, window_bounds = array<i64: 1, 32, 128>}, {transform_indices = @transform_4, window_bounds = array<i64: 1, 1, 8, 128>}]} {
    %c0 = arith.constant 0 : index
    %c0_0 = arith.constant 0 : index
    %c0_1 = arith.constant 0 : index
    %0 = vector.load %arg4[%c0, %c0_0, %c0_1] : memref<1x32x256xbf16, #tpu.memory_space<vmem>>, vector<1x32x256xbf16>
    %1 = vector.shape_cast %0 : vector<1x32x256xbf16> to vector<32x256xbf16>
    %cst = arith.constant 0.000000e+00 : bf16
    %2 = vector.broadcast %cst : bf16 to vector<32x256xbf16>
    %3 = arith.cmpf oge, %1, %2 : vector<32x256xbf16>
    %cst_2 = arith.constant 2.001950e-01 : bf16
    %4 = vector.broadcast %cst_2 : bf16 to vector<32x256xbf16>
    %5 = arith.mulf %4, %1 : vector<32x256xbf16>
    %6 = arith.select %3, %1, %5 : vector<32x256xi1>, vector<32x256xbf16>
    %c0_3 = arith.constant 0 : index
    %c0_4 = arith.constant 0 : index
    %c0_5 = arith.constant 0 : index
    %7 = vector.load %arg5[%c0_3, %c0_4, %c0_5] : memref<1x256x128xbf16, #tpu.memory_space<vmem>>, vector<1x256x128xbf16>
    %8 = vector.shape_cast %7 : vector<1x256x128xbf16> to vector<256x128xbf16>
    %cst_6 = arith.constant dense<0.000000e+00> : vector<32x128xf32>
    %9 = tpu.matmul %6, %8, %cst_6 {dimension_numbers = #tpu.dot_dimension_numbers<[1], [0], [0], [1], [0, 0, 1, 1], [], []>} : vector<32x256xbf16>, vector<256x128xbf16>, vector<32x128xf32> -> vector<32x128xf32>
    %c0_7 = arith.constant 0 : index
    %c0_8 = arith.constant 0 : index
    %10 = vector.load %arg6[%c0_7, %c0_8] : memref<1x128xf32, #tpu.memory_space<vmem>>, vector<1x128xf32>
    %11 = vector.broadcast %10 : vector<1x128xf32> to vector<32x128xf32>
    %12 = arith.addf %9, %11 : vector<32x128xf32>
    %cst_9 = arith.constant dense<0.000000e+00> : vector<128xf32>
    %13 = vector.multi_reduction <add>, %12, %cst_9 [0] : vector<32x128xf32> to vector<128xf32>
    %14 = vector.shape_cast %13 : vector<128xf32> to vector<1x128xf32>
    %c0_10 = arith.constant 0 : index
    %c0_11 = arith.constant 0 : index
    %c0_12 = arith.constant 0 : index
    %c0_13 = arith.constant 0 : index
    %15 = vector.load %arg8[%c0_10, %c0_11, %c0_12, %c0_13] : memref<1x1x8x128xf32, #tpu.memory_space<vmem>>, vector<1x1x1x128xf32>
    %16 = vector.shape_cast %15 : vector<1x1x1x128xf32> to vector<1x128xf32>
    %17 = vector.shape_cast %14 : vector<1x128xf32> to vector<1x1x1x128xf32>
    tpu.vector_store %arg8[%c0_10, %c0_11, %c0_12, %c0_13], %17 {strides = array<i32>} : memref<1x1x8x128xf32, #tpu.memory_space<vmem>>, vector<1x1x1x128xf32>,
    %18 = arith.mulf %12, %12 : vector<32x128xf32>
    %cst_14 = arith.constant dense<0.000000e+00> : vector<128xf32>
    %19 = vector.multi_reduction <add>, %18, %cst_14 [0] : vector<32x128xf32> to vector<128xf32>
    %20 = vector.shape_cast %19 : vector<128xf32> to vector<1x128xf32>
    %c0_15 = arith.constant 0 : index
    %c0_16 = arith.constant 0 : index
    %c1 = arith.constant 1 : index
    %c0_17 = arith.constant 0 : index
    %21 = vector.load %arg8[%c0_15, %c0_16, %c1, %c0_17] : memref<1x1x8x128xf32, #tpu.memory_space<vmem>>, vector<1x1x1x128xf32>
    %22 = vector.shape_cast %21 : vector<1x1x1x128xf32> to vector<1x128xf32>
    %23 = vector.shape_cast %20 : vector<1x128xf32> to vector<1x1x1x128xf32>
    tpu.vector_store %arg8[%c0_15, %c0_16, %c1, %c0_17], %23 {strides = array<i32>} : memref<1x1x8x128xf32, #tpu.memory_space<vmem>>, vector<1x1x1x128xf32>,
    %24 = arith.truncf %12 : vector<32x128xf32> to vector<32x128xbf16>
    %c0_18 = arith.constant 0 : index
    %c0_19 = arith.constant 0 : index
    %c0_20 = arith.constant 0 : index
    %25 = vector.load %arg7[%c0_18, %c0_19, %c0_20] : memref<1x32x128xbf16, #tpu.memory_space<vmem>>, vector<1x32x128xbf16>
    %26 = vector.shape_cast %25 : vector<1x32x128xbf16> to vector<32x128xbf16>
    %27 = vector.shape_cast %24 : vector<32x128xbf16> to vector<1x32x128xbf16>
    tpu.vector_store %arg7[%c0_18, %c0_19, %c0_20], %27 {strides = array<i32>} : memref<1x32x128xbf16, #tpu.memory_space<vmem>>, vector<1x32x128xbf16>,
    return
  }
  func.func @transform_0(%arg0: i32, %arg1: i32, %arg2: i32, %arg3: i32) -> (i32, i32, i32) {
    %c0_i32 = arith.constant 0 : i32
    return %arg0, %arg1, %arg3 : i32, i32, i32
  }
  func.func @transform_1(%arg0: i32, %arg1: i32, %arg2: i32, %arg3: i32) -> (i32, i32, i32) {
    %c0_i32 = arith.constant 0 : i32
    return %arg0, %arg3, %arg2 : i32, i32, i32
  }
  func.func @transform_2(%arg0: i32, %arg1: i32, %arg2: i32, %arg3: i32) -> (i32, i32) {
    %c0_i32 = arith.constant 0 : i32
    %c0_i32_0 = arith.constant 0 : i32
    return %c0_i32, %arg2 : i32, i32
  }
  func.func @transform_3(%arg0: i32, %arg1: i32, %arg2: i32, %arg3: i32) -> (i32, i32, i32) {
    %c0_i32 = arith.constant 0 : i32
    return %arg0, %arg1, %arg2 : i32, i32, i32
  }
  func.func @transform_4(%arg0: i32, %arg1: i32, %arg2: i32, %arg3: i32) -> (i32, i32, i32, i32) {
    %c0_i32 = arith.constant 0 : i32
    %c0_i32_0 = arith.constant 0 : i32
    return %arg0, %arg1, %c0_i32, %arg2 : i32, i32, i32, i32
  }
}

module attributes {stable_mosaic.version = 11 : i64} {
  func.func @_affine_kernel(%arg0: i32, %arg1: memref<8x128xbf16, #tpu.memory_space<vmem>>, %arg2: memref<1x128xf32, #tpu.memory_space<vmem>>, %arg3: memref<1x128xf32, #tpu.memory_space<vmem>>, %arg4: memref<8x128xbf16, #tpu.memory_space<vmem>>) attributes {dimension_semantics = [#tpu.dimension_semantics<parallel>], iteration_bounds = array<i64: 1>, scalar_prefetch = 0 : i64, scratch_operands = 0 : i64, tpu.core_type = #tpu.core_type<tc>, window_params = [{transform_indices = @transform_0, window_bounds = array<i64: 8, 128>}, {pipeline_mode = #tpu.pipeline_mode<synchronous>, transform_indices = @transform_1, window_bounds = array<i64: 1, 128>}, {pipeline_mode = #tpu.pipeline_mode<synchronous>, transform_indices = @transform_2, window_bounds = array<i64: 1, 128>}, {transform_indices = @transform_3, window_bounds = array<i64: 8, 128>}]} {
    %c0 = arith.constant 0 : index
    %c0_0 = arith.constant 0 : index
    %0 = vector.load %arg1[%c0, %c0_0] : memref<8x128xbf16, #tpu.memory_space<vmem>>, vector<8x128xbf16>
    %1 = arith.extf %0 : vector<8x128xbf16> to vector<8x128xf32>
    %c0_1 = arith.constant 0 : index
    %c0_2 = arith.constant 0 : index
    %2 = vector.load %arg2[%c0_1, %c0_2] : memref<1x128xf32, #tpu.memory_space<vmem>>, vector<1x128xf32>
    %3 = vector.broadcast %2 : vector<1x128xf32> to vector<8x128xf32>
    %4 = arith.mulf %1, %3 : vector<8x128xf32>
    %c0_3 = arith.constant 0 : index
    %c0_4 = arith.constant 0 : index
    %5 = vector.load %arg3[%c0_3, %c0_4] : memref<1x128xf32, #tpu.memory_space<vmem>>, vector<1x128xf32>
    %6 = vector.broadcast %5 : vector<1x128xf32> to vector<8x128xf32>
    %7 = arith.addf %4, %6 : vector<8x128xf32>
    %8 = arith.truncf %7 : vector<8x128xf32> to vector<8x128xbf16>
    %c0_5 = arith.constant 0 : index
    %c0_6 = arith.constant 0 : index
    %9 = vector.load %arg4[%c0_5, %c0_6] : memref<8x128xbf16, #tpu.memory_space<vmem>>, vector<8x128xbf16>
    tpu.vector_store %arg4[%c0_5, %c0_6], %8 {strides = array<i32>} : memref<8x128xbf16, #tpu.memory_space<vmem>>, vector<8x128xbf16>,
    return
  }
  func.func @transform_0(%arg0: i32) -> (i32, i32) {
    %c0_i32 = arith.constant 0 : i32
    %c0_i32_0 = arith.constant 0 : i32
    return %arg0, %c0_i32 : i32, i32
  }
  func.func @transform_1(%arg0: i32) -> (i32, i32) {
    %c0_i32 = arith.constant 0 : i32
    %c0_i32_0 = arith.constant 0 : i32
    %c0_i32_1 = arith.constant 0 : i32
    return %c0_i32, %c0_i32_0 : i32, i32
  }
  func.func @transform_2(%arg0: i32) -> (i32, i32) {
    %c0_i32 = arith.constant 0 : i32
    %c0_i32_0 = arith.constant 0 : i32
    %c0_i32_1 = arith.constant 0 : i32
    return %c0_i32, %c0_i32_0 : i32, i32
  }
  func.func @transform_3(%arg0: i32) -> (i32, i32) {
    %c0_i32 = arith.constant 0 : i32
    %c0_i32_0 = arith.constant 0 : i32
    return %arg0, %c0_i32 : i32, i32
  }
}

module attributes {stable_mosaic.version = 11 : i64} {
  func.func @_mm_kernel(%arg0: i32, %arg1: i32, %arg2: i32, %arg3: i32, %arg4: memref<1x16x512xbf16, #tpu.memory_space<vmem>>, %arg5: memref<1x512x128xbf16, #tpu.memory_space<vmem>>, %arg6: memref<1x128xf32, #tpu.memory_space<vmem>>, %arg7: memref<1x16x128xbf16, #tpu.memory_space<vmem>>, %arg8: memref<1x1x8x128xf32, #tpu.memory_space<vmem>>) attributes {dimension_semantics = [#tpu.dimension_semantics<parallel>, #tpu.dimension_semantics<parallel>, #tpu.dimension_semantics<parallel>, #tpu.dimension_semantics<arbitrary>], iteration_bounds = array<i64: 1, 1, 1, 1>, scalar_prefetch = 0 : i64, scratch_operands = 0 : i64, tpu.core_type = #tpu.core_type<tc>, window_params = [{transform_indices = @transform_0, window_bounds = array<i64: 1, 16, 512>}, {transform_indices = @transform_1, window_bounds = array<i64: 1, 512, 128>}, {transform_indices = @transform_2, window_bounds = array<i64: 1, 128>}, {transform_indices = @transform_3, window_bounds = array<i64: 1, 16, 128>}, {transform_indices = @transform_4, window_bounds = array<i64: 1, 1, 8, 128>}]} {
    %c0 = arith.constant 0 : index
    %c0_0 = arith.constant 0 : index
    %c0_1 = arith.constant 0 : index
    %0 = vector.load %arg4[%c0, %c0_0, %c0_1] : memref<1x16x512xbf16, #tpu.memory_space<vmem>>, vector<1x16x512xbf16>
    %1 = vector.shape_cast %0 : vector<1x16x512xbf16> to vector<16x512xbf16>
    %cst = arith.constant 0.000000e+00 : bf16
    %2 = vector.broadcast %cst : bf16 to vector<16x512xbf16>
    %3 = arith.cmpf oge, %1, %2 : vector<16x512xbf16>
    %cst_2 = arith.constant 2.001950e-01 : bf16
    %4 = vector.broadcast %cst_2 : bf16 to vector<16x512xbf16>
    %5 = arith.mulf %4, %1 : vector<16x512xbf16>
    %6 = arith.select %3, %1, %5 : vector<16x512xi1>, vector<16x512xbf16>
    %c0_3 = arith.constant 0 : index
    %c0_4 = arith.constant 0 : index
    %c0_5 = arith.constant 0 : index
    %7 = vector.load %arg5[%c0_3, %c0_4, %c0_5] : memref<1x512x128xbf16, #tpu.memory_space<vmem>>, vector<1x512x128xbf16>
    %8 = vector.shape_cast %7 : vector<1x512x128xbf16> to vector<512x128xbf16>
    %cst_6 = arith.constant dense<0.000000e+00> : vector<16x128xf32>
    %9 = tpu.matmul %6, %8, %cst_6 {dimension_numbers = #tpu.dot_dimension_numbers<[1], [0], [0], [1], [0, 0, 1, 1], [], []>} : vector<16x512xbf16>, vector<512x128xbf16>, vector<16x128xf32> -> vector<16x128xf32>
    %c0_7 = arith.constant 0 : index
    %c0_8 = arith.constant 0 : index
    %10 = vector.load %arg6[%c0_7, %c0_8] : memref<1x128xf32, #tpu.memory_space<vmem>>, vector<1x128xf32>
    %11 = vector.broadcast %10 : vector<1x128xf32> to vector<16x128xf32>
    %12 = arith.addf %9, %11 : vector<16x128xf32>
    %cst_9 = arith.constant dense<0.000000e+00> : vector<128xf32>
    %13 = vector.multi_reduction <add>, %12, %cst_9 [0] : vector<16x128xf32> to vector<128xf32>
    %14 = vector.shape_cast %13 : vector<128xf32> to vector<1x128xf32>
    %c0_10 = arith.constant 0 : index
    %c0_11 = arith.constant 0 : index
    %c0_12 = arith.constant 0 : index
    %c0_13 = arith.constant 0 : index
    %15 = vector.load %arg8[%c0_10, %c0_11, %c0_12, %c0_13] : memref<1x1x8x128xf32, #tpu.memory_space<vmem>>, vector<1x1x1x128xf32>
    %16 = vector.shape_cast %15 : vector<1x1x1x128xf32> to vector<1x128xf32>
    %17 = vector.shape_cast %14 : vector<1x128xf32> to vector<1x1x1x128xf32>
    tpu.vector_store %arg8[%c0_10, %c0_11, %c0_12, %c0_13], %17 {strides = array<i32>} : memref<1x1x8x128xf32, #tpu.memory_space<vmem>>, vector<1x1x1x128xf32>,
    %18 = arith.mulf %12, %12 : vector<16x128xf32>
    %cst_14 = arith.constant dense<0.000000e+00> : vector<128xf32>
    %19 = vector.multi_reduction <add>, %18, %cst_14 [0] : vector<16x128xf32> to vector<128xf32>
    %20 = vector.shape_cast %19 : vector<128xf32> to vector<1x128xf32>
    %c0_15 = arith.constant 0 : index
    %c0_16 = arith.constant 0 : index
    %c1 = arith.constant 1 : index
    %c0_17 = arith.constant 0 : index
    %21 = vector.load %arg8[%c0_15, %c0_16, %c1, %c0_17] : memref<1x1x8x128xf32, #tpu.memory_space<vmem>>, vector<1x1x1x128xf32>
    %22 = vector.shape_cast %21 : vector<1x1x1x128xf32> to vector<1x128xf32>
    %23 = vector.shape_cast %20 : vector<1x128xf32> to vector<1x1x1x128xf32>
    tpu.vector_store %arg8[%c0_15, %c0_16, %c1, %c0_17], %23 {strides = array<i32>} : memref<1x1x8x128xf32, #tpu.memory_space<vmem>>, vector<1x1x1x128xf32>,
    %24 = arith.truncf %12 : vector<16x128xf32> to vector<16x128xbf16>
    %c0_18 = arith.constant 0 : index
    %c0_19 = arith.constant 0 : index
    %c0_20 = arith.constant 0 : index
    %25 = vector.load %arg7[%c0_18, %c0_19, %c0_20] : memref<1x16x128xbf16, #tpu.memory_space<vmem>>, vector<1x16x128xbf16>
    %26 = vector.shape_cast %25 : vector<1x16x128xbf16> to vector<16x128xbf16>
    %27 = vector.shape_cast %24 : vector<16x128xbf16> to vector<1x16x128xbf16>
    tpu.vector_store %arg7[%c0_18, %c0_19, %c0_20], %27 {strides = array<i32>} : memref<1x16x128xbf16, #tpu.memory_space<vmem>>, vector<1x16x128xbf16>,
    return
  }
  func.func @transform_0(%arg0: i32, %arg1: i32, %arg2: i32, %arg3: i32) -> (i32, i32, i32) {
    %c0_i32 = arith.constant 0 : i32
    return %arg0, %arg1, %arg3 : i32, i32, i32
  }
  func.func @transform_1(%arg0: i32, %arg1: i32, %arg2: i32, %arg3: i32) -> (i32, i32, i32) {
    %c0_i32 = arith.constant 0 : i32
    return %arg0, %arg3, %arg2 : i32, i32, i32
  }
  func.func @transform_2(%arg0: i32, %arg1: i32, %arg2: i32, %arg3: i32) -> (i32, i32) {
    %c0_i32 = arith.constant 0 : i32
    %c0_i32_0 = arith.constant 0 : i32
    return %c0_i32, %arg2 : i32, i32
  }
  func.func @transform_3(%arg0: i32, %arg1: i32, %arg2: i32, %arg3: i32) -> (i32, i32, i32) {
    %c0_i32 = arith.constant 0 : i32
    return %arg0, %arg1, %arg2 : i32, i32, i32
  }
  func.func @transform_4(%arg0: i32, %arg1: i32, %arg2: i32, %arg3: i32) -> (i32, i32, i32, i32) {
    %c0_i32 = arith.constant 0 : i32
    %c0_i32_0 = arith.constant 0 : i32
    return %arg0, %arg1, %c0_i32, %arg2 : i32, i32, i32, i32
  }
}

module attributes {stable_mosaic.version = 11 : i64} {
  func.func @_mm_kernel(%arg0: i32, %arg1: i32, %arg2: i32, %arg3: i32, %arg4: memref<1x16x1024xbf16, #tpu.memory_space<vmem>>, %arg5: memref<1x1024x128xbf16, #tpu.memory_space<vmem>>, %arg6: memref<1x128xf32, #tpu.memory_space<vmem>>, %arg7: memref<1x16x128xbf16, #tpu.memory_space<vmem>>) attributes {dimension_semantics = [#tpu.dimension_semantics<parallel>, #tpu.dimension_semantics<parallel>, #tpu.dimension_semantics<parallel>, #tpu.dimension_semantics<arbitrary>], iteration_bounds = array<i64: 1, 1, 1, 1>, scalar_prefetch = 0 : i64, scratch_operands = 0 : i64, tpu.core_type = #tpu.core_type<tc>, window_params = [{transform_indices = @transform_0, window_bounds = array<i64: 1, 16, 1024>}, {transform_indices = @transform_1, window_bounds = array<i64: 1, 1024, 128>}, {transform_indices = @transform_2, window_bounds = array<i64: 1, 128>}, {transform_indices = @transform_3, window_bounds = array<i64: 1, 16, 128>}]} {
    %c0 = arith.constant 0 : index
    %c0_0 = arith.constant 0 : index
    %c0_1 = arith.constant 0 : index
    %0 = vector.load %arg4[%c0, %c0_0, %c0_1] : memref<1x16x1024xbf16, #tpu.memory_space<vmem>>, vector<1x16x1024xbf16>
    %1 = vector.shape_cast %0 : vector<1x16x1024xbf16> to vector<16x1024xbf16>
    %cst = arith.constant 0.000000e+00 : bf16
    %2 = vector.broadcast %cst : bf16 to vector<16x1024xbf16>
    %3 = arith.cmpf oge, %1, %2 : vector<16x1024xbf16>
    %cst_2 = arith.constant 2.001950e-01 : bf16
    %4 = vector.broadcast %cst_2 : bf16 to vector<16x1024xbf16>
    %5 = arith.mulf %4, %1 : vector<16x1024xbf16>
    %6 = arith.select %3, %1, %5 : vector<16x1024xi1>, vector<16x1024xbf16>
    %c0_3 = arith.constant 0 : index
    %c0_4 = arith.constant 0 : index
    %c0_5 = arith.constant 0 : index
    %7 = vector.load %arg5[%c0_3, %c0_4, %c0_5] : memref<1x1024x128xbf16, #tpu.memory_space<vmem>>, vector<1x1024x128xbf16>
    %8 = vector.shape_cast %7 : vector<1x1024x128xbf16> to vector<1024x128xbf16>
    %cst_6 = arith.constant dense<0.000000e+00> : vector<16x128xf32>
    %9 = tpu.matmul %6, %8, %cst_6 {dimension_numbers = #tpu.dot_dimension_numbers<[1], [0], [0], [1], [0, 0, 1, 1], [], []>} : vector<16x1024xbf16>, vector<1024x128xbf16>, vector<16x128xf32> -> vector<16x128xf32>
    %c0_7 = arith.constant 0 : index
    %c0_8 = arith.constant 0 : index
    %10 = vector.load %arg6[%c0_7, %c0_8] : memref<1x128xf32, #tpu.memory_space<vmem>>, vector<1x128xf32>
    %11 = vector.broadcast %10 : vector<1x128xf32> to vector<16x128xf32>
    %12 = arith.addf %9, %11 : vector<16x128xf32>
    %13 = arith.truncf %12 : vector<16x128xf32> to vector<16x128xbf16>
    %c0_9 = arith.constant 0 : index
    %c0_10 = arith.constant 0 : index
    %c0_11 = arith.constant 0 : index
    %14 = vector.load %arg7[%c0_9, %c0_10, %c0_11] : memref<1x16x128xbf16, #tpu.memory_space<vmem>>, vector<1x16x128xbf16>
    %15 = vector.shape_cast %14 : vector<1x16x128xbf16> to vector<16x128xbf16>
    %16 = vector.shape_cast %13 : vector<16x128xbf16> to vector<1x16x128xbf16>
    tpu.vector_store %arg7[%c0_9, %c0_10, %c0_11], %16 {strides = array<i32>} : memref<1x16x128xbf16, #tpu.memory_space<vmem>>, vector<1x16x128xbf16>,
    return
  }
  func.func @transform_0(%arg0: i32, %arg1: i32, %arg2: i32, %arg3: i32) -> (i32, i32, i32) {
    %c0_i32 = arith.constant 0 : i32
    return %arg0, %arg1, %arg3 : i32, i32, i32
  }
  func.func @transform_1(%arg0: i32, %arg1: i32, %arg2: i32, %arg3: i32) -> (i32, i32, i32) {
    %c0_i32 = arith.constant 0 : i32
    return %arg0, %arg3, %arg2 : i32, i32, i32
  }
  func.func @transform_2(%arg0: i32, %arg1: i32, %arg2: i32, %arg3: i32) -> (i32, i32) {
    %c0_i32 = arith.constant 0 : i32
    %c0_i32_0 = arith.constant 0 : i32
    return %c0_i32, %arg2 : i32, i32
  }
  func.func @transform_3(%arg0: i32, %arg1: i32, %arg2: i32, %arg3: i32) -> (i32, i32, i32) {
    %c0_i32 = arith.constant 0 : i32
    return %arg0, %arg1, %arg2 : i32, i32, i32
  }
}

module attributes {stable_mosaic.version = 11 : i64} {
  func.func @_mm_kernel(%arg0: i32, %arg1: i32, %arg2: i32, %arg3: i32, %arg4: memref<1x16x256xbf16, #tpu.memory_space<vmem>>, %arg5: memref<1x256x128xbf16, #tpu.memory_space<vmem>>, %arg6: memref<1x128xf32, #tpu.memory_space<vmem>>, %arg7: memref<1x16x128xbf16, #tpu.memory_space<vmem>>, %arg8: memref<1x1x8x128xf32, #tpu.memory_space<vmem>>) attributes {dimension_semantics = [#tpu.dimension_semantics<parallel>, #tpu.dimension_semantics<parallel>, #tpu.dimension_semantics<parallel>, #tpu.dimension_semantics<arbitrary>], iteration_bounds = array<i64: 4, 1, 1, 1>, scalar_prefetch = 0 : i64, scratch_operands = 0 : i64, tpu.core_type = #tpu.core_type<tc>, window_params = [{transform_indices = @transform_0, window_bounds = array<i64: 1, 16, 256>}, {transform_indices = @transform_1, window_bounds = array<i64: 1, 256, 128>}, {transform_indices = @transform_2, window_bounds = array<i64: 1, 128>}, {transform_indices = @transform_3, window_bounds = array<i64: 1, 16, 128>}, {transform_indices = @transform_4, window_bounds = array<i64: 1, 1, 8, 128>}]} {
    %c0 = arith.constant 0 : index
    %c0_0 = arith.constant 0 : index
    %c0_1 = arith.constant 0 : index
    %0 = vector.load %arg4[%c0, %c0_0, %c0_1] : memref<1x16x256xbf16, #tpu.memory_space<vmem>>, vector<1x16x256xbf16>
    %1 = vector.shape_cast %0 : vector<1x16x256xbf16> to vector<16x256xbf16>
    %cst = arith.constant 0.000000e+00 : bf16
    %2 = vector.broadcast %cst : bf16 to vector<16x256xbf16>
    %3 = arith.maximumf %1, %2 : vector<16x256xbf16>
    %c0_2 = arith.constant 0 : index
    %c0_3 = arith.constant 0 : index
    %c0_4 = arith.constant 0 : index
    %4 = vector.load %arg5[%c0_2, %c0_3, %c0_4] : memref<1x256x128xbf16, #tpu.memory_space<vmem>>, vector<1x256x128xbf16>
    %5 = vector.shape_cast %4 : vector<1x256x128xbf16> to vector<256x128xbf16>
    %cst_5 = arith.constant dense<0.000000e+00> : vector<16x128xf32>
    %6 = tpu.matmul %3, %5, %cst_5 {dimension_numbers = #tpu.dot_dimension_numbers<[1], [0], [0], [1], [0, 0, 1, 1], [], []>} : vector<16x256xbf16>, vector<256x128xbf16>, vector<16x128xf32> -> vector<16x128xf32>
    %c0_6 = arith.constant 0 : index
    %c0_7 = arith.constant 0 : index
    %7 = vector.load %arg6[%c0_6, %c0_7] : memref<1x128xf32, #tpu.memory_space<vmem>>, vector<1x128xf32>
    %8 = vector.broadcast %7 : vector<1x128xf32> to vector<16x128xf32>
    %9 = arith.addf %6, %8 : vector<16x128xf32>
    %cst_8 = arith.constant dense<0.000000e+00> : vector<128xf32>
    %10 = vector.multi_reduction <add>, %9, %cst_8 [0] : vector<16x128xf32> to vector<128xf32>
    %11 = vector.shape_cast %10 : vector<128xf32> to vector<1x128xf32>
    %c0_9 = arith.constant 0 : index
    %c0_10 = arith.constant 0 : index
    %c0_11 = arith.constant 0 : index
    %c0_12 = arith.constant 0 : index
    %12 = vector.load %arg8[%c0_9, %c0_10, %c0_11, %c0_12] : memref<1x1x8x128xf32, #tpu.memory_space<vmem>>, vector<1x1x1x128xf32>
    %13 = vector.shape_cast %12 : vector<1x1x1x128xf32> to vector<1x128xf32>
    %14 = vector.shape_cast %11 : vector<1x128xf32> to vector<1x1x1x128xf32>
    tpu.vector_store %arg8[%c0_9, %c0_10, %c0_11, %c0_12], %14 {strides = array<i32>} : memref<1x1x8x128xf32, #tpu.memory_space<vmem>>, vector<1x1x1x128xf32>,
    %15 = arith.mulf %9, %9 : vector<16x128xf32>
    %cst_13 = arith.constant dense<0.000000e+00> : vector<128xf32>
    %16 = vector.multi_reduction <add>, %15, %cst_13 [0] : vector<16x128xf32> to vector<128xf32>
    %17 = vector.shape_cast %16 : vector<128xf32> to vector<1x128xf32>
    %c0_14 = arith.constant 0 : index
    %c0_15 = arith.constant 0 : index
    %c1 = arith.constant 1 : index
    %c0_16 = arith.constant 0 : index
    %18 = vector.load %arg8[%c0_14, %c0_15, %c1, %c0_16] : memref<1x1x8x128xf32, #tpu.memory_space<vmem>>, vector<1x1x1x128xf32>
    %19 = vector.shape_cast %18 : vector<1x1x1x128xf32> to vector<1x128xf32>
    %20 = vector.shape_cast %17 : vector<1x128xf32> to vector<1x1x1x128xf32>
    tpu.vector_store %arg8[%c0_14, %c0_15, %c1, %c0_16], %20 {strides = array<i32>} : memref<1x1x8x128xf32, #tpu.memory_space<vmem>>, vector<1x1x1x128xf32>,
    %21 = arith.truncf %9 : vector<16x128xf32> to vector<16x128xbf16>
    %c0_17 = arith.constant 0 : index
    %c0_18 = arith.constant 0 : index
    %c0_19 = arith.constant 0 : index
    %22 = vector.load %arg7[%c0_17, %c0_18, %c0_19] : memref<1x16x128xbf16, #tpu.memory_space<vmem>>, vector<1x16x128xbf16>
    %23 = vector.shape_cast %22 : vector<1x16x128xbf16> to vector<16x128xbf16>
    %24 = vector.shape_cast %21 : vector<16x128xbf16> to vector<1x16x128xbf16>
    tpu.vector_store %arg7[%c0_17, %c0_18, %c0_19], %24 {strides = array<i32>} : memref<1x16x128xbf16, #tpu.memory_space<vmem>>, vector<1x16x128xbf16>,
    return
  }
  func.func @transform_0(%arg0: i32, %arg1: i32, %arg2: i32, %arg3: i32) -> (i32, i32, i32) {
    %c0_i32 = arith.constant 0 : i32
    return %arg0, %arg1, %arg3 : i32, i32, i32
  }
  func.func @transform_1(%arg0: i32, %arg1: i32, %arg2: i32, %arg3: i32) -> (i32, i32, i32) {
    %c0_i32 = arith.constant 0 : i32
    return %arg0, %arg3, %arg2 : i32, i32, i32
  }
  func.func @transform_2(%arg0: i32, %arg1: i32, %arg2: i32, %arg3: i32) -> (i32, i32) {
    %c0_i32 = arith.constant 0 : i32
    %c0_i32_0 = arith.constant 0 : i32
    return %c0_i32, %arg2 : i32, i32
  }
  func.func @transform_3(%arg0: i32, %arg1: i32, %arg2: i32, %arg3: i32) -> (i32, i32, i32) {
    %c0_i32 = arith.constant 0 : i32
    return %arg0, %arg1, %arg2 : i32, i32, i32
  }
  func.func @transform_4(%arg0: i32, %arg1: i32, %arg2: i32, %arg3: i32) -> (i32, i32, i32, i32) {
    %c0_i32 = arith.constant 0 : i32
    %c0_i32_0 = arith.constant 0 : i32
    return %arg0, %arg1, %c0_i32, %arg2 : i32, i32, i32, i32
  }
}

module attributes {stable_mosaic.version = 11 : i64} {
  func.func @_mm_kernel(%arg0: i32, %arg1: i32, %arg2: i32, %arg3: i32, %arg4: memref<1x16x512xbf16, #tpu.memory_space<vmem>>, %arg5: memref<1x512x128xbf16, #tpu.memory_space<vmem>>, %arg6: memref<1x128xf32, #tpu.memory_space<vmem>>, %arg7: memref<1x16x128xbf16, #tpu.memory_space<vmem>>, %arg8: memref<1x1x8x128xf32, #tpu.memory_space<vmem>>) attributes {dimension_semantics = [#tpu.dimension_semantics<parallel>, #tpu.dimension_semantics<parallel>, #tpu.dimension_semantics<parallel>, #tpu.dimension_semantics<arbitrary>], iteration_bounds = array<i64: 4, 1, 1, 1>, scalar_prefetch = 0 : i64, scratch_operands = 0 : i64, tpu.core_type = #tpu.core_type<tc>, window_params = [{transform_indices = @transform_0, window_bounds = array<i64: 1, 16, 512>}, {transform_indices = @transform_1, window_bounds = array<i64: 1, 512, 128>}, {transform_indices = @transform_2, window_bounds = array<i64: 1, 128>}, {transform_indices = @transform_3, window_bounds = array<i64: 1, 16, 128>}, {transform_indices = @transform_4, window_bounds = array<i64: 1, 1, 8, 128>}]} {
    %c0 = arith.constant 0 : index
    %c0_0 = arith.constant 0 : index
    %c0_1 = arith.constant 0 : index
    %0 = vector.load %arg4[%c0, %c0_0, %c0_1] : memref<1x16x512xbf16, #tpu.memory_space<vmem>>, vector<1x16x512xbf16>
    %1 = vector.shape_cast %0 : vector<1x16x512xbf16> to vector<16x512xbf16>
    %cst = arith.constant 0.000000e+00 : bf16
    %2 = vector.broadcast %cst : bf16 to vector<16x512xbf16>
    %3 = arith.maximumf %1, %2 : vector<16x512xbf16>
    %c0_2 = arith.constant 0 : index
    %c0_3 = arith.constant 0 : index
    %c0_4 = arith.constant 0 : index
    %4 = vector.load %arg5[%c0_2, %c0_3, %c0_4] : memref<1x512x128xbf16, #tpu.memory_space<vmem>>, vector<1x512x128xbf16>
    %5 = vector.shape_cast %4 : vector<1x512x128xbf16> to vector<512x128xbf16>
    %cst_5 = arith.constant dense<0.000000e+00> : vector<16x128xf32>
    %6 = tpu.matmul %3, %5, %cst_5 {dimension_numbers = #tpu.dot_dimension_numbers<[1], [0], [0], [1], [0, 0, 1, 1], [], []>} : vector<16x512xbf16>, vector<512x128xbf16>, vector<16x128xf32> -> vector<16x128xf32>
    %c0_6 = arith.constant 0 : index
    %c0_7 = arith.constant 0 : index
    %7 = vector.load %arg6[%c0_6, %c0_7] : memref<1x128xf32, #tpu.memory_space<vmem>>, vector<1x128xf32>
    %8 = vector.broadcast %7 : vector<1x128xf32> to vector<16x128xf32>
    %9 = arith.addf %6, %8 : vector<16x128xf32>
    %cst_8 = arith.constant dense<0.000000e+00> : vector<128xf32>
    %10 = vector.multi_reduction <add>, %9, %cst_8 [0] : vector<16x128xf32> to vector<128xf32>
    %11 = vector.shape_cast %10 : vector<128xf32> to vector<1x128xf32>
    %c0_9 = arith.constant 0 : index
    %c0_10 = arith.constant 0 : index
    %c0_11 = arith.constant 0 : index
    %c0_12 = arith.constant 0 : index
    %12 = vector.load %arg8[%c0_9, %c0_10, %c0_11, %c0_12] : memref<1x1x8x128xf32, #tpu.memory_space<vmem>>, vector<1x1x1x128xf32>
    %13 = vector.shape_cast %12 : vector<1x1x1x128xf32> to vector<1x128xf32>
    %14 = vector.shape_cast %11 : vector<1x128xf32> to vector<1x1x1x128xf32>
    tpu.vector_store %arg8[%c0_9, %c0_10, %c0_11, %c0_12], %14 {strides = array<i32>} : memref<1x1x8x128xf32, #tpu.memory_space<vmem>>, vector<1x1x1x128xf32>,
    %15 = arith.mulf %9, %9 : vector<16x128xf32>
    %cst_13 = arith.constant dense<0.000000e+00> : vector<128xf32>
    %16 = vector.multi_reduction <add>, %15, %cst_13 [0] : vector<16x128xf32> to vector<128xf32>
    %17 = vector.shape_cast %16 : vector<128xf32> to vector<1x128xf32>
    %c0_14 = arith.constant 0 : index
    %c0_15 = arith.constant 0 : index
    %c1 = arith.constant 1 : index
    %c0_16 = arith.constant 0 : index
    %18 = vector.load %arg8[%c0_14, %c0_15, %c1, %c0_16] : memref<1x1x8x128xf32, #tpu.memory_space<vmem>>, vector<1x1x1x128xf32>
    %19 = vector.shape_cast %18 : vector<1x1x1x128xf32> to vector<1x128xf32>
    %20 = vector.shape_cast %17 : vector<1x128xf32> to vector<1x1x1x128xf32>
    tpu.vector_store %arg8[%c0_14, %c0_15, %c1, %c0_16], %20 {strides = array<i32>} : memref<1x1x8x128xf32, #tpu.memory_space<vmem>>, vector<1x1x1x128xf32>,
    %21 = arith.truncf %9 : vector<16x128xf32> to vector<16x128xbf16>
    %c0_17 = arith.constant 0 : index
    %c0_18 = arith.constant 0 : index
    %c0_19 = arith.constant 0 : index
    %22 = vector.load %arg7[%c0_17, %c0_18, %c0_19] : memref<1x16x128xbf16, #tpu.memory_space<vmem>>, vector<1x16x128xbf16>
    %23 = vector.shape_cast %22 : vector<1x16x128xbf16> to vector<16x128xbf16>
    %24 = vector.shape_cast %21 : vector<16x128xbf16> to vector<1x16x128xbf16>
    tpu.vector_store %arg7[%c0_17, %c0_18, %c0_19], %24 {strides = array<i32>} : memref<1x16x128xbf16, #tpu.memory_space<vmem>>, vector<1x16x128xbf16>,
    return
  }
  func.func @transform_0(%arg0: i32, %arg1: i32, %arg2: i32, %arg3: i32) -> (i32, i32, i32) {
    %c0_i32 = arith.constant 0 : i32
    return %arg0, %arg1, %arg3 : i32, i32, i32
  }
  func.func @transform_1(%arg0: i32, %arg1: i32, %arg2: i32, %arg3: i32) -> (i32, i32, i32) {
    %c0_i32 = arith.constant 0 : i32
    return %arg0, %arg3, %arg2 : i32, i32, i32
  }
  func.func @transform_2(%arg0: i32, %arg1: i32, %arg2: i32, %arg3: i32) -> (i32, i32) {
    %c0_i32 = arith.constant 0 : i32
    %c0_i32_0 = arith.constant 0 : i32
    return %c0_i32, %arg2 : i32, i32
  }
  func.func @transform_3(%arg0: i32, %arg1: i32, %arg2: i32, %arg3: i32) -> (i32, i32, i32) {
    %c0_i32 = arith.constant 0 : i32
    return %arg0, %arg1, %arg2 : i32, i32, i32
  }
  func.func @transform_4(%arg0: i32, %arg1: i32, %arg2: i32, %arg3: i32) -> (i32, i32, i32, i32) {
    %c0_i32 = arith.constant 0 : i32
    %c0_i32_0 = arith.constant 0 : i32
    return %arg0, %arg1, %c0_i32, %arg2 : i32, i32, i32, i32
  }
}

module attributes {stable_mosaic.version = 11 : i64} {
  func.func @_mm_kernel(%arg0: i32, %arg1: i32, %arg2: i32, %arg3: i32, %arg4: memref<1x32x256xbf16, #tpu.memory_space<vmem>>, %arg5: memref<1x256x128xbf16, #tpu.memory_space<vmem>>, %arg6: memref<1x128xf32, #tpu.memory_space<vmem>>, %arg7: memref<1x32x128xbf16, #tpu.memory_space<vmem>>, %arg8: memref<1x1x8x128xf32, #tpu.memory_space<vmem>>) attributes {dimension_semantics = [#tpu.dimension_semantics<parallel>, #tpu.dimension_semantics<parallel>, #tpu.dimension_semantics<parallel>, #tpu.dimension_semantics<arbitrary>], iteration_bounds = array<i64: 4, 1, 1, 1>, scalar_prefetch = 0 : i64, scratch_operands = 0 : i64, tpu.core_type = #tpu.core_type<tc>, window_params = [{transform_indices = @transform_0, window_bounds = array<i64: 1, 32, 256>}, {transform_indices = @transform_1, window_bounds = array<i64: 1, 256, 128>}, {transform_indices = @transform_2, window_bounds = array<i64: 1, 128>}, {transform_indices = @transform_3, window_bounds = array<i64: 1, 32, 128>}, {transform_indices = @transform_4, window_bounds = array<i64: 1, 1, 8, 128>}]} {
    %c0 = arith.constant 0 : index
    %c0_0 = arith.constant 0 : index
    %c0_1 = arith.constant 0 : index
    %0 = vector.load %arg4[%c0, %c0_0, %c0_1] : memref<1x32x256xbf16, #tpu.memory_space<vmem>>, vector<1x32x256xbf16>
    %1 = vector.shape_cast %0 : vector<1x32x256xbf16> to vector<32x256xbf16>
    %cst = arith.constant 0.000000e+00 : bf16
    %2 = vector.broadcast %cst : bf16 to vector<32x256xbf16>
    %3 = arith.maximumf %1, %2 : vector<32x256xbf16>
    %c0_2 = arith.constant 0 : index
    %c0_3 = arith.constant 0 : index
    %c0_4 = arith.constant 0 : index
    %4 = vector.load %arg5[%c0_2, %c0_3, %c0_4] : memref<1x256x128xbf16, #tpu.memory_space<vmem>>, vector<1x256x128xbf16>
    %5 = vector.shape_cast %4 : vector<1x256x128xbf16> to vector<256x128xbf16>
    %cst_5 = arith.constant dense<0.000000e+00> : vector<32x128xf32>
    %6 = tpu.matmul %3, %5, %cst_5 {dimension_numbers = #tpu.dot_dimension_numbers<[1], [0], [0], [1], [0, 0, 1, 1], [], []>} : vector<32x256xbf16>, vector<256x128xbf16>, vector<32x128xf32> -> vector<32x128xf32>
    %c0_6 = arith.constant 0 : index
    %c0_7 = arith.constant 0 : index
    %7 = vector.load %arg6[%c0_6, %c0_7] : memref<1x128xf32, #tpu.memory_space<vmem>>, vector<1x128xf32>
    %8 = vector.broadcast %7 : vector<1x128xf32> to vector<32x128xf32>
    %9 = arith.addf %6, %8 : vector<32x128xf32>
    %cst_8 = arith.constant dense<0.000000e+00> : vector<128xf32>
    %10 = vector.multi_reduction <add>, %9, %cst_8 [0] : vector<32x128xf32> to vector<128xf32>
    %11 = vector.shape_cast %10 : vector<128xf32> to vector<1x128xf32>
    %c0_9 = arith.constant 0 : index
    %c0_10 = arith.constant 0 : index
    %c0_11 = arith.constant 0 : index
    %c0_12 = arith.constant 0 : index
    %12 = vector.load %arg8[%c0_9, %c0_10, %c0_11, %c0_12] : memref<1x1x8x128xf32, #tpu.memory_space<vmem>>, vector<1x1x1x128xf32>
    %13 = vector.shape_cast %12 : vector<1x1x1x128xf32> to vector<1x128xf32>
    %14 = vector.shape_cast %11 : vector<1x128xf32> to vector<1x1x1x128xf32>
    tpu.vector_store %arg8[%c0_9, %c0_10, %c0_11, %c0_12], %14 {strides = array<i32>} : memref<1x1x8x128xf32, #tpu.memory_space<vmem>>, vector<1x1x1x128xf32>,
    %15 = arith.mulf %9, %9 : vector<32x128xf32>
    %cst_13 = arith.constant dense<0.000000e+00> : vector<128xf32>
    %16 = vector.multi_reduction <add>, %15, %cst_13 [0] : vector<32x128xf32> to vector<128xf32>
    %17 = vector.shape_cast %16 : vector<128xf32> to vector<1x128xf32>
    %c0_14 = arith.constant 0 : index
    %c0_15 = arith.constant 0 : index
    %c1 = arith.constant 1 : index
    %c0_16 = arith.constant 0 : index
    %18 = vector.load %arg8[%c0_14, %c0_15, %c1, %c0_16] : memref<1x1x8x128xf32, #tpu.memory_space<vmem>>, vector<1x1x1x128xf32>
    %19 = vector.shape_cast %18 : vector<1x1x1x128xf32> to vector<1x128xf32>
    %20 = vector.shape_cast %17 : vector<1x128xf32> to vector<1x1x1x128xf32>
    tpu.vector_store %arg8[%c0_14, %c0_15, %c1, %c0_16], %20 {strides = array<i32>} : memref<1x1x8x128xf32, #tpu.memory_space<vmem>>, vector<1x1x1x128xf32>,
    %21 = arith.truncf %9 : vector<32x128xf32> to vector<32x128xbf16>
    %c0_17 = arith.constant 0 : index
    %c0_18 = arith.constant 0 : index
    %c0_19 = arith.constant 0 : index
    %22 = vector.load %arg7[%c0_17, %c0_18, %c0_19] : memref<1x32x128xbf16, #tpu.memory_space<vmem>>, vector<1x32x128xbf16>
    %23 = vector.shape_cast %22 : vector<1x32x128xbf16> to vector<32x128xbf16>
    %24 = vector.shape_cast %21 : vector<32x128xbf16> to vector<1x32x128xbf16>
    tpu.vector_store %arg7[%c0_17, %c0_18, %c0_19], %24 {strides = array<i32>} : memref<1x32x128xbf16, #tpu.memory_space<vmem>>, vector<1x32x128xbf16>,
    return
  }
  func.func @transform_0(%arg0: i32, %arg1: i32, %arg2: i32, %arg3: i32) -> (i32, i32, i32) {
    %c0_i32 = arith.constant 0 : i32
    return %arg0, %arg1, %arg3 : i32, i32, i32
  }
  func.func @transform_1(%arg0: i32, %arg1: i32, %arg2: i32, %arg3: i32) -> (i32, i32, i32) {
    %c0_i32 = arith.constant 0 : i32
    return %arg0, %arg3, %arg2 : i32, i32, i32
  }
  func.func @transform_2(%arg0: i32, %arg1: i32, %arg2: i32, %arg3: i32) -> (i32, i32) {
    %c0_i32 = arith.constant 0 : i32
    %c0_i32_0 = arith.constant 0 : i32
    return %c0_i32, %arg2 : i32, i32
  }
  func.func @transform_3(%arg0: i32, %arg1: i32, %arg2: i32, %arg3: i32) -> (i32, i32, i32) {
    %c0_i32 = arith.constant 0 : i32
    return %arg0, %arg1, %arg2 : i32, i32, i32
  }
  func.func @transform_4(%arg0: i32, %arg1: i32, %arg2: i32, %arg3: i32) -> (i32, i32, i32, i32) {
    %c0_i32 = arith.constant 0 : i32
    %c0_i32_0 = arith.constant 0 : i32
    return %arg0, %arg1, %c0_i32, %arg2 : i32, i32, i32, i32
  }
}

module attributes {stable_mosaic.version = 11 : i64} {
  func.func @_mm_kernel(%arg0: i32, %arg1: i32, %arg2: i32, %arg3: i32, %arg4: memref<1x128x128xbf16, #tpu.memory_space<vmem>>, %arg5: memref<1x128x128xbf16, #tpu.memory_space<vmem>>, %arg6: memref<1x128xf32, #tpu.memory_space<vmem>>, %arg7: memref<1x128x128xbf16, #tpu.memory_space<vmem>>, %arg8: memref<1x1x8x128xf32, #tpu.memory_space<vmem>>) attributes {dimension_semantics = [#tpu.dimension_semantics<parallel>, #tpu.dimension_semantics<parallel>, #tpu.dimension_semantics<parallel>, #tpu.dimension_semantics<arbitrary>], iteration_bounds = array<i64: 4, 1, 1, 1>, scalar_prefetch = 0 : i64, scratch_operands = 0 : i64, tpu.core_type = #tpu.core_type<tc>, window_params = [{transform_indices = @transform_0, window_bounds = array<i64: 1, 128, 128>}, {transform_indices = @transform_1, window_bounds = array<i64: 1, 128, 128>}, {transform_indices = @transform_2, window_bounds = array<i64: 1, 128>}, {transform_indices = @transform_3, window_bounds = array<i64: 1, 128, 128>}, {transform_indices = @transform_4, window_bounds = array<i64: 1, 1, 8, 128>}]} {
    %c0 = arith.constant 0 : index
    %c0_0 = arith.constant 0 : index
    %c0_1 = arith.constant 0 : index
    %0 = vector.load %arg4[%c0, %c0_0, %c0_1] : memref<1x128x128xbf16, #tpu.memory_space<vmem>>, vector<1x128x128xbf16>
    %1 = vector.shape_cast %0 : vector<1x128x128xbf16> to vector<128x128xbf16>
    %cst = arith.constant 0.000000e+00 : bf16
    %2 = vector.broadcast %cst : bf16 to vector<128x128xbf16>
    %3 = arith.maximumf %1, %2 : vector<128x128xbf16>
    %c0_2 = arith.constant 0 : index
    %c0_3 = arith.constant 0 : index
    %c0_4 = arith.constant 0 : index
    %4 = vector.load %arg5[%c0_2, %c0_3, %c0_4] : memref<1x128x128xbf16, #tpu.memory_space<vmem>>, vector<1x128x128xbf16>
    %5 = vector.shape_cast %4 : vector<1x128x128xbf16> to vector<128x128xbf16>
    %cst_5 = arith.constant dense<0.000000e+00> : vector<128x128xf32>
    %6 = tpu.matmul %3, %5, %cst_5 {dimension_numbers = #tpu.dot_dimension_numbers<[1], [0], [0], [1], [0, 0, 1, 1], [], []>} : vector<128x128xbf16>, vector<128x128xbf16>, vector<128x128xf32> -> vector<128x128xf32>
    %c0_6 = arith.constant 0 : index
    %c0_7 = arith.constant 0 : index
    %7 = vector.load %arg6[%c0_6, %c0_7] : memref<1x128xf32, #tpu.memory_space<vmem>>, vector<1x128xf32>
    %8 = vector.broadcast %7 : vector<1x128xf32> to vector<128x128xf32>
    %9 = arith.addf %6, %8 : vector<128x128xf32>
    %cst_8 = arith.constant dense<0.000000e+00> : vector<128xf32>
    %10 = vector.multi_reduction <add>, %9, %cst_8 [0] : vector<128x128xf32> to vector<128xf32>
    %11 = vector.shape_cast %10 : vector<128xf32> to vector<1x128xf32>
    %c0_9 = arith.constant 0 : index
    %c0_10 = arith.constant 0 : index
    %c0_11 = arith.constant 0 : index
    %c0_12 = arith.constant 0 : index
    %12 = vector.load %arg8[%c0_9, %c0_10, %c0_11, %c0_12] : memref<1x1x8x128xf32, #tpu.memory_space<vmem>>, vector<1x1x1x128xf32>
    %13 = vector.shape_cast %12 : vector<1x1x1x128xf32> to vector<1x128xf32>
    %14 = vector.shape_cast %11 : vector<1x128xf32> to vector<1x1x1x128xf32>
    tpu.vector_store %arg8[%c0_9, %c0_10, %c0_11, %c0_12], %14 {strides = array<i32>} : memref<1x1x8x128xf32, #tpu.memory_space<vmem>>, vector<1x1x1x128xf32>,
    %15 = arith.mulf %9, %9 : vector<128x128xf32>
    %cst_13 = arith.constant dense<0.000000e+00> : vector<128xf32>
    %16 = vector.multi_reduction <add>, %15, %cst_13 [0] : vector<128x128xf32> to vector<128xf32>
    %17 = vector.shape_cast %16 : vector<128xf32> to vector<1x128xf32>
    %c0_14 = arith.constant 0 : index
    %c0_15 = arith.constant 0 : index
    %c1 = arith.constant 1 : index
    %c0_16 = arith.constant 0 : index
    %18 = vector.load %arg8[%c0_14, %c0_15, %c1, %c0_16] : memref<1x1x8x128xf32, #tpu.memory_space<vmem>>, vector<1x1x1x128xf32>
    %19 = vector.shape_cast %18 : vector<1x1x1x128xf32> to vector<1x128xf32>
    %20 = vector.shape_cast %17 : vector<1x128xf32> to vector<1x1x1x128xf32>
    tpu.vector_store %arg8[%c0_14, %c0_15, %c1, %c0_16], %20 {strides = array<i32>} : memref<1x1x8x128xf32, #tpu.memory_space<vmem>>, vector<1x1x1x128xf32>,
    %21 = arith.truncf %9 : vector<128x128xf32> to vector<128x128xbf16>
    %c0_17 = arith.constant 0 : index
    %c0_18 = arith.constant 0 : index
    %c0_19 = arith.constant 0 : index
    %22 = vector.load %arg7[%c0_17, %c0_18, %c0_19] : memref<1x128x128xbf16, #tpu.memory_space<vmem>>, vector<1x128x128xbf16>
    %23 = vector.shape_cast %22 : vector<1x128x128xbf16> to vector<128x128xbf16>
    %24 = vector.shape_cast %21 : vector<128x128xbf16> to vector<1x128x128xbf16>
    tpu.vector_store %arg7[%c0_17, %c0_18, %c0_19], %24 {strides = array<i32>} : memref<1x128x128xbf16, #tpu.memory_space<vmem>>, vector<1x128x128xbf16>,
    return
  }
  func.func @transform_0(%arg0: i32, %arg1: i32, %arg2: i32, %arg3: i32) -> (i32, i32, i32) {
    %c0_i32 = arith.constant 0 : i32
    return %arg0, %arg1, %arg3 : i32, i32, i32
  }
  func.func @transform_1(%arg0: i32, %arg1: i32, %arg2: i32, %arg3: i32) -> (i32, i32, i32) {
    %c0_i32 = arith.constant 0 : i32
    return %arg0, %arg3, %arg2 : i32, i32, i32
  }
  func.func @transform_2(%arg0: i32, %arg1: i32, %arg2: i32, %arg3: i32) -> (i32, i32) {
    %c0_i32 = arith.constant 0 : i32
    %c0_i32_0 = arith.constant 0 : i32
    return %c0_i32, %arg2 : i32, i32
  }
  func.func @transform_3(%arg0: i32, %arg1: i32, %arg2: i32, %arg3: i32) -> (i32, i32, i32) {
    %c0_i32 = arith.constant 0 : i32
    return %arg0, %arg1, %arg2 : i32, i32, i32
  }
  func.func @transform_4(%arg0: i32, %arg1: i32, %arg2: i32, %arg3: i32) -> (i32, i32, i32, i32) {
    %c0_i32 = arith.constant 0 : i32
    %c0_i32_0 = arith.constant 0 : i32
    return %arg0, %arg1, %c0_i32, %arg2 : i32, i32, i32, i32
  }
}

module attributes {stable_mosaic.version = 11 : i64} {
  func.func @_affine_kernel(%arg0: i32, %arg1: memref<32x128xbf16, #tpu.memory_space<vmem>>, %arg2: memref<1x128xf32, #tpu.memory_space<vmem>>, %arg3: memref<1x128xf32, #tpu.memory_space<vmem>>, %arg4: memref<32x128xbf16, #tpu.memory_space<vmem>>) attributes {dimension_semantics = [#tpu.dimension_semantics<parallel>], iteration_bounds = array<i64: 1>, scalar_prefetch = 0 : i64, scratch_operands = 0 : i64, tpu.core_type = #tpu.core_type<tc>, window_params = [{transform_indices = @transform_0, window_bounds = array<i64: 32, 128>}, {pipeline_mode = #tpu.pipeline_mode<synchronous>, transform_indices = @transform_1, window_bounds = array<i64: 1, 128>}, {pipeline_mode = #tpu.pipeline_mode<synchronous>, transform_indices = @transform_2, window_bounds = array<i64: 1, 128>}, {transform_indices = @transform_3, window_bounds = array<i64: 32, 128>}]} {
    %c0 = arith.constant 0 : index
    %c0_0 = arith.constant 0 : index
    %0 = vector.load %arg1[%c0, %c0_0] : memref<32x128xbf16, #tpu.memory_space<vmem>>, vector<32x128xbf16>
    %1 = arith.extf %0 : vector<32x128xbf16> to vector<32x128xf32>
    %c0_1 = arith.constant 0 : index
    %c0_2 = arith.constant 0 : index
    %2 = vector.load %arg2[%c0_1, %c0_2] : memref<1x128xf32, #tpu.memory_space<vmem>>, vector<1x128xf32>
    %3 = vector.broadcast %2 : vector<1x128xf32> to vector<32x128xf32>
    %4 = arith.mulf %1, %3 : vector<32x128xf32>
    %c0_3 = arith.constant 0 : index
    %c0_4 = arith.constant 0 : index
    %5 = vector.load %arg3[%c0_3, %c0_4] : memref<1x128xf32, #tpu.memory_space<vmem>>, vector<1x128xf32>
    %6 = vector.broadcast %5 : vector<1x128xf32> to vector<32x128xf32>
    %7 = arith.addf %4, %6 : vector<32x128xf32>
    %8 = arith.truncf %7 : vector<32x128xf32> to vector<32x128xbf16>
    %c0_5 = arith.constant 0 : index
    %c0_6 = arith.constant 0 : index
    %9 = vector.load %arg4[%c0_5, %c0_6] : memref<32x128xbf16, #tpu.memory_space<vmem>>, vector<32x128xbf16>
    tpu.vector_store %arg4[%c0_5, %c0_6], %8 {strides = array<i32>} : memref<32x128xbf16, #tpu.memory_space<vmem>>, vector<32x128xbf16>,
    return
  }
  func.func @transform_0(%arg0: i32) -> (i32, i32) {
    %c0_i32 = arith.constant 0 : i32
    %c0_i32_0 = arith.constant 0 : i32
    return %arg0, %c0_i32 : i32, i32
  }
  func.func @transform_1(%arg0: i32) -> (i32, i32) {
    %c0_i32 = arith.constant 0 : i32
    %c0_i32_0 = arith.constant 0 : i32
    %c0_i32_1 = arith.constant 0 : i32
    return %c0_i32, %c0_i32_0 : i32, i32
  }
  func.func @transform_2(%arg0: i32) -> (i32, i32) {
    %c0_i32 = arith.constant 0 : i32
    %c0_i32_0 = arith.constant 0 : i32
    %c0_i32_1 = arith.constant 0 : i32
    return %c0_i32, %c0_i32_0 : i32, i32
  }
  func.func @transform_3(%arg0: i32) -> (i32, i32) {
    %c0_i32 = arith.constant 0 : i32
    %c0_i32_0 = arith.constant 0 : i32
    return %arg0, %c0_i32 : i32, i32
  }
}

module attributes {stable_mosaic.version = 11 : i64} {
  func.func @_mm_kernel(%arg0: i32, %arg1: i32, %arg2: i32, %arg3: i32, %arg4: memref<1x256x128xbf16, #tpu.memory_space<vmem>>, %arg5: memref<1x128x128xbf16, #tpu.memory_space<vmem>>, %arg6: memref<1x128xf32, #tpu.memory_space<vmem>>, %arg7: memref<1x256x128xbf16, #tpu.memory_space<vmem>>) attributes {dimension_semantics = [#tpu.dimension_semantics<parallel>, #tpu.dimension_semantics<parallel>, #tpu.dimension_semantics<parallel>, #tpu.dimension_semantics<arbitrary>], iteration_bounds = array<i64: 4, 2, 1, 1>, scalar_prefetch = 0 : i64, scratch_operands = 0 : i64, tpu.core_type = #tpu.core_type<tc>, window_params = [{transform_indices = @transform_0, window_bounds = array<i64: 1, 256, 128>}, {transform_indices = @transform_1, window_bounds = array<i64: 1, 128, 128>}, {transform_indices = @transform_2, window_bounds = array<i64: 1, 128>}, {transform_indices = @transform_3, window_bounds = array<i64: 1, 256, 128>}]} {
    %c0 = arith.constant 0 : index
    %c0_0 = arith.constant 0 : index
    %c0_1 = arith.constant 0 : index
    %0 = vector.load %arg4[%c0, %c0_0, %c0_1] : memref<1x256x128xbf16, #tpu.memory_space<vmem>>, vector<1x256x128xbf16>
    %1 = vector.shape_cast %0 : vector<1x256x128xbf16> to vector<256x128xbf16>
    %cst = arith.constant 0.000000e+00 : bf16
    %2 = vector.broadcast %cst : bf16 to vector<256x128xbf16>
    %3 = arith.maximumf %1, %2 : vector<256x128xbf16>
    %c0_2 = arith.constant 0 : index
    %c0_3 = arith.constant 0 : index
    %c0_4 = arith.constant 0 : index
    %4 = vector.load %arg5[%c0_2, %c0_3, %c0_4] : memref<1x128x128xbf16, #tpu.memory_space<vmem>>, vector<1x128x128xbf16>
    %5 = vector.shape_cast %4 : vector<1x128x128xbf16> to vector<128x128xbf16>
    %cst_5 = arith.constant dense<0.000000e+00> : vector<256x128xf32>
    %6 = tpu.matmul %3, %5, %cst_5 {dimension_numbers = #tpu.dot_dimension_numbers<[1], [0], [0], [1], [0, 0, 1, 1], [], []>} : vector<256x128xbf16>, vector<128x128xbf16>, vector<256x128xf32> -> vector<256x128xf32>
    %c0_6 = arith.constant 0 : index
    %c0_7 = arith.constant 0 : index
    %7 = vector.load %arg6[%c0_6, %c0_7] : memref<1x128xf32, #tpu.memory_space<vmem>>, vector<1x128xf32>
    %8 = vector.broadcast %7 : vector<1x128xf32> to vector<256x128xf32>
    %9 = arith.addf %6, %8 : vector<256x128xf32>
    %10 = math.tanh %9 : vector<256x128xf32>
    %11 = arith.truncf %10 : vector<256x128xf32> to vector<256x128xbf16>
    %c0_8 = arith.constant 0 : index
    %c0_9 = arith.constant 0 : index
    %c0_10 = arith.constant 0 : index
    %12 = vector.load %arg7[%c0_8, %c0_9, %c0_10] : memref<1x256x128xbf16, #tpu.memory_space<vmem>>, vector<1x256x128xbf16>
    %13 = vector.shape_cast %12 : vector<1x256x128xbf16> to vector<256x128xbf16>
    %14 = vector.shape_cast %11 : vector<256x128xbf16> to vector<1x256x128xbf16>
    tpu.vector_store %arg7[%c0_8, %c0_9, %c0_10], %14 {strides = array<i32>} : memref<1x256x128xbf16, #tpu.memory_space<vmem>>, vector<1x256x128xbf16>,
    return
  }
  func.func @transform_0(%arg0: i32, %arg1: i32, %arg2: i32, %arg3: i32) -> (i32, i32, i32) {
    %c0_i32 = arith.constant 0 : i32
    return %arg0, %arg1, %arg3 : i32, i32, i32
  }
  func.func @transform_1(%arg0: i32, %arg1: i32, %arg2: i32, %arg3: i32) -> (i32, i32, i32) {
    %c0_i32 = arith.constant 0 : i32
    return %arg0, %arg3, %arg2 : i32, i32, i32
  }
  func.func @transform_2(%arg0: i32, %arg1: i32, %arg2: i32, %arg3: i32) -> (i32, i32) {
    %c0_i32 = arith.constant 0 : i32
    %c0_i32_0 = arith.constant 0 : i32
    return %c0_i32, %arg2 : i32, i32
  }
  func.func @transform_3(%arg0: i32, %arg1: i32, %arg2: i32, %arg3: i32) -> (i32, i32, i32) {
    %c0_i32 = arith.constant 0 : i32
    return %arg0, %arg1, %arg2 : i32, i32, i32
  }
}

</mosaic_0001>

<llo_original>
// kernel: unet_generator_forward.17
$region0: #{unet_generator_forward.17}
  #allocation0 [shape = 'u32[]', space=smem, size = 0x4, offset = 0x4, fixed_abs, tag = 'smem constant byte address 0x4 - core index']
  #allocation1 [shape = 'u32[72,128]{1,0:T(1,128)}', space=vmem, size = 0x9000, scoped, tag = 'internal scratch']
  %s0 = inlined_call_operand.vmem [shape: bf16[1,512,128], index: 0, kind: input, shape index: {}]
  %s1 = inlined_call_operand.vmem [shape: bf16[1,128,128], index: 1, kind: input, shape index: {}]
  %s2 = inlined_call_operand.vmem [shape: f32[1,128], index: 2, kind: input, shape index: {}]
  %s3 = inlined_call_operand.vmem [shape: bf16[1,512,128], index: 3, kind: output, shape index: {}]
  %s4 = sld [smem:[#allocation0]]
  $region45: #{unet_generator_forward.17} parent=0
    _
  %s6 = ssub.s32 1, %s4
  %s7 = scalar_select 0, %s6, %s4
  loop: start=0, step=1, limit=4
  $region2: #{unet_generator_forward.17} parent=0 // loop_pre_header
    _
  $region3: #{unet_generator_forward.17} parent=0 // loop_header
    %s9 = sphi 0, %s13
    %p10 = scmp.ge.s32.totalorder %s9, 4
    %s16 = sphi 0, %s42
    %s17 = sphi 0, %s38
    %s18 = sphi 0, %s34
    %s19 = sphi 0, %s30
    %s20 = sphi 0, %s16
    %s21 = sphi 0, %s17
    %s22 = sphi 0, %s18
    %s23 = sphi 0, %s19
    %s24 = sphi 0, %s20
    %s25 = sphi 0, %s21
    %s26 = sphi 0, %s22
    %s27 = sphi 0, %s23
    %s49 = sphi 0, %s51
    %s52 = sphi 0, %s49
    %s53 = sphi 0, %s52
    %s69 = sphi 0, %s53
    %s79 = sphi 0, %s81
    %s82 = sphi 0, %s79
    %s83 = sphi 0, %s82
    %s99 = sphi 0, %s83
    %s105 = sphi 0, %s107
    %s108 = sphi 0, %s105
    %s109 = sphi 0, %s108
    %s125 = sphi 0, %s109
    %s135 = sphi 0, %s137
    %s138 = sphi 0, %s135
    %s139 = sphi 0, %s138
    %s155 = sphi 0, %s139
  $region4: #{unet_generator_forward.17} parent=0 // loop_header_branch
    %12 = sbr.rel (%p10) target = $region8
  $region5: #{unet_generator_forward.17} parent=0 // loop_body
    %s14 = ssub.s32 %s9, 1
    %s15 = ssub.s32 %s9, 2
    %s28 = sadd.s32 1, %s19
    %p29 = scmp.ge.s32.totalorder %s28, 1
    %s30 = scalar_select %p29, 0, %s28
    %s31 = sadd.s32 1, %s18
    %s32 = scalar_select %p29, %s31, %s18
    %p33 = scmp.ge.s32.totalorder %s32, 1
    %s34 = scalar_select %p33, 0, %s32
    %s35 = sadd.s32 1, %s17
    %s36 = scalar_select %p33, %s35, %s17
    %p37 = scmp.ge.s32.totalorder %s36, 2
    %s38 = scalar_select %p37, 0, %s36
    %s39 = sadd.s32 1, %s16
    %s40 = scalar_select %p37, %s39, %s16
    %p41 = scmp.ge.s32.totalorder %s40, 1
    %s42 = scalar_select %p41, 0, %s40
    %s43 = ssub.s32 %s16, %s42
    %s44 = ssub.s32 %s17, %s38
    %s45 = sor.u32 %s43, %s44
    %s46 = ssub.s32 %s19, %s30
    %s47 = sor.u32 %s45, %s46
    %p48 = scmp.eq.s32.totalorder %s47, 0
    %s50 = sadd.s32 %s49, 1
    %s51 = scalar_select %p48, %s49, %s50
    %p54 = pneg %p48
    %p55 = scmp.eq.s32.totalorder %s9, 1
    %p56 = por %p54, %p55
    %p57 = scmp.ne.s32.totalorder %s49, %s52
    %p58 = scmp.eq.s32.totalorder %s9, 0
    %p59 = por %p57, %p58
    %p60 = scmp.ne.s32.totalorder %s49, %s52
    %p61 = scmp.eq.s32.totalorder %s14, 1
    %p62 = por %p60, %p61
    %p63 = scmp.ne.s32.totalorder %s52, %s53
    %p64 = scmp.eq.s32.totalorder %s14, 0
    %p65 = por %p63, %p64
    %p66 = scmp.ne.s32.totalorder %s52, %s53
    %p67 = scmp.eq.s32.totalorder %s15, 1
    %p68 = por %p66, %p67
    %p70 = scmp.ne.s32.totalorder %s53, %s69
    %p71 = scmp.eq.s32.totalorder %s15, 0
    %p72 = por %p70, %p71
    %s73 = ssub.s32 %s16, %s42
    %s74 = ssub.s32 %s19, %s30
    %s75 = sor.u32 %s73, %s74
    %s76 = ssub.s32 %s18, %s34
    %s77 = sor.u32 %s75, %s76
    %p78 = scmp.eq.s32.totalorder %s77, 0
    %s80 = sadd.s32 %s79, 1
    %s81 = scalar_select %p78, %s79, %s80
    %p84 = pneg %p78
    %p85 = scmp.eq.s32.totalorder %s9, 1
    %p86 = por %p84, %p85
    %p87 = scmp.ne.s32.totalorder %s79, %s82
    %p88 = scmp.eq.s32.totalorder %s9, 0
    %p89 = por %p87, %p88
    %p90 = scmp.ne.s32.totalorder %s79, %s82
    %p91 = scmp.eq.s32.totalorder %s14, 1
    %p92 = por %p90, %p91
    %p93 = scmp.ne.s32.totalorder %s82, %s83
    %p94 = scmp.eq.s32.totalorder %s14, 0
    %p95 = por %p93, %p94
    %p96 = scmp.ne.s32.totalorder %s82, %s83
    %p97 = scmp.eq.s32.totalorder %s15, 1
    %p98 = por %p96, %p97
    %p100 = scmp.ne.s32.totalorder %s83, %s99
    %p101 = scmp.eq.s32.totalorder %s15, 0
    %p102 = por %p100, %p101
    %s103 = ssub.s32 %s18, %s34
    %p104 = scmp.eq.s32.totalorder %s103, 0
    %s106 = sadd.s32 %s105, 1
    %s107 = scalar_select %p104, %s105, %s106
    %p110 = pneg %p104
    %p111 = scmp.eq.s32.totalorder %s9, 1
    %p112 = por %p110, %p111
    %p113 = scmp.ne.s32.totalorder %s105, %s108
    %p114 = scmp.eq.s32.totalorder %s9, 0
    %p115 = por %p113, %p114
    %p116 = scmp.ne.s32.totalorder %s105, %s108
    %p117 = scmp.eq.s32.totalorder %s14, 1
    %p118 = por %p116, %p117
    %p119 = scmp.ne.s32.totalorder %s108, %s109
    %p120 = scmp.eq.s32.totalorder %s14, 0
    %p121 = por %p119, %p120
    %p122 = scmp.ne.s32.totalorder %s108, %s109
    %p123 = scmp.eq.s32.totalorder %s15, 1
    %p124 = por %p122, %p123
    %p126 = scmp.ne.s32.totalorder %s109, %s125
    %p127 = scmp.eq.s32.totalorder %s15, 0
    %p128 = por %p126, %p127
    %s129 = ssub.s32 %s16, %s42
    %s130 = ssub.s32 %s17, %s38
    %s131 = sor.u32 %s129, %s130
    %s132 = ssub.s32 %s18, %s34
    %s133 = sor.u32 %s131, %s132
    %p134 = scmp.eq.s32.totalorder %s133, 0
    %s136 = sadd.s32 %s135, 1
    %s137 = scalar_select %p134, %s135, %s136
    %p140 = pneg %p134
    %p141 = scmp.eq.s32.totalorder %s9, 1
    %p142 = por %p140, %p141
    %p143 = scmp.ne.s32.totalorder %s135, %s138
    %p144 = scmp.eq.s32.totalorder %s9, 0
    %p145 = por %p143, %p144
    %p146 = scmp.ne.s32.totalorder %s135, %s138
    %p147 = scmp.eq.s32.totalorder %s14, 1
    %p148 = por %p146, %p147
    %p149 = scmp.ne.s32.totalorder %s138, %s139
    %p150 = scmp.eq.s32.totalorder %s14, 0
    %p151 = por %p149, %p150
    %p152 = scmp.ne.s32.totalorder %s138, %s139
    %p153 = scmp.eq.s32.totalorder %s15, 1
    %p154 = por %p152, %p153
    %p156 = scmp.ne.s32.totalorder %s139, %s155
    %p157 = scmp.eq.s32.totalorder %s15, 0
    %p158 = por %p156, %p157
    %p159 = scmp.le.s32.totalorder 1, %s9
    %p160 = scmp.lt.s32.totalorder %s9, 3
    %p161 = pnand %p159, %p160
    %p162 = pneg %p161
    // Predicated region
    $region9: #{unet_generator_forward.17} parent=5 // pred_check
      _
    $region10: #{unet_generator_forward.17} parent=5 // pred_check_branch
      %164 = sbr.rel (%p161) target = $region12
    $region11: #{unet_generator_forward.17} parent=5 // pred_region
      %s165 = ssub.s32 %s9, 1
      // Predicated region
      $region13: #{unet_generator_forward.17} parent=11 // pred_check
        %p166 = pneg %p95
      $region14: #{unet_generator_forward.17} parent=11 // pred_check_branch
        %168 = sbr.rel (%p166) target = $region16
      $region15: #{unet_generator_forward.17} parent=11 // pred_region
        %s169 = smul.u32 16, %s23
        %p170 = scmp.lt.s32.totalorder %s20, 0
        %s171 = scalar_select %p170, %s20, 0
        %p172 = scmp.lt.s32.totalorder %s169, 15
        %s173 = scalar_select %p172, %s169, 15
        %p174 = scmp.lt.s32.totalorder %s22, 0
        %s175 = scalar_select %p174, %s22, 0
        %s176 = sadd.s32 %s175, %s173
        %s177 = smul.addr %s171, 16
        %s178 = sadd.s32 %s176, %s177
        %s179 = smul.addr %s178, 4
        %s180 = scalar_lea.vmem %s1, %s179
        %s181 = smul.u32 16, %s23
      $region16: #{unet_generator_forward.17} parent=11 // pred_fallthru
        _
      // Predicated region
      $region17: #{unet_generator_forward.17} parent=11 // pred_check
        %p182 = pneg %p121
      $region18: #{unet_generator_forward.17} parent=11 // pred_check_branch
        %184 = sbr.rel (%p182) target = $region20
      $region19: #{unet_generator_forward.17} parent=11 // pred_region
        %p185 = scmp.lt.s32.totalorder %s22, 0
        %s186 = scalar_select %p185, %s22, 0
        %s187 = scalar_lea.vmem %s2, %s186
      $region20: #{unet_generator_forward.17} parent=11 // pred_fallthru
        _
    $region12: #{unet_generator_forward.17} parent=5 // pred_fallthru
      _
    %p188 = scmp.lt.s32.totalorder %s9, 2
    // Predicated region
    $region21: #{unet_generator_forward.17} parent=5 // pred_check
      %p189 = pneg %p188
    $region22: #{unet_generator_forward.17} parent=5 // pred_check_branch
      %191 = sbr.rel (%p189) target = $region24
    $region23: #{unet_generator_forward.17} parent=5 // pred_region
      // Predicated region
      $region25: #{unet_generator_forward.17} parent=23 // pred_check
        %p192 = pneg %p59
      $region26: #{unet_generator_forward.17} parent=23 // pred_check_branch
        %194 = sbr.rel (%p192) target = $region28
      $region27: #{unet_generator_forward.17} parent=23 // pred_region
        %s195 = smul.u32 32, %s17
        %p196 = scmp.lt.s32.totalorder %s16, 0
        %s197 = scalar_select %p196, %s16, 0
        %p198 = scmp.lt.s32.totalorder %s195, 63
        %s199 = scalar_select %p198, %s195, 63
        %p200 = scmp.lt.s32.totalorder %s19, 0
        %s201 = scalar_select %p200, %s19, 0
        %s202 = sadd.s32 %s201, %s199
        %s203 = smul.addr %s197, 64
        %s204 = sadd.s32 %s202, %s203
        %s205 = smul.addr %s204, 4
        %s206 = scalar_lea.vmem %s0, %s205
        %s207 = smul.u32 32, %s17
      $region28: #{unet_generator_forward.17} parent=23 // pred_fallthru
        _
    $region24: #{unet_generator_forward.17} parent=5 // pred_fallthru
      _
    %p208 = scmp.le.s32.totalorder 1, %s9
    %p209 = scmp.lt.s32.totalorder %s9, 3
    %p210 = pnand %p208, %p209
    %p211 = pneg %p210
    // Predicated region
    $region29: #{unet_generator_forward.17} parent=5 // pred_check
      _
    $region30: #{unet_generator_forward.17} parent=5 // pred_check_branch
      %213 = sbr.rel (%p210) target = $region32
    $region31: #{unet_generator_forward.17} parent=5 // pred_region
      %s214 = ssub.s32 %s9, 1
      %s215 = smul.u32 32, %s21
      %p216 = scmp.lt.s32.totalorder %s20, 0
      %s217 = scalar_select %p216, %s20, 0
      %p218 = scmp.lt.s32.totalorder %s215, 63
      %s219 = scalar_select %p218, %s215, 63
      %p220 = scmp.lt.s32.totalorder %s23, 0
      %s221 = scalar_select %p220, %s23, 0
      %s222 = sadd.s32 %s221, %s219
      %s223 = smul.addr %s217, 64
      %s224 = sadd.s32 %s222, %s223
      %s225 = smul.addr %s224, 4
      %s226 = scalar_lea.vmem %s0, %s225
      %p227 = pneg %p65
      %p228 = pneg %p62
      %s229 = smul.u32 16, %s23
      %p230 = scmp.lt.s32.totalorder %s20, 0
      %s231 = scalar_select %p230, %s20, 0
      %p232 = scmp.lt.s32.totalorder %s229, 15
      %s233 = scalar_select %p232, %s229, 15
      %p234 = scmp.lt.s32.totalorder %s22, 0
      %s235 = scalar_select %p234, %s22, 0
      %s236 = sadd.s32 %s235, %s233
      %s237 = smul.addr %s231, 16
      %s238 = sadd.s32 %s236, %s237
      %s239 = smul.addr %s238, 4
      %s240 = scalar_lea.vmem %s1, %s239
      %p241 = pneg %p95
      %p242 = pneg %p92
      %p243 = scmp.lt.s32.totalorder %s22, 0
      %s244 = scalar_select %p243, %s22, 0
      %s245 = scalar_lea.vmem %s2, %s244
      %p246 = pneg %p121
      %p247 = pneg %p118
      %p248 = pneg %p151
      %p249 = pneg %p148
      %s250 = smul.u32 32, %s21
      %p251 = scmp.lt.s32.totalorder %s20, 0
      %s252 = scalar_select %p251, %s20, 0
      %p253 = scmp.lt.s32.totalorder %s250, 63
      %s254 = scalar_select %p253, %s250, 63
      %p255 = scmp.lt.s32.totalorder %s22, 0
      %s256 = scalar_select %p255, %s22, 0
      %s257 = sadd.s32 %s256, %s254
      %s258 = smul.addr %s252, 64
      %s259 = sadd.s32 %s257, %s258
      %s260 = smul.addr %s259, 4
      %s261 = scalar_lea.vmem %s3, %s260
      %s262 = smul.u32 32, %s21
      %p263 = scmp.lt.s32.totalorder %s20, 0
      %s264 = scalar_select %p263, %s20, 0
      %p265 = scmp.lt.s32.totalorder %s262, 63
      %s266 = scalar_select %p265, %s262, 63
      %p267 = scmp.lt.s32.totalorder %s23, 0
      %s268 = scalar_select %p267, %s23, 0
      %s269 = sadd.s32 %s268, %s266
      %s270 = smul.addr %s264, 64
      %s271 = sadd.s32 %s269, %s270
      %s272 = smul.addr %s271, 4
      %s273 = scalar_lea.vmem %s0, %s272
      %s274 = smul.u32 32, %s21
      %s275 = smul.u32 16, %s23
      %p276 = scmp.lt.s32.totalorder %s20, 0
      %s277 = scalar_select %p276, %s20, 0
      %p278 = scmp.lt.s32.totalorder %s275, 15
      %s279 = scalar_select %p278, %s275, 15
      %p280 = scmp.lt.s32.totalorder %s22, 0
      %s281 = scalar_select %p280, %s22, 0
      %s282 = sadd.s32 %s281, %s279
      %s283 = smul.addr %s277, 16
      %s284 = sadd.s32 %s282, %s283
      %s285 = smul.addr %s284, 4
      %s286 = scalar_lea.vmem %s1, %s285
      %s287 = smul.u32 16, %s23
      %p288 = scmp.lt.s32.totalorder %s22, 0
      %s289 = scalar_select %p288, %s22, 0
      %s290 = scalar_lea.vmem %s2, %s289
      %s291 = smul.u32 32, %s21
      %p292 = scmp.lt.s32.totalorder %s20, 0
      %s293 = scalar_select %p292, %s20, 0
      %p294 = scmp.lt.s32.totalorder %s291, 63
      %s295 = scalar_select %p294, %s291, 63
      %p296 = scmp.lt.s32.totalorder %s22, 0
      %s297 = scalar_select %p296, %s22, 0
      %s298 = sadd.s32 %s297, %s295
      %s299 = smul.addr %s293, 64
      %s300 = sadd.s32 %s298, %s299
      %s301 = smul.addr %s300, 4
      %s302 = scalar_lea.vmem %s3, %s301
      %s303 = smul.u32 32, %s21
      %v304 = vld [vmem:[%s273] sm:$0xf]
      %v305 = vld [vmem:[%s273 + $0x4] sm:$0xf]
      %v306 = vld [vmem:[%s273 + $0x8] sm:$0xf]
      %v307 = vld [vmem:[%s273 + $0xc] sm:$0xf]
      %v308 = vld [vmem:[%s273 + $0x10] sm:$0xf]
      %v309 = vld [vmem:[%s273 + $0x14] sm:$0xf]
      %v310 = vld [vmem:[%s273 + $0x18] sm:$0xf]
      %v311 = vld [vmem:[%s273 + $0x1c] sm:$0xf]
      %v312 = vld [vmem:[%s273 + $0x20] sm:$0xf]
      %v313 = vld [vmem:[%s273 + $0x24] sm:$0xf]
      %v314 = vld [vmem:[%s273 + $0x28] sm:$0xf]
      %v315 = vld [vmem:[%s273 + $0x2c] sm:$0xf]
      %v316 = vld [vmem:[%s273 + $0x30] sm:$0xf]
      %v317 = vld [vmem:[%s273 + $0x34] sm:$0xf]
      %v318 = vld [vmem:[%s273 + $0x38] sm:$0xf]
      %v319 = vld [vmem:[%s273 + $0x3c] sm:$0xf]
      %v320 = vld [vmem:[%s273 + $0x40] sm:$0xf]
      %v321 = vld [vmem:[%s273 + $0x44] sm:$0xf]
      %v322 = vld [vmem:[%s273 + $0x48] sm:$0xf]
      %v323 = vld [vmem:[%s273 + $0x4c] sm:$0xf]
      %v324 = vld [vmem:[%s273 + $0x50] sm:$0xf]
      %v325 = vld [vmem:[%s273 + $0x54] sm:$0xf]
      %v326 = vld [vmem:[%s273 + $0x58] sm:$0xf]
      %v327 = vld [vmem:[%s273 + $0x5c] sm:$0xf]
      %v328 = vld [vmem:[%s273 + $0x60] sm:$0xf]
      %v329 = vld [vmem:[%s273 + $0x64] sm:$0xf]
      %v330 = vld [vmem:[%s273 + $0x68] sm:$0xf]
      %v331 = vld [vmem:[%s273 + $0x6c] sm:$0xf]
      %v332 = vld [vmem:[%s273 + $0x70] sm:$0xf]
      %v333 = vld [vmem:[%s273 + $0x74] sm:$0xf]
      %v334 = vld [vmem:[%s273 + $0x78] sm:$0xf]
      %v335 = vld [vmem:[%s273 + $0x7c] sm:$0xf]
      %v336 = vld [vmem:[%s286] sm:$0xf]
      %v337 = vld [vmem:[%s286 + $0x4] sm:$0xf]
      %v338 = vld [vmem:[%s286 + $0x8] sm:$0xf]
      %v339 = vld [vmem:[%s286 + $0xc] sm:$0xf]
      %v340 = vld [vmem:[%s286 + $0x10] sm:$0xf]
      %v341 = vld [vmem:[%s286 + $0x14] sm:$0xf]
      %v342 = vld [vmem:[%s286 + $0x18] sm:$0xf]
      %v343 = vld [vmem:[%s286 + $0x1c] sm:$0xf]
      %v344 = vld [vmem:[%s286 + $0x20] sm:$0xf]
      %v345 = vld [vmem:[%s286 + $0x24] sm:$0xf]
      %v346 = vld [vmem:[%s286 + $0x28] sm:$0xf]
      %v347 = vld [vmem:[%s286 + $0x2c] sm:$0xf]
      %v348 = vld [vmem:[%s286 + $0x30] sm:$0xf]
      %v349 = vld [vmem:[%s286 + $0x34] sm:$0xf]
      %v350 = vld [vmem:[%s286 + $0x38] sm:$0xf]
      %v351 = vld [vmem:[%s286 + $0x3c] sm:$0xf]
      %v352 = vld [vmem:[%s290] sm:$0x1]
      %v354 = vperm.slane %v352, 0
      %v388 = vunpack.c.l.b16 %v304
      %v389 = vunpack.c.l.b16 %v305
      %v390 = vunpack.c.l.b16 %v306
      %v391 = vunpack.c.l.b16 %v307
      %v392 = vunpack.c.l.b16 %v308
      %v393 = vunpack.c.l.b16 %v309
      %v394 = vunpack.c.l.b16 %v310
      %v395 = vunpack.c.l.b16 %v311
      %v396 = vunpack.c.l.b16 %v312
      %v397 = vunpack.c.l.b16 %v313
      %v398 = vunpack.c.l.b16 %v314
      %v399 = vunpack.c.l.b16 %v315
      %v400 = vunpack.c.l.b16 %v316
      %v401 = vunpack.c.l.b16 %v317
      %v402 = vunpack.c.l.b16 %v318
      %v403 = vunpack.c.l.b16 %v319
      %v404 = vunpack.c.l.b16 %v320
      %v405 = vunpack.c.l.b16 %v321
      %v406 = vunpack.c.l.b16 %v322
      %v407 = vunpack.c.l.b16 %v323
      %v408 = vunpack.c.l.b16 %v324
      %v409 = vunpack.c.l.b16 %v325
      %v410 = vunpack.c.l.b16 %v326
      %v411 = vunpack.c.l.b16 %v327
      %v412 = vunpack.c.l.b16 %v328
      %v413 = vunpack.c.l.b16 %v329
      %v414 = vunpack.c.l.b16 %v330
      %v415 = vunpack.c.l.b16 %v331
      %v416 = vunpack.c.l.b16 %v332
      %v417 = vunpack.c.l.b16 %v333
      %v418 = vunpack.c.l.b16 %v334
      %v419 = vunpack.c.l.b16 %v335
      %v420 = vpack.c.b16 %v389, %v388
      %v421 = vpack.c.b16 %v391, %v390
      %v422 = vpack.c.b16 %v393, %v392
      %v423 = vpack.c.b16 %v395, %v394
      %v424 = vpack.c.b16 %v397, %v396
      %v425 = vpack.c.b16 %v399, %v398
      %v426 = vpack.c.b16 %v401, %v400
      %v427 = vpack.c.b16 %v403, %v402
      %v428 = vpack.c.b16 %v405, %v404
      %v429 = vpack.c.b16 %v407, %v406
      %v430 = vpack.c.b16 %v409, %v408
      %v431 = vpack.c.b16 %v411, %v410
      %v432 = vpack.c.b16 %v413, %v412
      %v433 = vpack.c.b16 %v415, %v414
      %v434 = vpack.c.b16 %v417, %v416
      %v435 = vpack.c.b16 %v419, %v418
      %v468 = vunpack.c.l.b16 %v336
      %v469 = vunpack.c.l.b16 %v337
      %v470 = vunpack.c.l.b16 %v338
      %v471 = vunpack.c.l.b16 %v339
      %v472 = vunpack.c.l.b16 %v340
      %v473 = vunpack.c.l.b16 %v341
      %v474 = vunpack.c.l.b16 %v342
      %v475 = vunpack.c.l.b16 %v343
      %v476 = vunpack.c.l.b16 %v344
      %v477 = vunpack.c.l.b16 %v345
      %v478 = vunpack.c.l.b16 %v346
      %v479 = vunpack.c.l.b16 %v347
      %v480 = vunpack.c.l.b16 %v348
      %v481 = vunpack.c.l.b16 %v349
      %v482 = vunpack.c.l.b16 %v350
      %v483 = vunpack.c.l.b16 %v351
      %v484 = vpack.c.b16 %v469, %v468
      %v485 = vpack.c.b16 %v471, %v470
      %v486 = vpack.c.b16 %v473, %v472
      %v487 = vpack.c.b16 %v475, %v474
      %v488 = vpack.c.b16 %v477, %v476
      %v489 = vpack.c.b16 %v479, %v478
      %v490 = vpack.c.b16 %v481, %v480
      %v491 = vpack.c.b16 %v483, %v482
      %500 = vmatpush.bf16.msra.mxu0 %v491
      %501 = vmatpush.bf16.msra.mxu0 %v490
      %502 = vmatpush.bf16.msra.mxu0 %v489
      %503 = vmatpush.bf16.msra.mxu0 %v488
      %504 = vmatpush.bf16.msra.mxu0 %v487
      %505 = vmatpush.bf16.msra.mxu0 %v486
      %506 = vmatpush.bf16.msra.mxu0 %v485
      %507 = vmatpush.bf16.msra.mxu0 %v484
      %508 = vmatmul.bf16.gmra.mxu0 %v420
      %v509 = vpop.f32.mrf.mxu0
      %v510 = vadd.f32 %v354, %v509
      %v511 = vpop.f32.mrf.mxu0
      %v512 = vadd.f32 %v354, %v511
      %513 = vmatmul.bf16.gmra.mxu0 %v421
      %v514 = vpop.f32.mrf.mxu0
      %v515 = vadd.f32 %v354, %v514
      %v516 = vpop.f32.mrf.mxu0
      %v517 = vadd.f32 %v354, %v516
      %518 = vmatmul.bf16.gmra.mxu0 %v422
      %v519 = vpop.f32.mrf.mxu0
      %v520 = vadd.f32 %v354, %v519
      %v521 = vpop.f32.mrf.mxu0
      %v522 = vadd.f32 %v354, %v521
      %523 = vmatmul.bf16.gmra.mxu0 %v423
      %v524 = vpop.f32.mrf.mxu0
      %v525 = vadd.f32 %v354, %v524
      %v526 = vpop.f32.mrf.mxu0
      %v527 = vadd.f32 %v354, %v526
      %528 = vmatmul.bf16.gmra.mxu0 %v424
      %v529 = vpop.f32.mrf.mxu0
      %v530 = vadd.f32 %v354, %v529
      %v531 = vpop.f32.mrf.mxu0
      %v532 = vadd.f32 %v354, %v531
      %533 = vmatmul.bf16.gmra.mxu0 %v425
      %v534 = vpop.f32.mrf.mxu0
      %v535 = vadd.f32 %v354, %v534
      %v536 = vpop.f32.mrf.mxu0
      %v537 = vadd.f32 %v354, %v536
      %538 = vmatmul.bf16.gmra.mxu0 %v426
      %v539 = vpop.f32.mrf.mxu0
      %v540 = vadd.f32 %v354, %v539
      %v541 = vpop.f32.mrf.mxu0
      %v542 = vadd.f32 %v354, %v541
      %543 = vmatmul.bf16.gmra.mxu0 %v427
      %v544 = vpop.f32.mrf.mxu0
      %v545 = vadd.f32 %v354, %v544
      %v546 = vpop.f32.mrf.mxu0
      %v547 = vadd.f32 %v354, %v546
      %548 = vmatmul.bf16.gmra.mxu0 %v428
      %v549 = vpop.f32.mrf.mxu0
      %v550 = vadd.f32 %v354, %v549
      %v551 = vpop.f32.mrf.mxu0
      %v552 = vadd.f32 %v354, %v551
      %553 = vmatmul.bf16.gmra.mxu0 %v429
      %v554 = vpop.f32.mrf.mxu0
      %v555 = vadd.f32 %v354, %v554
      %v556 = vpop.f32.mrf.mxu0
      %v557 = vadd.f32 %v354, %v556
      %558 = vmatmul.bf16.gmra.mxu0 %v430
      %v559 = vpop.f32.mrf.mxu0
      %v560 = vadd.f32 %v354, %v559
      %v561 = vpop.f32.mrf.mxu0
      %v562 = vadd.f32 %v354, %v561
      %563 = vmatmul.bf16.gmra.mxu0 %v431
      %v564 = vpop.f32.mrf.mxu0
      %v565 = vadd.f32 %v354, %v564
      %v566 = vpop.f32.mrf.mxu0
      %v567 = vadd.f32 %v354, %v566
      %568 = vmatmul.bf16.gmra.mxu0 %v432
      %v569 = vpop.f32.mrf.mxu0
      %v570 = vadd.f32 %v354, %v569
      %v571 = vpop.f32.mrf.mxu0
      %v572 = vadd.f32 %v354, %v571
      %573 = vmatmul.bf16.gmra.mxu0 %v433
      %v574 = vpop.f32.mrf.mxu0
      %v575 = vadd.f32 %v354, %v574
      %v576 = vpop.f32.mrf.mxu0
      %v577 = vadd.f32 %v354, %v576
      %578 = vmatmul.bf16.gmra.mxu0 %v434
      %v579 = vpop.f32.mrf.mxu0
      %v580 = vadd.f32 %v354, %v579
      %v581 = vpop.f32.mrf.mxu0
      %v582 = vadd.f32 %v354, %v581
      %583 = vmatmul.bf16.gmra.mxu0 %v435
      %v584 = vpop.f32.mrf.mxu0
      %v585 = vadd.f32 %v354, %v584
      %v586 = vpop.f32.mrf.mxu0
      %v587 = vadd.f32 %v354, %v586
      %588 = vdwg.mxu0
      %v589 = vpack.c.bf16 %v510, %v510
      %v590 = vpack.c.bf16 %v512, %v512
      %v591 = vpack.c.bf16 %v515, %v515
      %v592 = vpack.c.bf16 %v517, %v517
      %v593 = vpack.c.bf16 %v520, %v520
      %v594 = vpack.c.bf16 %v522, %v522
      %v595 = vpack.c.bf16 %v525, %v525
      %v596 = vpack.c.bf16 %v527, %v527
      %v597 = vpack.c.bf16 %v530, %v530
      %v598 = vpack.c.bf16 %v532, %v532
      %v599 = vpack.c.bf16 %v535, %v535
      %v600 = vpack.c.bf16 %v537, %v537
      %v601 = vpack.c.bf16 %v540, %v540
      %v602 = vpack.c.bf16 %v542, %v542
      %v603 = vpack.c.bf16 %v545, %v545
      %v604 = vpack.c.bf16 %v547, %v547
      %v605 = vpack.c.bf16 %v550, %v550
      %v606 = vpack.c.bf16 %v552, %v552
      %v607 = vpack.c.bf16 %v555, %v555
      %v608 = vpack.c.bf16 %v557, %v557
      %v609 = vpack.c.bf16 %v560, %v560
      %v610 = vpack.c.bf16 %v562, %v562
      %v611 = vpack.c.bf16 %v565, %v565
      %v612 = vpack.c.bf16 %v567, %v567
      %v613 = vpack.c.bf16 %v570, %v570
      %v614 = vpack.c.bf16 %v572, %v572
      %v615 = vpack.c.bf16 %v575, %v575
      %v616 = vpack.c.bf16 %v577, %v577
      %v617 = vpack.c.bf16 %v580, %v580
      %v618 = vpack.c.bf16 %v582, %v582
      %v619 = vpack.c.bf16 %v585, %v585
      %v620 = vpack.c.bf16 %v587, %v587
      %621 = vst [vmem:[%s302] sm:$0xf] %v589
      %622 = vst [vmem:[%s302 + $0x4] sm:$0xf] %v590
      %623 = vst [vmem:[%s302 + $0x8] sm:$0xf] %v591
      %624 = vst [vmem:[%s302 + $0xc] sm:$0xf] %v592
      %625 = vst [vmem:[%s302 + $0x10] sm:$0xf] %v593
      %626 = vst [vmem:[%s302 + $0x14] sm:$0xf] %v594
      %627 = vst [vmem:[%s302 + $0x18] sm:$0xf] %v595
      %628 = vst [vmem:[%s302 + $0x1c] sm:$0xf] %v596
      %629 = vst [vmem:[%s302 + $0x20] sm:$0xf] %v597
      %630 = vst [vmem:[%s302 + $0x24] sm:$0xf] %v598
      %631 = vst [vmem:[%s302 + $0x28] sm:$0xf] %v599
      %632 = vst [vmem:[%s302 + $0x2c] sm:$0xf] %v600
      %633 = vst [vmem:[%s302 + $0x30] sm:$0xf] %v601
      %634 = vst [vmem:[%s302 + $0x34] sm:$0xf] %v602
      %635 = vst [vmem:[%s302 + $0x38] sm:$0xf] %v603
      %636 = vst [vmem:[%s302 + $0x3c] sm:$0xf] %v604
      %637 = vst [vmem:[%s302 + $0x40] sm:$0xf] %v605
      %638 = vst [vmem:[%s302 + $0x44] sm:$0xf] %v606
      %639 = vst [vmem:[%s302 + $0x48] sm:$0xf] %v607
      %640 = vst [vmem:[%s302 + $0x4c] sm:$0xf] %v608
      %641 = vst [vmem:[%s302 + $0x50] sm:$0xf] %v609
      %642 = vst [vmem:[%s302 + $0x54] sm:$0xf] %v610
      %643 = vst [vmem:[%s302 + $0x58] sm:$0xf] %v611
      %644 = vst [vmem:[%s302 + $0x5c] sm:$0xf] %v612
      %645 = vst [vmem:[%s302 + $0x60] sm:$0xf] %v613
      %646 = vst [vmem:[%s302 + $0x64] sm:$0xf] %v614
      %647 = vst [vmem:[%s302 + $0x68] sm:$0xf] %v615
      %648 = vst [vmem:[%s302 + $0x6c] sm:$0xf] %v616
      %649 = vst [vmem:[%s302 + $0x70] sm:$0xf] %v617
      %650 = vst [vmem:[%s302 + $0x74] sm:$0xf] %v618
      %651 = vst [vmem:[%s302 + $0x78] sm:$0xf] %v619
      %652 = vst [vmem:[%s302 + $0x7c] sm:$0xf] %v620
      %s653 = smul.u32 32, %s21
      %p654 = scmp.lt.s32.totalorder %s20, 0
      %s655 = scalar_select %p654, %s20, 0
      %p656 = scmp.lt.s32.totalorder %s653, 63
      %s657 = scalar_select %p656, %s653, 63
      %p658 = scmp.lt.s32.totalorder %s22, 0
      %s659 = scalar_select %p658, %s22, 0
      %s660 = sadd.s32 %s659, %s657
      %s661 = smul.addr %s655, 64
      %s662 = sadd.s32 %s660, %s661
      %s663 = smul.addr %s662, 4
      %s664 = scalar_lea.vmem %s3, %s663
      // Predicated region
      $region33: #{unet_generator_forward.17} parent=31 // pred_check
        %p665 = pneg %p148
      $region34: #{unet_generator_forward.17} parent=31 // pred_check_branch
        %667 = sbr.rel (%p665) target = $region36
      $region35: #{unet_generator_forward.17} parent=31 // pred_region
        %s668 = smul.u32 32, %s21
      $region36: #{unet_generator_forward.17} parent=31 // pred_fallthru
        _
    $region32: #{unet_generator_forward.17} parent=5 // pred_fallthru
      _
    %p669 = scmp.le.s32.totalorder 2, %s9
    // Predicated region
    $region37: #{unet_generator_forward.17} parent=5 // pred_check
      %p670 = pneg %p669
    $region38: #{unet_generator_forward.17} parent=5 // pred_check_branch
      %672 = sbr.rel (%p670) target = $region40
    $region39: #{unet_generator_forward.17} parent=5 // pred_region
      %s673 = ssub.s32 %s9, 2
      // Predicated region
      $region41: #{unet_generator_forward.17} parent=39 // pred_check
        %p674 = pneg %p154
      $region42: #{unet_generator_forward.17} parent=39 // pred_check_branch
        %676 = sbr.rel (%p674) target = $region44
      $region43: #{unet_generator_forward.17} parent=39 // pred_region
        %s677 = smul.u32 32, %s25
        %p678 = scmp.lt.s32.totalorder %s24, 0
        %s679 = scalar_select %p678, %s24, 0
        %p680 = scmp.lt.s32.totalorder %s677, 63
        %s681 = scalar_select %p680, %s677, 63
        %p682 = scmp.lt.s32.totalorder %s26, 0
        %s683 = scalar_select %p682, %s26, 0
        %s684 = sadd.s32 %s683, %s681
        %s685 = smul.addr %s679, 64
        %s686 = sadd.s32 %s684, %s685
        %s687 = smul.addr %s686, 4
        %s688 = scalar_lea.vmem %s3, %s687
      $region44: #{unet_generator_forward.17} parent=39 // pred_fallthru
        _
    $region40: #{unet_generator_forward.17} parent=5 // pred_fallthru
      _
  $region6: #{unet_generator_forward.17} parent=0 // loop_footer
    %s13 = sadd.s32 1, %s9
  $region7: #{unet_generator_forward.17} parent=0 // loop_footer_branch
    %8 = sbr.rel target = $region3
  $region8: #{unet_generator_forward.17} parent=0 // loop_exit
    _

// kernel: unet_generator_forward.18
$region0: #{unet_generator_forward.18}
  #allocation0 [shape = 'u32[]', space=smem, size = 0x4, offset = 0x4, fixed_abs, tag = 'smem constant byte address 0x4 - core index']
  #allocation1 [shape = 'u32[72,128]{1,0:T(1,128)}', space=vmem, size = 0x9000, scoped, tag = 'internal scratch']
  %s0 = inlined_call_operand.vmem [shape: bf16[1,128,128], index: 0, kind: input, shape index: {}]
  %s1 = inlined_call_operand.vmem [shape: bf16[1,128,128], index: 1, kind: input, shape index: {}]
  %s2 = inlined_call_operand.vmem [shape: f32[1,128], index: 2, kind: input, shape index: {}]
  %s3 = inlined_call_operand.vmem [shape: bf16[1,128,128], index: 3, kind: output, shape index: {0}]
  %s4 = inlined_call_operand.vmem [shape: f32[1,1,8,128], index: 4, kind: output, shape index: {1}]
  %5 = xla_tuple %s3, %s4
  %s6 = sld [smem:[#allocation0]]
  $region30: #{unet_generator_forward.18} parent=0
    _
  %s8 = ssub.s32 1, %s6
  %s9 = scalar_select 0, %s8, %s6
  // Predicated region
  $region2: #{unet_generator_forward.18} parent=0 // pred_check
    _
  $region3: #{unet_generator_forward.18} parent=0 // pred_check_branch
    %11 = sbr.rel (0) target = $region5
  $region4: #{unet_generator_forward.18} parent=0 // pred_region
    _
  $region5: #{unet_generator_forward.18} parent=0 // pred_fallthru
    _
  // Predicated region
  $region6: #{unet_generator_forward.18} parent=0 // pred_check
    _
  $region7: #{unet_generator_forward.18} parent=0 // pred_check_branch
    %13 = sbr.rel (0) target = $region9
  $region8: #{unet_generator_forward.18} parent=0 // pred_region
    _
  $region9: #{unet_generator_forward.18} parent=0 // pred_fallthru
    _
  // Predicated region
  $region10: #{unet_generator_forward.18} parent=0 // pred_check
    _
  $region11: #{unet_generator_forward.18} parent=0 // pred_check_branch
    %15 = sbr.rel (0) target = $region13
  $region12: #{unet_generator_forward.18} parent=0 // pred_region
    _
  $region13: #{unet_generator_forward.18} parent=0 // pred_fallthru
    _
  %v16 = vld [vmem:[%s0] sm:$0xf]
  %v17 = vld [vmem:[%s0 + $0x4] sm:$0xf]
  %v18 = vld [vmem:[%s0 + $0x8] sm:$0xf]
  %v19 = vld [vmem:[%s0 + $0xc] sm:$0xf]
  %v20 = vld [vmem:[%s0 + $0x10] sm:$0xf]
  %v21 = vld [vmem:[%s0 + $0x14] sm:$0xf]
  %v22 = vld [vmem:[%s0 + $0x18] sm:$0xf]
  %v23 = vld [vmem:[%s0 + $0x1c] sm:$0xf]
  %v24 = vld [vmem:[%s0 + $0x20] sm:$0xf]
  %v25 = vld [vmem:[%s0 + $0x24] sm:$0xf]
  %v26 = vld [vmem:[%s0 + $0x28] sm:$0xf]
  %v27 = vld [vmem:[%s0 + $0x2c] sm:$0xf]
  %v28 = vld [vmem:[%s0 + $0x30] sm:$0xf]
  %v29 = vld [vmem:[%s0 + $0x34] sm:$0xf]
  %v30 = vld [vmem:[%s0 + $0x38] sm:$0xf]
  %v31 = vld [vmem:[%s0 + $0x3c] sm:$0xf]
  %v32 = vunpack.c.l.bf16 %v16
  %v33 = vunpack.c.l.bf16 %v17
  %v34 = vunpack.c.l.bf16 %v18
  %v35 = vunpack.c.l.bf16 %v19
  %v36 = vunpack.c.l.bf16 %v20
  %v37 = vunpack.c.l.bf16 %v21
  %v38 = vunpack.c.l.bf16 %v22
  %v39 = vunpack.c.l.bf16 %v23
  %v40 = vunpack.c.l.bf16 %v24
  %v41 = vunpack.c.l.bf16 %v25
  %v42 = vunpack.c.l.bf16 %v26
  %v43 = vunpack.c.l.bf16 %v27
  %v44 = vunpack.c.l.bf16 %v28
  %v45 = vunpack.c.l.bf16 %v29
  %v46 = vunpack.c.l.bf16 %v30
  %v47 = vunpack.c.l.bf16 %v31
  %vm48 = vcmp.ge.f32.partialorder %v32, 0.0
  %vm49 = vcmp.ge.f32.partialorder %v33, 0.0
  %vm50 = vcmp.ge.f32.partialorder %v34, 0.0
  %vm51 = vcmp.ge.f32.partialorder %v35, 0.0
  %vm52 = vcmp.ge.f32.partialorder %v36, 0.0
  %vm53 = vcmp.ge.f32.partialorder %v37, 0.0
  %vm54 = vcmp.ge.f32.partialorder %v38, 0.0
  %vm55 = vcmp.ge.f32.partialorder %v39, 0.0
  %vm56 = vcmp.ge.f32.partialorder %v40, 0.0
  %vm57 = vcmp.ge.f32.partialorder %v41, 0.0
  %vm58 = vcmp.ge.f32.partialorder %v42, 0.0
  %vm59 = vcmp.ge.f32.partialorder %v43, 0.0
  %vm60 = vcmp.ge.f32.partialorder %v44, 0.0
  %vm61 = vcmp.ge.f32.partialorder %v45, 0.0
  %vm62 = vcmp.ge.f32.partialorder %v46, 0.0
  %vm63 = vcmp.ge.f32.partialorder %v47, 0.0
  %v64 = vmul.f32 %v32, 0.20019531
  %v65 = vmul.f32 %v33, 0.20019531
  %v66 = vmul.f32 %v34, 0.20019531
  %v67 = vmul.f32 %v35, 0.20019531
  %v68 = vmul.f32 %v36, 0.20019531
  %v69 = vmul.f32 %v37, 0.20019531
  %v70 = vmul.f32 %v38, 0.20019531
  %v71 = vmul.f32 %v39, 0.20019531
  %v72 = vmul.f32 %v40, 0.20019531
  %v73 = vmul.f32 %v41, 0.20019531
  %v74 = vmul.f32 %v42, 0.20019531
  %v75 = vmul.f32 %v43, 0.20019531
  %v76 = vmul.f32 %v44, 0.20019531
  %v77 = vmul.f32 %v45, 0.20019531
  %v78 = vmul.f32 %v46, 0.20019531
  %v79 = vmul.f32 %v47, 0.20019531
  %v80 = vpack.c.bf16 %v64, %v64
  %v81 = vpack.c.bf16 %v65, %v65
  %v82 = vpack.c.bf16 %v66, %v66
  %v83 = vpack.c.bf16 %v67, %v67
  %v84 = vpack.c.bf16 %v68, %v68
  %v85 = vpack.c.bf16 %v69, %v69
  %v86 = vpack.c.bf16 %v70, %v70
  %v87 = vpack.c.bf16 %v71, %v71
  %v88 = vpack.c.bf16 %v72, %v72
  %v89 = vpack.c.bf16 %v73, %v73
  %v90 = vpack.c.bf16 %v74, %v74
  %v91 = vpack.c.bf16 %v75, %v75
  %v92 = vpack.c.bf16 %v76, %v76
  %v93 = vpack.c.bf16 %v77, %v77
  %v94 = vpack.c.bf16 %v78, %v78
  %v95 = vpack.c.bf16 %v79, %v79
  %vm96 = vmpackc.low %vm48, %vm48
  %vm97 = vmpackc.low %vm49, %vm49
  %vm98 = vmpackc.low %vm50, %vm50
  %vm99 = vmpackc.low %vm51, %vm51
  %vm100 = vmpackc.low %vm52, %vm52
  %vm101 = vmpackc.low %vm53, %vm53
  %vm102 = vmpackc.low %vm54, %vm54
  %vm103 = vmpackc.low %vm55, %vm55
  %vm104 = vmpackc.low %vm56, %vm56
  %vm105 = vmpackc.low %vm57, %vm57
  %vm106 = vmpackc.low %vm58, %vm58
  %vm107 = vmpackc.low %vm59, %vm59
  %vm108 = vmpackc.low %vm60, %vm60
  %vm109 = vmpackc.low %vm61, %vm61
  %vm110 = vmpackc.low %vm62, %vm62
  %vm111 = vmpackc.low %vm63, %vm63
  %v112 = vsel %vm96, %v16, %v80
  %v113 = vsel %vm97, %v17, %v81
  %v114 = vsel %vm98, %v18, %v82
  %v115 = vsel %vm99, %v19, %v83
  %v116 = vsel %vm100, %v20, %v84
  %v117 = vsel %vm101, %v21, %v85
  %v118 = vsel %vm102, %v22, %v86
  %v119 = vsel %vm103, %v23, %v87
  %v120 = vsel %vm104, %v24, %v88
  %v121 = vsel %vm105, %v25, %v89
  %v122 = vsel %vm106, %v26, %v90
  %v123 = vsel %vm107, %v27, %v91
  %v124 = vsel %vm108, %v28, %v92
  %v125 = vsel %vm109, %v29, %v93
  %v126 = vsel %vm110, %v30, %v94
  %v127 = vsel %vm111, %v31, %v95
  %v128 = vld [vmem:[%s1] sm:$0xf]
  %v129 = vld [vmem:[%s1 + $0x4] sm:$0xf]
  %v130 = vld [vmem:[%s1 + $0x8] sm:$0xf]
  %v131 = vld [vmem:[%s1 + $0xc] sm:$0xf]
  %v132 = vld [vmem:[%s1 + $0x10] sm:$0xf]
  %v133 = vld [vmem:[%s1 + $0x14] sm:$0xf]
  %v134 = vld [vmem:[%s1 + $0x18] sm:$0xf]
  %v135 = vld [vmem:[%s1 + $0x1c] sm:$0xf]
  %v136 = vld [vmem:[%s1 + $0x20] sm:$0xf]
  %v137 = vld [vmem:[%s1 + $0x24] sm:$0xf]
  %v138 = vld [vmem:[%s1 + $0x28] sm:$0xf]
  %v139 = vld [vmem:[%s1 + $0x2c] sm:$0xf]
  %v140 = vld [vmem:[%s1 + $0x30] sm:$0xf]
  %v141 = vld [vmem:[%s1 + $0x34] sm:$0xf]
  %v142 = vld [vmem:[%s1 + $0x38] sm:$0xf]
  %v143 = vld [vmem:[%s1 + $0x3c] sm:$0xf]
  %v144 = vld [vmem:[%s2] sm:$0x1]
  %v146 = vperm.slane %v144, 0
  %v164 = vunpack.c.l.b16 %v112
  %v165 = vunpack.c.l.b16 %v113
  %v166 = vunpack.c.l.b16 %v114
  %v167 = vunpack.c.l.b16 %v115
  %v168 = vunpack.c.l.b16 %v116
  %v169 = vunpack.c.l.b16 %v117
  %v170 = vunpack.c.l.b16 %v118
  %v171 = vunpack.c.l.b16 %v119
  %v172 = vunpack.c.l.b16 %v120
  %v173 = vunpack.c.l.b16 %v121
  %v174 = vunpack.c.l.b16 %v122
  %v175 = vunpack.c.l.b16 %v123
  %v176 = vunpack.c.l.b16 %v124
  %v177 = vunpack.c.l.b16 %v125
  %v178 = vunpack.c.l.b16 %v126
  %v179 = vunpack.c.l.b16 %v127
  %v180 = vpack.c.b16 %v165, %v164
  %v181 = vpack.c.b16 %v167, %v166
  %v182 = vpack.c.b16 %v169, %v168
  %v183 = vpack.c.b16 %v171, %v170
  %v184 = vpack.c.b16 %v173, %v172
  %v185 = vpack.c.b16 %v175, %v174
  %v186 = vpack.c.b16 %v177, %v176
  %v187 = vpack.c.b16 %v179, %v178
  %v212 = vunpack.c.l.b16 %v128
  %v213 = vunpack.c.l.b16 %v129
  %v214 = vunpack.c.l.b16 %v130
  %v215 = vunpack.c.l.b16 %v131
  %v216 = vunpack.c.l.b16 %v132
  %v217 = vunpack.c.l.b16 %v133
  %v218 = vunpack.c.l.b16 %v134
  %v219 = vunpack.c.l.b16 %v135
  %v220 = vunpack.c.l.b16 %v136
  %v221 = vunpack.c.l.b16 %v137
  %v222 = vunpack.c.l.b16 %v138
  %v223 = vunpack.c.l.b16 %v139
  %v224 = vunpack.c.l.b16 %v140
  %v225 = vunpack.c.l.b16 %v141
  %v226 = vunpack.c.l.b16 %v142
  %v227 = vunpack.c.l.b16 %v143
  %v228 = vpack.c.b16 %v213, %v212
  %v229 = vpack.c.b16 %v215, %v214
  %v230 = vpack.c.b16 %v217, %v216
  %v231 = vpack.c.b16 %v219, %v218
  %v232 = vpack.c.b16 %v221, %v220
  %v233 = vpack.c.b16 %v223, %v222
  %v234 = vpack.c.b16 %v225, %v224
  %v235 = vpack.c.b16 %v227, %v226
  %244 = vmatpush.bf16.msra.mxu0 %v235
  %245 = vmatpush.bf16.msra.mxu0 %v234
  %246 = vmatpush.bf16.msra.mxu0 %v233
  %247 = vmatpush.bf16.msra.mxu0 %v232
  %248 = vmatpush.bf16.msra.mxu0 %v231
  %249 = vmatpush.bf16.msra.mxu0 %v230
  %250 = vmatpush.bf16.msra.mxu0 %v229
  %251 = vmatpush.bf16.msra.mxu0 %v228
  %252 = vmatmul.bf16.gmra.mxu0 %v180
  %v253 = vpop.f32.mrf.mxu0
  %v254 = vadd.f32 %v146, %v253
  %v255 = vpop.f32.mrf.mxu0
  %v256 = vadd.f32 %v146, %v255
  %257 = vmatmul.bf16.gmra.mxu0 %v181
  %v258 = vpop.f32.mrf.mxu0
  %v259 = vadd.f32 %v146, %v258
  %v260 = vpop.f32.mrf.mxu0
  %v261 = vadd.f32 %v146, %v260
  %262 = vmatmul.bf16.gmra.mxu0 %v182
  %v263 = vpop.f32.mrf.mxu0
  %v264 = vadd.f32 %v146, %v263
  %v265 = vpop.f32.mrf.mxu0
  %v266 = vadd.f32 %v146, %v265
  %267 = vmatmul.bf16.gmra.mxu0 %v183
  %v268 = vpop.f32.mrf.mxu0
  %v269 = vadd.f32 %v146, %v268
  %v270 = vpop.f32.mrf.mxu0
  %v271 = vadd.f32 %v146, %v270
  %272 = vmatmul.bf16.gmra.mxu0 %v184
  %v273 = vpop.f32.mrf.mxu0
  %v274 = vadd.f32 %v146, %v273
  %v275 = vpop.f32.mrf.mxu0
  %v276 = vadd.f32 %v146, %v275
  %277 = vmatmul.bf16.gmra.mxu0 %v185
  %v278 = vpop.f32.mrf.mxu0
  %v279 = vadd.f32 %v146, %v278
  %v280 = vpop.f32.mrf.mxu0
  %v281 = vadd.f32 %v146, %v280
  %282 = vmatmul.bf16.gmra.mxu0 %v186
  %v283 = vpop.f32.mrf.mxu0
  %v284 = vadd.f32 %v146, %v283
  %v285 = vpop.f32.mrf.mxu0
  %v286 = vadd.f32 %v146, %v285
  %287 = vmatmul.bf16.gmra.mxu0 %v187
  %v288 = vpop.f32.mrf.mxu0
  %v289 = vadd.f32 %v146, %v288
  %v290 = vpop.f32.mrf.mxu0
  %v291 = vadd.f32 %v146, %v290
  %292 = vdwg.mxu0
  %v293 = vadd.f32 %v254, %v256
  %v294 = vadd.f32 %v293, %v259
  %v295 = vadd.f32 %v294, %v261
  %v296 = vadd.f32 %v295, %v264
  %v297 = vadd.f32 %v296, %v266
  %v298 = vadd.f32 %v297, %v269
  %v299 = vadd.f32 %v298, %v271
  %v300 = vadd.f32 %v299, %v274
  %v301 = vadd.f32 %v300, %v276
  %v302 = vadd.f32 %v301, %v279
  %v303 = vadd.f32 %v302, %v281
  %v304 = vadd.f32 %v303, %v284
  %v305 = vadd.f32 %v304, %v286
  %v306 = vadd.f32 %v305, %v289
  %v307 = vadd.f32 %v306, %v291
  %v308 = vrot.slane %v307, 4
  %v309 = vadd.f32 %v307, %v308
  %v310 = vrot.slane %v309, 2
  %v311 = vadd.f32 %v309, %v310
  %v312 = vrot.slane %v311, 1
  %v313 = vadd.f32 %v311, %v312
  %314 = vst [vmem:[%s4] sm:$0x1] %v313
  %v315 = vmul.f32 %v254, %v254
  %v316 = vmul.f32 %v256, %v256
  %v317 = vmul.f32 %v259, %v259
  %v318 = vmul.f32 %v261, %v261
  %v319 = vmul.f32 %v264, %v264
  %v320 = vmul.f32 %v266, %v266
  %v321 = vmul.f32 %v269, %v269
  %v322 = vmul.f32 %v271, %v271
  %v323 = vmul.f32 %v274, %v274
  %v324 = vmul.f32 %v276, %v276
  %v325 = vmul.f32 %v279, %v279
  %v326 = vmul.f32 %v281, %v281
  %v327 = vmul.f32 %v284, %v284
  %v328 = vmul.f32 %v286, %v286
  %v329 = vmul.f32 %v289, %v289
  %v330 = vmul.f32 %v291, %v291
  %v331 = vadd.f32 %v315, %v316
  %v332 = vadd.f32 %v331, %v317
  %v333 = vadd.f32 %v332, %v318
  %v334 = vadd.f32 %v333, %v319
  %v335 = vadd.f32 %v334, %v320
  %v336 = vadd.f32 %v335, %v321
  %v337 = vadd.f32 %v336, %v322
  %v338 = vadd.f32 %v337, %v323
  %v339 = vadd.f32 %v338, %v324
  %v340 = vadd.f32 %v339, %v325
  %v341 = vadd.f32 %v340, %v326
  %v342 = vadd.f32 %v341, %v327
  %v343 = vadd.f32 %v342, %v328
  %v344 = vadd.f32 %v343, %v329
  %v345 = vadd.f32 %v344, %v330
  %v346 = vrot.slane %v345, 4
  %v347 = vadd.f32 %v345, %v346
  %v348 = vrot.slane %v347, 2
  %v349 = vadd.f32 %v347, %v348
  %v350 = vrot.slane %v349, 1
  %v351 = vadd.f32 %v349, %v350
  %352 = vst [vmem:[%s4 + $0x1] sm:$0x1] %v351
  %v353 = vpack.c.bf16 %v254, %v254
  %v354 = vpack.c.bf16 %v256, %v256
  %v355 = vpack.c.bf16 %v259, %v259
  %v356 = vpack.c.bf16 %v261, %v261
  %v357 = vpack.c.bf16 %v264, %v264
  %v358 = vpack.c.bf16 %v266, %v266
  %v359 = vpack.c.bf16 %v269, %v269
  %v360 = vpack.c.bf16 %v271, %v271
  %v361 = vpack.c.bf16 %v274, %v274
  %v362 = vpack.c.bf16 %v276, %v276
  %v363 = vpack.c.bf16 %v279, %v279
  %v364 = vpack.c.bf16 %v281, %v281
  %v365 = vpack.c.bf16 %v284, %v284
  %v366 = vpack.c.bf16 %v286, %v286
  %v367 = vpack.c.bf16 %v289, %v289
  %v368 = vpack.c.bf16 %v291, %v291
  %369 = vst [vmem:[%s3] sm:$0xf] %v353
  %370 = vst [vmem:[%s3 + $0x4] sm:$0xf] %v354
  %371 = vst [vmem:[%s3 + $0x8] sm:$0xf] %v355
  %372 = vst [vmem:[%s3 + $0xc] sm:$0xf] %v356
  %373 = vst [vmem:[%s3 + $0x10] sm:$0xf] %v357
  %374 = vst [vmem:[%s3 + $0x14] sm:$0xf] %v358
  %375 = vst [vmem:[%s3 + $0x18] sm:$0xf] %v359
  %376 = vst [vmem:[%s3 + $0x1c] sm:$0xf] %v360
  %377 = vst [vmem:[%s3 + $0x20] sm:$0xf] %v361
  %378 = vst [vmem:[%s3 + $0x24] sm:$0xf] %v362
  %379 = vst [vmem:[%s3 + $0x28] sm:$0xf] %v363
  %380 = vst [vmem:[%s3 + $0x2c] sm:$0xf] %v364
  %381 = vst [vmem:[%s3 + $0x30] sm:$0xf] %v365
  %382 = vst [vmem:[%s3 + $0x34] sm:$0xf] %v366
  %383 = vst [vmem:[%s3 + $0x38] sm:$0xf] %v367
  %384 = vst [vmem:[%s3 + $0x3c] sm:$0xf] %v368
  // Predicated region
  $region14: #{unet_generator_forward.18} parent=0 // pred_check
    _
  $region15: #{unet_generator_forward.18} parent=0 // pred_check_branch
    %386 = sbr.rel (0) target = $region17
  $region16: #{unet_generator_forward.18} parent=0 // pred_region
    _
  $region17: #{unet_generator_forward.18} parent=0 // pred_fallthru
    _
  // Predicated region
  $region18: #{unet_generator_forward.18} parent=0 // pred_check
    _
  $region19: #{unet_generator_forward.18} parent=0 // pred_check_branch
    %388 = sbr.rel (0) target = $region21
  $region20: #{unet_generator_forward.18} parent=0 // pred_region
    _
  $region21: #{unet_generator_forward.18} parent=0 // pred_fallthru
    _
  // Predicated region
  $region22: #{unet_generator_forward.18} parent=0 // pred_check
    _
  $region23: #{unet_generator_forward.18} parent=0 // pred_check_branch
    %390 = sbr.rel (0) target = $region25
  $region24: #{unet_generator_forward.18} parent=0 // pred_region
    _
  $region25: #{unet_generator_forward.18} parent=0 // pred_fallthru
    _
  // Predicated region
  $region26: #{unet_generator_forward.18} parent=0 // pred_check
    _
  $region27: #{unet_generator_forward.18} parent=0 // pred_check_branch
    %392 = sbr.rel (0) target = $region29
  $region28: #{unet_generator_forward.18} parent=0 // pred_region
    _
  $region29: #{unet_generator_forward.18} parent=0 // pred_fallthru
    _

// kernel: tile.73
$region0: #{tile.73}
  #allocation0 [shape = 's32[1]{0}', space=sflag, size = 0x4, scoped, tag = 'scoped memory for tile.73']
  %s0 = inlined_call_operand.vmem [shape: f32[16], index: 0, kind: input, shape index: {}]
  %s1 = inlined_call_operand.vmem [shape: f32[8,16], index: 1, kind: output, shape index: {}]
  // Predicated region
  $region2: #{tile.73} parent=0 // pred_check
    _
  $region3: #{tile.73} parent=0 // pred_check_branch
    %3 = sbr.rel (0) target = $region5
  $region4: #{tile.73} parent=0 // pred_region
    _
  $region5: #{tile.73} parent=0 // pred_fallthru
    _
  %v4 = vld [vmem:[%s0] ss:$0 sm:$0xff]
  %5 = vst [vmem:[%s1] sm:$0xff] %v4

// kernel: tile.74
$region0: #{tile.74}
  %s0 = inlined_call_operand.vmem [shape: f32[8,16], index: 0, kind: input, shape index: {}]
  %s1 = inlined_call_operand.vmem [shape: f32[1,128], index: 1, kind: output, shape index: {}]
  $region1: #{tile.74} parent=0
    #allocation0 [shape = 'u8[4096]{0}', space=vmem, size = 0x1000, scoped, tag = 'scoped mem for output reshape']
    %v2 = vld [vmem:[%s0] sm:$0x1]
    %vm3 = vcmask 130048
    %4 = vst.msk [vmem:[#allocation0] sm:$0x1] %vm3, %v2
    %s5 = scalar_lea.vmem %s0, 7
    %v6 = vld [vmem:[%s5] sm:$0x1]
    %7 = vrot.lane.b32.xlu0 %v6, 112
    %v8 = vpop.permute.xlu0 %7
    %vm9 = vcmask 1048448
    %10 = vst.msk [vmem:[#allocation0] sm:$0x1] %vm9, %v8
    %s11 = scalar_lea.vmem %s0, 6
    %v12 = vld [vmem:[%s11] sm:$0x1]
    %13 = vrot.lane.b32.xlu0 %v12, 96
    %v14 = vpop.permute.xlu0 %13
    %vm15 = vcmask 917248
    %16 = vst.msk [vmem:[#allocation0] sm:$0x1] %vm15, %v14
    %s17 = scalar_lea.vmem %s0, 5
    %v18 = vld [vmem:[%s17] sm:$0x1]
    %19 = vrot.lane.b32.xlu0 %v18, 80
    %v20 = vpop.permute.xlu0 %19
    %vm21 = vcmask 786048
    %22 = vst.msk [vmem:[#allocation0] sm:$0x1] %vm21, %v20
    %s23 = scalar_lea.vmem %s0, 4
    %v24 = vld [vmem:[%s23] sm:$0x1]
    %25 = vrot.lane.b32.xlu0 %v24, 64
    %v26 = vpop.permute.xlu0 %25
    %vm27 = vcmask 654848
    %28 = vst.msk [vmem:[#allocation0] sm:$0x1] %vm27, %v26
    %s29 = scalar_lea.vmem %s0, 3
    %v30 = vld [vmem:[%s29] sm:$0x1]
    %31 = vrot.lane.b32.xlu0 %v30, 48
    %v32 = vpop.permute.xlu0 %31
    %vm33 = vcmask 523648
    %34 = vst.msk [vmem:[#allocation0] sm:$0x1] %vm33, %v32
    %s35 = scalar_lea.vmem %s0, 2
    %v36 = vld [vmem:[%s35] sm:$0x1]
    %37 = vrot.lane.b32.xlu0 %v36, 32
    %v38 = vpop.permute.xlu0 %37
    %vm39 = vcmask 392448
    %40 = vst.msk [vmem:[#allocation0] sm:$0x1] %vm39, %v38
    %s41 = scalar_lea.vmem %s0, 1
    %v42 = vld [vmem:[%s41] sm:$0x1]
    %43 = vrot.lane.b32.xlu0 %v42, 16
    %v44 = vpop.permute.xlu0 %43
    %vm45 = vcmask 261248
    %46 = vst.msk [vmem:[#allocation0] sm:$0x1] %vm45, %v44
    %s48 = ssub.s32 2, 1
    %v49 = vld [vmem:[#allocation0] sm:%s48]
    %s51 = ssub.s32 2, 1
    %52 = vst [vmem:[%s1] sm:%s51] %v49

// kernel: squeeze.22
$region0: #{squeeze.22}
  %s0 = inlined_call_operand.vmem [shape: bf16[1,128,16], index: 0, kind: input, shape index: {}]
  %s1 = inlined_call_operand.vmem [shape: bf16[16,128], index: 1, kind: output, shape index: {}]
  $region1: #{squeeze.22} parent=0
    #allocation0 [shape = 'u8[8192]{0}', space=vmem, size = 0x2000, scoped, tag = 'scoped mem for output reshape']
    #allocation1 [shape = 'u8[65536]{0}', space=vmem, size = 0x10000, scoped, tag = 'scoped mem for input reshape']
    %s3 = ssub.s32 256, 1
    %s4 = scalar_lea.vmem %s0, 60
    %s5 = sshrl.u32 %s3, 1
    %s6 = sor.u32 %s3, %s5
    %s7 = sand.u32 %s6, 85
    %s8 = sshrl.u32 %s7, 1
    %s9 = sor.u32 %s7, %s8
    %s10 = sand.u32 51, %s9
    %s11 = sshrl.u32 %s10, 2
    %s12 = sor.u32 %s10, %s11
    %s13 = sand.u32 15, %s12
    %v14 = vld [vmem:[%s4] sm:%s13]
    %v15 = vunpack.c.l.bf16 %v14
    %v16 = vunpack.c.h.bf16 %v14
    %s17 = scalar_lea.vmem [#allocation1], 120
    %18 = vst [vmem:[%s17] sm:%s3] %v15
    %s19 = scalar_lea.vmem %s0, 56
    %s20 = sshrl.u32 %s3, 1
    %s21 = sor.u32 %s3, %s20
    %s22 = sand.u32 %s21, 85
    %s23 = sshrl.u32 %s22, 1
    %s24 = sor.u32 %s22, %s23
    %s25 = sand.u32 51, %s24
    %s26 = sshrl.u32 %s25, 2
    %s27 = sor.u32 %s25, %s26
    %s28 = sand.u32 15, %s27
    %v29 = vld [vmem:[%s19] sm:%s28]
    %v30 = vunpack.c.l.bf16 %v29
    %v31 = vunpack.c.h.bf16 %v29
    %s32 = scalar_lea.vmem [#allocation1], 112
    %33 = vst [vmem:[%s32] sm:%s3] %v30
    %s34 = scalar_lea.vmem %s0, 52
    %s35 = sshrl.u32 %s3, 1
    %s36 = sor.u32 %s3, %s35
    %s37 = sand.u32 %s36, 85
    %s38 = sshrl.u32 %s37, 1
    %s39 = sor.u32 %s37, %s38
    %s40 = sand.u32 51, %s39
    %s41 = sshrl.u32 %s40, 2
    %s42 = sor.u32 %s40, %s41
    %s43 = sand.u32 15, %s42
    %v44 = vld [vmem:[%s34] sm:%s43]
    %v45 = vunpack.c.l.bf16 %v44
    %v46 = vunpack.c.h.bf16 %v44
    %s47 = scalar_lea.vmem [#allocation1], 104
    %48 = vst [vmem:[%s47] sm:%s3] %v45
    %s49 = scalar_lea.vmem %s0, 48
    %s50 = sshrl.u32 %s3, 1
    %s51 = sor.u32 %s3, %s50
    %s52 = sand.u32 %s51, 85
    %s53 = sshrl.u32 %s52, 1
    %s54 = sor.u32 %s52, %s53
    %s55 = sand.u32 51, %s54
    %s56 = sshrl.u32 %s55, 2
    %s57 = sor.u32 %s55, %s56
    %s58 = sand.u32 15, %s57
    %v59 = vld [vmem:[%s49] sm:%s58]
    %v60 = vunpack.c.l.bf16 %v59
    %v61 = vunpack.c.h.bf16 %v59
    %s62 = scalar_lea.vmem [#allocation1], 96
    %63 = vst [vmem:[%s62] sm:%s3] %v60
    %s64 = scalar_lea.vmem %s0, 44
    %s65 = sshrl.u32 %s3, 1
    %s66 = sor.u32 %s3, %s65
    %s67 = sand.u32 %s66, 85
    %s68 = sshrl.u32 %s67, 1
    %s69 = sor.u32 %s67, %s68
    %s70 = sand.u32 51, %s69
    %s71 = sshrl.u32 %s70, 2
    %s72 = sor.u32 %s70, %s71
    %s73 = sand.u32 15, %s72
    %v74 = vld [vmem:[%s64] sm:%s73]
    %v75 = vunpack.c.l.bf16 %v74
    %v76 = vunpack.c.h.bf16 %v74
    %s77 = scalar_lea.vmem [#allocation1], 88
    %78 = vst [vmem:[%s77] sm:%s3] %v75
    %s79 = scalar_lea.vmem %s0, 40
    %s80 = sshrl.u32 %s3, 1
    %s81 = sor.u32 %s3, %s80
    %s82 = sand.u32 %s81, 85
    %s83 = sshrl.u32 %s82, 1
    %s84 = sor.u32 %s82, %s83
    %s85 = sand.u32 51, %s84
    %s86 = sshrl.u32 %s85, 2
    %s87 = sor.u32 %s85, %s86
    %s88 = sand.u32 15, %s87
    %v89 = vld [vmem:[%s79] sm:%s88]
    %v90 = vunpack.c.l.bf16 %v89
    %v91 = vunpack.c.h.bf16 %v89
    %s92 = scalar_lea.vmem [#allocation1], 80
    %93 = vst [vmem:[%s92] sm:%s3] %v90
    %s94 = scalar_lea.vmem %s0, 36
    %s95 = sshrl.u32 %s3, 1
    %s96 = sor.u32 %s3, %s95
    %s97 = sand.u32 %s96, 85
    %s98 = sshrl.u32 %s97, 1
    %s99 = sor.u32 %s97, %s98
    %s100 = sand.u32 51, %s99
    %s101 = sshrl.u32 %s100, 2
    %s102 = sor.u32 %s100, %s101
    %s103 = sand.u32 15, %s102
    %v104 = vld [vmem:[%s94] sm:%s103]
    %v105 = vunpack.c.l.bf16 %v104
    %v106 = vunpack.c.h.bf16 %v104
    %s107 = scalar_lea.vmem [#allocation1], 72
    %108 = vst [vmem:[%s107] sm:%s3] %v105
    %s109 = scalar_lea.vmem %s0, 32
    %s110 = sshrl.u32 %s3, 1
    %s111 = sor.u32 %s3, %s110
    %s112 = sand.u32 %s111, 85
    %s113 = sshrl.u32 %s112, 1
    %s114 = sor.u32 %s112, %s113
    %s115 = sand.u32 51, %s114
    %s116 = sshrl.u32 %s115, 2
    %s117 = sor.u32 %s115, %s116
    %s118 = sand.u32 15, %s117
    %v119 = vld [vmem:[%s109] sm:%s118]
    %v120 = vunpack.c.l.bf16 %v119
    %v121 = vunpack.c.h.bf16 %v119
    %s122 = scalar_lea.vmem [#allocation1], 64
    %123 = vst [vmem:[%s122] sm:%s3] %v120
    %s124 = scalar_lea.vmem %s0, 28
    %s125 = sshrl.u32 %s3, 1
    %s126 = sor.u32 %s3, %s125
    %s127 = sand.u32 %s126, 85
    %s128 = sshrl.u32 %s127, 1
    %s129 = sor.u32 %s127, %s128
    %s130 = sand.u32 51, %s129
    %s131 = sshrl.u32 %s130, 2
    %s132 = sor.u32 %s130, %s131
    %s133 = sand.u32 15, %s132
    %v134 = vld [vmem:[%s124] sm:%s133]
    %v135 = vunpack.c.l.bf16 %v134
    %v136 = vunpack.c.h.bf16 %v134
    %s137 = scalar_lea.vmem [#allocation1], 56
    %138 = vst [vmem:[%s137] sm:%s3] %v135
    %s139 = scalar_lea.vmem %s0, 24
    %s140 = sshrl.u32 %s3, 1
    %s141 = sor.u32 %s3, %s140
    %s142 = sand.u32 %s141, 85
    %s143 = sshrl.u32 %s142, 1
    %s144 = sor.u32 %s142, %s143
    %s145 = sand.u32 51, %s144
    %s146 = sshrl.u32 %s145, 2
    %s147 = sor.u32 %s145, %s146
    %s148 = sand.u32 15, %s147
    %v149 = vld [vmem:[%s139] sm:%s148]
    %v150 = vunpack.c.l.bf16 %v149
    %v151 = vunpack.c.h.bf16 %v149
    %s152 = scalar_lea.vmem [#allocation1], 48
    %153 = vst [vmem:[%s152] sm:%s3] %v150
    %s154 = scalar_lea.vmem %s0, 20
    %s155 = sshrl.u32 %s3, 1
    %s156 = sor.u32 %s3, %s155
    %s157 = sand.u32 %s156, 85
    %s158 = sshrl.u32 %s157, 1
    %s159 = sor.u32 %s157, %s158
    %s160 = sand.u32 51, %s159
    %s161 = sshrl.u32 %s160, 2
    %s162 = sor.u32 %s160, %s161
    %s163 = sand.u32 15, %s162
    %v164 = vld [vmem:[%s154] sm:%s163]
    %v165 = vunpack.c.l.bf16 %v164
    %v166 = vunpack.c.h.bf16 %v164
    %s167 = scalar_lea.vmem [#allocation1], 40
    %168 = vst [vmem:[%s167] sm:%s3] %v165
    %s169 = scalar_lea.vmem %s0, 16
    %s170 = sshrl.u32 %s3, 1
    %s171 = sor.u32 %s3, %s170
    %s172 = sand.u32 %s171, 85
    %s173 = sshrl.u32 %s172, 1
    %s174 = sor.u32 %s172, %s173
    %s175 = sand.u32 51, %s174
    %s176 = sshrl.u32 %s175, 2
    %s177 = sor.u32 %s175, %s176
    %s178 = sand.u32 15, %s177
    %v179 = vld [vmem:[%s169] sm:%s178]
    %v180 = vunpack.c.l.bf16 %v179
    %v181 = vunpack.c.h.bf16 %v179
    %s182 = scalar_lea.vmem [#allocation1], 32
    %183 = vst [vmem:[%s182] sm:%s3] %v180
    %s184 = scalar_lea.vmem %s0, 12
    %s185 = sshrl.u32 %s3, 1
    %s186 = sor.u32 %s3, %s185
    %s187 = sand.u32 %s186, 85
    %s188 = sshrl.u32 %s187, 1
    %s189 = sor.u32 %s187, %s188
    %s190 = sand.u32 51, %s189
    %s191 = sshrl.u32 %s190, 2
    %s192 = sor.u32 %s190, %s191
    %s193 = sand.u32 15, %s192
    %v194 = vld [vmem:[%s184] sm:%s193]
    %v195 = vunpack.c.l.bf16 %v194
    %v196 = vunpack.c.h.bf16 %v194
    %s197 = scalar_lea.vmem [#allocation1], 24
    %198 = vst [vmem:[%s197] sm:%s3] %v195
    %s199 = scalar_lea.vmem %s0, 8
    %s200 = sshrl.u32 %s3, 1
    %s201 = sor.u32 %s3, %s200
    %s202 = sand.u32 %s201, 85
    %s203 = sshrl.u32 %s202, 1
    %s204 = sor.u32 %s202, %s203
    %s205 = sand.u32 51, %s204
    %s206 = sshrl.u32 %s205, 2
    %s207 = sor.u32 %s205, %s206
    %s208 = sand.u32 15, %s207
    %v209 = vld [vmem:[%s199] sm:%s208]
    %v210 = vunpack.c.l.bf16 %v209
    %v211 = vunpack.c.h.bf16 %v209
    %s212 = scalar_lea.vmem [#allocation1], 16
    %213 = vst [vmem:[%s212] sm:%s3] %v210
    %s214 = scalar_lea.vmem %s0, 4
    %s215 = sshrl.u32 %s3, 1
    %s216 = sor.u32 %s3, %s215
    %s217 = sand.u32 %s216, 85
    %s218 = sshrl.u32 %s217, 1
    %s219 = sor.u32 %s217, %s218
    %s220 = sand.u32 51, %s219
    %s221 = sshrl.u32 %s220, 2
    %s222 = sor.u32 %s220, %s221
    %s223 = sand.u32 15, %s222
    %v224 = vld [vmem:[%s214] sm:%s223]
    %v225 = vunpack.c.l.bf16 %v224
    %v226 = vunpack.c.h.bf16 %v224
    %s227 = scalar_lea.vmem [#allocation1], 8
    %228 = vst [vmem:[%s227] sm:%s3] %v225
    %s229 = sshrl.u32 %s3, 1
    %s230 = sor.u32 %s3, %s229
    %s231 = sand.u32 %s230, 85
    %s232 = sshrl.u32 %s231, 1
    %s233 = sor.u32 %s231, %s232
    %s234 = sand.u32 51, %s233
    %s235 = sshrl.u32 %s234, 2
    %s236 = sor.u32 %s234, %s235
    %s237 = sand.u32 15, %s236
    %v238 = vld [vmem:[%s0] sm:%s237]
    %v239 = vunpack.c.l.bf16 %v238
    %v240 = vunpack.c.h.bf16 %v238
    %241 = vst [vmem:[#allocation1] sm:%s3] %v239
    %v242 = vld [vmem:[#allocation1] ss:$8 sm:$0xf]
    %v243 = vld [vmem:[#allocation1] ss:$8 sm:$0xf0]
    %vm244 = vcmask 1047556
    %v245 = vsel %vm244, %v243, %v242
    %vm246 = vcmask 130048
    %247 = vst.msk [vmem:[#allocation0] sm:$0xff] %vm246, %v245
    %s248 = scalar_lea.vmem [#allocation1], 64
    %v249 = vld [vmem:[%s248] ss:$8 sm:$0xf]
    %s250 = scalar_lea.vmem [#allocation1], 64
    %v251 = vld [vmem:[%s250] ss:$8 sm:$0xf0]
    %vm252 = vcmask 1047556
    %v253 = vsel %vm252, %v251, %v249
    %vm254 = vcmask 130048
    %s255 = scalar_lea.vmem [#allocation0], 8
    %256 = vst.msk [vmem:[%s255] sm:$0xff] %vm254, %v253
    %s257 = scalar_lea.vmem [#allocation1], 7
    %v258 = vld [vmem:[%s257] ss:$8 sm:$0xf]
    %s259 = scalar_lea.vmem [#allocation1], 7
    %v260 = vld [vmem:[%s259] ss:$8 sm:$0xf0]
    %vm261 = vcmask 1047556
    %v262 = vsel %vm261, %v260, %v258
    %263 = vrot.lane.b32.xlu0 %v262, 112
    %v264 = vpop.permute.xlu0 %263
    %vm265 = vcmask 1048448
    %266 = vst.msk [vmem:[#allocation0] sm:$0xff] %vm265, %v264
    %s267 = scalar_lea.vmem [#allocation1], 71
    %v268 = vld [vmem:[%s267] ss:$8 sm:$0xf]
    %s269 = scalar_lea.vmem [#allocation1], 71
    %v270 = vld [vmem:[%s269] ss:$8 sm:$0xf0]
    %vm271 = vcmask 1047556
    %v272 = vsel %vm271, %v270, %v268
    %273 = vrot.lane.b32.xlu0 %v272, 112
    %v274 = vpop.permute.xlu0 %273
    %vm275 = vcmask 1048448
    %s276 = scalar_lea.vmem [#allocation0], 8
    %277 = vst.msk [vmem:[%s276] sm:$0xff] %vm275, %v274
    %s278 = scalar_lea.vmem [#allocation1], 6
    %v279 = vld [vmem:[%s278] ss:$8 sm:$0xf]
    %s280 = scalar_lea.vmem [#allocation1], 6
    %v281 = vld [vmem:[%s280] ss:$8 sm:$0xf0]
    %vm282 = vcmask 1047556
    %v283 = vsel %vm282, %v281, %v279
    %284 = vrot.lane.b32.xlu0 %v283, 96
    %v285 = vpop.permute.xlu0 %284
    %vm286 = vcmask 917248
    %287 = vst.msk [vmem:[#allocation0] sm:$0xff] %vm286, %v285
    %s288 = scalar_lea.vmem [#allocation1], 70
    %v289 = vld [vmem:[%s288] ss:$8 sm:$0xf]
    %s290 = scalar_lea.vmem [#allocation1], 70
    %v291 = vld [vmem:[%s290] ss:$8 sm:$0xf0]
    %vm292 = vcmask 1047556
    %v293 = vsel %vm292, %v291, %v289
    %294 = vrot.lane.b32.xlu0 %v293, 96
    %v295 = vpop.permute.xlu0 %294
    %vm296 = vcmask 917248
    %s297 = scalar_lea.vmem [#allocation0], 8
    %298 = vst.msk [vmem:[%s297] sm:$0xff] %vm296, %v295
    %s299 = scalar_lea.vmem [#allocation1], 5
    %v300 = vld [vmem:[%s299] ss:$8 sm:$0xf]
    %s301 = scalar_lea.vmem [#allocation1], 5
    %v302 = vld [vmem:[%s301] ss:$8 sm:$0xf0]
    %vm303 = vcmask 1047556
    %v304 = vsel %vm303, %v302, %v300
    %305 = vrot.lane.b32.xlu0 %v304, 80
    %v306 = vpop.permute.xlu0 %305
    %vm307 = vcmask 786048
    %308 = vst.msk [vmem:[#allocation0] sm:$0xff] %vm307, %v306
    %s309 = scalar_lea.vmem [#allocation1], 69
    %v310 = vld [vmem:[%s309] ss:$8 sm:$0xf]
    %s311 = scalar_lea.vmem [#allocation1], 69
    %v312 = vld [vmem:[%s311] ss:$8 sm:$0xf0]
    %vm313 = vcmask 1047556
    %v314 = vsel %vm313, %v312, %v310
    %315 = vrot.lane.b32.xlu0 %v314, 80
    %v316 = vpop.permute.xlu0 %315
    %vm317 = vcmask 786048
    %s318 = scalar_lea.vmem [#allocation0], 8
    %319 = vst.msk [vmem:[%s318] sm:$0xff] %vm317, %v316
    %s320 = scalar_lea.vmem [#allocation1], 4
    %v321 = vld [vmem:[%s320] ss:$8 sm:$0xf]
    %s322 = scalar_lea.vmem [#allocation1], 4
    %v323 = vld [vmem:[%s322] ss:$8 sm:$0xf0]
    %vm324 = vcmask 1047556
    %v325 = vsel %vm324, %v323, %v321
    %326 = vrot.lane.b32.xlu0 %v325, 64
    %v327 = vpop.permute.xlu0 %326
    %vm328 = vcmask 654848
    %329 = vst.msk [vmem:[#allocation0] sm:$0xff] %vm328, %v327
    %s330 = scalar_lea.vmem [#allocation1], 68
    %v331 = vld [vmem:[%s330] ss:$8 sm:$0xf]
    %s332 = scalar_lea.vmem [#allocation1], 68
    %v333 = vld [vmem:[%s332] ss:$8 sm:$0xf0]
    %vm334 = vcmask 1047556
    %v335 = vsel %vm334, %v333, %v331
    %336 = vrot.lane.b32.xlu0 %v335, 64
    %v337 = vpop.permute.xlu0 %336
    %vm338 = vcmask 654848
    %s339 = scalar_lea.vmem [#allocation0], 8
    %340 = vst.msk [vmem:[%s339] sm:$0xff] %vm338, %v337
    %s341 = scalar_lea.vmem [#allocation1], 3
    %v342 = vld [vmem:[%s341] ss:$8 sm:$0xf]
    %s343 = scalar_lea.vmem [#allocation1], 3
    %v344 = vld [vmem:[%s343] ss:$8 sm:$0xf0]
    %vm345 = vcmask 1047556
    %v346 = vsel %vm345, %v344, %v342
    %347 = vrot.lane.b32.xlu0 %v346, 48
    %v348 = vpop.permute.xlu0 %347
    %vm349 = vcmask 523648
    %350 = vst.msk [vmem:[#allocation0] sm:$0xff] %vm349, %v348
    %s351 = scalar_lea.vmem [#allocation1], 67
    %v352 = vld [vmem:[%s351] ss:$8 sm:$0xf]
    %s353 = scalar_lea.vmem [#allocation1], 67
    %v354 = vld [vmem:[%s353] ss:$8 sm:$0xf0]
    %vm355 = vcmask 1047556
    %v356 = vsel %vm355, %v354, %v352
    %357 = vrot.lane.b32.xlu0 %v356, 48
    %v358 = vpop.permute.xlu0 %357
    %vm359 = vcmask 523648
    %s360 = scalar_lea.vmem [#allocation0], 8
    %361 = vst.msk [vmem:[%s360] sm:$0xff] %vm359, %v358
    %s362 = scalar_lea.vmem [#allocation1], 2
    %v363 = vld [vmem:[%s362] ss:$8 sm:$0xf]
    %s364 = scalar_lea.vmem [#allocation1], 2
    %v365 = vld [vmem:[%s364] ss:$8 sm:$0xf0]
    %vm366 = vcmask 1047556
    %v367 = vsel %vm366, %v365, %v363
    %368 = vrot.lane.b32.xlu0 %v367, 32
    %v369 = vpop.permute.xlu0 %368
    %vm370 = vcmask 392448
    %371 = vst.msk [vmem:[#allocation0] sm:$0xff] %vm370, %v369
    %s372 = scalar_lea.vmem [#allocation1], 66
    %v373 = vld [vmem:[%s372] ss:$8 sm:$0xf]
    %s374 = scalar_lea.vmem [#allocation1], 66
    %v375 = vld [vmem:[%s374] ss:$8 sm:$0xf0]
    %vm376 = vcmask 1047556
    %v377 = vsel %vm376, %v375, %v373
    %378 = vrot.lane.b32.xlu0 %v377, 32
    %v379 = vpop.permute.xlu0 %378
    %vm380 = vcmask 392448
    %s381 = scalar_lea.vmem [#allocation0], 8
    %382 = vst.msk [vmem:[%s381] sm:$0xff] %vm380, %v379
    %s383 = scalar_lea.vmem [#allocation1], 1
    %v384 = vld [vmem:[%s383] ss:$8 sm:$0xf]
    %s385 = scalar_lea.vmem [#allocation1], 1
    %v386 = vld [vmem:[%s385] ss:$8 sm:$0xf0]
    %vm387 = vcmask 1047556
    %v388 = vsel %vm387, %v386, %v384
    %389 = vrot.lane.b32.xlu0 %v388, 16
    %v390 = vpop.permute.xlu0 %389
    %vm391 = vcmask 261248
    %392 = vst.msk [vmem:[#allocation0] sm:$0xff] %vm391, %v390
    %s393 = scalar_lea.vmem [#allocation1], 65
    %v394 = vld [vmem:[%s393] ss:$8 sm:$0xf]
    %s395 = scalar_lea.vmem [#allocation1], 65
    %v396 = vld [vmem:[%s395] ss:$8 sm:$0xf0]
    %vm397 = vcmask 1047556
    %v398 = vsel %vm397, %v396, %v394
    %399 = vrot.lane.b32.xlu0 %v398, 16
    %v400 = vpop.permute.xlu0 %399
    %vm401 = vcmask 261248
    %s402 = scalar_lea.vmem [#allocation0], 8
    %403 = vst.msk [vmem:[%s402] sm:$0xff] %vm401, %v400
    %s405 = ssub.s32 256, 1
    %v406 = vld [vmem:[#allocation0] sm:%s405]
    %v407 = vpack.c.bf16 0.0, %v406
    %s409 = ssub.s32 16, 1
    %410 = vst [vmem:[%s1] sm:%s409] %v407
    %s411 = scalar_lea.vmem [#allocation0], 8
    %v412 = vld [vmem:[%s411] sm:%s405]
    %v413 = vpack.c.bf16 0.0, %v412
    %s415 = ssub.s32 16, 1
    %s416 = scalar_lea.vmem %s1, 4
    %417 = vst [vmem:[%s416] sm:%s415] %v413

// kernel: unet_generator_forward.19
$region0: #{unet_generator_forward.19}
  #allocation0 [shape = 'u32[]', space=smem, size = 0x4, offset = 0x4, fixed_abs, tag = 'smem constant byte address 0x4 - core index']
  #allocation1 [shape = 'u32[72,128]{1,0:T(1,128)}', space=vmem, size = 0x9000, scoped, tag = 'internal scratch']
  %s0 = inlined_call_operand.vmem [shape: bf16[16,128], index: 0, kind: input, shape index: {}]
  %s1 = inlined_call_operand.vmem [shape: f32[1,128], index: 1, kind: input, shape index: {}]
  %s2 = inlined_call_operand.vmem [shape: f32[1,128], index: 2, kind: input, shape index: {}]
  %s3 = inlined_call_operand.vmem [shape: bf16[16,128], index: 3, kind: output, shape index: {}]
  %s4 = sld [smem:[#allocation0]]
  $region22: #{unet_generator_forward.19} parent=0
    _
  %s6 = ssub.s32 1, %s4
  %s7 = scalar_select 0, %s6, %s4
  // Predicated region
  $region2: #{unet_generator_forward.19} parent=0 // pred_check
    _
  $region3: #{unet_generator_forward.19} parent=0 // pred_check_branch
    %9 = sbr.rel (0) target = $region5
  $region4: #{unet_generator_forward.19} parent=0 // pred_region
    _
  $region5: #{unet_generator_forward.19} parent=0 // pred_fallthru
    _
  // Predicated region
  $region6: #{unet_generator_forward.19} parent=0 // pred_check
    _
  $region7: #{unet_generator_forward.19} parent=0 // pred_check_branch
    %11 = sbr.rel (0) target = $region9
  $region8: #{unet_generator_forward.19} parent=0 // pred_region
    _
  $region9: #{unet_generator_forward.19} parent=0 // pred_fallthru
    _
  // Predicated region
  $region10: #{unet_generator_forward.19} parent=0 // pred_check
    _
  $region11: #{unet_generator_forward.19} parent=0 // pred_check_branch
    %13 = sbr.rel (0) target = $region13
  $region12: #{unet_generator_forward.19} parent=0 // pred_region
    _
  $region13: #{unet_generator_forward.19} parent=0 // pred_fallthru
    _
  %v14 = vld [vmem:[%s0] sm:$0xf]
  %v15 = vld [vmem:[%s0 + $0x4] sm:$0xf]
  %v16 = vunpack.c.l.bf16 %v14
  %v17 = vunpack.c.l.bf16 %v15
  %v18 = vld [vmem:[%s1] sm:$0x1]
  %v20 = vperm.slane %v18, 0
  %v22 = vmul.f32 %v16, %v20
  %v23 = vmul.f32 %v17, %v20
  %v24 = vld [vmem:[%s2] sm:$0x1]
  %v26 = vperm.slane %v24, 0
  %v28 = vadd.f32 %v22, %v26
  %v29 = vadd.f32 %v23, %v26
  %v30 = vpack.c.bf16 %v28, %v28
  %v31 = vpack.c.bf16 %v29, %v29
  %32 = vst [vmem:[%s3] sm:$0xf] %v30
  %33 = vst [vmem:[%s3 + $0x4] sm:$0xf] %v31
  // Predicated region
  $region14: #{unet_generator_forward.19} parent=0 // pred_check
    _
  $region15: #{unet_generator_forward.19} parent=0 // pred_check_branch
    %35 = sbr.rel (0) target = $region17
  $region16: #{unet_generator_forward.19} parent=0 // pred_region
    _
  $region17: #{unet_generator_forward.19} parent=0 // pred_fallthru
    _
  // Predicated region
  $region18: #{unet_generator_forward.19} parent=0 // pred_check
    _
  $region19: #{unet_generator_forward.19} parent=0 // pred_check_branch
    %37 = sbr.rel (0) target = $region21
  $region20: #{unet_generator_forward.19} parent=0 // pred_region
    _
  $region21: #{unet_generator_forward.19} parent=0 // pred_fallthru
    _

// kernel: tile.83
$region0: #{tile.83}
  #allocation0 [shape = 's32[1]{0}', space=sflag, size = 0x4, scoped, tag = 'scoped memory for tile.83']
  %s0 = inlined_call_operand.vmem [shape: f32[32], index: 0, kind: input, shape index: {}]
  %s1 = inlined_call_operand.vmem [shape: f32[4,32], index: 1, kind: output, shape index: {}]
  // Predicated region
  $region2: #{tile.83} parent=0 // pred_check
    _
  $region3: #{tile.83} parent=0 // pred_check_branch
    %3 = sbr.rel (0) target = $region5
  $region4: #{tile.83} parent=0 // pred_region
    _
  $region5: #{tile.83} parent=0 // pred_fallthru
    _
  %v4 = vld [vmem:[%s0] ss:$0 sm:$0xff]
  %5 = vst [vmem:[%s1] sm:$0xf] %v4

// kernel: tile.84
$region0: #{tile.84}
  %s0 = inlined_call_operand.vmem [shape: f32[4,32], index: 0, kind: input, shape index: {}]
  %s1 = inlined_call_operand.vmem [shape: f32[1,128], index: 1, kind: output, shape index: {}]
  $region1: #{tile.84} parent=0
    #allocation0 [shape = 'u8[4096]{0}', space=vmem, size = 0x1000, scoped, tag = 'scoped mem for output reshape']
    #allocation1 [shape = 'u8[4096]{0}', space=vmem, size = 0x1000, scoped, tag = 'scoped mem for input reshape']
    %s3 = ssub.s32 16, 1
    %v4 = vld [vmem:[%s0] sm:%s3]
    %5 = vst [vmem:[#allocation1] sm:%s3] %v4
    %v6 = vld [vmem:[#allocation1] sm:$0x1]
    %vm7 = vcmask 261120
    %8 = vst.msk [vmem:[#allocation0] sm:$0x1] %vm7, %v6
    %s9 = scalar_lea.vmem [#allocation1], 3
    %v10 = vld [vmem:[%s9] sm:$0x1]
    %11 = vrot.lane.b32.xlu0 %v10, 96
    %v12 = vpop.permute.xlu0 %11
    %vm13 = vcmask 1048320
    %14 = vst.msk [vmem:[#allocation0] sm:$0x1] %vm13, %v12
    %s15 = scalar_lea.vmem [#allocation1], 2
    %v16 = vld [vmem:[%s15] sm:$0x1]
    %17 = vrot.lane.b32.xlu0 %v16, 64
    %v18 = vpop.permute.xlu0 %17
    %vm19 = vcmask 785920
    %20 = vst.msk [vmem:[#allocation0] sm:$0x1] %vm19, %v18
    %s21 = scalar_lea.vmem [#allocation1], 1
    %v22 = vld [vmem:[%s21] sm:$0x1]
    %23 = vrot.lane.b32.xlu0 %v22, 32
    %v24 = vpop.permute.xlu0 %23
    %vm25 = vcmask 523520
    %26 = vst.msk [vmem:[#allocation0] sm:$0x1] %vm25, %v24
    %s28 = ssub.s32 2, 1
    %v29 = vld [vmem:[#allocation0] sm:%s28]
    %s31 = ssub.s32 2, 1
    %32 = vst [vmem:[%s1] sm:%s31] %v29

// kernel: squeeze.25
$region0: #{squeeze.25}
  %s0 = inlined_call_operand.vmem [shape: bf16[1,32,32], index: 0, kind: input, shape index: {}]
  %s1 = inlined_call_operand.vmem [shape: bf16[8,128], index: 1, kind: output, shape index: {}]
  $region1: #{squeeze.25} parent=0
    #allocation0 [shape = 'u8[4096]{0}', space=vmem, size = 0x1000, scoped, tag = 'scoped mem for output reshape']
    #allocation1 [shape = 'u8[16384]{0}', space=vmem, size = 0x4000, scoped, tag = 'scoped mem for input reshape']
    %s3 = ssub.s32 256, 1
    %s4 = scalar_lea.vmem %s0, 12
    %s5 = sshrl.u32 %s3, 1
    %s6 = sor.u32 %s3, %s5
    %s7 = sand.u32 %s6, 85
    %s8 = sshrl.u32 %s7, 1
    %s9 = sor.u32 %s7, %s8
    %s10 = sand.u32 51, %s9
    %s11 = sshrl.u32 %s10, 2
    %s12 = sor.u32 %s10, %s11
    %s13 = sand.u32 15, %s12
    %v14 = vld [vmem:[%s4] sm:%s13]
    %v15 = vunpack.c.l.bf16 %v14
    %v16 = vunpack.c.h.bf16 %v14
    %s17 = scalar_lea.vmem [#allocation1], 24
    %18 = vst [vmem:[%s17] sm:%s3] %v15
    %s19 = scalar_lea.vmem %s0, 8
    %s20 = sshrl.u32 %s3, 1
    %s21 = sor.u32 %s3, %s20
    %s22 = sand.u32 %s21, 85
    %s23 = sshrl.u32 %s22, 1
    %s24 = sor.u32 %s22, %s23
    %s25 = sand.u32 51, %s24
    %s26 = sshrl.u32 %s25, 2
    %s27 = sor.u32 %s25, %s26
    %s28 = sand.u32 15, %s27
    %v29 = vld [vmem:[%s19] sm:%s28]
    %v30 = vunpack.c.l.bf16 %v29
    %v31 = vunpack.c.h.bf16 %v29
    %s32 = scalar_lea.vmem [#allocation1], 16
    %33 = vst [vmem:[%s32] sm:%s3] %v30
    %s34 = scalar_lea.vmem %s0, 4
    %s35 = sshrl.u32 %s3, 1
    %s36 = sor.u32 %s3, %s35
    %s37 = sand.u32 %s36, 85
    %s38 = sshrl.u32 %s37, 1
    %s39 = sor.u32 %s37, %s38
    %s40 = sand.u32 51, %s39
    %s41 = sshrl.u32 %s40, 2
    %s42 = sor.u32 %s40, %s41
    %s43 = sand.u32 15, %s42
    %v44 = vld [vmem:[%s34] sm:%s43]
    %v45 = vunpack.c.l.bf16 %v44
    %v46 = vunpack.c.h.bf16 %v44
    %s47 = scalar_lea.vmem [#allocation1], 8
    %48 = vst [vmem:[%s47] sm:%s3] %v45
    %s49 = sshrl.u32 %s3, 1
    %s50 = sor.u32 %s3, %s49
    %s51 = sand.u32 %s50, 85
    %s52 = sshrl.u32 %s51, 1
    %s53 = sor.u32 %s51, %s52
    %s54 = sand.u32 51, %s53
    %s55 = sshrl.u32 %s54, 2
    %s56 = sor.u32 %s54, %s55
    %s57 = sand.u32 15, %s56
    %v58 = vld [vmem:[%s0] sm:%s57]
    %v59 = vunpack.c.l.bf16 %v58
    %v60 = vunpack.c.h.bf16 %v58
    %61 = vst [vmem:[#allocation1] sm:%s3] %v59
    %v62 = vld [vmem:[#allocation1] ss:$4 sm:$0xff]
    %vm63 = vcmask 261120
    %64 = vst.msk [vmem:[#allocation0] sm:$0xff] %vm63, %v62
    %s65 = scalar_lea.vmem [#allocation1], 3
    %v66 = vld [vmem:[%s65] ss:$4 sm:$0xff]
    %67 = vrot.lane.b32.xlu0 %v66, 96
    %v68 = vpop.permute.xlu0 %67
    %vm69 = vcmask 1048320
    %70 = vst.msk [vmem:[#allocation0] sm:$0xff] %vm69, %v68
    %s71 = scalar_lea.vmem [#allocation1], 2
    %v72 = vld [vmem:[%s71] ss:$4 sm:$0xff]
    %73 = vrot.lane.b32.xlu0 %v72, 64
    %v74 = vpop.permute.xlu0 %73
    %vm75 = vcmask 785920
    %76 = vst.msk [vmem:[#allocation0] sm:$0xff] %vm75, %v74
    %s77 = scalar_lea.vmem [#allocation1], 1
    %v78 = vld [vmem:[%s77] ss:$4 sm:$0xff]
    %79 = vrot.lane.b32.xlu0 %v78, 32
    %v80 = vpop.permute.xlu0 %79
    %vm81 = vcmask 523520
    %82 = vst.msk [vmem:[#allocation0] sm:$0xff] %vm81, %v80
    %s84 = ssub.s32 256, 1
    %v85 = vld [vmem:[#allocation0] sm:%s84]
    %v86 = vpack.c.bf16 0.0, %v85
    %s88 = ssub.s32 16, 1
    %89 = vst [vmem:[%s1] sm:%s88] %v86

// kernel: unet_generator_forward.20
$region0: #{unet_generator_forward.20}
  #allocation0 [shape = 'u32[]', space=smem, size = 0x4, offset = 0x4, fixed_abs, tag = 'smem constant byte address 0x4 - core index']
  #allocation1 [shape = 'u32[72,128]{1,0:T(1,128)}', space=vmem, size = 0x9000, scoped, tag = 'internal scratch']
  %s0 = inlined_call_operand.vmem [shape: bf16[1,32,256], index: 0, kind: input, shape index: {}]
  %s1 = inlined_call_operand.vmem [shape: bf16[1,256,128], index: 1, kind: input, shape index: {}]
  %s2 = inlined_call_operand.vmem [shape: f32[1,128], index: 2, kind: input, shape index: {}]
  %s3 = inlined_call_operand.vmem [shape: bf16[1,32,128], index: 3, kind: output, shape index: {0}]
  %s4 = inlined_call_operand.vmem [shape: f32[1,1,8,128], index: 4, kind: output, shape index: {1}]
  %5 = xla_tuple %s3, %s4
  %s6 = sld [smem:[#allocation0]]
  $region30: #{unet_generator_forward.20} parent=0
    _
  %s8 = ssub.s32 1, %s6
  %s9 = scalar_select 0, %s8, %s6
  // Predicated region
  $region2: #{unet_generator_forward.20} parent=0 // pred_check
    _
  $region3: #{unet_generator_forward.20} parent=0 // pred_check_branch
    %11 = sbr.rel (0) target = $region5
  $region4: #{unet_generator_forward.20} parent=0 // pred_region
    _
  $region5: #{unet_generator_forward.20} parent=0 // pred_fallthru
    _
  // Predicated region
  $region6: #{unet_generator_forward.20} parent=0 // pred_check
    _
  $region7: #{unet_generator_forward.20} parent=0 // pred_check_branch
    %13 = sbr.rel (0) target = $region9
  $region8: #{unet_generator_forward.20} parent=0 // pred_region
    _
  $region9: #{unet_generator_forward.20} parent=0 // pred_fallthru
    _
  // Predicated region
  $region10: #{unet_generator_forward.20} parent=0 // pred_check
    _
  $region11: #{unet_generator_forward.20} parent=0 // pred_check_branch
    %15 = sbr.rel (0) target = $region13
  $region12: #{unet_generator_forward.20} parent=0 // pred_region
    _
  $region13: #{unet_generator_forward.20} parent=0 // pred_fallthru
    _
  %v16 = vld [vmem:[%s0] sm:$0xff]
  %v17 = vld [vmem:[%s0 + $0x8] sm:$0xff]
  %v18 = vld [vmem:[%s0 + $0x10] sm:$0xff]
  %v19 = vld [vmem:[%s0 + $0x18] sm:$0xff]
  %v20 = vunpack.c.l.bf16 %v16
  %v21 = vunpack.c.h.bf16 %v16
  %v22 = vunpack.c.l.bf16 %v17
  %v23 = vunpack.c.h.bf16 %v17
  %v24 = vunpack.c.l.bf16 %v18
  %v25 = vunpack.c.h.bf16 %v18
  %v26 = vunpack.c.l.bf16 %v19
  %v27 = vunpack.c.h.bf16 %v19
  %vm28 = vcmp.ge.f32.partialorder %v20, 0.0
  %vm29 = vcmp.ge.f32.partialorder %v21, 0.0
  %vm30 = vcmp.ge.f32.partialorder %v22, 0.0
  %vm31 = vcmp.ge.f32.partialorder %v23, 0.0
  %vm32 = vcmp.ge.f32.partialorder %v24, 0.0
  %vm33 = vcmp.ge.f32.partialorder %v25, 0.0
  %vm34 = vcmp.ge.f32.partialorder %v26, 0.0
  %vm35 = vcmp.ge.f32.partialorder %v27, 0.0
  %v36 = vmul.f32 %v20, 0.20019531
  %v37 = vmul.f32 %v21, 0.20019531
  %v38 = vmul.f32 %v22, 0.20019531
  %v39 = vmul.f32 %v23, 0.20019531
  %v40 = vmul.f32 %v24, 0.20019531
  %v41 = vmul.f32 %v25, 0.20019531
  %v42 = vmul.f32 %v26, 0.20019531
  %v43 = vmul.f32 %v27, 0.20019531
  %v44 = vpack.c.bf16 %v37, %v36
  %v45 = vpack.c.bf16 %v39, %v38
  %v46 = vpack.c.bf16 %v41, %v40
  %v47 = vpack.c.bf16 %v43, %v42
  %vm48 = vmpackc.low %vm29, %vm28
  %vm49 = vmpackc.low %vm31, %vm30
  %vm50 = vmpackc.low %vm33, %vm32
  %vm51 = vmpackc.low %vm35, %vm34
  %v52 = vsel %vm48, %v16, %v44
  %v53 = vsel %vm49, %v17, %v45
  %v54 = vsel %vm50, %v18, %v46
  %v55 = vsel %vm51, %v19, %v47
  %v56 = vld [vmem:[%s1] sm:$0xf]
  %v57 = vld [vmem:[%s1 + $0x4] sm:$0xf]
  %v58 = vld [vmem:[%s1 + $0x8] sm:$0xf]
  %v59 = vld [vmem:[%s1 + $0xc] sm:$0xf]
  %v60 = vld [vmem:[%s1 + $0x10] sm:$0xf]
  %v61 = vld [vmem:[%s1 + $0x14] sm:$0xf]
  %v62 = vld [vmem:[%s1 + $0x18] sm:$0xf]
  %v63 = vld [vmem:[%s1 + $0x1c] sm:$0xf]
  %v64 = vld [vmem:[%s1 + $0x20] sm:$0xf]
  %v65 = vld [vmem:[%s1 + $0x24] sm:$0xf]
  %v66 = vld [vmem:[%s1 + $0x28] sm:$0xf]
  %v67 = vld [vmem:[%s1 + $0x2c] sm:$0xf]
  %v68 = vld [vmem:[%s1 + $0x30] sm:$0xf]
  %v69 = vld [vmem:[%s1 + $0x34] sm:$0xf]
  %v70 = vld [vmem:[%s1 + $0x38] sm:$0xf]
  %v71 = vld [vmem:[%s1 + $0x3c] sm:$0xf]
  %v72 = vld [vmem:[%s1 + $0x40] sm:$0xf]
  %v73 = vld [vmem:[%s1 + $0x44] sm:$0xf]
  %v74 = vld [vmem:[%s1 + $0x48] sm:$0xf]
  %v75 = vld [vmem:[%s1 + $0x4c] sm:$0xf]
  %v76 = vld [vmem:[%s1 + $0x50] sm:$0xf]
  %v77 = vld [vmem:[%s1 + $0x54] sm:$0xf]
  %v78 = vld [vmem:[%s1 + $0x58] sm:$0xf]
  %v79 = vld [vmem:[%s1 + $0x5c] sm:$0xf]
  %v80 = vld [vmem:[%s1 + $0x60] sm:$0xf]
  %v81 = vld [vmem:[%s1 + $0x64] sm:$0xf]
  %v82 = vld [vmem:[%s1 + $0x68] sm:$0xf]
  %v83 = vld [vmem:[%s1 + $0x6c] sm:$0xf]
  %v84 = vld [vmem:[%s1 + $0x70] sm:$0xf]
  %v85 = vld [vmem:[%s1 + $0x74] sm:$0xf]
  %v86 = vld [vmem:[%s1 + $0x78] sm:$0xf]
  %v87 = vld [vmem:[%s1 + $0x7c] sm:$0xf]
  %v88 = vld [vmem:[%s2] sm:$0x1]
  %v90 = vperm.slane %v88, 0
  %v96 = vunpack.c.l.b16 %v52
  %v97 = vunpack.c.h.b16 %v52
  %v98 = vunpack.c.l.b16 %v53
  %v99 = vunpack.c.h.b16 %v53
  %v100 = vunpack.c.l.b16 %v54
  %v101 = vunpack.c.h.b16 %v54
  %v102 = vunpack.c.l.b16 %v55
  %v103 = vunpack.c.h.b16 %v55
  %v104 = vpack.c.b16 %v98, %v96
  %v105 = vpack.c.b16 %v99, %v97
  %v106 = vpack.c.b16 %v102, %v100
  %v107 = vpack.c.b16 %v103, %v101
  %v144 = vunpack.c.l.b16 %v56
  %v145 = vunpack.c.l.b16 %v57
  %v146 = vunpack.c.l.b16 %v58
  %v147 = vunpack.c.l.b16 %v59
  %v148 = vunpack.c.l.b16 %v60
  %v149 = vunpack.c.l.b16 %v61
  %v150 = vunpack.c.l.b16 %v62
  %v151 = vunpack.c.l.b16 %v63
  %v152 = vunpack.c.l.b16 %v64
  %v153 = vunpack.c.l.b16 %v65
  %v154 = vunpack.c.l.b16 %v66
  %v155 = vunpack.c.l.b16 %v67
  %v156 = vunpack.c.l.b16 %v68
  %v157 = vunpack.c.l.b16 %v69
  %v158 = vunpack.c.l.b16 %v70
  %v159 = vunpack.c.l.b16 %v71
  %v160 = vunpack.c.l.b16 %v72
  %v161 = vunpack.c.l.b16 %v73
  %v162 = vunpack.c.l.b16 %v74
  %v163 = vunpack.c.l.b16 %v75
  %v164 = vunpack.c.l.b16 %v76
  %v165 = vunpack.c.l.b16 %v77
  %v166 = vunpack.c.l.b16 %v78
  %v167 = vunpack.c.l.b16 %v79
  %v168 = vunpack.c.l.b16 %v80
  %v169 = vunpack.c.l.b16 %v81
  %v170 = vunpack.c.l.b16 %v82
  %v171 = vunpack.c.l.b16 %v83
  %v172 = vunpack.c.l.b16 %v84
  %v173 = vunpack.c.l.b16 %v85
  %v174 = vunpack.c.l.b16 %v86
  %v175 = vunpack.c.l.b16 %v87
  %v176 = vpack.c.b16 %v145, %v144
  %v177 = vpack.c.b16 %v147, %v146
  %v178 = vpack.c.b16 %v149, %v148
  %v179 = vpack.c.b16 %v151, %v150
  %v180 = vpack.c.b16 %v153, %v152
  %v181 = vpack.c.b16 %v155, %v154
  %v182 = vpack.c.b16 %v157, %v156
  %v183 = vpack.c.b16 %v159, %v158
  %v184 = vpack.c.b16 %v161, %v160
  %v185 = vpack.c.b16 %v163, %v162
  %v186 = vpack.c.b16 %v165, %v164
  %v187 = vpack.c.b16 %v167, %v166
  %v188 = vpack.c.b16 %v169, %v168
  %v189 = vpack.c.b16 %v171, %v170
  %v190 = vpack.c.b16 %v173, %v172
  %v191 = vpack.c.b16 %v175, %v174
  %208 = vmatpush.bf16.msra.mxu0 %v183
  %209 = vmatpush.bf16.msra.mxu0 %v182
  %210 = vmatpush.bf16.msra.mxu0 %v181
  %211 = vmatpush.bf16.msra.mxu0 %v180
  %212 = vmatpush.bf16.msra.mxu0 %v179
  %213 = vmatpush.bf16.msra.mxu0 %v178
  %214 = vmatpush.bf16.msra.mxu0 %v177
  %215 = vmatpush.bf16.msra.mxu0 %v176
  %216 = vmatmul.bf16.gmra.mxu0 %v104
  %v217 = vpop.f32.mrf.mxu0
  %v218 = vadd.f32 %v90, %v217
  %v219 = vpop.f32.mrf.mxu0
  %v220 = vadd.f32 %v90, %v219
  %221 = vmatmul.bf16.gmra.mxu0 %v106
  %v222 = vpop.f32.mrf.mxu0
  %v223 = vadd.f32 %v90, %v222
  %v224 = vpop.f32.mrf.mxu0
  %v225 = vadd.f32 %v90, %v224
  %226 = vdwg.mxu0
  %227 = vmatpush.bf16.msra.mxu0 %v191
  %228 = vmatpush.bf16.msra.mxu0 %v190
  %229 = vmatpush.bf16.msra.mxu0 %v189
  %230 = vmatpush.bf16.msra.mxu0 %v188
  %231 = vmatpush.bf16.msra.mxu0 %v187
  %232 = vmatpush.bf16.msra.mxu0 %v186
  %233 = vmatpush.bf16.msra.mxu0 %v185
  %234 = vmatpush.bf16.msra.mxu0 %v184
  %235 = vmatmul.bf16.gmra.mxu0 %v105
  %v236 = vpop.f32.mrf.mxu0
  %v237 = vadd.f32 %v218, %v236
  %v238 = vpop.f32.mrf.mxu0
  %v239 = vadd.f32 %v220, %v238
  %240 = vmatmul.bf16.gmra.mxu0 %v107
  %v241 = vpop.f32.mrf.mxu0
  %v242 = vadd.f32 %v223, %v241
  %v243 = vpop.f32.mrf.mxu0
  %v244 = vadd.f32 %v225, %v243
  %245 = vdwg.mxu0
  %v246 = vadd.f32 %v237, %v239
  %v247 = vadd.f32 %v246, %v242
  %v248 = vadd.f32 %v247, %v244
  %v249 = vrot.slane %v248, 4
  %v250 = vadd.f32 %v248, %v249
  %v251 = vrot.slane %v250, 2
  %v252 = vadd.f32 %v250, %v251
  %v253 = vrot.slane %v252, 1
  %v254 = vadd.f32 %v252, %v253
  %255 = vst [vmem:[%s4] sm:$0x1] %v254
  %v256 = vmul.f32 %v237, %v237
  %v257 = vmul.f32 %v239, %v239
  %v258 = vmul.f32 %v242, %v242
  %v259 = vmul.f32 %v244, %v244
  %v260 = vadd.f32 %v256, %v257
  %v261 = vadd.f32 %v260, %v258
  %v262 = vadd.f32 %v261, %v259
  %v263 = vrot.slane %v262, 4
  %v264 = vadd.f32 %v262, %v263
  %v265 = vrot.slane %v264, 2
  %v266 = vadd.f32 %v264, %v265
  %v267 = vrot.slane %v266, 1
  %v268 = vadd.f32 %v266, %v267
  %269 = vst [vmem:[%s4 + $0x1] sm:$0x1] %v268
  %v270 = vpack.c.bf16 %v237, %v237
  %v271 = vpack.c.bf16 %v239, %v239
  %v272 = vpack.c.bf16 %v242, %v242
  %v273 = vpack.c.bf16 %v244, %v244
  %274 = vst [vmem:[%s3] sm:$0xf] %v270
  %275 = vst [vmem:[%s3 + $0x4] sm:$0xf] %v271
  %276 = vst [vmem:[%s3 + $0x8] sm:$0xf] %v272
  %277 = vst [vmem:[%s3 + $0xc] sm:$0xf] %v273
  // Predicated region
  $region14: #{unet_generator_forward.20} parent=0 // pred_check
    _
  $region15: #{unet_generator_forward.20} parent=0 // pred_check_branch
    %279 = sbr.rel (0) target = $region17
  $region16: #{unet_generator_forward.20} parent=0 // pred_region
    _
  $region17: #{unet_generator_forward.20} parent=0 // pred_fallthru
    _
  // Predicated region
  $region18: #{unet_generator_forward.20} parent=0 // pred_check
    _
  $region19: #{unet_generator_forward.20} parent=0 // pred_check_branch
    %281 = sbr.rel (0) target = $region21
  $region20: #{unet_generator_forward.20} parent=0 // pred_region
    _
  $region21: #{unet_generator_forward.20} parent=0 // pred_fallthru
    _
  // Predicated region
  $region22: #{unet_generator_forward.20} parent=0 // pred_check
    _
  $region23: #{unet_generator_forward.20} parent=0 // pred_check_branch
    %283 = sbr.rel (0) target = $region25
  $region24: #{unet_generator_forward.20} parent=0 // pred_region
    _
  $region25: #{unet_generator_forward.20} parent=0 // pred_fallthru
    _
  // Predicated region
  $region26: #{unet_generator_forward.20} parent=0 // pred_check
    _
  $region27: #{unet_generator_forward.20} parent=0 // pred_check_branch
    %285 = sbr.rel (0) target = $region29
  $region28: #{unet_generator_forward.20} parent=0 // pred_region
    _
  $region29: #{unet_generator_forward.20} parent=0 // pred_fallthru
    _

// kernel: unet_generator_forward.21
$region0: #{unet_generator_forward.21}
  #allocation0 [shape = 'u32[]', space=smem, size = 0x4, offset = 0x4, fixed_abs, tag = 'smem constant byte address 0x4 - core index']
  #allocation1 [shape = 'u32[72,128]{1,0:T(1,128)}', space=vmem, size = 0x9000, scoped, tag = 'internal scratch']
  %s0 = inlined_call_operand.vmem [shape: bf16[8,128], index: 0, kind: input, shape index: {}]
  %s1 = inlined_call_operand.vmem [shape: f32[1,128], index: 1, kind: input, shape index: {}]
  %s2 = inlined_call_operand.vmem [shape: f32[1,128], index: 2, kind: input, shape index: {}]
  %s3 = inlined_call_operand.vmem [shape: bf16[8,128], index: 3, kind: output, shape index: {}]
  %s4 = sld [smem:[#allocation0]]
  $region22: #{unet_generator_forward.21} parent=0
    _
  %s6 = ssub.s32 1, %s4
  %s7 = scalar_select 0, %s6, %s4
  // Predicated region
  $region2: #{unet_generator_forward.21} parent=0 // pred_check
    _
  $region3: #{unet_generator_forward.21} parent=0 // pred_check_branch
    %9 = sbr.rel (0) target = $region5
  $region4: #{unet_generator_forward.21} parent=0 // pred_region
    _
  $region5: #{unet_generator_forward.21} parent=0 // pred_fallthru
    _
  // Predicated region
  $region6: #{unet_generator_forward.21} parent=0 // pred_check
    _
  $region7: #{unet_generator_forward.21} parent=0 // pred_check_branch
    %11 = sbr.rel (0) target = $region9
  $region8: #{unet_generator_forward.21} parent=0 // pred_region
    _
  $region9: #{unet_generator_forward.21} parent=0 // pred_fallthru
    _
  // Predicated region
  $region10: #{unet_generator_forward.21} parent=0 // pred_check
    _
  $region11: #{unet_generator_forward.21} parent=0 // pred_check_branch
    %13 = sbr.rel (0) target = $region13
  $region12: #{unet_generator_forward.21} parent=0 // pred_region
    _
  $region13: #{unet_generator_forward.21} parent=0 // pred_fallthru
    _
  %v14 = vld [vmem:[%s0] sm:$0xf]
  %v15 = vunpack.c.l.bf16 %v14
  %v16 = vld [vmem:[%s1] sm:$0x1]
  %v18 = vperm.slane %v16, 0
  %v20 = vmul.f32 %v15, %v18
  %v21 = vld [vmem:[%s2] sm:$0x1]
  %v23 = vperm.slane %v21, 0
  %v25 = vadd.f32 %v20, %v23
  %v26 = vpack.c.bf16 %v25, %v25
  %27 = vst [vmem:[%s3] sm:$0xf] %v26
  // Predicated region
  $region14: #{unet_generator_forward.21} parent=0 // pred_check
    _
  $region15: #{unet_generator_forward.21} parent=0 // pred_check_branch
    %29 = sbr.rel (0) target = $region17
  $region16: #{unet_generator_forward.21} parent=0 // pred_region
    _
  $region17: #{unet_generator_forward.21} parent=0 // pred_fallthru
    _
  // Predicated region
  $region18: #{unet_generator_forward.21} parent=0 // pred_check
    _
  $region19: #{unet_generator_forward.21} parent=0 // pred_check_branch
    %31 = sbr.rel (0) target = $region21
  $region20: #{unet_generator_forward.21} parent=0 // pred_region
    _
  $region21: #{unet_generator_forward.21} parent=0 // pred_fallthru
    _

// kernel: squeeze.28
$region0: #{squeeze.28}
  %s0 = inlined_call_operand.vmem [shape: bf16[1,8,64], index: 0, kind: input, shape index: {}]
  %s1 = inlined_call_operand.vmem [shape: bf16[4,128], index: 1, kind: output, shape index: {}]
  $region1: #{squeeze.28} parent=0
    #allocation0 [shape = 'u8[4096]{0}', space=vmem, size = 0x1000, scoped, tag = 'scoped mem for output reshape']
    #allocation1 [shape = 'u8[4096]{0}', space=vmem, size = 0x1000, scoped, tag = 'scoped mem for input reshape']
    %s3 = ssub.s32 256, 1
    %s4 = sshrl.u32 %s3, 1
    %s5 = sor.u32 %s3, %s4
    %s6 = sand.u32 %s5, 85
    %s7 = sshrl.u32 %s6, 1
    %s8 = sor.u32 %s6, %s7
    %s9 = sand.u32 51, %s8
    %s10 = sshrl.u32 %s9, 2
    %s11 = sor.u32 %s9, %s10
    %s12 = sand.u32 15, %s11
    %v13 = vld [vmem:[%s0] sm:%s12]
    %v14 = vunpack.c.l.bf16 %v13
    %v15 = vunpack.c.h.bf16 %v13
    %16 = vst [vmem:[#allocation1] sm:%s3] %v14
    %v17 = vld [vmem:[#allocation1] ss:$2 sm:$0xf]
    %vm18 = vcmask 523264
    %19 = vst.msk [vmem:[#allocation0] sm:$0xf] %vm18, %v17
    %s20 = scalar_lea.vmem [#allocation1], 1
    %v21 = vld [vmem:[%s20] ss:$2 sm:$0xf]
    %22 = vrot.lane.b32.xlu0 %v21, 64
    %v23 = vpop.permute.xlu0 %22
    %vm24 = vcmask 1048064
    %25 = vst.msk [vmem:[#allocation0] sm:$0xf] %vm24, %v23
    %s27 = ssub.s32 16, 1
    %v28 = vld [vmem:[#allocation0] sm:%s27]
    %v29 = vpack.c.bf16 0.0, %v28
    %s31 = ssub.s32 4, 1
    %32 = vst [vmem:[%s1] sm:%s31] %v29

// kernel: tile.93
$region0: #{tile.93}
  #allocation0 [shape = 's32[1]{0}', space=sflag, size = 0x4, scoped, tag = 'scoped memory for tile.93']
  %s0 = inlined_call_operand.vmem [shape: f32[64], index: 0, kind: input, shape index: {}]
  %s1 = inlined_call_operand.vmem [shape: f32[2,64], index: 1, kind: output, shape index: {}]
  // Predicated region
  $region2: #{tile.93} parent=0 // pred_check
    _
  $region3: #{tile.93} parent=0 // pred_check_branch
    %3 = sbr.rel (0) target = $region5
  $region4: #{tile.93} parent=0 // pred_region
    _
  $region5: #{tile.93} parent=0 // pred_fallthru
    _
  %v4 = vld [vmem:[%s0] ss:$0 sm:$0xff]
  %5 = vst [vmem:[%s1] sm:$0x3] %v4

// kernel: tile.94
$region0: #{tile.94}
  %s0 = inlined_call_operand.vmem [shape: f32[2,64], index: 0, kind: input, shape index: {}]
  %s1 = inlined_call_operand.vmem [shape: f32[1,128], index: 1, kind: output, shape index: {}]
  $region1: #{tile.94} parent=0
    #allocation0 [shape = 'u8[4096]{0}', space=vmem, size = 0x1000, scoped, tag = 'scoped mem for output reshape']
    #allocation1 [shape = 'u8[4096]{0}', space=vmem, size = 0x1000, scoped, tag = 'scoped mem for input reshape']
    %s3 = ssub.s32 4, 1
    %v4 = vld [vmem:[%s0] sm:%s3]
    %5 = vst [vmem:[#allocation1] sm:%s3] %v4
    %v6 = vld [vmem:[#allocation1] sm:$0x1]
    %vm7 = vcmask 523264
    %8 = vst.msk [vmem:[#allocation0] sm:$0x1] %vm7, %v6
    %s9 = scalar_lea.vmem [#allocation1], 1
    %v10 = vld [vmem:[%s9] sm:$0x1]
    %11 = vrot.lane.b32.xlu0 %v10, 64
    %v12 = vpop.permute.xlu0 %11
    %vm13 = vcmask 1048064
    %14 = vst.msk [vmem:[#allocation0] sm:$0x1] %vm13, %v12
    %s16 = ssub.s32 2, 1
    %v17 = vld [vmem:[#allocation0] sm:%s16]
    %s19 = ssub.s32 2, 1
    %20 = vst [vmem:[%s1] sm:%s19] %v17

// kernel: unet_generator_forward.22
$region0: #{unet_generator_forward.22}
  #allocation0 [shape = 'u32[]', space=smem, size = 0x4, offset = 0x4, fixed_abs, tag = 'smem constant byte address 0x4 - core index']
  #allocation1 [shape = 'u32[72,128]{1,0:T(1,128)}', space=vmem, size = 0x9000, scoped, tag = 'internal scratch']
  %s0 = inlined_call_operand.vmem [shape: bf16[1,16,512], index: 0, kind: input, shape index: {}]
  %s1 = inlined_call_operand.vmem [shape: bf16[1,512,128], index: 1, kind: input, shape index: {}]
  %s2 = inlined_call_operand.vmem [shape: f32[1,128], index: 2, kind: input, shape index: {}]
  %s3 = inlined_call_operand.vmem [shape: bf16[1,16,128], index: 3, kind: output, shape index: {0}]
  %s4 = inlined_call_operand.vmem [shape: f32[1,1,8,128], index: 4, kind: output, shape index: {1}]
  %5 = xla_tuple %s3, %s4
  %s6 = sld [smem:[#allocation0]]
  $region30: #{unet_generator_forward.22} parent=0
    _
  %s8 = ssub.s32 1, %s6
  %s9 = scalar_select 0, %s8, %s6
  // Predicated region
  $region2: #{unet_generator_forward.22} parent=0 // pred_check
    _
  $region3: #{unet_generator_forward.22} parent=0 // pred_check_branch
    %11 = sbr.rel (0) target = $region5
  $region4: #{unet_generator_forward.22} parent=0 // pred_region
    _
  $region5: #{unet_generator_forward.22} parent=0 // pred_fallthru
    _
  // Predicated region
  $region6: #{unet_generator_forward.22} parent=0 // pred_check
    _
  $region7: #{unet_generator_forward.22} parent=0 // pred_check_branch
    %13 = sbr.rel (0) target = $region9
  $region8: #{unet_generator_forward.22} parent=0 // pred_region
    _
  $region9: #{unet_generator_forward.22} parent=0 // pred_fallthru
    _
  // Predicated region
  $region10: #{unet_generator_forward.22} parent=0 // pred_check
    _
  $region11: #{unet_generator_forward.22} parent=0 // pred_check_branch
    %15 = sbr.rel (0) target = $region13
  $region12: #{unet_generator_forward.22} parent=0 // pred_region
    _
  $region13: #{unet_generator_forward.22} parent=0 // pred_fallthru
    _
  %v16 = vld [vmem:[%s0] sm:$0xff]
  %v17 = vld [vmem:[%s0 + $0x8] sm:$0xff]
  %v18 = vld [vmem:[%s0 + $0x10] sm:$0xff]
  %v19 = vld [vmem:[%s0 + $0x18] sm:$0xff]
  %v20 = vunpack.c.l.bf16 %v16
  %v21 = vunpack.c.h.bf16 %v16
  %v22 = vunpack.c.l.bf16 %v17
  %v23 = vunpack.c.h.bf16 %v17
  %v24 = vunpack.c.l.bf16 %v18
  %v25 = vunpack.c.h.bf16 %v18
  %v26 = vunpack.c.l.bf16 %v19
  %v27 = vunpack.c.h.bf16 %v19
  %vm28 = vcmp.ge.f32.partialorder %v20, 0.0
  %vm29 = vcmp.ge.f32.partialorder %v21, 0.0
  %vm30 = vcmp.ge.f32.partialorder %v22, 0.0
  %vm31 = vcmp.ge.f32.partialorder %v23, 0.0
  %vm32 = vcmp.ge.f32.partialorder %v24, 0.0
  %vm33 = vcmp.ge.f32.partialorder %v25, 0.0
  %vm34 = vcmp.ge.f32.partialorder %v26, 0.0
  %vm35 = vcmp.ge.f32.partialorder %v27, 0.0
  %v36 = vmul.f32 %v20, 0.20019531
  %v37 = vmul.f32 %v21, 0.20019531
  %v38 = vmul.f32 %v22, 0.20019531
  %v39 = vmul.f32 %v23, 0.20019531
  %v40 = vmul.f32 %v24, 0.20019531
  %v41 = vmul.f32 %v25, 0.20019531
  %v42 = vmul.f32 %v26, 0.20019531
  %v43 = vmul.f32 %v27, 0.20019531
  %v44 = vpack.c.bf16 %v37, %v36
  %v45 = vpack.c.bf16 %v39, %v38
  %v46 = vpack.c.bf16 %v41, %v40
  %v47 = vpack.c.bf16 %v43, %v42
  %vm48 = vmpackc.low %vm29, %vm28
  %vm49 = vmpackc.low %vm31, %vm30
  %vm50 = vmpackc.low %vm33, %vm32
  %vm51 = vmpackc.low %vm35, %vm34
  %v52 = vsel %vm48, %v16, %v44
  %v53 = vsel %vm49, %v17, %v45
  %v54 = vsel %vm50, %v18, %v46
  %v55 = vsel %vm51, %v19, %v47
  %v56 = vld [vmem:[%s1] sm:$0xf]
  %v57 = vld [vmem:[%s1 + $0x4] sm:$0xf]
  %v58 = vld [vmem:[%s1 + $0x8] sm:$0xf]
  %v59 = vld [vmem:[%s1 + $0xc] sm:$0xf]
  %v60 = vld [vmem:[%s1 + $0x10] sm:$0xf]
  %v61 = vld [vmem:[%s1 + $0x14] sm:$0xf]
  %v62 = vld [vmem:[%s1 + $0x18] sm:$0xf]
  %v63 = vld [vmem:[%s1 + $0x1c] sm:$0xf]
  %v64 = vld [vmem:[%s1 + $0x20] sm:$0xf]
  %v65 = vld [vmem:[%s1 + $0x24] sm:$0xf]
  %v66 = vld [vmem:[%s1 + $0x28] sm:$0xf]
  %v67 = vld [vmem:[%s1 + $0x2c] sm:$0xf]
  %v68 = vld [vmem:[%s1 + $0x30] sm:$0xf]
  %v69 = vld [vmem:[%s1 + $0x34] sm:$0xf]
  %v70 = vld [vmem:[%s1 + $0x38] sm:$0xf]
  %v71 = vld [vmem:[%s1 + $0x3c] sm:$0xf]
  %v72 = vld [vmem:[%s1 + $0x40] sm:$0xf]
  %v73 = vld [vmem:[%s1 + $0x44] sm:$0xf]
  %v74 = vld [vmem:[%s1 + $0x48] sm:$0xf]
  %v75 = vld [vmem:[%s1 + $0x4c] sm:$0xf]
  %v76 = vld [vmem:[%s1 + $0x50] sm:$0xf]
  %v77 = vld [vmem:[%s1 + $0x54] sm:$0xf]
  %v78 = vld [vmem:[%s1 + $0x58] sm:$0xf]
  %v79 = vld [vmem:[%s1 + $0x5c] sm:$0xf]
  %v80 = vld [vmem:[%s1 + $0x60] sm:$0xf]
  %v81 = vld [vmem:[%s1 + $0x64] sm:$0xf]
  %v82 = vld [vmem:[%s1 + $0x68] sm:$0xf]
  %v83 = vld [vmem:[%s1 + $0x6c] sm:$0xf]
  %v84 = vld [vmem:[%s1 + $0x70] sm:$0xf]
  %v85 = vld [vmem:[%s1 + $0x74] sm:$0xf]
  %v86 = vld [vmem:[%s1 + $0x78] sm:$0xf]
  %v87 = vld [vmem:[%s1 + $0x7c] sm:$0xf]
  %v88 = vld [vmem:[%s1 + $0x80] sm:$0xf]
  %v89 = vld [vmem:[%s1 + $0x84] sm:$0xf]
  %v90 = vld [vmem:[%s1 + $0x88] sm:$0xf]
  %v91 = vld [vmem:[%s1 + $0x8c] sm:$0xf]
  %v92 = vld [vmem:[%s1 + $0x90] sm:$0xf]
  %v93 = vld [vmem:[%s1 + $0x94] sm:$0xf]
  %v94 = vld [vmem:[%s1 + $0x98] sm:$0xf]
  %v95 = vld [vmem:[%s1 + $0x9c] sm:$0xf]
  %v96 = vld [vmem:[%s1 + $0xa0] sm:$0xf]
  %v97 = vld [vmem:[%s1 + $0xa4] sm:$0xf]
  %v98 = vld [vmem:[%s1 + $0xa8] sm:$0xf]
  %v99 = vld [vmem:[%s1 + $0xac] sm:$0xf]
  %v100 = vld [vmem:[%s1 + $0xb0] sm:$0xf]
  %v101 = vld [vmem:[%s1 + $0xb4] sm:$0xf]
  %v102 = vld [vmem:[%s1 + $0xb8] sm:$0xf]
  %v103 = vld [vmem:[%s1 + $0xbc] sm:$0xf]
  %v104 = vld [vmem:[%s1 + $0xc0] sm:$0xf]
  %v105 = vld [vmem:[%s1 + $0xc4] sm:$0xf]
  %v106 = vld [vmem:[%s1 + $0xc8] sm:$0xf]
  %v107 = vld [vmem:[%s1 + $0xcc] sm:$0xf]
  %v108 = vld [vmem:[%s1 + $0xd0] sm:$0xf]
  %v109 = vld [vmem:[%s1 + $0xd4] sm:$0xf]
  %v110 = vld [vmem:[%s1 + $0xd8] sm:$0xf]
  %v111 = vld [vmem:[%s1 + $0xdc] sm:$0xf]
  %v112 = vld [vmem:[%s1 + $0xe0] sm:$0xf]
  %v113 = vld [vmem:[%s1 + $0xe4] sm:$0xf]
  %v114 = vld [vmem:[%s1 + $0xe8] sm:$0xf]
  %v115 = vld [vmem:[%s1 + $0xec] sm:$0xf]
  %v116 = vld [vmem:[%s1 + $0xf0] sm:$0xf]
  %v117 = vld [vmem:[%s1 + $0xf4] sm:$0xf]
  %v118 = vld [vmem:[%s1 + $0xf8] sm:$0xf]
  %v119 = vld [vmem:[%s1 + $0xfc] sm:$0xf]
  %v120 = vld [vmem:[%s2] sm:$0x1]
  %v122 = vperm.slane %v120, 0
  %v128 = vunpack.c.l.b16 %v52
  %v129 = vunpack.c.h.b16 %v52
  %v130 = vunpack.c.l.b16 %v53
  %v131 = vunpack.c.h.b16 %v53
  %v132 = vunpack.c.l.b16 %v54
  %v133 = vunpack.c.h.b16 %v54
  %v134 = vunpack.c.l.b16 %v55
  %v135 = vunpack.c.h.b16 %v55
  %v136 = vpack.c.b16 %v132, %v128
  %v137 = vpack.c.b16 %v133, %v129
  %v138 = vpack.c.b16 %v134, %v130
  %v139 = vpack.c.b16 %v135, %v131
  %v208 = vunpack.c.l.b16 %v56
  %v209 = vunpack.c.l.b16 %v57
  %v210 = vunpack.c.l.b16 %v58
  %v211 = vunpack.c.l.b16 %v59
  %v212 = vunpack.c.l.b16 %v60
  %v213 = vunpack.c.l.b16 %v61
  %v214 = vunpack.c.l.b16 %v62
  %v215 = vunpack.c.l.b16 %v63
  %v216 = vunpack.c.l.b16 %v64
  %v217 = vunpack.c.l.b16 %v65
  %v218 = vunpack.c.l.b16 %v66
  %v219 = vunpack.c.l.b16 %v67
  %v220 = vunpack.c.l.b16 %v68
  %v221 = vunpack.c.l.b16 %v69
  %v222 = vunpack.c.l.b16 %v70
  %v223 = vunpack.c.l.b16 %v71
  %v224 = vunpack.c.l.b16 %v72
  %v225 = vunpack.c.l.b16 %v73
  %v226 = vunpack.c.l.b16 %v74
  %v227 = vunpack.c.l.b16 %v75
  %v228 = vunpack.c.l.b16 %v76
  %v229 = vunpack.c.l.b16 %v77
  %v230 = vunpack.c.l.b16 %v78
  %v231 = vunpack.c.l.b16 %v79
  %v232 = vunpack.c.l.b16 %v80
  %v233 = vunpack.c.l.b16 %v81
  %v234 = vunpack.c.l.b16 %v82
  %v235 = vunpack.c.l.b16 %v83
  %v236 = vunpack.c.l.b16 %v84
  %v237 = vunpack.c.l.b16 %v85
  %v238 = vunpack.c.l.b16 %v86
  %v239 = vunpack.c.l.b16 %v87
  %v240 = vunpack.c.l.b16 %v88
  %v241 = vunpack.c.l.b16 %v89
  %v242 = vunpack.c.l.b16 %v90
  %v243 = vunpack.c.l.b16 %v91
  %v244 = vunpack.c.l.b16 %v92
  %v245 = vunpack.c.l.b16 %v93
  %v246 = vunpack.c.l.b16 %v94
  %v247 = vunpack.c.l.b16 %v95
  %v248 = vunpack.c.l.b16 %v96
  %v249 = vunpack.c.l.b16 %v97
  %v250 = vunpack.c.l.b16 %v98
  %v251 = vunpack.c.l.b16 %v99
  %v252 = vunpack.c.l.b16 %v100
  %v253 = vunpack.c.l.b16 %v101
  %v254 = vunpack.c.l.b16 %v102
  %v255 = vunpack.c.l.b16 %v103
  %v256 = vunpack.c.l.b16 %v104
  %v257 = vunpack.c.l.b16 %v105
  %v258 = vunpack.c.l.b16 %v106
  %v259 = vunpack.c.l.b16 %v107
  %v260 = vunpack.c.l.b16 %v108
  %v261 = vunpack.c.l.b16 %v109
  %v262 = vunpack.c.l.b16 %v110
  %v263 = vunpack.c.l.b16 %v111
  %v264 = vunpack.c.l.b16 %v112
  %v265 = vunpack.c.l.b16 %v113
  %v266 = vunpack.c.l.b16 %v114
  %v267 = vunpack.c.l.b16 %v115
  %v268 = vunpack.c.l.b16 %v116
  %v269 = vunpack.c.l.b16 %v117
  %v270 = vunpack.c.l.b16 %v118
  %v271 = vunpack.c.l.b16 %v119
  %v272 = vpack.c.b16 %v209, %v208
  %v273 = vpack.c.b16 %v211, %v210
  %v274 = vpack.c.b16 %v213, %v212
  %v275 = vpack.c.b16 %v215, %v214
  %v276 = vpack.c.b16 %v217, %v216
  %v277 = vpack.c.b16 %v219, %v218
  %v278 = vpack.c.b16 %v221, %v220
  %v279 = vpack.c.b16 %v223, %v222
  %v280 = vpack.c.b16 %v225, %v224
  %v281 = vpack.c.b16 %v227, %v226
  %v282 = vpack.c.b16 %v229, %v228
  %v283 = vpack.c.b16 %v231, %v230
  %v284 = vpack.c.b16 %v233, %v232
  %v285 = vpack.c.b16 %v235, %v234
  %v286 = vpack.c.b16 %v237, %v236
  %v287 = vpack.c.b16 %v239, %v238
  %v288 = vpack.c.b16 %v241, %v240
  %v289 = vpack.c.b16 %v243, %v242
  %v290 = vpack.c.b16 %v245, %v244
  %v291 = vpack.c.b16 %v247, %v246
  %v292 = vpack.c.b16 %v249, %v248
  %v293 = vpack.c.b16 %v251, %v250
  %v294 = vpack.c.b16 %v253, %v252
  %v295 = vpack.c.b16 %v255, %v254
  %v296 = vpack.c.b16 %v257, %v256
  %v297 = vpack.c.b16 %v259, %v258
  %v298 = vpack.c.b16 %v261, %v260
  %v299 = vpack.c.b16 %v263, %v262
  %v300 = vpack.c.b16 %v265, %v264
  %v301 = vpack.c.b16 %v267, %v266
  %v302 = vpack.c.b16 %v269, %v268
  %v303 = vpack.c.b16 %v271, %v270
  %336 = vmatpush.bf16.msra.mxu0 %v279
  %337 = vmatpush.bf16.msra.mxu0 %v278
  %338 = vmatpush.bf16.msra.mxu0 %v277
  %339 = vmatpush.bf16.msra.mxu0 %v276
  %340 = vmatpush.bf16.msra.mxu0 %v275
  %341 = vmatpush.bf16.msra.mxu0 %v274
  %342 = vmatpush.bf16.msra.mxu0 %v273
  %343 = vmatpush.bf16.msra.mxu0 %v272
  %344 = vmatmul.bf16.gmra.mxu0 %v136
  %v345 = vpop.f32.mrf.mxu0
  %v346 = vadd.f32 %v122, %v345
  %v347 = vpop.f32.mrf.mxu0
  %v348 = vadd.f32 %v122, %v347
  %349 = vdwg.mxu0
  %350 = vmatpush.bf16.msra.mxu0 %v287
  %351 = vmatpush.bf16.msra.mxu0 %v286
  %352 = vmatpush.bf16.msra.mxu0 %v285
  %353 = vmatpush.bf16.msra.mxu0 %v284
  %354 = vmatpush.bf16.msra.mxu0 %v283
  %355 = vmatpush.bf16.msra.mxu0 %v282
  %356 = vmatpush.bf16.msra.mxu0 %v281
  %357 = vmatpush.bf16.msra.mxu0 %v280
  %358 = vmatmul.bf16.gmra.mxu0 %v137
  %v359 = vpop.f32.mrf.mxu0
  %v360 = vadd.f32 %v346, %v359
  %v361 = vpop.f32.mrf.mxu0
  %v362 = vadd.f32 %v348, %v361
  %363 = vdwg.mxu0
  %364 = vmatpush.bf16.msra.mxu0 %v295
  %365 = vmatpush.bf16.msra.mxu0 %v294
  %366 = vmatpush.bf16.msra.mxu0 %v293
  %367 = vmatpush.bf16.msra.mxu0 %v292
  %368 = vmatpush.bf16.msra.mxu0 %v291
  %369 = vmatpush.bf16.msra.mxu0 %v290
  %370 = vmatpush.bf16.msra.mxu0 %v289
  %371 = vmatpush.bf16.msra.mxu0 %v288
  %372 = vmatmul.bf16.gmra.mxu0 %v138
  %v373 = vpop.f32.mrf.mxu0
  %v374 = vadd.f32 %v360, %v373
  %v375 = vpop.f32.mrf.mxu0
  %v376 = vadd.f32 %v362, %v375
  %377 = vdwg.mxu0
  %378 = vmatpush.bf16.msra.mxu0 %v303
  %379 = vmatpush.bf16.msra.mxu0 %v302
  %380 = vmatpush.bf16.msra.mxu0 %v301
  %381 = vmatpush.bf16.msra.mxu0 %v300
  %382 = vmatpush.bf16.msra.mxu0 %v299
  %383 = vmatpush.bf16.msra.mxu0 %v298
  %384 = vmatpush.bf16.msra.mxu0 %v297
  %385 = vmatpush.bf16.msra.mxu0 %v296
  %386 = vmatmul.bf16.gmra.mxu0 %v139
  %v387 = vpop.f32.mrf.mxu0
  %v388 = vadd.f32 %v374, %v387
  %v389 = vpop.f32.mrf.mxu0
  %v390 = vadd.f32 %v376, %v389
  %391 = vdwg.mxu0
  %v392 = vadd.f32 %v388, %v390
  %v393 = vrot.slane %v392, 4
  %v394 = vadd.f32 %v392, %v393
  %v395 = vrot.slane %v394, 2
  %v396 = vadd.f32 %v394, %v395
  %v397 = vrot.slane %v396, 1
  %v398 = vadd.f32 %v396, %v397
  %399 = vst [vmem:[%s4] sm:$0x1] %v398
  %v400 = vmul.f32 %v388, %v388
  %v401 = vmul.f32 %v390, %v390
  %v402 = vadd.f32 %v400, %v401
  %v403 = vrot.slane %v402, 4
  %v404 = vadd.f32 %v402, %v403
  %v405 = vrot.slane %v404, 2
  %v406 = vadd.f32 %v404, %v405
  %v407 = vrot.slane %v406, 1
  %v408 = vadd.f32 %v406, %v407
  %409 = vst [vmem:[%s4 + $0x1] sm:$0x1] %v408
  %v410 = vpack.c.bf16 %v388, %v388
  %v411 = vpack.c.bf16 %v390, %v390
  %412 = vst [vmem:[%s3] sm:$0xf] %v410
  %413 = vst [vmem:[%s3 + $0x4] sm:$0xf] %v411
  // Predicated region
  $region14: #{unet_generator_forward.22} parent=0 // pred_check
    _
  $region15: #{unet_generator_forward.22} parent=0 // pred_check_branch
    %415 = sbr.rel (0) target = $region17
  $region16: #{unet_generator_forward.22} parent=0 // pred_region
    _
  $region17: #{unet_generator_forward.22} parent=0 // pred_fallthru
    _
  // Predicated region
  $region18: #{unet_generator_forward.22} parent=0 // pred_check
    _
  $region19: #{unet_generator_forward.22} parent=0 // pred_check_branch
    %417 = sbr.rel (0) target = $region21
  $region20: #{unet_generator_forward.22} parent=0 // pred_region
    _
  $region21: #{unet_generator_forward.22} parent=0 // pred_fallthru
    _
  // Predicated region
  $region22: #{unet_generator_forward.22} parent=0 // pred_check
    _
  $region23: #{unet_generator_forward.22} parent=0 // pred_check_branch
    %419 = sbr.rel (0) target = $region25
  $region24: #{unet_generator_forward.22} parent=0 // pred_region
    _
  $region25: #{unet_generator_forward.22} parent=0 // pred_fallthru
    _
  // Predicated region
  $region26: #{unet_generator_forward.22} parent=0 // pred_check
    _
  $region27: #{unet_generator_forward.22} parent=0 // pred_check_branch
    %421 = sbr.rel (0) target = $region29
  $region28: #{unet_generator_forward.22} parent=0 // pred_region
    _
  $region29: #{unet_generator_forward.22} parent=0 // pred_fallthru
    _

// kernel: unet_generator_forward.24
$region0: #{unet_generator_forward.24}
  #allocation0 [shape = 'u32[]', space=smem, size = 0x4, offset = 0x4, fixed_abs, tag = 'smem constant byte address 0x4 - core index']
  #allocation1 [shape = 'u32[72,128]{1,0:T(1,128)}', space=vmem, size = 0x9000, scoped, tag = 'internal scratch']
  %s0 = inlined_call_operand.vmem [shape: bf16[1,16,1024], index: 0, kind: input, shape index: {}]
  %s1 = inlined_call_operand.vmem [shape: bf16[1,1024,128], index: 1, kind: input, shape index: {}]
  %s2 = inlined_call_operand.vmem [shape: f32[1,128], index: 2, kind: input, shape index: {}]
  %s3 = inlined_call_operand.vmem [shape: bf16[1,16,128], index: 3, kind: output, shape index: {}]
  %s4 = sld [smem:[#allocation0]]
  $region22: #{unet_generator_forward.24} parent=0
    _
  %s6 = ssub.s32 1, %s4
  %s7 = scalar_select 0, %s6, %s4
  // Predicated region
  $region2: #{unet_generator_forward.24} parent=0 // pred_check
    _
  $region3: #{unet_generator_forward.24} parent=0 // pred_check_branch
    %9 = sbr.rel (0) target = $region5
  $region4: #{unet_generator_forward.24} parent=0 // pred_region
    _
  $region5: #{unet_generator_forward.24} parent=0 // pred_fallthru
    _
  // Predicated region
  $region6: #{unet_generator_forward.24} parent=0 // pred_check
    _
  $region7: #{unet_generator_forward.24} parent=0 // pred_check_branch
    %11 = sbr.rel (0) target = $region9
  $region8: #{unet_generator_forward.24} parent=0 // pred_region
    _
  $region9: #{unet_generator_forward.24} parent=0 // pred_fallthru
    _
  // Predicated region
  $region10: #{unet_generator_forward.24} parent=0 // pred_check
    _
  $region11: #{unet_generator_forward.24} parent=0 // pred_check_branch
    %13 = sbr.rel (0) target = $region13
  $region12: #{unet_generator_forward.24} parent=0 // pred_region
    _
  $region13: #{unet_generator_forward.24} parent=0 // pred_fallthru
    _
  %v14 = vld [vmem:[%s0] sm:$0xff]
  %v15 = vld [vmem:[%s0 + $0x8] sm:$0xff]
  %v16 = vld [vmem:[%s0 + $0x10] sm:$0xff]
  %v17 = vld [vmem:[%s0 + $0x18] sm:$0xff]
  %v18 = vld [vmem:[%s0 + $0x20] sm:$0xff]
  %v19 = vld [vmem:[%s0 + $0x28] sm:$0xff]
  %v20 = vld [vmem:[%s0 + $0x30] sm:$0xff]
  %v21 = vld [vmem:[%s0 + $0x38] sm:$0xff]
  %v22 = vunpack.c.l.bf16 %v14
  %v23 = vunpack.c.h.bf16 %v14
  %v24 = vunpack.c.l.bf16 %v15
  %v25 = vunpack.c.h.bf16 %v15
  %v26 = vunpack.c.l.bf16 %v16
  %v27 = vunpack.c.h.bf16 %v16
  %v28 = vunpack.c.l.bf16 %v17
  %v29 = vunpack.c.h.bf16 %v17
  %v30 = vunpack.c.l.bf16 %v18
  %v31 = vunpack.c.h.bf16 %v18
  %v32 = vunpack.c.l.bf16 %v19
  %v33 = vunpack.c.h.bf16 %v19
  %v34 = vunpack.c.l.bf16 %v20
  %v35 = vunpack.c.h.bf16 %v20
  %v36 = vunpack.c.l.bf16 %v21
  %v37 = vunpack.c.h.bf16 %v21
  %vm38 = vcmp.ge.f32.partialorder %v22, 0.0
  %vm39 = vcmp.ge.f32.partialorder %v23, 0.0
  %vm40 = vcmp.ge.f32.partialorder %v24, 0.0
  %vm41 = vcmp.ge.f32.partialorder %v25, 0.0
  %vm42 = vcmp.ge.f32.partialorder %v26, 0.0
  %vm43 = vcmp.ge.f32.partialorder %v27, 0.0
  %vm44 = vcmp.ge.f32.partialorder %v28, 0.0
  %vm45 = vcmp.ge.f32.partialorder %v29, 0.0
  %vm46 = vcmp.ge.f32.partialorder %v30, 0.0
  %vm47 = vcmp.ge.f32.partialorder %v31, 0.0
  %vm48 = vcmp.ge.f32.partialorder %v32, 0.0
  %vm49 = vcmp.ge.f32.partialorder %v33, 0.0
  %vm50 = vcmp.ge.f32.partialorder %v34, 0.0
  %vm51 = vcmp.ge.f32.partialorder %v35, 0.0
  %vm52 = vcmp.ge.f32.partialorder %v36, 0.0
  %vm53 = vcmp.ge.f32.partialorder %v37, 0.0
  %v54 = vmul.f32 %v22, 0.20019531
  %v55 = vmul.f32 %v23, 0.20019531
  %v56 = vmul.f32 %v24, 0.20019531
  %v57 = vmul.f32 %v25, 0.20019531
  %v58 = vmul.f32 %v26, 0.20019531
  %v59 = vmul.f32 %v27, 0.20019531
  %v60 = vmul.f32 %v28, 0.20019531
  %v61 = vmul.f32 %v29, 0.20019531
  %v62 = vmul.f32 %v30, 0.20019531
  %v63 = vmul.f32 %v31, 0.20019531
  %v64 = vmul.f32 %v32, 0.20019531
  %v65 = vmul.f32 %v33, 0.20019531
  %v66 = vmul.f32 %v34, 0.20019531
  %v67 = vmul.f32 %v35, 0.20019531
  %v68 = vmul.f32 %v36, 0.20019531
  %v69 = vmul.f32 %v37, 0.20019531
  %v70 = vpack.c.bf16 %v55, %v54
  %v71 = vpack.c.bf16 %v57, %v56
  %v72 = vpack.c.bf16 %v59, %v58
  %v73 = vpack.c.bf16 %v61, %v60
  %v74 = vpack.c.bf16 %v63, %v62
  %v75 = vpack.c.bf16 %v65, %v64
  %v76 = vpack.c.bf16 %v67, %v66
  %v77 = vpack.c.bf16 %v69, %v68
  %vm78 = vmpackc.low %vm39, %vm38
  %vm79 = vmpackc.low %vm41, %vm40
  %vm80 = vmpackc.low %vm43, %vm42
  %vm81 = vmpackc.low %vm45, %vm44
  %vm82 = vmpackc.low %vm47, %vm46
  %vm83 = vmpackc.low %vm49, %vm48
  %vm84 = vmpackc.low %vm51, %vm50
  %vm85 = vmpackc.low %vm53, %vm52
  %v86 = vsel %vm78, %v14, %v70
  %v87 = vsel %vm79, %v15, %v71
  %v88 = vsel %vm80, %v16, %v72
  %v89 = vsel %vm81, %v17, %v73
  %v90 = vsel %vm82, %v18, %v74
  %v91 = vsel %vm83, %v19, %v75
  %v92 = vsel %vm84, %v20, %v76
  %v93 = vsel %vm85, %v21, %v77
  %v94 = vld [vmem:[%s1] sm:$0xf]
  %v95 = vld [vmem:[%s1 + $0x4] sm:$0xf]
  %v96 = vld [vmem:[%s1 + $0x8] sm:$0xf]
  %v97 = vld [vmem:[%s1 + $0xc] sm:$0xf]
  %v98 = vld [vmem:[%s1 + $0x10] sm:$0xf]
  %v99 = vld [vmem:[%s1 + $0x14] sm:$0xf]
  %v100 = vld [vmem:[%s1 + $0x18] sm:$0xf]
  %v101 = vld [vmem:[%s1 + $0x1c] sm:$0xf]
  %v102 = vld [vmem:[%s1 + $0x20] sm:$0xf]
  %v103 = vld [vmem:[%s1 + $0x24] sm:$0xf]
  %v104 = vld [vmem:[%s1 + $0x28] sm:$0xf]
  %v105 = vld [vmem:[%s1 + $0x2c] sm:$0xf]
  %v106 = vld [vmem:[%s1 + $0x30] sm:$0xf]
  %v107 = vld [vmem:[%s1 + $0x34] sm:$0xf]
  %v108 = vld [vmem:[%s1 + $0x38] sm:$0xf]
  %v109 = vld [vmem:[%s1 + $0x3c] sm:$0xf]
  %v110 = vld [vmem:[%s1 + $0x40] sm:$0xf]
  %v111 = vld [vmem:[%s1 + $0x44] sm:$0xf]
  %v112 = vld [vmem:[%s1 + $0x48] sm:$0xf]
  %v113 = vld [vmem:[%s1 + $0x4c] sm:$0xf]
  %v114 = vld [vmem:[%s1 + $0x50] sm:$0xf]
  %v115 = vld [vmem:[%s1 + $0x54] sm:$0xf]
  %v116 = vld [vmem:[%s1 + $0x58] sm:$0xf]
  %v117 = vld [vmem:[%s1 + $0x5c] sm:$0xf]
  %v118 = vld [vmem:[%s1 + $0x60] sm:$0xf]
  %v119 = vld [vmem:[%s1 + $0x64] sm:$0xf]
  %v120 = vld [vmem:[%s1 + $0x68] sm:$0xf]
  %v121 = vld [vmem:[%s1 + $0x6c] sm:$0xf]
  %v122 = vld [vmem:[%s1 + $0x70] sm:$0xf]
  %v123 = vld [vmem:[%s1 + $0x74] sm:$0xf]
  %v124 = vld [vmem:[%s1 + $0x78] sm:$0xf]
  %v125 = vld [vmem:[%s1 + $0x7c] sm:$0xf]
  %v126 = vld [vmem:[%s1 + $0x80] sm:$0xf]
  %v127 = vld [vmem:[%s1 + $0x84] sm:$0xf]
  %v128 = vld [vmem:[%s1 + $0x88] sm:$0xf]
  %v129 = vld [vmem:[%s1 + $0x8c] sm:$0xf]
  %v130 = vld [vmem:[%s1 + $0x90] sm:$0xf]
  %v131 = vld [vmem:[%s1 + $0x94] sm:$0xf]
  %v132 = vld [vmem:[%s1 + $0x98] sm:$0xf]
  %v133 = vld [vmem:[%s1 + $0x9c] sm:$0xf]
  %v134 = vld [vmem:[%s1 + $0xa0] sm:$0xf]
  %v135 = vld [vmem:[%s1 + $0xa4] sm:$0xf]
  %v136 = vld [vmem:[%s1 + $0xa8] sm:$0xf]
  %v137 = vld [vmem:[%s1 + $0xac] sm:$0xf]
  %v138 = vld [vmem:[%s1 + $0xb0] sm:$0xf]
  %v139 = vld [vmem:[%s1 + $0xb4] sm:$0xf]
  %v140 = vld [vmem:[%s1 + $0xb8] sm:$0xf]
  %v141 = vld [vmem:[%s1 + $0xbc] sm:$0xf]
  %v142 = vld [vmem:[%s1 + $0xc0] sm:$0xf]
  %v143 = vld [vmem:[%s1 + $0xc4] sm:$0xf]
  %v144 = vld [vmem:[%s1 + $0xc8] sm:$0xf]
  %v145 = vld [vmem:[%s1 + $0xcc] sm:$0xf]
  %v146 = vld [vmem:[%s1 + $0xd0] sm:$0xf]
  %v147 = vld [vmem:[%s1 + $0xd4] sm:$0xf]
  %v148 = vld [vmem:[%s1 + $0xd8] sm:$0xf]
  %v149 = vld [vmem:[%s1 + $0xdc] sm:$0xf]
  %v150 = vld [vmem:[%s1 + $0xe0] sm:$0xf]
  %v151 = vld [vmem:[%s1 + $0xe4] sm:$0xf]
  %v152 = vld [vmem:[%s1 + $0xe8] sm:$0xf]
  %v153 = vld [vmem:[%s1 + $0xec] sm:$0xf]
  %v154 = vld [vmem:[%s1 + $0xf0] sm:$0xf]
  %v155 = vld [vmem:[%s1 + $0xf4] sm:$0xf]
  %v156 = vld [vmem:[%s1 + $0xf8] sm:$0xf]
  %v157 = vld [vmem:[%s1 + $0xfc] sm:$0xf]
  %v158 = vld [vmem:[%s1 + $0x100] sm:$0xf]
  %v159 = vld [vmem:[%s1 + $0x104] sm:$0xf]
  %v160 = vld [vmem:[%s1 + $0x108] sm:$0xf]
  %v161 = vld [vmem:[%s1 + $0x10c] sm:$0xf]
  %v162 = vld [vmem:[%s1 + $0x110] sm:$0xf]
  %v163 = vld [vmem:[%s1 + $0x114] sm:$0xf]
  %v164 = vld [vmem:[%s1 + $0x118] sm:$0xf]
  %v165 = vld [vmem:[%s1 + $0x11c] sm:$0xf]
  %v166 = vld [vmem:[%s1 + $0x120] sm:$0xf]
  %v167 = vld [vmem:[%s1 + $0x124] sm:$0xf]
  %v168 = vld [vmem:[%s1 + $0x128] sm:$0xf]
  %v169 = vld [vmem:[%s1 + $0x12c] sm:$0xf]
  %v170 = vld [vmem:[%s1 + $0x130] sm:$0xf]
  %v171 = vld [vmem:[%s1 + $0x134] sm:$0xf]
  %v172 = vld [vmem:[%s1 + $0x138] sm:$0xf]
  %v173 = vld [vmem:[%s1 + $0x13c] sm:$0xf]
  %v174 = vld [vmem:[%s1 + $0x140] sm:$0xf]
  %v175 = vld [vmem:[%s1 + $0x144] sm:$0xf]
  %v176 = vld [vmem:[%s1 + $0x148] sm:$0xf]
  %v177 = vld [vmem:[%s1 + $0x14c] sm:$0xf]
  %v178 = vld [vmem:[%s1 + $0x150] sm:$0xf]
  %v179 = vld [vmem:[%s1 + $0x154] sm:$0xf]
  %v180 = vld [vmem:[%s1 + $0x158] sm:$0xf]
  %v181 = vld [vmem:[%s1 + $0x15c] sm:$0xf]
  %v182 = vld [vmem:[%s1 + $0x160] sm:$0xf]
  %v183 = vld [vmem:[%s1 + $0x164] sm:$0xf]
  %v184 = vld [vmem:[%s1 + $0x168] sm:$0xf]
  %v185 = vld [vmem:[%s1 + $0x16c] sm:$0xf]
  %v186 = vld [vmem:[%s1 + $0x170] sm:$0xf]
  %v187 = vld [vmem:[%s1 + $0x174] sm:$0xf]
  %v188 = vld [vmem:[%s1 + $0x178] sm:$0xf]
  %v189 = vld [vmem:[%s1 + $0x17c] sm:$0xf]
  %v190 = vld [vmem:[%s1 + $0x180] sm:$0xf]
  %v191 = vld [vmem:[%s1 + $0x184] sm:$0xf]
  %v192 = vld [vmem:[%s1 + $0x188] sm:$0xf]
  %v193 = vld [vmem:[%s1 + $0x18c] sm:$0xf]
  %v194 = vld [vmem:[%s1 + $0x190] sm:$0xf]
  %v195 = vld [vmem:[%s1 + $0x194] sm:$0xf]
  %v196 = vld [vmem:[%s1 + $0x198] sm:$0xf]
  %v197 = vld [vmem:[%s1 + $0x19c] sm:$0xf]
  %v198 = vld [vmem:[%s1 + $0x1a0] sm:$0xf]
  %v199 = vld [vmem:[%s1 + $0x1a4] sm:$0xf]
  %v200 = vld [vmem:[%s1 + $0x1a8] sm:$0xf]
  %v201 = vld [vmem:[%s1 + $0x1ac] sm:$0xf]
  %v202 = vld [vmem:[%s1 + $0x1b0] sm:$0xf]
  %v203 = vld [vmem:[%s1 + $0x1b4] sm:$0xf]
  %v204 = vld [vmem:[%s1 + $0x1b8] sm:$0xf]
  %v205 = vld [vmem:[%s1 + $0x1bc] sm:$0xf]
  %v206 = vld [vmem:[%s1 + $0x1c0] sm:$0xf]
  %v207 = vld [vmem:[%s1 + $0x1c4] sm:$0xf]
  %v208 = vld [vmem:[%s1 + $0x1c8] sm:$0xf]
  %v209 = vld [vmem:[%s1 + $0x1cc] sm:$0xf]
  %v210 = vld [vmem:[%s1 + $0x1d0] sm:$0xf]
  %v211 = vld [vmem:[%s1 + $0x1d4] sm:$0xf]
  %v212 = vld [vmem:[%s1 + $0x1d8] sm:$0xf]
  %v213 = vld [vmem:[%s1 + $0x1dc] sm:$0xf]
  %v214 = vld [vmem:[%s1 + $0x1e0] sm:$0xf]
  %v215 = vld [vmem:[%s1 + $0x1e4] sm:$0xf]
  %v216 = vld [vmem:[%s1 + $0x1e8] sm:$0xf]
  %v217 = vld [vmem:[%s1 + $0x1ec] sm:$0xf]
  %v218 = vld [vmem:[%s1 + $0x1f0] sm:$0xf]
  %v219 = vld [vmem:[%s1 + $0x1f4] sm:$0xf]
  %v220 = vld [vmem:[%s1 + $0x1f8] sm:$0xf]
  %v221 = vld [vmem:[%s1 + $0x1fc] sm:$0xf]
  %v222 = vld [vmem:[%s2] sm:$0x1]
  %v224 = vperm.slane %v222, 0
  %v234 = vunpack.c.l.b16 %v86
  %v235 = vunpack.c.h.b16 %v86
  %v236 = vunpack.c.l.b16 %v87
  %v237 = vunpack.c.h.b16 %v87
  %v238 = vunpack.c.l.b16 %v88
  %v239 = vunpack.c.h.b16 %v88
  %v240 = vunpack.c.l.b16 %v89
  %v241 = vunpack.c.h.b16 %v89
  %v242 = vunpack.c.l.b16 %v90
  %v243 = vunpack.c.h.b16 %v90
  %v244 = vunpack.c.l.b16 %v91
  %v245 = vunpack.c.h.b16 %v91
  %v246 = vunpack.c.l.b16 %v92
  %v247 = vunpack.c.h.b16 %v92
  %v248 = vunpack.c.l.b16 %v93
  %v249 = vunpack.c.h.b16 %v93
  %v250 = vpack.c.b16 %v242, %v234
  %v251 = vpack.c.b16 %v243, %v235
  %v252 = vpack.c.b16 %v244, %v236
  %v253 = vpack.c.b16 %v245, %v237
  %v254 = vpack.c.b16 %v246, %v238
  %v255 = vpack.c.b16 %v247, %v239
  %v256 = vpack.c.b16 %v248, %v240
  %v257 = vpack.c.b16 %v249, %v241
  %v394 = vunpack.c.l.b16 %v94
  %v395 = vunpack.c.l.b16 %v95
  %v396 = vunpack.c.l.b16 %v96
  %v397 = vunpack.c.l.b16 %v97
  %v398 = vunpack.c.l.b16 %v98
  %v399 = vunpack.c.l.b16 %v99
  %v400 = vunpack.c.l.b16 %v100
  %v401 = vunpack.c.l.b16 %v101
  %v402 = vunpack.c.l.b16 %v102
  %v403 = vunpack.c.l.b16 %v103
  %v404 = vunpack.c.l.b16 %v104
  %v405 = vunpack.c.l.b16 %v105
  %v406 = vunpack.c.l.b16 %v106
  %v407 = vunpack.c.l.b16 %v107
  %v408 = vunpack.c.l.b16 %v108
  %v409 = vunpack.c.l.b16 %v109
  %v410 = vunpack.c.l.b16 %v110
  %v411 = vunpack.c.l.b16 %v111
  %v412 = vunpack.c.l.b16 %v112
  %v413 = vunpack.c.l.b16 %v113
  %v414 = vunpack.c.l.b16 %v114
  %v415 = vunpack.c.l.b16 %v115
  %v416 = vunpack.c.l.b16 %v116
  %v417 = vunpack.c.l.b16 %v117
  %v418 = vunpack.c.l.b16 %v118
  %v419 = vunpack.c.l.b16 %v119
  %v420 = vunpack.c.l.b16 %v120
  %v421 = vunpack.c.l.b16 %v121
  %v422 = vunpack.c.l.b16 %v122
  %v423 = vunpack.c.l.b16 %v123
  %v424 = vunpack.c.l.b16 %v124
  %v425 = vunpack.c.l.b16 %v125
  %v426 = vunpack.c.l.b16 %v126
  %v427 = vunpack.c.l.b16 %v127
  %v428 = vunpack.c.l.b16 %v128
  %v429 = vunpack.c.l.b16 %v129
  %v430 = vunpack.c.l.b16 %v130
  %v431 = vunpack.c.l.b16 %v131
  %v432 = vunpack.c.l.b16 %v132
  %v433 = vunpack.c.l.b16 %v133
  %v434 = vunpack.c.l.b16 %v134
  %v435 = vunpack.c.l.b16 %v135
  %v436 = vunpack.c.l.b16 %v136
  %v437 = vunpack.c.l.b16 %v137
  %v438 = vunpack.c.l.b16 %v138
  %v439 = vunpack.c.l.b16 %v139
  %v440 = vunpack.c.l.b16 %v140
  %v441 = vunpack.c.l.b16 %v141
  %v442 = vunpack.c.l.b16 %v142
  %v443 = vunpack.c.l.b16 %v143
  %v444 = vunpack.c.l.b16 %v144
  %v445 = vunpack.c.l.b16 %v145
  %v446 = vunpack.c.l.b16 %v146
  %v447 = vunpack.c.l.b16 %v147
  %v448 = vunpack.c.l.b16 %v148
  %v449 = vunpack.c.l.b16 %v149
  %v450 = vunpack.c.l.b16 %v150
  %v451 = vunpack.c.l.b16 %v151
  %v452 = vunpack.c.l.b16 %v152
  %v453 = vunpack.c.l.b16 %v153
  %v454 = vunpack.c.l.b16 %v154
  %v455 = vunpack.c.l.b16 %v155
  %v456 = vunpack.c.l.b16 %v156
  %v457 = vunpack.c.l.b16 %v157
  %v458 = vunpack.c.l.b16 %v158
  %v459 = vunpack.c.l.b16 %v159
  %v460 = vunpack.c.l.b16 %v160
  %v461 = vunpack.c.l.b16 %v161
  %v462 = vunpack.c.l.b16 %v162
  %v463 = vunpack.c.l.b16 %v163
  %v464 = vunpack.c.l.b16 %v164
  %v465 = vunpack.c.l.b16 %v165
  %v466 = vunpack.c.l.b16 %v166
  %v467 = vunpack.c.l.b16 %v167
  %v468 = vunpack.c.l.b16 %v168
  %v469 = vunpack.c.l.b16 %v169
  %v470 = vunpack.c.l.b16 %v170
  %v471 = vunpack.c.l.b16 %v171
  %v472 = vunpack.c.l.b16 %v172
  %v473 = vunpack.c.l.b16 %v173
  %v474 = vunpack.c.l.b16 %v174
  %v475 = vunpack.c.l.b16 %v175
  %v476 = vunpack.c.l.b16 %v176
  %v477 = vunpack.c.l.b16 %v177
  %v478 = vunpack.c.l.b16 %v178
  %v479 = vunpack.c.l.b16 %v179
  %v480 = vunpack.c.l.b16 %v180
  %v481 = vunpack.c.l.b16 %v181
  %v482 = vunpack.c.l.b16 %v182
  %v483 = vunpack.c.l.b16 %v183
  %v484 = vunpack.c.l.b16 %v184
  %v485 = vunpack.c.l.b16 %v185
  %v486 = vunpack.c.l.b16 %v186
  %v487 = vunpack.c.l.b16 %v187
  %v488 = vunpack.c.l.b16 %v188
  %v489 = vunpack.c.l.b16 %v189
  %v490 = vunpack.c.l.b16 %v190
  %v491 = vunpack.c.l.b16 %v191
  %v492 = vunpack.c.l.b16 %v192
  %v493 = vunpack.c.l.b16 %v193
  %v494 = vunpack.c.l.b16 %v194
  %v495 = vunpack.c.l.b16 %v195
  %v496 = vunpack.c.l.b16 %v196
  %v497 = vunpack.c.l.b16 %v197
  %v498 = vunpack.c.l.b16 %v198
  %v499 = vunpack.c.l.b16 %v199
  %v500 = vunpack.c.l.b16 %v200
  %v501 = vunpack.c.l.b16 %v201
  %v502 = vunpack.c.l.b16 %v202
  %v503 = vunpack.c.l.b16 %v203
  %v504 = vunpack.c.l.b16 %v204
  %v505 = vunpack.c.l.b16 %v205
  %v506 = vunpack.c.l.b16 %v206
  %v507 = vunpack.c.l.b16 %v207
  %v508 = vunpack.c.l.b16 %v208
  %v509 = vunpack.c.l.b16 %v209
  %v510 = vunpack.c.l.b16 %v210
  %v511 = vunpack.c.l.b16 %v211
  %v512 = vunpack.c.l.b16 %v212
  %v513 = vunpack.c.l.b16 %v213
  %v514 = vunpack.c.l.b16 %v214
  %v515 = vunpack.c.l.b16 %v215
  %v516 = vunpack.c.l.b16 %v216
  %v517 = vunpack.c.l.b16 %v217
  %v518 = vunpack.c.l.b16 %v218
  %v519 = vunpack.c.l.b16 %v219
  %v520 = vunpack.c.l.b16 %v220
  %v521 = vunpack.c.l.b16 %v221
  %v522 = vpack.c.b16 %v395, %v394
  %v523 = vpack.c.b16 %v397, %v396
  %v524 = vpack.c.b16 %v399, %v398
  %v525 = vpack.c.b16 %v401, %v400
  %v526 = vpack.c.b16 %v403, %v402
  %v527 = vpack.c.b16 %v405, %v404
  %v528 = vpack.c.b16 %v407, %v406
  %v529 = vpack.c.b16 %v409, %v408
  %v530 = vpack.c.b16 %v411, %v410
  %v531 = vpack.c.b16 %v413, %v412
  %v532 = vpack.c.b16 %v415, %v414
  %v533 = vpack.c.b16 %v417, %v416
  %v534 = vpack.c.b16 %v419, %v418
  %v535 = vpack.c.b16 %v421, %v420
  %v536 = vpack.c.b16 %v423, %v422
  %v537 = vpack.c.b16 %v425, %v424
  %v538 = vpack.c.b16 %v427, %v426
  %v539 = vpack.c.b16 %v429, %v428
  %v540 = vpack.c.b16 %v431, %v430
  %v541 = vpack.c.b16 %v433, %v432
  %v542 = vpack.c.b16 %v435, %v434
  %v543 = vpack.c.b16 %v437, %v436
  %v544 = vpack.c.b16 %v439, %v438
  %v545 = vpack.c.b16 %v441, %v440
  %v546 = vpack.c.b16 %v443, %v442
  %v547 = vpack.c.b16 %v445, %v444
  %v548 = vpack.c.b16 %v447, %v446
  %v549 = vpack.c.b16 %v449, %v448
  %v550 = vpack.c.b16 %v451, %v450
  %v551 = vpack.c.b16 %v453, %v452
  %v552 = vpack.c.b16 %v455, %v454
  %v553 = vpack.c.b16 %v457, %v456
  %v554 = vpack.c.b16 %v459, %v458
  %v555 = vpack.c.b16 %v461, %v460
  %v556 = vpack.c.b16 %v463, %v462
  %v557 = vpack.c.b16 %v465, %v464
  %v558 = vpack.c.b16 %v467, %v466
  %v559 = vpack.c.b16 %v469, %v468
  %v560 = vpack.c.b16 %v471, %v470
  %v561 = vpack.c.b16 %v473, %v472
  %v562 = vpack.c.b16 %v475, %v474
  %v563 = vpack.c.b16 %v477, %v476
  %v564 = vpack.c.b16 %v479, %v478
  %v565 = vpack.c.b16 %v481, %v480
  %v566 = vpack.c.b16 %v483, %v482
  %v567 = vpack.c.b16 %v485, %v484
  %v568 = vpack.c.b16 %v487, %v486
  %v569 = vpack.c.b16 %v489, %v488
  %v570 = vpack.c.b16 %v491, %v490
  %v571 = vpack.c.b16 %v493, %v492
  %v572 = vpack.c.b16 %v495, %v494
  %v573 = vpack.c.b16 %v497, %v496
  %v574 = vpack.c.b16 %v499, %v498
  %v575 = vpack.c.b16 %v501, %v500
  %v576 = vpack.c.b16 %v503, %v502
  %v577 = vpack.c.b16 %v505, %v504
  %v578 = vpack.c.b16 %v507, %v506
  %v579 = vpack.c.b16 %v509, %v508
  %v580 = vpack.c.b16 %v511, %v510
  %v581 = vpack.c.b16 %v513, %v512
  %v582 = vpack.c.b16 %v515, %v514
  %v583 = vpack.c.b16 %v517, %v516
  %v584 = vpack.c.b16 %v519, %v518
  %v585 = vpack.c.b16 %v521, %v520
  %650 = vmatpush.bf16.msra.mxu0 %v529
  %651 = vmatpush.bf16.msra.mxu0 %v528
  %652 = vmatpush.bf16.msra.mxu0 %v527
  %653 = vmatpush.bf16.msra.mxu0 %v526
  %654 = vmatpush.bf16.msra.mxu0 %v525
  %655 = vmatpush.bf16.msra.mxu0 %v524
  %656 = vmatpush.bf16.msra.mxu0 %v523
  %657 = vmatpush.bf16.msra.mxu0 %v522
  %658 = vmatmul.bf16.gmra.mxu0 %v250
  %v659 = vpop.f32.mrf.mxu0
  %v660 = vadd.f32 %v224, %v659
  %v661 = vpop.f32.mrf.mxu0
  %v662 = vadd.f32 %v224, %v661
  %663 = vdwg.mxu0
  %664 = vmatpush.bf16.msra.mxu0 %v537
  %665 = vmatpush.bf16.msra.mxu0 %v536
  %666 = vmatpush.bf16.msra.mxu0 %v535
  %667 = vmatpush.bf16.msra.mxu0 %v534
  %668 = vmatpush.bf16.msra.mxu0 %v533
  %669 = vmatpush.bf16.msra.mxu0 %v532
  %670 = vmatpush.bf16.msra.mxu0 %v531
  %671 = vmatpush.bf16.msra.mxu0 %v530
  %672 = vmatmul.bf16.gmra.mxu0 %v251
  %v673 = vpop.f32.mrf.mxu0
  %v674 = vadd.f32 %v660, %v673
  %v675 = vpop.f32.mrf.mxu0
  %v676 = vadd.f32 %v662, %v675
  %677 = vdwg.mxu0
  %678 = vmatpush.bf16.msra.mxu0 %v545
  %679 = vmatpush.bf16.msra.mxu0 %v544
  %680 = vmatpush.bf16.msra.mxu0 %v543
  %681 = vmatpush.bf16.msra.mxu0 %v542
  %682 = vmatpush.bf16.msra.mxu0 %v541
  %683 = vmatpush.bf16.msra.mxu0 %v540
  %684 = vmatpush.bf16.msra.mxu0 %v539
  %685 = vmatpush.bf16.msra.mxu0 %v538
  %686 = vmatmul.bf16.gmra.mxu0 %v252
  %v687 = vpop.f32.mrf.mxu0
  %v688 = vadd.f32 %v674, %v687
  %v689 = vpop.f32.mrf.mxu0
  %v690 = vadd.f32 %v676, %v689
  %691 = vdwg.mxu0
  %692 = vmatpush.bf16.msra.mxu0 %v553
  %693 = vmatpush.bf16.msra.mxu0 %v552
  %694 = vmatpush.bf16.msra.mxu0 %v551
  %695 = vmatpush.bf16.msra.mxu0 %v550
  %696 = vmatpush.bf16.msra.mxu0 %v549
  %697 = vmatpush.bf16.msra.mxu0 %v548
  %698 = vmatpush.bf16.msra.mxu0 %v547
  %699 = vmatpush.bf16.msra.mxu0 %v546
  %700 = vmatmul.bf16.gmra.mxu0 %v253
  %v701 = vpop.f32.mrf.mxu0
  %v702 = vadd.f32 %v688, %v701
  %v703 = vpop.f32.mrf.mxu0
  %v704 = vadd.f32 %v690, %v703
  %705 = vdwg.mxu0
  %706 = vmatpush.bf16.msra.mxu0 %v561
  %707 = vmatpush.bf16.msra.mxu0 %v560
  %708 = vmatpush.bf16.msra.mxu0 %v559
  %709 = vmatpush.bf16.msra.mxu0 %v558
  %710 = vmatpush.bf16.msra.mxu0 %v557
  %711 = vmatpush.bf16.msra.mxu0 %v556
  %712 = vmatpush.bf16.msra.mxu0 %v555
  %713 = vmatpush.bf16.msra.mxu0 %v554
  %714 = vmatmul.bf16.gmra.mxu0 %v254
  %v715 = vpop.f32.mrf.mxu0
  %v716 = vadd.f32 %v702, %v715
  %v717 = vpop.f32.mrf.mxu0
  %v718 = vadd.f32 %v704, %v717
  %719 = vdwg.mxu0
  %720 = vmatpush.bf16.msra.mxu0 %v569
  %721 = vmatpush.bf16.msra.mxu0 %v568
  %722 = vmatpush.bf16.msra.mxu0 %v567
  %723 = vmatpush.bf16.msra.mxu0 %v566
  %724 = vmatpush.bf16.msra.mxu0 %v565
  %725 = vmatpush.bf16.msra.mxu0 %v564
  %726 = vmatpush.bf16.msra.mxu0 %v563
  %727 = vmatpush.bf16.msra.mxu0 %v562
  %728 = vmatmul.bf16.gmra.mxu0 %v255
  %v729 = vpop.f32.mrf.mxu0
  %v730 = vadd.f32 %v716, %v729
  %v731 = vpop.f32.mrf.mxu0
  %v732 = vadd.f32 %v718, %v731
  %733 = vdwg.mxu0
  %734 = vmatpush.bf16.msra.mxu0 %v577
  %735 = vmatpush.bf16.msra.mxu0 %v576
  %736 = vmatpush.bf16.msra.mxu0 %v575
  %737 = vmatpush.bf16.msra.mxu0 %v574
  %738 = vmatpush.bf16.msra.mxu0 %v573
  %739 = vmatpush.bf16.msra.mxu0 %v572
  %740 = vmatpush.bf16.msra.mxu0 %v571
  %741 = vmatpush.bf16.msra.mxu0 %v570
  %742 = vmatmul.bf16.gmra.mxu0 %v256
  %v743 = vpop.f32.mrf.mxu0
  %v744 = vadd.f32 %v730, %v743
  %v745 = vpop.f32.mrf.mxu0
  %v746 = vadd.f32 %v732, %v745
  %747 = vdwg.mxu0
  %748 = vmatpush.bf16.msra.mxu0 %v585
  %749 = vmatpush.bf16.msra.mxu0 %v584
  %750 = vmatpush.bf16.msra.mxu0 %v583
  %751 = vmatpush.bf16.msra.mxu0 %v582
  %752 = vmatpush.bf16.msra.mxu0 %v581
  %753 = vmatpush.bf16.msra.mxu0 %v580
  %754 = vmatpush.bf16.msra.mxu0 %v579
  %755 = vmatpush.bf16.msra.mxu0 %v578
  %756 = vmatmul.bf16.gmra.mxu0 %v257
  %v757 = vpop.f32.mrf.mxu0
  %v758 = vadd.f32 %v744, %v757
  %v759 = vpop.f32.mrf.mxu0
  %v760 = vadd.f32 %v746, %v759
  %761 = vdwg.mxu0
  %v762 = vpack.c.bf16 %v758, %v758
  %v763 = vpack.c.bf16 %v760, %v760
  %764 = vst [vmem:[%s3] sm:$0xf] %v762
  %765 = vst [vmem:[%s3 + $0x4] sm:$0xf] %v763
  // Predicated region
  $region14: #{unet_generator_forward.24} parent=0 // pred_check
    _
  $region15: #{unet_generator_forward.24} parent=0 // pred_check_branch
    %767 = sbr.rel (0) target = $region17
  $region16: #{unet_generator_forward.24} parent=0 // pred_region
    _
  $region17: #{unet_generator_forward.24} parent=0 // pred_fallthru
    _
  // Predicated region
  $region18: #{unet_generator_forward.24} parent=0 // pred_check
    _
  $region19: #{unet_generator_forward.24} parent=0 // pred_check_branch
    %769 = sbr.rel (0) target = $region21
  $region20: #{unet_generator_forward.24} parent=0 // pred_region
    _
  $region21: #{unet_generator_forward.24} parent=0 // pred_fallthru
    _

// kernel: unet_generator_forward.25
$region0: #{unet_generator_forward.25}
  #allocation0 [shape = 'u32[]', space=smem, size = 0x4, offset = 0x4, fixed_abs, tag = 'smem constant byte address 0x4 - core index']
  #allocation1 [shape = 'u32[72,128]{1,0:T(1,128)}', space=vmem, size = 0x9000, scoped, tag = 'internal scratch']
  %s0 = inlined_call_operand.vmem [shape: bf16[4,16,256], index: 0, kind: input, shape index: {}]
  %s1 = inlined_call_operand.vmem [shape: bf16[4,256,128], index: 1, kind: input, shape index: {}]
  %s2 = inlined_call_operand.vmem [shape: f32[1,128], index: 2, kind: input, shape index: {}]
  %s3 = inlined_call_operand.vmem [shape: bf16[4,16,128], index: 3, kind: output, shape index: {0}]
  %s4 = inlined_call_operand.vmem [shape: f32[4,1,8,128], index: 4, kind: output, shape index: {1}]
  %5 = xla_tuple %s3, %s4
  %s6 = sld [smem:[#allocation0]]
  $region53: #{unet_generator_forward.25} parent=0
    _
  %s8 = ssub.s32 1, %s6
  %s9 = scalar_select 0, %s8, %s6
  loop: start=0, step=1, limit=6
  $region2: #{unet_generator_forward.25} parent=0 // loop_pre_header
    _
  $region3: #{unet_generator_forward.25} parent=0 // loop_header
    %s11 = sphi 0, %s15
    %p12 = scmp.ge.s32.totalorder %s11, 6
    %s18 = sphi 0, %s44
    %s19 = sphi 0, %s40
    %s20 = sphi 0, %s36
    %s21 = sphi 0, %s32
    %s22 = sphi 0, %s18
    %s23 = sphi 0, %s19
    %s24 = sphi 0, %s20
    %s25 = sphi 0, %s21
    %s26 = sphi 0, %s22
    %s27 = sphi 0, %s23
    %s28 = sphi 0, %s24
    %s29 = sphi 0, %s25
    %s51 = sphi 0, %s53
    %s54 = sphi 0, %s51
    %s55 = sphi 0, %s54
    %s71 = sphi 0, %s55
    %s81 = sphi 0, %s83
    %s84 = sphi 0, %s81
    %s85 = sphi 0, %s84
    %s101 = sphi 0, %s85
    %s107 = sphi 0, %s109
    %s110 = sphi 0, %s107
    %s111 = sphi 0, %s110
    %s127 = sphi 0, %s111
    %s137 = sphi 0, %s139
    %s140 = sphi 0, %s137
    %s141 = sphi 0, %s140
    %s157 = sphi 0, %s141
    %s167 = sphi 0, %s169
    %s170 = sphi 0, %s167
    %s171 = sphi 0, %s170
    %s187 = sphi 0, %s171
  $region4: #{unet_generator_forward.25} parent=0 // loop_header_branch
    %14 = sbr.rel (%p12) target = $region8
  $region5: #{unet_generator_forward.25} parent=0 // loop_body
    %s16 = ssub.s32 %s11, 1
    %s17 = ssub.s32 %s11, 2
    %s30 = sadd.s32 1, %s21
    %p31 = scmp.ge.s32.totalorder %s30, 1
    %s32 = scalar_select %p31, 0, %s30
    %s33 = sadd.s32 1, %s20
    %s34 = scalar_select %p31, %s33, %s20
    %p35 = scmp.ge.s32.totalorder %s34, 1
    %s36 = scalar_select %p35, 0, %s34
    %s37 = sadd.s32 1, %s19
    %s38 = scalar_select %p35, %s37, %s19
    %p39 = scmp.ge.s32.totalorder %s38, 1
    %s40 = scalar_select %p39, 0, %s38
    %s41 = sadd.s32 1, %s18
    %s42 = scalar_select %p39, %s41, %s18
    %p43 = scmp.ge.s32.totalorder %s42, 4
    %s44 = scalar_select %p43, 0, %s42
    %s45 = ssub.s32 %s18, %s44
    %s46 = ssub.s32 %s19, %s40
    %s47 = sor.u32 %s45, %s46
    %s48 = ssub.s32 %s21, %s32
    %s49 = sor.u32 %s47, %s48
    %p50 = scmp.eq.s32.totalorder %s49, 0
    %s52 = sadd.s32 %s51, 1
    %s53 = scalar_select %p50, %s51, %s52
    %p56 = pneg %p50
    %p57 = scmp.eq.s32.totalorder %s11, 3
    %p58 = por %p56, %p57
    %p59 = scmp.ne.s32.totalorder %s51, %s54
    %p60 = scmp.eq.s32.totalorder %s11, 0
    %p61 = por %p59, %p60
    %p62 = scmp.ne.s32.totalorder %s51, %s54
    %p63 = scmp.eq.s32.totalorder %s16, 3
    %p64 = por %p62, %p63
    %p65 = scmp.ne.s32.totalorder %s54, %s55
    %p66 = scmp.eq.s32.totalorder %s16, 0
    %p67 = por %p65, %p66
    %p68 = scmp.ne.s32.totalorder %s54, %s55
    %p69 = scmp.eq.s32.totalorder %s17, 3
    %p70 = por %p68, %p69
    %p72 = scmp.ne.s32.totalorder %s55, %s71
    %p73 = scmp.eq.s32.totalorder %s17, 0
    %p74 = por %p72, %p73
    %s75 = ssub.s32 %s18, %s44
    %s76 = ssub.s32 %s21, %s32
    %s77 = sor.u32 %s75, %s76
    %s78 = ssub.s32 %s20, %s36
    %s79 = sor.u32 %s77, %s78
    %p80 = scmp.eq.s32.totalorder %s79, 0
    %s82 = sadd.s32 %s81, 1
    %s83 = scalar_select %p80, %s81, %s82
    %p86 = pneg %p80
    %p87 = scmp.eq.s32.totalorder %s11, 3
    %p88 = por %p86, %p87
    %p89 = scmp.ne.s32.totalorder %s81, %s84
    %p90 = scmp.eq.s32.totalorder %s11, 0
    %p91 = por %p89, %p90
    %p92 = scmp.ne.s32.totalorder %s81, %s84
    %p93 = scmp.eq.s32.totalorder %s16, 3
    %p94 = por %p92, %p93
    %p95 = scmp.ne.s32.totalorder %s84, %s85
    %p96 = scmp.eq.s32.totalorder %s16, 0
    %p97 = por %p95, %p96
    %p98 = scmp.ne.s32.totalorder %s84, %s85
    %p99 = scmp.eq.s32.totalorder %s17, 3
    %p100 = por %p98, %p99
    %p102 = scmp.ne.s32.totalorder %s85, %s101
    %p103 = scmp.eq.s32.totalorder %s17, 0
    %p104 = por %p102, %p103
    %s105 = ssub.s32 %s20, %s36
    %p106 = scmp.eq.s32.totalorder %s105, 0
    %s108 = sadd.s32 %s107, 1
    %s109 = scalar_select %p106, %s107, %s108
    %p112 = pneg %p106
    %p113 = scmp.eq.s32.totalorder %s11, 3
    %p114 = por %p112, %p113
    %p115 = scmp.ne.s32.totalorder %s107, %s110
    %p116 = scmp.eq.s32.totalorder %s11, 0
    %p117 = por %p115, %p116
    %p118 = scmp.ne.s32.totalorder %s107, %s110
    %p119 = scmp.eq.s32.totalorder %s16, 3
    %p120 = por %p118, %p119
    %p121 = scmp.ne.s32.totalorder %s110, %s111
    %p122 = scmp.eq.s32.totalorder %s16, 0
    %p123 = por %p121, %p122
    %p124 = scmp.ne.s32.totalorder %s110, %s111
    %p125 = scmp.eq.s32.totalorder %s17, 3
    %p126 = por %p124, %p125
    %p128 = scmp.ne.s32.totalorder %s111, %s127
    %p129 = scmp.eq.s32.totalorder %s17, 0
    %p130 = por %p128, %p129
    %s131 = ssub.s32 %s18, %s44
    %s132 = ssub.s32 %s19, %s40
    %s133 = sor.u32 %s131, %s132
    %s134 = ssub.s32 %s20, %s36
    %s135 = sor.u32 %s133, %s134
    %p136 = scmp.eq.s32.totalorder %s135, 0
    %s138 = sadd.s32 %s137, 1
    %s139 = scalar_select %p136, %s137, %s138
    %p142 = pneg %p136
    %p143 = scmp.eq.s32.totalorder %s11, 3
    %p144 = por %p142, %p143
    %p145 = scmp.ne.s32.totalorder %s137, %s140
    %p146 = scmp.eq.s32.totalorder %s11, 0
    %p147 = por %p145, %p146
    %p148 = scmp.ne.s32.totalorder %s137, %s140
    %p149 = scmp.eq.s32.totalorder %s16, 3
    %p150 = por %p148, %p149
    %p151 = scmp.ne.s32.totalorder %s140, %s141
    %p152 = scmp.eq.s32.totalorder %s16, 0
    %p153 = por %p151, %p152
    %p154 = scmp.ne.s32.totalorder %s140, %s141
    %p155 = scmp.eq.s32.totalorder %s17, 3
    %p156 = por %p154, %p155
    %p158 = scmp.ne.s32.totalorder %s141, %s157
    %p159 = scmp.eq.s32.totalorder %s17, 0
    %p160 = por %p158, %p159
    %s161 = ssub.s32 %s18, %s44
    %s162 = ssub.s32 %s19, %s40
    %s163 = sor.u32 %s161, %s162
    %s164 = ssub.s32 %s20, %s36
    %s165 = sor.u32 %s163, %s164
    %p166 = scmp.eq.s32.totalorder %s165, 0
    %s168 = sadd.s32 %s167, 1
    %s169 = scalar_select %p166, %s167, %s168
    %p172 = pneg %p166
    %p173 = scmp.eq.s32.totalorder %s11, 3
    %p174 = por %p172, %p173
    %p175 = scmp.ne.s32.totalorder %s167, %s170
    %p176 = scmp.eq.s32.totalorder %s11, 0
    %p177 = por %p175, %p176
    %p178 = scmp.ne.s32.totalorder %s167, %s170
    %p179 = scmp.eq.s32.totalorder %s16, 3
    %p180 = por %p178, %p179
    %p181 = scmp.ne.s32.totalorder %s170, %s171
    %p182 = scmp.eq.s32.totalorder %s16, 0
    %p183 = por %p181, %p182
    %p184 = scmp.ne.s32.totalorder %s170, %s171
    %p185 = scmp.eq.s32.totalorder %s17, 3
    %p186 = por %p184, %p185
    %p188 = scmp.ne.s32.totalorder %s171, %s187
    %p189 = scmp.eq.s32.totalorder %s17, 0
    %p190 = por %p188, %p189
    %p191 = scmp.le.s32.totalorder 1, %s11
    %p192 = scmp.lt.s32.totalorder %s11, 5
    %p193 = pnand %p191, %p192
    %p194 = pneg %p193
    // Predicated region
    $region9: #{unet_generator_forward.25} parent=5 // pred_check
      _
    $region10: #{unet_generator_forward.25} parent=5 // pred_check_branch
      %196 = sbr.rel (%p193) target = $region12
    $region11: #{unet_generator_forward.25} parent=5 // pred_region
      %s197 = ssub.s32 %s11, 1
      // Predicated region
      $region13: #{unet_generator_forward.25} parent=11 // pred_check
        %p198 = pneg %p123
      $region14: #{unet_generator_forward.25} parent=11 // pred_check_branch
        %200 = sbr.rel (%p198) target = $region16
      $region15: #{unet_generator_forward.25} parent=11 // pred_region
        %p201 = scmp.lt.s32.totalorder %s24, 0
        %s202 = scalar_select %p201, %s24, 0
        %s203 = scalar_lea.vmem %s2, %s202
      $region16: #{unet_generator_forward.25} parent=11 // pred_fallthru
        _
    $region12: #{unet_generator_forward.25} parent=5 // pred_fallthru
      _
    %p204 = scmp.lt.s32.totalorder %s11, 4
    // Predicated region
    $region17: #{unet_generator_forward.25} parent=5 // pred_check
      %p205 = pneg %p204
    $region18: #{unet_generator_forward.25} parent=5 // pred_check_branch
      %207 = sbr.rel (%p205) target = $region20
    $region19: #{unet_generator_forward.25} parent=5 // pred_region
      // Predicated region
      $region21: #{unet_generator_forward.25} parent=19 // pred_check
        %p208 = pneg %p61
      $region22: #{unet_generator_forward.25} parent=19 // pred_check_branch
        %210 = sbr.rel (%p208) target = $region24
      $region23: #{unet_generator_forward.25} parent=19 // pred_region
        %s211 = smul.u32 2, %s19
        %s212 = smul.u32 2, %s21
        %p213 = scmp.lt.s32.totalorder %s18, 3
        %s214 = scalar_select %p213, %s18, 3
        %p215 = scmp.lt.s32.totalorder %s211, 1
        %s216 = scalar_select %p215, %s211, 1
        %p217 = scmp.lt.s32.totalorder %s212, 1
        %s218 = scalar_select %p217, %s212, 1
        %s219 = smul.addr %s216, 2
        %s220 = sadd.s32 %s218, %s219
        %s221 = smul.addr %s214, 4
        %s222 = sadd.s32 %s220, %s221
        %s223 = smul.addr %s222, 4
        %s224 = scalar_lea.vmem %s0, %s223
        %s225 = smul.u32 2, %s19
        %s226 = smul.u32 2, %s21
      $region24: #{unet_generator_forward.25} parent=19 // pred_fallthru
        _
      // Predicated region
      $region25: #{unet_generator_forward.25} parent=19 // pred_check
        %p227 = pneg %p91
      $region26: #{unet_generator_forward.25} parent=19 // pred_check_branch
        %229 = sbr.rel (%p227) target = $region28
      $region27: #{unet_generator_forward.25} parent=19 // pred_region
        %s230 = smul.u32 32, %s21
        %p231 = scmp.lt.s32.totalorder %s18, 3
        %s232 = scalar_select %p231, %s18, 3
        %p233 = scmp.lt.s32.totalorder %s230, 31
        %s234 = scalar_select %p233, %s230, 31
        %p235 = scmp.lt.s32.totalorder %s20, 0
        %s236 = scalar_select %p235, %s20, 0
        %s237 = sadd.s32 %s236, %s234
        %s238 = smul.addr %s232, 32
        %s239 = sadd.s32 %s237, %s238
        %s240 = smul.addr %s239, 4
        %s241 = scalar_lea.vmem %s1, %s240
        %s242 = smul.u32 32, %s21
      $region28: #{unet_generator_forward.25} parent=19 // pred_fallthru
        _
    $region20: #{unet_generator_forward.25} parent=5 // pred_fallthru
      _
    %p243 = scmp.le.s32.totalorder 1, %s11
    %p244 = scmp.lt.s32.totalorder %s11, 5
    %p245 = pnand %p243, %p244
    %p246 = pneg %p245
    // Predicated region
    $region29: #{unet_generator_forward.25} parent=5 // pred_check
      _
    $region30: #{unet_generator_forward.25} parent=5 // pred_check_branch
      %248 = sbr.rel (%p245) target = $region32
    $region31: #{unet_generator_forward.25} parent=5 // pred_region
      %s249 = ssub.s32 %s11, 1
      %s250 = smul.u32 2, %s23
      %s251 = smul.u32 2, %s25
      %p252 = scmp.lt.s32.totalorder %s22, 3
      %s253 = scalar_select %p252, %s22, 3
      %p254 = scmp.lt.s32.totalorder %s250, 1
      %s255 = scalar_select %p254, %s250, 1
      %p256 = scmp.lt.s32.totalorder %s251, 1
      %s257 = scalar_select %p256, %s251, 1
      %s258 = smul.addr %s255, 2
      %s259 = sadd.s32 %s257, %s258
      %s260 = smul.addr %s253, 4
      %s261 = sadd.s32 %s259, %s260
      %s262 = smul.addr %s261, 4
      %s263 = scalar_lea.vmem %s0, %s262
      %p264 = pneg %p67
      %p265 = pneg %p64
      %s266 = smul.u32 32, %s25
      %p267 = scmp.lt.s32.totalorder %s22, 3
      %s268 = scalar_select %p267, %s22, 3
      %p269 = scmp.lt.s32.totalorder %s266, 31
      %s270 = scalar_select %p269, %s266, 31
      %p271 = scmp.lt.s32.totalorder %s24, 0
      %s272 = scalar_select %p271, %s24, 0
      %s273 = sadd.s32 %s272, %s270
      %s274 = smul.addr %s268, 32
      %s275 = sadd.s32 %s273, %s274
      %s276 = smul.addr %s275, 4
      %s277 = scalar_lea.vmem %s1, %s276
      %p278 = pneg %p97
      %p279 = pneg %p94
      %p280 = scmp.lt.s32.totalorder %s24, 0
      %s281 = scalar_select %p280, %s24, 0
      %s282 = scalar_lea.vmem %s2, %s281
      %p283 = pneg %p123
      %p284 = pneg %p120
      %p285 = pneg %p153
      %p286 = pneg %p150
      %s287 = smul.u32 2, %s23
      %p288 = scmp.lt.s32.totalorder %s22, 3
      %s289 = scalar_select %p288, %s22, 3
      %p290 = scmp.lt.s32.totalorder %s287, 1
      %s291 = scalar_select %p290, %s287, 1
      %p292 = scmp.lt.s32.totalorder %s24, 0
      %s293 = scalar_select %p292, %s24, 0
      %s294 = sadd.s32 %s293, %s291
      %s295 = smul.addr %s289, 2
      %s296 = sadd.s32 %s294, %s295
      %s297 = smul.addr %s296, 4
      %s298 = scalar_lea.vmem %s3, %s297
      %p299 = pneg %p183
      %p300 = pneg %p180
      %p301 = scmp.lt.s32.totalorder %s22, 3
      %s302 = scalar_select %p301, %s22, 3
      %p303 = scmp.lt.s32.totalorder %s23, 0
      %s304 = scalar_select %p303, %s23, 0
      %p305 = scmp.lt.s32.totalorder %s24, 0
      %s306 = scalar_select %p305, %s24, 0
      %s307 = sadd.s32 %s306, %s304
      %s308 = sadd.s32 %s307, %s302
      %s309 = smul.addr %s308, 8
      %s310 = scalar_lea.vmem %s4, %s309
      %s311 = smul.u32 2, %s23
      %s312 = smul.u32 2, %s25
      %p313 = scmp.lt.s32.totalorder %s22, 3
      %s314 = scalar_select %p313, %s22, 3
      %p315 = scmp.lt.s32.totalorder %s311, 1
      %s316 = scalar_select %p315, %s311, 1
      %p317 = scmp.lt.s32.totalorder %s312, 1
      %s318 = scalar_select %p317, %s312, 1
      %s319 = smul.addr %s316, 2
      %s320 = sadd.s32 %s318, %s319
      %s321 = smul.addr %s314, 4
      %s322 = sadd.s32 %s320, %s321
      %s323 = smul.addr %s322, 4
      %s324 = scalar_lea.vmem %s0, %s323
      %s325 = smul.u32 2, %s23
      %s326 = smul.u32 2, %s25
      %s327 = smul.u32 32, %s25
      %p328 = scmp.lt.s32.totalorder %s22, 3
      %s329 = scalar_select %p328, %s22, 3
      %p330 = scmp.lt.s32.totalorder %s327, 31
      %s331 = scalar_select %p330, %s327, 31
      %p332 = scmp.lt.s32.totalorder %s24, 0
      %s333 = scalar_select %p332, %s24, 0
      %s334 = sadd.s32 %s333, %s331
      %s335 = smul.addr %s329, 32
      %s336 = sadd.s32 %s334, %s335
      %s337 = smul.addr %s336, 4
      %s338 = scalar_lea.vmem %s1, %s337
      %s339 = smul.u32 32, %s25
      %p340 = scmp.lt.s32.totalorder %s24, 0
      %s341 = scalar_select %p340, %s24, 0
      %s342 = scalar_lea.vmem %s2, %s341
      %s343 = smul.u32 2, %s23
      %p344 = scmp.lt.s32.totalorder %s22, 3
      %s345 = scalar_select %p344, %s22, 3
      %p346 = scmp.lt.s32.totalorder %s343, 1
      %s347 = scalar_select %p346, %s343, 1
      %p348 = scmp.lt.s32.totalorder %s24, 0
      %s349 = scalar_select %p348, %s24, 0
      %s350 = sadd.s32 %s349, %s347
      %s351 = smul.addr %s345, 2
      %s352 = sadd.s32 %s350, %s351
      %s353 = smul.addr %s352, 4
      %s354 = scalar_lea.vmem %s3, %s353
      %s355 = smul.u32 2, %s23
      %p356 = scmp.lt.s32.totalorder %s22, 3
      %s357 = scalar_select %p356, %s22, 3
      %p358 = scmp.lt.s32.totalorder %s23, 0
      %s359 = scalar_select %p358, %s23, 0
      %p360 = scmp.lt.s32.totalorder %s24, 0
      %s361 = scalar_select %p360, %s24, 0
      %s362 = sadd.s32 %s361, %s359
      %s363 = sadd.s32 %s362, %s357
      %s364 = smul.addr %s363, 8
      %s365 = scalar_lea.vmem %s4, %s364
      %v366 = vld [vmem:[%s324] sm:$0xff]
      %v367 = vld [vmem:[%s324 + $0x8] sm:$0xff]
      %v368 = vunpack.c.l.bf16 %v366
      %v369 = vunpack.c.h.bf16 %v366
      %v370 = vunpack.c.l.bf16 %v367
      %v371 = vunpack.c.h.bf16 %v367
      %v372 = vmax.f32 %v368, 0.0
      %v373 = vmax.f32 %v369, 0.0
      %v374 = vmax.f32 %v370, 0.0
      %v375 = vmax.f32 %v371, 0.0
      %v376 = vpack.c.bf16 %v374, %v372
      %v377 = vpack.c.bf16 %v375, %v373
      %v378 = vld [vmem:[%s338] sm:$0xf]
      %v379 = vld [vmem:[%s338 + $0x4] sm:$0xf]
      %v380 = vld [vmem:[%s338 + $0x8] sm:$0xf]
      %v381 = vld [vmem:[%s338 + $0xc] sm:$0xf]
      %v382 = vld [vmem:[%s338 + $0x10] sm:$0xf]
      %v383 = vld [vmem:[%s338 + $0x14] sm:$0xf]
      %v384 = vld [vmem:[%s338 + $0x18] sm:$0xf]
      %v385 = vld [vmem:[%s338 + $0x1c] sm:$0xf]
      %v386 = vld [vmem:[%s338 + $0x20] sm:$0xf]
      %v387 = vld [vmem:[%s338 + $0x24] sm:$0xf]
      %v388 = vld [vmem:[%s338 + $0x28] sm:$0xf]
      %v389 = vld [vmem:[%s338 + $0x2c] sm:$0xf]
      %v390 = vld [vmem:[%s338 + $0x30] sm:$0xf]
      %v391 = vld [vmem:[%s338 + $0x34] sm:$0xf]
      %v392 = vld [vmem:[%s338 + $0x38] sm:$0xf]
      %v393 = vld [vmem:[%s338 + $0x3c] sm:$0xf]
      %v394 = vld [vmem:[%s338 + $0x40] sm:$0xf]
      %v395 = vld [vmem:[%s338 + $0x44] sm:$0xf]
      %v396 = vld [vmem:[%s338 + $0x48] sm:$0xf]
      %v397 = vld [vmem:[%s338 + $0x4c] sm:$0xf]
      %v398 = vld [vmem:[%s338 + $0x50] sm:$0xf]
      %v399 = vld [vmem:[%s338 + $0x54] sm:$0xf]
      %v400 = vld [vmem:[%s338 + $0x58] sm:$0xf]
      %v401 = vld [vmem:[%s338 + $0x5c] sm:$0xf]
      %v402 = vld [vmem:[%s338 + $0x60] sm:$0xf]
      %v403 = vld [vmem:[%s338 + $0x64] sm:$0xf]
      %v404 = vld [vmem:[%s338 + $0x68] sm:$0xf]
      %v405 = vld [vmem:[%s338 + $0x6c] sm:$0xf]
      %v406 = vld [vmem:[%s338 + $0x70] sm:$0xf]
      %v407 = vld [vmem:[%s338 + $0x74] sm:$0xf]
      %v408 = vld [vmem:[%s338 + $0x78] sm:$0xf]
      %v409 = vld [vmem:[%s338 + $0x7c] sm:$0xf]
      %v410 = vld [vmem:[%s342] sm:$0x1]
      %v412 = vperm.slane %v410, 0
      %v446 = vunpack.c.l.b16 %v378
      %v447 = vunpack.c.l.b16 %v379
      %v448 = vunpack.c.l.b16 %v380
      %v449 = vunpack.c.l.b16 %v381
      %v450 = vunpack.c.l.b16 %v382
      %v451 = vunpack.c.l.b16 %v383
      %v452 = vunpack.c.l.b16 %v384
      %v453 = vunpack.c.l.b16 %v385
      %v454 = vunpack.c.l.b16 %v386
      %v455 = vunpack.c.l.b16 %v387
      %v456 = vunpack.c.l.b16 %v388
      %v457 = vunpack.c.l.b16 %v389
      %v458 = vunpack.c.l.b16 %v390
      %v459 = vunpack.c.l.b16 %v391
      %v460 = vunpack.c.l.b16 %v392
      %v461 = vunpack.c.l.b16 %v393
      %v462 = vunpack.c.l.b16 %v394
      %v463 = vunpack.c.l.b16 %v395
      %v464 = vunpack.c.l.b16 %v396
      %v465 = vunpack.c.l.b16 %v397
      %v466 = vunpack.c.l.b16 %v398
      %v467 = vunpack.c.l.b16 %v399
      %v468 = vunpack.c.l.b16 %v400
      %v469 = vunpack.c.l.b16 %v401
      %v470 = vunpack.c.l.b16 %v402
      %v471 = vunpack.c.l.b16 %v403
      %v472 = vunpack.c.l.b16 %v404
      %v473 = vunpack.c.l.b16 %v405
      %v474 = vunpack.c.l.b16 %v406
      %v475 = vunpack.c.l.b16 %v407
      %v476 = vunpack.c.l.b16 %v408
      %v477 = vunpack.c.l.b16 %v409
      %v478 = vpack.c.b16 %v447, %v446
      %v479 = vpack.c.b16 %v449, %v448
      %v480 = vpack.c.b16 %v451, %v450
      %v481 = vpack.c.b16 %v453, %v452
      %v482 = vpack.c.b16 %v455, %v454
      %v483 = vpack.c.b16 %v457, %v456
      %v484 = vpack.c.b16 %v459, %v458
      %v485 = vpack.c.b16 %v461, %v460
      %v486 = vpack.c.b16 %v463, %v462
      %v487 = vpack.c.b16 %v465, %v464
      %v488 = vpack.c.b16 %v467, %v466
      %v489 = vpack.c.b16 %v469, %v468
      %v490 = vpack.c.b16 %v471, %v470
      %v491 = vpack.c.b16 %v473, %v472
      %v492 = vpack.c.b16 %v475, %v474
      %v493 = vpack.c.b16 %v477, %v476
      %510 = vmatpush.bf16.msra.mxu0 %v485
      %511 = vmatpush.bf16.msra.mxu0 %v484
      %512 = vmatpush.bf16.msra.mxu0 %v483
      %513 = vmatpush.bf16.msra.mxu0 %v482
      %514 = vmatpush.bf16.msra.mxu0 %v481
      %515 = vmatpush.bf16.msra.mxu0 %v480
      %516 = vmatpush.bf16.msra.mxu0 %v479
      %517 = vmatpush.bf16.msra.mxu0 %v478
      %518 = vmatmul.bf16.gmra.mxu0 %v376
      %v519 = vpop.f32.mrf.mxu0
      %v520 = vadd.f32 %v412, %v519
      %v521 = vpop.f32.mrf.mxu0
      %v522 = vadd.f32 %v412, %v521
      %523 = vdwg.mxu0
      %524 = vmatpush.bf16.msra.mxu0 %v493
      %525 = vmatpush.bf16.msra.mxu0 %v492
      %526 = vmatpush.bf16.msra.mxu0 %v491
      %527 = vmatpush.bf16.msra.mxu0 %v490
      %528 = vmatpush.bf16.msra.mxu0 %v489
      %529 = vmatpush.bf16.msra.mxu0 %v488
      %530 = vmatpush.bf16.msra.mxu0 %v487
      %531 = vmatpush.bf16.msra.mxu0 %v486
      %532 = vmatmul.bf16.gmra.mxu0 %v377
      %v533 = vpop.f32.mrf.mxu0
      %v534 = vadd.f32 %v520, %v533
      %v535 = vpop.f32.mrf.mxu0
      %v536 = vadd.f32 %v522, %v535
      %537 = vdwg.mxu0
      %v538 = vadd.f32 %v534, %v536
      %v539 = vrot.slane %v538, 4
      %v540 = vadd.f32 %v538, %v539
      %v541 = vrot.slane %v540, 2
      %v542 = vadd.f32 %v540, %v541
      %v543 = vrot.slane %v542, 1
      %v544 = vadd.f32 %v542, %v543
      %545 = vst [vmem:[%s365] sm:$0x1] %v544
      %v546 = vmul.f32 %v534, %v534
      %v547 = vmul.f32 %v536, %v536
      %v548 = vadd.f32 %v546, %v547
      %v549 = vrot.slane %v548, 4
      %v550 = vadd.f32 %v548, %v549
      %v551 = vrot.slane %v550, 2
      %v552 = vadd.f32 %v550, %v551
      %v553 = vrot.slane %v552, 1
      %v554 = vadd.f32 %v552, %v553
      %555 = vst [vmem:[%s365 + $0x1] sm:$0x1] %v554
      %v556 = vpack.c.bf16 %v534, %v534
      %v557 = vpack.c.bf16 %v536, %v536
      %558 = vst [vmem:[%s354] sm:$0xf] %v556
      %559 = vst [vmem:[%s354 + $0x4] sm:$0xf] %v557
      %s560 = smul.u32 2, %s23
      %p561 = scmp.lt.s32.totalorder %s22, 3
      %s562 = scalar_select %p561, %s22, 3
      %p563 = scmp.lt.s32.totalorder %s560, 1
      %s564 = scalar_select %p563, %s560, 1
      %p565 = scmp.lt.s32.totalorder %s24, 0
      %s566 = scalar_select %p565, %s24, 0
      %s567 = sadd.s32 %s566, %s564
      %s568 = smul.addr %s562, 2
      %s569 = sadd.s32 %s567, %s568
      %s570 = smul.addr %s569, 4
      %s571 = scalar_lea.vmem %s3, %s570
      %p572 = scmp.lt.s32.totalorder %s22, 3
      %s573 = scalar_select %p572, %s22, 3
      %p574 = scmp.lt.s32.totalorder %s23, 0
      %s575 = scalar_select %p574, %s23, 0
      %p576 = scmp.lt.s32.totalorder %s24, 0
      %s577 = scalar_select %p576, %s24, 0
      %s578 = sadd.s32 %s577, %s575
      %s579 = sadd.s32 %s578, %s573
      %s580 = smul.addr %s579, 8
      %s581 = scalar_lea.vmem %s4, %s580
      // Predicated region
      $region33: #{unet_generator_forward.25} parent=31 // pred_check
        %p582 = pneg %p150
      $region34: #{unet_generator_forward.25} parent=31 // pred_check_branch
        %584 = sbr.rel (%p582) target = $region36
      $region35: #{unet_generator_forward.25} parent=31 // pred_region
        %s585 = smul.u32 2, %s23
      $region36: #{unet_generator_forward.25} parent=31 // pred_fallthru
        _
      // Predicated region
      $region37: #{unet_generator_forward.25} parent=31 // pred_check
        %p586 = pneg %p180
      $region38: #{unet_generator_forward.25} parent=31 // pred_check_branch
        %588 = sbr.rel (%p586) target = $region40
      $region39: #{unet_generator_forward.25} parent=31 // pred_region
        _
      $region40: #{unet_generator_forward.25} parent=31 // pred_fallthru
        _
    $region32: #{unet_generator_forward.25} parent=5 // pred_fallthru
      _
    %p589 = scmp.le.s32.totalorder 2, %s11
    // Predicated region
    $region41: #{unet_generator_forward.25} parent=5 // pred_check
      %p590 = pneg %p589
    $region42: #{unet_generator_forward.25} parent=5 // pred_check_branch
      %592 = sbr.rel (%p590) target = $region44
    $region43: #{unet_generator_forward.25} parent=5 // pred_region
      %s593 = ssub.s32 %s11, 2
      // Predicated region
      $region45: #{unet_generator_forward.25} parent=43 // pred_check
        %p594 = pneg %p156
      $region46: #{unet_generator_forward.25} parent=43 // pred_check_branch
        %596 = sbr.rel (%p594) target = $region48
      $region47: #{unet_generator_forward.25} parent=43 // pred_region
        %s597 = smul.u32 2, %s27
        %p598 = scmp.lt.s32.totalorder %s26, 3
        %s599 = scalar_select %p598, %s26, 3
        %p600 = scmp.lt.s32.totalorder %s597, 1
        %s601 = scalar_select %p600, %s597, 1
        %p602 = scmp.lt.s32.totalorder %s28, 0
        %s603 = scalar_select %p602, %s28, 0
        %s604 = sadd.s32 %s603, %s601
        %s605 = smul.addr %s599, 2
        %s606 = sadd.s32 %s604, %s605
        %s607 = smul.addr %s606, 4
        %s608 = scalar_lea.vmem %s3, %s607
      $region48: #{unet_generator_forward.25} parent=43 // pred_fallthru
        _
      // Predicated region
      $region49: #{unet_generator_forward.25} parent=43 // pred_check
        %p609 = pneg %p186
      $region50: #{unet_generator_forward.25} parent=43 // pred_check_branch
        %611 = sbr.rel (%p609) target = $region52
      $region51: #{unet_generator_forward.25} parent=43 // pred_region
        %p612 = scmp.lt.s32.totalorder %s26, 3
        %s613 = scalar_select %p612, %s26, 3
        %p614 = scmp.lt.s32.totalorder %s27, 0
        %s615 = scalar_select %p614, %s27, 0
        %p616 = scmp.lt.s32.totalorder %s28, 0
        %s617 = scalar_select %p616, %s28, 0
        %s618 = sadd.s32 %s617, %s615
        %s619 = sadd.s32 %s618, %s613
        %s620 = smul.addr %s619, 8
        %s621 = scalar_lea.vmem %s4, %s620
      $region52: #{unet_generator_forward.25} parent=43 // pred_fallthru
        _
    $region44: #{unet_generator_forward.25} parent=5 // pred_fallthru
      _
  $region6: #{unet_generator_forward.25} parent=0 // loop_footer
    %s15 = sadd.s32 1, %s11
  $region7: #{unet_generator_forward.25} parent=0 // loop_footer_branch
    %10 = sbr.rel target = $region3
  $region8: #{unet_generator_forward.25} parent=0 // loop_exit
    _

// kernel: unet_generator_forward.27
$region0: #{unet_generator_forward.27}
  #allocation0 [shape = 'u32[]', space=smem, size = 0x4, offset = 0x4, fixed_abs, tag = 'smem constant byte address 0x4 - core index']
  #allocation1 [shape = 'u32[72,128]{1,0:T(1,128)}', space=vmem, size = 0x9000, scoped, tag = 'internal scratch']
  %s0 = inlined_call_operand.vmem [shape: bf16[4,16,512], index: 0, kind: input, shape index: {}]
  %s1 = inlined_call_operand.vmem [shape: bf16[4,512,128], index: 1, kind: input, shape index: {}]
  %s2 = inlined_call_operand.vmem [shape: f32[1,128], index: 2, kind: input, shape index: {}]
  %s3 = inlined_call_operand.vmem [shape: bf16[4,16,128], index: 3, kind: output, shape index: {0}]
  %s4 = inlined_call_operand.vmem [shape: f32[4,1,8,128], index: 4, kind: output, shape index: {1}]
  %5 = xla_tuple %s3, %s4
  %s6 = sld [smem:[#allocation0]]
  $region53: #{unet_generator_forward.27} parent=0
    _
  %s8 = ssub.s32 1, %s6
  %s9 = scalar_select 0, %s8, %s6
  loop: start=0, step=1, limit=6
  $region2: #{unet_generator_forward.27} parent=0 // loop_pre_header
    _
  $region3: #{unet_generator_forward.27} parent=0 // loop_header
    %s11 = sphi 0, %s15
    %p12 = scmp.ge.s32.totalorder %s11, 6
    %s18 = sphi 0, %s44
    %s19 = sphi 0, %s40
    %s20 = sphi 0, %s36
    %s21 = sphi 0, %s32
    %s22 = sphi 0, %s18
    %s23 = sphi 0, %s19
    %s24 = sphi 0, %s20
    %s25 = sphi 0, %s21
    %s26 = sphi 0, %s22
    %s27 = sphi 0, %s23
    %s28 = sphi 0, %s24
    %s29 = sphi 0, %s25
    %s51 = sphi 0, %s53
    %s54 = sphi 0, %s51
    %s55 = sphi 0, %s54
    %s71 = sphi 0, %s55
    %s81 = sphi 0, %s83
    %s84 = sphi 0, %s81
    %s85 = sphi 0, %s84
    %s101 = sphi 0, %s85
    %s107 = sphi 0, %s109
    %s110 = sphi 0, %s107
    %s111 = sphi 0, %s110
    %s127 = sphi 0, %s111
    %s137 = sphi 0, %s139
    %s140 = sphi 0, %s137
    %s141 = sphi 0, %s140
    %s157 = sphi 0, %s141
    %s167 = sphi 0, %s169
    %s170 = sphi 0, %s167
    %s171 = sphi 0, %s170
    %s187 = sphi 0, %s171
  $region4: #{unet_generator_forward.27} parent=0 // loop_header_branch
    %14 = sbr.rel (%p12) target = $region8
  $region5: #{unet_generator_forward.27} parent=0 // loop_body
    %s16 = ssub.s32 %s11, 1
    %s17 = ssub.s32 %s11, 2
    %s30 = sadd.s32 1, %s21
    %p31 = scmp.ge.s32.totalorder %s30, 1
    %s32 = scalar_select %p31, 0, %s30
    %s33 = sadd.s32 1, %s20
    %s34 = scalar_select %p31, %s33, %s20
    %p35 = scmp.ge.s32.totalorder %s34, 1
    %s36 = scalar_select %p35, 0, %s34
    %s37 = sadd.s32 1, %s19
    %s38 = scalar_select %p35, %s37, %s19
    %p39 = scmp.ge.s32.totalorder %s38, 1
    %s40 = scalar_select %p39, 0, %s38
    %s41 = sadd.s32 1, %s18
    %s42 = scalar_select %p39, %s41, %s18
    %p43 = scmp.ge.s32.totalorder %s42, 4
    %s44 = scalar_select %p43, 0, %s42
    %s45 = ssub.s32 %s18, %s44
    %s46 = ssub.s32 %s19, %s40
    %s47 = sor.u32 %s45, %s46
    %s48 = ssub.s32 %s21, %s32
    %s49 = sor.u32 %s47, %s48
    %p50 = scmp.eq.s32.totalorder %s49, 0
    %s52 = sadd.s32 %s51, 1
    %s53 = scalar_select %p50, %s51, %s52
    %p56 = pneg %p50
    %p57 = scmp.eq.s32.totalorder %s11, 3
    %p58 = por %p56, %p57
    %p59 = scmp.ne.s32.totalorder %s51, %s54
    %p60 = scmp.eq.s32.totalorder %s11, 0
    %p61 = por %p59, %p60
    %p62 = scmp.ne.s32.totalorder %s51, %s54
    %p63 = scmp.eq.s32.totalorder %s16, 3
    %p64 = por %p62, %p63
    %p65 = scmp.ne.s32.totalorder %s54, %s55
    %p66 = scmp.eq.s32.totalorder %s16, 0
    %p67 = por %p65, %p66
    %p68 = scmp.ne.s32.totalorder %s54, %s55
    %p69 = scmp.eq.s32.totalorder %s17, 3
    %p70 = por %p68, %p69
    %p72 = scmp.ne.s32.totalorder %s55, %s71
    %p73 = scmp.eq.s32.totalorder %s17, 0
    %p74 = por %p72, %p73
    %s75 = ssub.s32 %s18, %s44
    %s76 = ssub.s32 %s21, %s32
    %s77 = sor.u32 %s75, %s76
    %s78 = ssub.s32 %s20, %s36
    %s79 = sor.u32 %s77, %s78
    %p80 = scmp.eq.s32.totalorder %s79, 0
    %s82 = sadd.s32 %s81, 1
    %s83 = scalar_select %p80, %s81, %s82
    %p86 = pneg %p80
    %p87 = scmp.eq.s32.totalorder %s11, 3
    %p88 = por %p86, %p87
    %p89 = scmp.ne.s32.totalorder %s81, %s84
    %p90 = scmp.eq.s32.totalorder %s11, 0
    %p91 = por %p89, %p90
    %p92 = scmp.ne.s32.totalorder %s81, %s84
    %p93 = scmp.eq.s32.totalorder %s16, 3
    %p94 = por %p92, %p93
    %p95 = scmp.ne.s32.totalorder %s84, %s85
    %p96 = scmp.eq.s32.totalorder %s16, 0
    %p97 = por %p95, %p96
    %p98 = scmp.ne.s32.totalorder %s84, %s85
    %p99 = scmp.eq.s32.totalorder %s17, 3
    %p100 = por %p98, %p99
    %p102 = scmp.ne.s32.totalorder %s85, %s101
    %p103 = scmp.eq.s32.totalorder %s17, 0
    %p104 = por %p102, %p103
    %s105 = ssub.s32 %s20, %s36
    %p106 = scmp.eq.s32.totalorder %s105, 0
    %s108 = sadd.s32 %s107, 1
    %s109 = scalar_select %p106, %s107, %s108
    %p112 = pneg %p106
    %p113 = scmp.eq.s32.totalorder %s11, 3
    %p114 = por %p112, %p113
    %p115 = scmp.ne.s32.totalorder %s107, %s110
    %p116 = scmp.eq.s32.totalorder %s11, 0
    %p117 = por %p115, %p116
    %p118 = scmp.ne.s32.totalorder %s107, %s110
    %p119 = scmp.eq.s32.totalorder %s16, 3
    %p120 = por %p118, %p119
    %p121 = scmp.ne.s32.totalorder %s110, %s111
    %p122 = scmp.eq.s32.totalorder %s16, 0
    %p123 = por %p121, %p122
    %p124 = scmp.ne.s32.totalorder %s110, %s111
    %p125 = scmp.eq.s32.totalorder %s17, 3
    %p126 = por %p124, %p125
    %p128 = scmp.ne.s32.totalorder %s111, %s127
    %p129 = scmp.eq.s32.totalorder %s17, 0
    %p130 = por %p128, %p129
    %s131 = ssub.s32 %s18, %s44
    %s132 = ssub.s32 %s19, %s40
    %s133 = sor.u32 %s131, %s132
    %s134 = ssub.s32 %s20, %s36
    %s135 = sor.u32 %s133, %s134
    %p136 = scmp.eq.s32.totalorder %s135, 0
    %s138 = sadd.s32 %s137, 1
    %s139 = scalar_select %p136, %s137, %s138
    %p142 = pneg %p136
    %p143 = scmp.eq.s32.totalorder %s11, 3
    %p144 = por %p142, %p143
    %p145 = scmp.ne.s32.totalorder %s137, %s140
    %p146 = scmp.eq.s32.totalorder %s11, 0
    %p147 = por %p145, %p146
    %p148 = scmp.ne.s32.totalorder %s137, %s140
    %p149 = scmp.eq.s32.totalorder %s16, 3
    %p150 = por %p148, %p149
    %p151 = scmp.ne.s32.totalorder %s140, %s141
    %p152 = scmp.eq.s32.totalorder %s16, 0
    %p153 = por %p151, %p152
    %p154 = scmp.ne.s32.totalorder %s140, %s141
    %p155 = scmp.eq.s32.totalorder %s17, 3
    %p156 = por %p154, %p155
    %p158 = scmp.ne.s32.totalorder %s141, %s157
    %p159 = scmp.eq.s32.totalorder %s17, 0
    %p160 = por %p158, %p159
    %s161 = ssub.s32 %s18, %s44
    %s162 = ssub.s32 %s19, %s40
    %s163 = sor.u32 %s161, %s162
    %s164 = ssub.s32 %s20, %s36
    %s165 = sor.u32 %s163, %s164
    %p166 = scmp.eq.s32.totalorder %s165, 0
    %s168 = sadd.s32 %s167, 1
    %s169 = scalar_select %p166, %s167, %s168
    %p172 = pneg %p166
    %p173 = scmp.eq.s32.totalorder %s11, 3
    %p174 = por %p172, %p173
    %p175 = scmp.ne.s32.totalorder %s167, %s170
    %p176 = scmp.eq.s32.totalorder %s11, 0
    %p177 = por %p175, %p176
    %p178 = scmp.ne.s32.totalorder %s167, %s170
    %p179 = scmp.eq.s32.totalorder %s16, 3
    %p180 = por %p178, %p179
    %p181 = scmp.ne.s32.totalorder %s170, %s171
    %p182 = scmp.eq.s32.totalorder %s16, 0
    %p183 = por %p181, %p182
    %p184 = scmp.ne.s32.totalorder %s170, %s171
    %p185 = scmp.eq.s32.totalorder %s17, 3
    %p186 = por %p184, %p185
    %p188 = scmp.ne.s32.totalorder %s171, %s187
    %p189 = scmp.eq.s32.totalorder %s17, 0
    %p190 = por %p188, %p189
    %p191 = scmp.le.s32.totalorder 1, %s11
    %p192 = scmp.lt.s32.totalorder %s11, 5
    %p193 = pnand %p191, %p192
    %p194 = pneg %p193
    // Predicated region
    $region9: #{unet_generator_forward.27} parent=5 // pred_check
      _
    $region10: #{unet_generator_forward.27} parent=5 // pred_check_branch
      %196 = sbr.rel (%p193) target = $region12
    $region11: #{unet_generator_forward.27} parent=5 // pred_region
      %s197 = ssub.s32 %s11, 1
      // Predicated region
      $region13: #{unet_generator_forward.27} parent=11 // pred_check
        %p198 = pneg %p123
      $region14: #{unet_generator_forward.27} parent=11 // pred_check_branch
        %200 = sbr.rel (%p198) target = $region16
      $region15: #{unet_generator_forward.27} parent=11 // pred_region
        %p201 = scmp.lt.s32.totalorder %s24, 0
        %s202 = scalar_select %p201, %s24, 0
        %s203 = scalar_lea.vmem %s2, %s202
      $region16: #{unet_generator_forward.27} parent=11 // pred_fallthru
        _
    $region12: #{unet_generator_forward.27} parent=5 // pred_fallthru
      _
    %p204 = scmp.lt.s32.totalorder %s11, 4
    // Predicated region
    $region17: #{unet_generator_forward.27} parent=5 // pred_check
      %p205 = pneg %p204
    $region18: #{unet_generator_forward.27} parent=5 // pred_check_branch
      %207 = sbr.rel (%p205) target = $region20
    $region19: #{unet_generator_forward.27} parent=5 // pred_region
      // Predicated region
      $region21: #{unet_generator_forward.27} parent=19 // pred_check
        %p208 = pneg %p61
      $region22: #{unet_generator_forward.27} parent=19 // pred_check_branch
        %210 = sbr.rel (%p208) target = $region24
      $region23: #{unet_generator_forward.27} parent=19 // pred_region
        %s211 = smul.u32 2, %s19
        %s212 = smul.u32 4, %s21
        %p213 = scmp.lt.s32.totalorder %s18, 3
        %s214 = scalar_select %p213, %s18, 3
        %p215 = scmp.lt.s32.totalorder %s211, 1
        %s216 = scalar_select %p215, %s211, 1
        %p217 = scmp.lt.s32.totalorder %s212, 3
        %s218 = scalar_select %p217, %s212, 3
        %s219 = smul.addr %s216, 4
        %s220 = sadd.s32 %s218, %s219
        %s221 = smul.addr %s214, 8
        %s222 = sadd.s32 %s220, %s221
        %s223 = smul.addr %s222, 4
        %s224 = scalar_lea.vmem %s0, %s223
        %s225 = smul.u32 2, %s19
        %s226 = smul.u32 4, %s21
      $region24: #{unet_generator_forward.27} parent=19 // pred_fallthru
        _
      // Predicated region
      $region25: #{unet_generator_forward.27} parent=19 // pred_check
        %p227 = pneg %p91
      $region26: #{unet_generator_forward.27} parent=19 // pred_check_branch
        %229 = sbr.rel (%p227) target = $region28
      $region27: #{unet_generator_forward.27} parent=19 // pred_region
        %s230 = smul.u32 64, %s21
        %p231 = scmp.lt.s32.totalorder %s18, 3
        %s232 = scalar_select %p231, %s18, 3
        %p233 = scmp.lt.s32.totalorder %s230, 63
        %s234 = scalar_select %p233, %s230, 63
        %p235 = scmp.lt.s32.totalorder %s20, 0
        %s236 = scalar_select %p235, %s20, 0
        %s237 = sadd.s32 %s236, %s234
        %s238 = smul.addr %s232, 64
        %s239 = sadd.s32 %s237, %s238
        %s240 = smul.addr %s239, 4
        %s241 = scalar_lea.vmem %s1, %s240
        %s242 = smul.u32 64, %s21
      $region28: #{unet_generator_forward.27} parent=19 // pred_fallthru
        _
    $region20: #{unet_generator_forward.27} parent=5 // pred_fallthru
      _
    %p243 = scmp.le.s32.totalorder 1, %s11
    %p244 = scmp.lt.s32.totalorder %s11, 5
    %p245 = pnand %p243, %p244
    %p246 = pneg %p245
    // Predicated region
    $region29: #{unet_generator_forward.27} parent=5 // pred_check
      _
    $region30: #{unet_generator_forward.27} parent=5 // pred_check_branch
      %248 = sbr.rel (%p245) target = $region32
    $region31: #{unet_generator_forward.27} parent=5 // pred_region
      %s249 = ssub.s32 %s11, 1
      %s250 = smul.u32 2, %s23
      %s251 = smul.u32 4, %s25
      %p252 = scmp.lt.s32.totalorder %s22, 3
      %s253 = scalar_select %p252, %s22, 3
      %p254 = scmp.lt.s32.totalorder %s250, 1
      %s255 = scalar_select %p254, %s250, 1
      %p256 = scmp.lt.s32.totalorder %s251, 3
      %s257 = scalar_select %p256, %s251, 3
      %s258 = smul.addr %s255, 4
      %s259 = sadd.s32 %s257, %s258
      %s260 = smul.addr %s253, 8
      %s261 = sadd.s32 %s259, %s260
      %s262 = smul.addr %s261, 4
      %s263 = scalar_lea.vmem %s0, %s262
      %p264 = pneg %p67
      %p265 = pneg %p64
      %s266 = smul.u32 64, %s25
      %p267 = scmp.lt.s32.totalorder %s22, 3
      %s268 = scalar_select %p267, %s22, 3
      %p269 = scmp.lt.s32.totalorder %s266, 63
      %s270 = scalar_select %p269, %s266, 63
      %p271 = scmp.lt.s32.totalorder %s24, 0
      %s272 = scalar_select %p271, %s24, 0
      %s273 = sadd.s32 %s272, %s270
      %s274 = smul.addr %s268, 64
      %s275 = sadd.s32 %s273, %s274
      %s276 = smul.addr %s275, 4
      %s277 = scalar_lea.vmem %s1, %s276
      %p278 = pneg %p97
      %p279 = pneg %p94
      %p280 = scmp.lt.s32.totalorder %s24, 0
      %s281 = scalar_select %p280, %s24, 0
      %s282 = scalar_lea.vmem %s2, %s281
      %p283 = pneg %p123
      %p284 = pneg %p120
      %p285 = pneg %p153
      %p286 = pneg %p150
      %s287 = smul.u32 2, %s23
      %p288 = scmp.lt.s32.totalorder %s22, 3
      %s289 = scalar_select %p288, %s22, 3
      %p290 = scmp.lt.s32.totalorder %s287, 1
      %s291 = scalar_select %p290, %s287, 1
      %p292 = scmp.lt.s32.totalorder %s24, 0
      %s293 = scalar_select %p292, %s24, 0
      %s294 = sadd.s32 %s293, %s291
      %s295 = smul.addr %s289, 2
      %s296 = sadd.s32 %s294, %s295
      %s297 = smul.addr %s296, 4
      %s298 = scalar_lea.vmem %s3, %s297
      %p299 = pneg %p183
      %p300 = pneg %p180
      %p301 = scmp.lt.s32.totalorder %s22, 3
      %s302 = scalar_select %p301, %s22, 3
      %p303 = scmp.lt.s32.totalorder %s23, 0
      %s304 = scalar_select %p303, %s23, 0
      %p305 = scmp.lt.s32.totalorder %s24, 0
      %s306 = scalar_select %p305, %s24, 0
      %s307 = sadd.s32 %s306, %s304
      %s308 = sadd.s32 %s307, %s302
      %s309 = smul.addr %s308, 8
      %s310 = scalar_lea.vmem %s4, %s309
      %s311 = smul.u32 2, %s23
      %s312 = smul.u32 4, %s25
      %p313 = scmp.lt.s32.totalorder %s22, 3
      %s314 = scalar_select %p313, %s22, 3
      %p315 = scmp.lt.s32.totalorder %s311, 1
      %s316 = scalar_select %p315, %s311, 1
      %p317 = scmp.lt.s32.totalorder %s312, 3
      %s318 = scalar_select %p317, %s312, 3
      %s319 = smul.addr %s316, 4
      %s320 = sadd.s32 %s318, %s319
      %s321 = smul.addr %s314, 8
      %s322 = sadd.s32 %s320, %s321
      %s323 = smul.addr %s322, 4
      %s324 = scalar_lea.vmem %s0, %s323
      %s325 = smul.u32 2, %s23
      %s326 = smul.u32 4, %s25
      %s327 = smul.u32 64, %s25
      %p328 = scmp.lt.s32.totalorder %s22, 3
      %s329 = scalar_select %p328, %s22, 3
      %p330 = scmp.lt.s32.totalorder %s327, 63
      %s331 = scalar_select %p330, %s327, 63
      %p332 = scmp.lt.s32.totalorder %s24, 0
      %s333 = scalar_select %p332, %s24, 0
      %s334 = sadd.s32 %s333, %s331
      %s335 = smul.addr %s329, 64
      %s336 = sadd.s32 %s334, %s335
      %s337 = smul.addr %s336, 4
      %s338 = scalar_lea.vmem %s1, %s337
      %s339 = smul.u32 64, %s25
      %p340 = scmp.lt.s32.totalorder %s24, 0
      %s341 = scalar_select %p340, %s24, 0
      %s342 = scalar_lea.vmem %s2, %s341
      %s343 = smul.u32 2, %s23
      %p344 = scmp.lt.s32.totalorder %s22, 3
      %s345 = scalar_select %p344, %s22, 3
      %p346 = scmp.lt.s32.totalorder %s343, 1
      %s347 = scalar_select %p346, %s343, 1
      %p348 = scmp.lt.s32.totalorder %s24, 0
      %s349 = scalar_select %p348, %s24, 0
      %s350 = sadd.s32 %s349, %s347
      %s351 = smul.addr %s345, 2
      %s352 = sadd.s32 %s350, %s351
      %s353 = smul.addr %s352, 4
      %s354 = scalar_lea.vmem %s3, %s353
      %s355 = smul.u32 2, %s23
      %p356 = scmp.lt.s32.totalorder %s22, 3
      %s357 = scalar_select %p356, %s22, 3
      %p358 = scmp.lt.s32.totalorder %s23, 0
      %s359 = scalar_select %p358, %s23, 0
      %p360 = scmp.lt.s32.totalorder %s24, 0
      %s361 = scalar_select %p360, %s24, 0
      %s362 = sadd.s32 %s361, %s359
      %s363 = sadd.s32 %s362, %s357
      %s364 = smul.addr %s363, 8
      %s365 = scalar_lea.vmem %s4, %s364
      %v366 = vld [vmem:[%s324] sm:$0xff]
      %v367 = vld [vmem:[%s324 + $0x8] sm:$0xff]
      %v368 = vld [vmem:[%s324 + $0x10] sm:$0xff]
      %v369 = vld [vmem:[%s324 + $0x18] sm:$0xff]
      %v370 = vunpack.c.l.bf16 %v366
      %v371 = vunpack.c.h.bf16 %v366
      %v372 = vunpack.c.l.bf16 %v367
      %v373 = vunpack.c.h.bf16 %v367
      %v374 = vunpack.c.l.bf16 %v368
      %v375 = vunpack.c.h.bf16 %v368
      %v376 = vunpack.c.l.bf16 %v369
      %v377 = vunpack.c.h.bf16 %v369
      %v378 = vmax.f32 %v370, 0.0
      %v379 = vmax.f32 %v371, 0.0
      %v380 = vmax.f32 %v372, 0.0
      %v381 = vmax.f32 %v373, 0.0
      %v382 = vmax.f32 %v374, 0.0
      %v383 = vmax.f32 %v375, 0.0
      %v384 = vmax.f32 %v376, 0.0
      %v385 = vmax.f32 %v377, 0.0
      %v386 = vpack.c.bf16 %v382, %v378
      %v387 = vpack.c.bf16 %v383, %v379
      %v388 = vpack.c.bf16 %v384, %v380
      %v389 = vpack.c.bf16 %v385, %v381
      %v390 = vld [vmem:[%s338] sm:$0xf]
      %v391 = vld [vmem:[%s338 + $0x4] sm:$0xf]
      %v392 = vld [vmem:[%s338 + $0x8] sm:$0xf]
      %v393 = vld [vmem:[%s338 + $0xc] sm:$0xf]
      %v394 = vld [vmem:[%s338 + $0x10] sm:$0xf]
      %v395 = vld [vmem:[%s338 + $0x14] sm:$0xf]
      %v396 = vld [vmem:[%s338 + $0x18] sm:$0xf]
      %v397 = vld [vmem:[%s338 + $0x1c] sm:$0xf]
      %v398 = vld [vmem:[%s338 + $0x20] sm:$0xf]
      %v399 = vld [vmem:[%s338 + $0x24] sm:$0xf]
      %v400 = vld [vmem:[%s338 + $0x28] sm:$0xf]
      %v401 = vld [vmem:[%s338 + $0x2c] sm:$0xf]
      %v402 = vld [vmem:[%s338 + $0x30] sm:$0xf]
      %v403 = vld [vmem:[%s338 + $0x34] sm:$0xf]
      %v404 = vld [vmem:[%s338 + $0x38] sm:$0xf]
      %v405 = vld [vmem:[%s338 + $0x3c] sm:$0xf]
      %v406 = vld [vmem:[%s338 + $0x40] sm:$0xf]
      %v407 = vld [vmem:[%s338 + $0x44] sm:$0xf]
      %v408 = vld [vmem:[%s338 + $0x48] sm:$0xf]
      %v409 = vld [vmem:[%s338 + $0x4c] sm:$0xf]
      %v410 = vld [vmem:[%s338 + $0x50] sm:$0xf]
      %v411 = vld [vmem:[%s338 + $0x54] sm:$0xf]
      %v412 = vld [vmem:[%s338 + $0x58] sm:$0xf]
      %v413 = vld [vmem:[%s338 + $0x5c] sm:$0xf]
      %v414 = vld [vmem:[%s338 + $0x60] sm:$0xf]
      %v415 = vld [vmem:[%s338 + $0x64] sm:$0xf]
      %v416 = vld [vmem:[%s338 + $0x68] sm:$0xf]
      %v417 = vld [vmem:[%s338 + $0x6c] sm:$0xf]
      %v418 = vld [vmem:[%s338 + $0x70] sm:$0xf]
      %v419 = vld [vmem:[%s338 + $0x74] sm:$0xf]
      %v420 = vld [vmem:[%s338 + $0x78] sm:$0xf]
      %v421 = vld [vmem:[%s338 + $0x7c] sm:$0xf]
      %v422 = vld [vmem:[%s338 + $0x80] sm:$0xf]
      %v423 = vld [vmem:[%s338 + $0x84] sm:$0xf]
      %v424 = vld [vmem:[%s338 + $0x88] sm:$0xf]
      %v425 = vld [vmem:[%s338 + $0x8c] sm:$0xf]
      %v426 = vld [vmem:[%s338 + $0x90] sm:$0xf]
      %v427 = vld [vmem:[%s338 + $0x94] sm:$0xf]
      %v428 = vld [vmem:[%s338 + $0x98] sm:$0xf]
      %v429 = vld [vmem:[%s338 + $0x9c] sm:$0xf]
      %v430 = vld [vmem:[%s338 + $0xa0] sm:$0xf]
      %v431 = vld [vmem:[%s338 + $0xa4] sm:$0xf]
      %v432 = vld [vmem:[%s338 + $0xa8] sm:$0xf]
      %v433 = vld [vmem:[%s338 + $0xac] sm:$0xf]
      %v434 = vld [vmem:[%s338 + $0xb0] sm:$0xf]
      %v435 = vld [vmem:[%s338 + $0xb4] sm:$0xf]
      %v436 = vld [vmem:[%s338 + $0xb8] sm:$0xf]
      %v437 = vld [vmem:[%s338 + $0xbc] sm:$0xf]
      %v438 = vld [vmem:[%s338 + $0xc0] sm:$0xf]
      %v439 = vld [vmem:[%s338 + $0xc4] sm:$0xf]
      %v440 = vld [vmem:[%s338 + $0xc8] sm:$0xf]
      %v441 = vld [vmem:[%s338 + $0xcc] sm:$0xf]
      %v442 = vld [vmem:[%s338 + $0xd0] sm:$0xf]
      %v443 = vld [vmem:[%s338 + $0xd4] sm:$0xf]
      %v444 = vld [vmem:[%s338 + $0xd8] sm:$0xf]
      %v445 = vld [vmem:[%s338 + $0xdc] sm:$0xf]
      %v446 = vld [vmem:[%s338 + $0xe0] sm:$0xf]
      %v447 = vld [vmem:[%s338 + $0xe4] sm:$0xf]
      %v448 = vld [vmem:[%s338 + $0xe8] sm:$0xf]
      %v449 = vld [vmem:[%s338 + $0xec] sm:$0xf]
      %v450 = vld [vmem:[%s338 + $0xf0] sm:$0xf]
      %v451 = vld [vmem:[%s338 + $0xf4] sm:$0xf]
      %v452 = vld [vmem:[%s338 + $0xf8] sm:$0xf]
      %v453 = vld [vmem:[%s338 + $0xfc] sm:$0xf]
      %v454 = vld [vmem:[%s342] sm:$0x1]
      %v456 = vperm.slane %v454, 0
      %v522 = vunpack.c.l.b16 %v390
      %v523 = vunpack.c.l.b16 %v391
      %v524 = vunpack.c.l.b16 %v392
      %v525 = vunpack.c.l.b16 %v393
      %v526 = vunpack.c.l.b16 %v394
      %v527 = vunpack.c.l.b16 %v395
      %v528 = vunpack.c.l.b16 %v396
      %v529 = vunpack.c.l.b16 %v397
      %v530 = vunpack.c.l.b16 %v398
      %v531 = vunpack.c.l.b16 %v399
      %v532 = vunpack.c.l.b16 %v400
      %v533 = vunpack.c.l.b16 %v401
      %v534 = vunpack.c.l.b16 %v402
      %v535 = vunpack.c.l.b16 %v403
      %v536 = vunpack.c.l.b16 %v404
      %v537 = vunpack.c.l.b16 %v405
      %v538 = vunpack.c.l.b16 %v406
      %v539 = vunpack.c.l.b16 %v407
      %v540 = vunpack.c.l.b16 %v408
      %v541 = vunpack.c.l.b16 %v409
      %v542 = vunpack.c.l.b16 %v410
      %v543 = vunpack.c.l.b16 %v411
      %v544 = vunpack.c.l.b16 %v412
      %v545 = vunpack.c.l.b16 %v413
      %v546 = vunpack.c.l.b16 %v414
      %v547 = vunpack.c.l.b16 %v415
      %v548 = vunpack.c.l.b16 %v416
      %v549 = vunpack.c.l.b16 %v417
      %v550 = vunpack.c.l.b16 %v418
      %v551 = vunpack.c.l.b16 %v419
      %v552 = vunpack.c.l.b16 %v420
      %v553 = vunpack.c.l.b16 %v421
      %v554 = vunpack.c.l.b16 %v422
      %v555 = vunpack.c.l.b16 %v423
      %v556 = vunpack.c.l.b16 %v424
      %v557 = vunpack.c.l.b16 %v425
      %v558 = vunpack.c.l.b16 %v426
      %v559 = vunpack.c.l.b16 %v427
      %v560 = vunpack.c.l.b16 %v428
      %v561 = vunpack.c.l.b16 %v429
      %v562 = vunpack.c.l.b16 %v430
      %v563 = vunpack.c.l.b16 %v431
      %v564 = vunpack.c.l.b16 %v432
      %v565 = vunpack.c.l.b16 %v433
      %v566 = vunpack.c.l.b16 %v434
      %v567 = vunpack.c.l.b16 %v435
      %v568 = vunpack.c.l.b16 %v436
      %v569 = vunpack.c.l.b16 %v437
      %v570 = vunpack.c.l.b16 %v438
      %v571 = vunpack.c.l.b16 %v439
      %v572 = vunpack.c.l.b16 %v440
      %v573 = vunpack.c.l.b16 %v441
      %v574 = vunpack.c.l.b16 %v442
      %v575 = vunpack.c.l.b16 %v443
      %v576 = vunpack.c.l.b16 %v444
      %v577 = vunpack.c.l.b16 %v445
      %v578 = vunpack.c.l.b16 %v446
      %v579 = vunpack.c.l.b16 %v447
      %v580 = vunpack.c.l.b16 %v448
      %v581 = vunpack.c.l.b16 %v449
      %v582 = vunpack.c.l.b16 %v450
      %v583 = vunpack.c.l.b16 %v451
      %v584 = vunpack.c.l.b16 %v452
      %v585 = vunpack.c.l.b16 %v453
      %v586 = vpack.c.b16 %v523, %v522
      %v587 = vpack.c.b16 %v525, %v524
      %v588 = vpack.c.b16 %v527, %v526
      %v589 = vpack.c.b16 %v529, %v528
      %v590 = vpack.c.b16 %v531, %v530
      %v591 = vpack.c.b16 %v533, %v532
      %v592 = vpack.c.b16 %v535, %v534
      %v593 = vpack.c.b16 %v537, %v536
      %v594 = vpack.c.b16 %v539, %v538
      %v595 = vpack.c.b16 %v541, %v540
      %v596 = vpack.c.b16 %v543, %v542
      %v597 = vpack.c.b16 %v545, %v544
      %v598 = vpack.c.b16 %v547, %v546
      %v599 = vpack.c.b16 %v549, %v548
      %v600 = vpack.c.b16 %v551, %v550
      %v601 = vpack.c.b16 %v553, %v552
      %v602 = vpack.c.b16 %v555, %v554
      %v603 = vpack.c.b16 %v557, %v556
      %v604 = vpack.c.b16 %v559, %v558
      %v605 = vpack.c.b16 %v561, %v560
      %v606 = vpack.c.b16 %v563, %v562
      %v607 = vpack.c.b16 %v565, %v564
      %v608 = vpack.c.b16 %v567, %v566
      %v609 = vpack.c.b16 %v569, %v568
      %v610 = vpack.c.b16 %v571, %v570
      %v611 = vpack.c.b16 %v573, %v572
      %v612 = vpack.c.b16 %v575, %v574
      %v613 = vpack.c.b16 %v577, %v576
      %v614 = vpack.c.b16 %v579, %v578
      %v615 = vpack.c.b16 %v581, %v580
      %v616 = vpack.c.b16 %v583, %v582
      %v617 = vpack.c.b16 %v585, %v584
      %650 = vmatpush.bf16.msra.mxu0 %v593
      %651 = vmatpush.bf16.msra.mxu0 %v592
      %652 = vmatpush.bf16.msra.mxu0 %v591
      %653 = vmatpush.bf16.msra.mxu0 %v590
      %654 = vmatpush.bf16.msra.mxu0 %v589
      %655 = vmatpush.bf16.msra.mxu0 %v588
      %656 = vmatpush.bf16.msra.mxu0 %v587
      %657 = vmatpush.bf16.msra.mxu0 %v586
      %658 = vmatmul.bf16.gmra.mxu0 %v386
      %v659 = vpop.f32.mrf.mxu0
      %v660 = vadd.f32 %v456, %v659
      %v661 = vpop.f32.mrf.mxu0
      %v662 = vadd.f32 %v456, %v661
      %663 = vdwg.mxu0
      %664 = vmatpush.bf16.msra.mxu0 %v601
      %665 = vmatpush.bf16.msra.mxu0 %v600
      %666 = vmatpush.bf16.msra.mxu0 %v599
      %667 = vmatpush.bf16.msra.mxu0 %v598
      %668 = vmatpush.bf16.msra.mxu0 %v597
      %669 = vmatpush.bf16.msra.mxu0 %v596
      %670 = vmatpush.bf16.msra.mxu0 %v595
      %671 = vmatpush.bf16.msra.mxu0 %v594
      %672 = vmatmul.bf16.gmra.mxu0 %v387
      %v673 = vpop.f32.mrf.mxu0
      %v674 = vadd.f32 %v660, %v673
      %v675 = vpop.f32.mrf.mxu0
      %v676 = vadd.f32 %v662, %v675
      %677 = vdwg.mxu0
      %678 = vmatpush.bf16.msra.mxu0 %v609
      %679 = vmatpush.bf16.msra.mxu0 %v608
      %680 = vmatpush.bf16.msra.mxu0 %v607
      %681 = vmatpush.bf16.msra.mxu0 %v606
      %682 = vmatpush.bf16.msra.mxu0 %v605
      %683 = vmatpush.bf16.msra.mxu0 %v604
      %684 = vmatpush.bf16.msra.mxu0 %v603
      %685 = vmatpush.bf16.msra.mxu0 %v602
      %686 = vmatmul.bf16.gmra.mxu0 %v388
      %v687 = vpop.f32.mrf.mxu0
      %v688 = vadd.f32 %v674, %v687
      %v689 = vpop.f32.mrf.mxu0
      %v690 = vadd.f32 %v676, %v689
      %691 = vdwg.mxu0
      %692 = vmatpush.bf16.msra.mxu0 %v617
      %693 = vmatpush.bf16.msra.mxu0 %v616
      %694 = vmatpush.bf16.msra.mxu0 %v615
      %695 = vmatpush.bf16.msra.mxu0 %v614
      %696 = vmatpush.bf16.msra.mxu0 %v613
      %697 = vmatpush.bf16.msra.mxu0 %v612
      %698 = vmatpush.bf16.msra.mxu0 %v611
      %699 = vmatpush.bf16.msra.mxu0 %v610
      %700 = vmatmul.bf16.gmra.mxu0 %v389
      %v701 = vpop.f32.mrf.mxu0
      %v702 = vadd.f32 %v688, %v701
      %v703 = vpop.f32.mrf.mxu0
      %v704 = vadd.f32 %v690, %v703
      %705 = vdwg.mxu0
      %v706 = vadd.f32 %v702, %v704
      %v707 = vrot.slane %v706, 4
      %v708 = vadd.f32 %v706, %v707
      %v709 = vrot.slane %v708, 2
      %v710 = vadd.f32 %v708, %v709
      %v711 = vrot.slane %v710, 1
      %v712 = vadd.f32 %v710, %v711
      %713 = vst [vmem:[%s365] sm:$0x1] %v712
      %v714 = vmul.f32 %v702, %v702
      %v715 = vmul.f32 %v704, %v704
      %v716 = vadd.f32 %v714, %v715
      %v717 = vrot.slane %v716, 4
      %v718 = vadd.f32 %v716, %v717
      %v719 = vrot.slane %v718, 2
      %v720 = vadd.f32 %v718, %v719
      %v721 = vrot.slane %v720, 1
      %v722 = vadd.f32 %v720, %v721
      %723 = vst [vmem:[%s365 + $0x1] sm:$0x1] %v722
      %v724 = vpack.c.bf16 %v702, %v702
      %v725 = vpack.c.bf16 %v704, %v704
      %726 = vst [vmem:[%s354] sm:$0xf] %v724
      %727 = vst [vmem:[%s354 + $0x4] sm:$0xf] %v725
      %s728 = smul.u32 2, %s23
      %p729 = scmp.lt.s32.totalorder %s22, 3
      %s730 = scalar_select %p729, %s22, 3
      %p731 = scmp.lt.s32.totalorder %s728, 1
      %s732 = scalar_select %p731, %s728, 1
      %p733 = scmp.lt.s32.totalorder %s24, 0
      %s734 = scalar_select %p733, %s24, 0
      %s735 = sadd.s32 %s734, %s732
      %s736 = smul.addr %s730, 2
      %s737 = sadd.s32 %s735, %s736
      %s738 = smul.addr %s737, 4
      %s739 = scalar_lea.vmem %s3, %s738
      %p740 = scmp.lt.s32.totalorder %s22, 3
      %s741 = scalar_select %p740, %s22, 3
      %p742 = scmp.lt.s32.totalorder %s23, 0
      %s743 = scalar_select %p742, %s23, 0
      %p744 = scmp.lt.s32.totalorder %s24, 0
      %s745 = scalar_select %p744, %s24, 0
      %s746 = sadd.s32 %s745, %s743
      %s747 = sadd.s32 %s746, %s741
      %s748 = smul.addr %s747, 8
      %s749 = scalar_lea.vmem %s4, %s748
      // Predicated region
      $region33: #{unet_generator_forward.27} parent=31 // pred_check
        %p750 = pneg %p150
      $region34: #{unet_generator_forward.27} parent=31 // pred_check_branch
        %752 = sbr.rel (%p750) target = $region36
      $region35: #{unet_generator_forward.27} parent=31 // pred_region
        %s753 = smul.u32 2, %s23
      $region36: #{unet_generator_forward.27} parent=31 // pred_fallthru
        _
      // Predicated region
      $region37: #{unet_generator_forward.27} parent=31 // pred_check
        %p754 = pneg %p180
      $region38: #{unet_generator_forward.27} parent=31 // pred_check_branch
        %756 = sbr.rel (%p754) target = $region40
      $region39: #{unet_generator_forward.27} parent=31 // pred_region
        _
      $region40: #{unet_generator_forward.27} parent=31 // pred_fallthru
        _
    $region32: #{unet_generator_forward.27} parent=5 // pred_fallthru
      _
    %p757 = scmp.le.s32.totalorder 2, %s11
    // Predicated region
    $region41: #{unet_generator_forward.27} parent=5 // pred_check
      %p758 = pneg %p757
    $region42: #{unet_generator_forward.27} parent=5 // pred_check_branch
      %760 = sbr.rel (%p758) target = $region44
    $region43: #{unet_generator_forward.27} parent=5 // pred_region
      %s761 = ssub.s32 %s11, 2
      // Predicated region
      $region45: #{unet_generator_forward.27} parent=43 // pred_check
        %p762 = pneg %p156
      $region46: #{unet_generator_forward.27} parent=43 // pred_check_branch
        %764 = sbr.rel (%p762) target = $region48
      $region47: #{unet_generator_forward.27} parent=43 // pred_region
        %s765 = smul.u32 2, %s27
        %p766 = scmp.lt.s32.totalorder %s26, 3
        %s767 = scalar_select %p766, %s26, 3
        %p768 = scmp.lt.s32.totalorder %s765, 1
        %s769 = scalar_select %p768, %s765, 1
        %p770 = scmp.lt.s32.totalorder %s28, 0
        %s771 = scalar_select %p770, %s28, 0
        %s772 = sadd.s32 %s771, %s769
        %s773 = smul.addr %s767, 2
        %s774 = sadd.s32 %s772, %s773
        %s775 = smul.addr %s774, 4
        %s776 = scalar_lea.vmem %s3, %s775
      $region48: #{unet_generator_forward.27} parent=43 // pred_fallthru
        _
      // Predicated region
      $region49: #{unet_generator_forward.27} parent=43 // pred_check
        %p777 = pneg %p186
      $region50: #{unet_generator_forward.27} parent=43 // pred_check_branch
        %779 = sbr.rel (%p777) target = $region52
      $region51: #{unet_generator_forward.27} parent=43 // pred_region
        %p780 = scmp.lt.s32.totalorder %s26, 3
        %s781 = scalar_select %p780, %s26, 3
        %p782 = scmp.lt.s32.totalorder %s27, 0
        %s783 = scalar_select %p782, %s27, 0
        %p784 = scmp.lt.s32.totalorder %s28, 0
        %s785 = scalar_select %p784, %s28, 0
        %s786 = sadd.s32 %s785, %s783
        %s787 = sadd.s32 %s786, %s781
        %s788 = smul.addr %s787, 8
        %s789 = scalar_lea.vmem %s4, %s788
      $region52: #{unet_generator_forward.27} parent=43 // pred_fallthru
        _
    $region44: #{unet_generator_forward.27} parent=5 // pred_fallthru
      _
  $region6: #{unet_generator_forward.27} parent=0 // loop_footer
    %s15 = sadd.s32 1, %s11
  $region7: #{unet_generator_forward.27} parent=0 // loop_footer_branch
    %10 = sbr.rel target = $region3
  $region8: #{unet_generator_forward.27} parent=0 // loop_exit
    _

// kernel: unet_generator_forward.29
$region0: #{unet_generator_forward.29}
  #allocation0 [shape = 'u32[]', space=smem, size = 0x4, offset = 0x4, fixed_abs, tag = 'smem constant byte address 0x4 - core index']
  #allocation1 [shape = 'u32[72,128]{1,0:T(1,128)}', space=vmem, size = 0x9000, scoped, tag = 'internal scratch']
  %s0 = inlined_call_operand.vmem [shape: bf16[4,32,256], index: 0, kind: input, shape index: {}]
  %s1 = inlined_call_operand.vmem [shape: bf16[4,256,128], index: 1, kind: input, shape index: {}]
  %s2 = inlined_call_operand.vmem [shape: f32[1,128], index: 2, kind: input, shape index: {}]
  %s3 = inlined_call_operand.vmem [shape: bf16[4,32,128], index: 3, kind: output, shape index: {0}]
  %s4 = inlined_call_operand.vmem [shape: f32[4,1,8,128], index: 4, kind: output, shape index: {1}]
  %5 = xla_tuple %s3, %s4
  %s6 = sld [smem:[#allocation0]]
  $region53: #{unet_generator_forward.29} parent=0
    _
  %s8 = ssub.s32 1, %s6
  %s9 = scalar_select 0, %s8, %s6
  loop: start=0, step=1, limit=6
  $region2: #{unet_generator_forward.29} parent=0 // loop_pre_header
    _
  $region3: #{unet_generator_forward.29} parent=0 // loop_header
    %s11 = sphi 0, %s15
    %p12 = scmp.ge.s32.totalorder %s11, 6
    %s18 = sphi 0, %s44
    %s19 = sphi 0, %s40
    %s20 = sphi 0, %s36
    %s21 = sphi 0, %s32
    %s22 = sphi 0, %s18
    %s23 = sphi 0, %s19
    %s24 = sphi 0, %s20
    %s25 = sphi 0, %s21
    %s26 = sphi 0, %s22
    %s27 = sphi 0, %s23
    %s28 = sphi 0, %s24
    %s29 = sphi 0, %s25
    %s51 = sphi 0, %s53
    %s54 = sphi 0, %s51
    %s55 = sphi 0, %s54
    %s71 = sphi 0, %s55
    %s81 = sphi 0, %s83
    %s84 = sphi 0, %s81
    %s85 = sphi 0, %s84
    %s101 = sphi 0, %s85
    %s107 = sphi 0, %s109
    %s110 = sphi 0, %s107
    %s111 = sphi 0, %s110
    %s127 = sphi 0, %s111
    %s137 = sphi 0, %s139
    %s140 = sphi 0, %s137
    %s141 = sphi 0, %s140
    %s157 = sphi 0, %s141
    %s167 = sphi 0, %s169
    %s170 = sphi 0, %s167
    %s171 = sphi 0, %s170
    %s187 = sphi 0, %s171
  $region4: #{unet_generator_forward.29} parent=0 // loop_header_branch
    %14 = sbr.rel (%p12) target = $region8
  $region5: #{unet_generator_forward.29} parent=0 // loop_body
    %s16 = ssub.s32 %s11, 1
    %s17 = ssub.s32 %s11, 2
    %s30 = sadd.s32 1, %s21
    %p31 = scmp.ge.s32.totalorder %s30, 1
    %s32 = scalar_select %p31, 0, %s30
    %s33 = sadd.s32 1, %s20
    %s34 = scalar_select %p31, %s33, %s20
    %p35 = scmp.ge.s32.totalorder %s34, 1
    %s36 = scalar_select %p35, 0, %s34
    %s37 = sadd.s32 1, %s19
    %s38 = scalar_select %p35, %s37, %s19
    %p39 = scmp.ge.s32.totalorder %s38, 1
    %s40 = scalar_select %p39, 0, %s38
    %s41 = sadd.s32 1, %s18
    %s42 = scalar_select %p39, %s41, %s18
    %p43 = scmp.ge.s32.totalorder %s42, 4
    %s44 = scalar_select %p43, 0, %s42
    %s45 = ssub.s32 %s18, %s44
    %s46 = ssub.s32 %s19, %s40
    %s47 = sor.u32 %s45, %s46
    %s48 = ssub.s32 %s21, %s32
    %s49 = sor.u32 %s47, %s48
    %p50 = scmp.eq.s32.totalorder %s49, 0
    %s52 = sadd.s32 %s51, 1
    %s53 = scalar_select %p50, %s51, %s52
    %p56 = pneg %p50
    %p57 = scmp.eq.s32.totalorder %s11, 3
    %p58 = por %p56, %p57
    %p59 = scmp.ne.s32.totalorder %s51, %s54
    %p60 = scmp.eq.s32.totalorder %s11, 0
    %p61 = por %p59, %p60
    %p62 = scmp.ne.s32.totalorder %s51, %s54
    %p63 = scmp.eq.s32.totalorder %s16, 3
    %p64 = por %p62, %p63
    %p65 = scmp.ne.s32.totalorder %s54, %s55
    %p66 = scmp.eq.s32.totalorder %s16, 0
    %p67 = por %p65, %p66
    %p68 = scmp.ne.s32.totalorder %s54, %s55
    %p69 = scmp.eq.s32.totalorder %s17, 3
    %p70 = por %p68, %p69
    %p72 = scmp.ne.s32.totalorder %s55, %s71
    %p73 = scmp.eq.s32.totalorder %s17, 0
    %p74 = por %p72, %p73
    %s75 = ssub.s32 %s18, %s44
    %s76 = ssub.s32 %s21, %s32
    %s77 = sor.u32 %s75, %s76
    %s78 = ssub.s32 %s20, %s36
    %s79 = sor.u32 %s77, %s78
    %p80 = scmp.eq.s32.totalorder %s79, 0
    %s82 = sadd.s32 %s81, 1
    %s83 = scalar_select %p80, %s81, %s82
    %p86 = pneg %p80
    %p87 = scmp.eq.s32.totalorder %s11, 3
    %p88 = por %p86, %p87
    %p89 = scmp.ne.s32.totalorder %s81, %s84
    %p90 = scmp.eq.s32.totalorder %s11, 0
    %p91 = por %p89, %p90
    %p92 = scmp.ne.s32.totalorder %s81, %s84
    %p93 = scmp.eq.s32.totalorder %s16, 3
    %p94 = por %p92, %p93
    %p95 = scmp.ne.s32.totalorder %s84, %s85
    %p96 = scmp.eq.s32.totalorder %s16, 0
    %p97 = por %p95, %p96
    %p98 = scmp.ne.s32.totalorder %s84, %s85
    %p99 = scmp.eq.s32.totalorder %s17, 3
    %p100 = por %p98, %p99
    %p102 = scmp.ne.s32.totalorder %s85, %s101
    %p103 = scmp.eq.s32.totalorder %s17, 0
    %p104 = por %p102, %p103
    %s105 = ssub.s32 %s20, %s36
    %p106 = scmp.eq.s32.totalorder %s105, 0
    %s108 = sadd.s32 %s107, 1
    %s109 = scalar_select %p106, %s107, %s108
    %p112 = pneg %p106
    %p113 = scmp.eq.s32.totalorder %s11, 3
    %p114 = por %p112, %p113
    %p115 = scmp.ne.s32.totalorder %s107, %s110
    %p116 = scmp.eq.s32.totalorder %s11, 0
    %p117 = por %p115, %p116
    %p118 = scmp.ne.s32.totalorder %s107, %s110
    %p119 = scmp.eq.s32.totalorder %s16, 3
    %p120 = por %p118, %p119
    %p121 = scmp.ne.s32.totalorder %s110, %s111
    %p122 = scmp.eq.s32.totalorder %s16, 0
    %p123 = por %p121, %p122
    %p124 = scmp.ne.s32.totalorder %s110, %s111
    %p125 = scmp.eq.s32.totalorder %s17, 3
    %p126 = por %p124, %p125
    %p128 = scmp.ne.s32.totalorder %s111, %s127
    %p129 = scmp.eq.s32.totalorder %s17, 0
    %p130 = por %p128, %p129
    %s131 = ssub.s32 %s18, %s44
    %s132 = ssub.s32 %s19, %s40
    %s133 = sor.u32 %s131, %s132
    %s134 = ssub.s32 %s20, %s36
    %s135 = sor.u32 %s133, %s134
    %p136 = scmp.eq.s32.totalorder %s135, 0
    %s138 = sadd.s32 %s137, 1
    %s139 = scalar_select %p136, %s137, %s138
    %p142 = pneg %p136
    %p143 = scmp.eq.s32.totalorder %s11, 3
    %p144 = por %p142, %p143
    %p145 = scmp.ne.s32.totalorder %s137, %s140
    %p146 = scmp.eq.s32.totalorder %s11, 0
    %p147 = por %p145, %p146
    %p148 = scmp.ne.s32.totalorder %s137, %s140
    %p149 = scmp.eq.s32.totalorder %s16, 3
    %p150 = por %p148, %p149
    %p151 = scmp.ne.s32.totalorder %s140, %s141
    %p152 = scmp.eq.s32.totalorder %s16, 0
    %p153 = por %p151, %p152
    %p154 = scmp.ne.s32.totalorder %s140, %s141
    %p155 = scmp.eq.s32.totalorder %s17, 3
    %p156 = por %p154, %p155
    %p158 = scmp.ne.s32.totalorder %s141, %s157
    %p159 = scmp.eq.s32.totalorder %s17, 0
    %p160 = por %p158, %p159
    %s161 = ssub.s32 %s18, %s44
    %s162 = ssub.s32 %s19, %s40
    %s163 = sor.u32 %s161, %s162
    %s164 = ssub.s32 %s20, %s36
    %s165 = sor.u32 %s163, %s164
    %p166 = scmp.eq.s32.totalorder %s165, 0
    %s168 = sadd.s32 %s167, 1
    %s169 = scalar_select %p166, %s167, %s168
    %p172 = pneg %p166
    %p173 = scmp.eq.s32.totalorder %s11, 3
    %p174 = por %p172, %p173
    %p175 = scmp.ne.s32.totalorder %s167, %s170
    %p176 = scmp.eq.s32.totalorder %s11, 0
    %p177 = por %p175, %p176
    %p178 = scmp.ne.s32.totalorder %s167, %s170
    %p179 = scmp.eq.s32.totalorder %s16, 3
    %p180 = por %p178, %p179
    %p181 = scmp.ne.s32.totalorder %s170, %s171
    %p182 = scmp.eq.s32.totalorder %s16, 0
    %p183 = por %p181, %p182
    %p184 = scmp.ne.s32.totalorder %s170, %s171
    %p185 = scmp.eq.s32.totalorder %s17, 3
    %p186 = por %p184, %p185
    %p188 = scmp.ne.s32.totalorder %s171, %s187
    %p189 = scmp.eq.s32.totalorder %s17, 0
    %p190 = por %p188, %p189
    %p191 = scmp.le.s32.totalorder 1, %s11
    %p192 = scmp.lt.s32.totalorder %s11, 5
    %p193 = pnand %p191, %p192
    %p194 = pneg %p193
    // Predicated region
    $region9: #{unet_generator_forward.29} parent=5 // pred_check
      _
    $region10: #{unet_generator_forward.29} parent=5 // pred_check_branch
      %196 = sbr.rel (%p193) target = $region12
    $region11: #{unet_generator_forward.29} parent=5 // pred_region
      %s197 = ssub.s32 %s11, 1
      // Predicated region
      $region13: #{unet_generator_forward.29} parent=11 // pred_check
        %p198 = pneg %p123
      $region14: #{unet_generator_forward.29} parent=11 // pred_check_branch
        %200 = sbr.rel (%p198) target = $region16
      $region15: #{unet_generator_forward.29} parent=11 // pred_region
        %p201 = scmp.lt.s32.totalorder %s24, 0
        %s202 = scalar_select %p201, %s24, 0
        %s203 = scalar_lea.vmem %s2, %s202
      $region16: #{unet_generator_forward.29} parent=11 // pred_fallthru
        _
    $region12: #{unet_generator_forward.29} parent=5 // pred_fallthru
      _
    %p204 = scmp.lt.s32.totalorder %s11, 4
    // Predicated region
    $region17: #{unet_generator_forward.29} parent=5 // pred_check
      %p205 = pneg %p204
    $region18: #{unet_generator_forward.29} parent=5 // pred_check_branch
      %207 = sbr.rel (%p205) target = $region20
    $region19: #{unet_generator_forward.29} parent=5 // pred_region
      // Predicated region
      $region21: #{unet_generator_forward.29} parent=19 // pred_check
        %p208 = pneg %p61
      $region22: #{unet_generator_forward.29} parent=19 // pred_check_branch
        %210 = sbr.rel (%p208) target = $region24
      $region23: #{unet_generator_forward.29} parent=19 // pred_region
        %s211 = smul.u32 4, %s19
        %s212 = smul.u32 2, %s21
        %p213 = scmp.lt.s32.totalorder %s18, 3
        %s214 = scalar_select %p213, %s18, 3
        %p215 = scmp.lt.s32.totalorder %s211, 3
        %s216 = scalar_select %p215, %s211, 3
        %p217 = scmp.lt.s32.totalorder %s212, 1
        %s218 = scalar_select %p217, %s212, 1
        %s219 = smul.addr %s216, 2
        %s220 = sadd.s32 %s218, %s219
        %s221 = smul.addr %s214, 8
        %s222 = sadd.s32 %s220, %s221
        %s223 = smul.addr %s222, 4
        %s224 = scalar_lea.vmem %s0, %s223
        %s225 = smul.u32 4, %s19
        %s226 = smul.u32 2, %s21
      $region24: #{unet_generator_forward.29} parent=19 // pred_fallthru
        _
      // Predicated region
      $region25: #{unet_generator_forward.29} parent=19 // pred_check
        %p227 = pneg %p91
      $region26: #{unet_generator_forward.29} parent=19 // pred_check_branch
        %229 = sbr.rel (%p227) target = $region28
      $region27: #{unet_generator_forward.29} parent=19 // pred_region
        %s230 = smul.u32 32, %s21
        %p231 = scmp.lt.s32.totalorder %s18, 3
        %s232 = scalar_select %p231, %s18, 3
        %p233 = scmp.lt.s32.totalorder %s230, 31
        %s234 = scalar_select %p233, %s230, 31
        %p235 = scmp.lt.s32.totalorder %s20, 0
        %s236 = scalar_select %p235, %s20, 0
        %s237 = sadd.s32 %s236, %s234
        %s238 = smul.addr %s232, 32
        %s239 = sadd.s32 %s237, %s238
        %s240 = smul.addr %s239, 4
        %s241 = scalar_lea.vmem %s1, %s240
        %s242 = smul.u32 32, %s21
      $region28: #{unet_generator_forward.29} parent=19 // pred_fallthru
        _
    $region20: #{unet_generator_forward.29} parent=5 // pred_fallthru
      _
    %p243 = scmp.le.s32.totalorder 1, %s11
    %p244 = scmp.lt.s32.totalorder %s11, 5
    %p245 = pnand %p243, %p244
    %p246 = pneg %p245
    // Predicated region
    $region29: #{unet_generator_forward.29} parent=5 // pred_check
      _
    $region30: #{unet_generator_forward.29} parent=5 // pred_check_branch
      %248 = sbr.rel (%p245) target = $region32
    $region31: #{unet_generator_forward.29} parent=5 // pred_region
      %s249 = ssub.s32 %s11, 1
      %s250 = smul.u32 4, %s23
      %s251 = smul.u32 2, %s25
      %p252 = scmp.lt.s32.totalorder %s22, 3
      %s253 = scalar_select %p252, %s22, 3
      %p254 = scmp.lt.s32.totalorder %s250, 3
      %s255 = scalar_select %p254, %s250, 3
      %p256 = scmp.lt.s32.totalorder %s251, 1
      %s257 = scalar_select %p256, %s251, 1
      %s258 = smul.addr %s255, 2
      %s259 = sadd.s32 %s257, %s258
      %s260 = smul.addr %s253, 8
      %s261 = sadd.s32 %s259, %s260
      %s262 = smul.addr %s261, 4
      %s263 = scalar_lea.vmem %s0, %s262
      %p264 = pneg %p67
      %p265 = pneg %p64
      %s266 = smul.u32 32, %s25
      %p267 = scmp.lt.s32.totalorder %s22, 3
      %s268 = scalar_select %p267, %s22, 3
      %p269 = scmp.lt.s32.totalorder %s266, 31
      %s270 = scalar_select %p269, %s266, 31
      %p271 = scmp.lt.s32.totalorder %s24, 0
      %s272 = scalar_select %p271, %s24, 0
      %s273 = sadd.s32 %s272, %s270
      %s274 = smul.addr %s268, 32
      %s275 = sadd.s32 %s273, %s274
      %s276 = smul.addr %s275, 4
      %s277 = scalar_lea.vmem %s1, %s276
      %p278 = pneg %p97
      %p279 = pneg %p94
      %p280 = scmp.lt.s32.totalorder %s24, 0
      %s281 = scalar_select %p280, %s24, 0
      %s282 = scalar_lea.vmem %s2, %s281
      %p283 = pneg %p123
      %p284 = pneg %p120
      %p285 = pneg %p153
      %p286 = pneg %p150
      %s287 = smul.u32 4, %s23
      %p288 = scmp.lt.s32.totalorder %s22, 3
      %s289 = scalar_select %p288, %s22, 3
      %p290 = scmp.lt.s32.totalorder %s287, 3
      %s291 = scalar_select %p290, %s287, 3
      %p292 = scmp.lt.s32.totalorder %s24, 0
      %s293 = scalar_select %p292, %s24, 0
      %s294 = sadd.s32 %s293, %s291
      %s295 = smul.addr %s289, 4
      %s296 = sadd.s32 %s294, %s295
      %s297 = smul.addr %s296, 4
      %s298 = scalar_lea.vmem %s3, %s297
      %p299 = pneg %p183
      %p300 = pneg %p180
      %p301 = scmp.lt.s32.totalorder %s22, 3
      %s302 = scalar_select %p301, %s22, 3
      %p303 = scmp.lt.s32.totalorder %s23, 0
      %s304 = scalar_select %p303, %s23, 0
      %p305 = scmp.lt.s32.totalorder %s24, 0
      %s306 = scalar_select %p305, %s24, 0
      %s307 = sadd.s32 %s306, %s304
      %s308 = sadd.s32 %s307, %s302
      %s309 = smul.addr %s308, 8
      %s310 = scalar_lea.vmem %s4, %s309
      %s311 = smul.u32 4, %s23
      %s312 = smul.u32 2, %s25
      %p313 = scmp.lt.s32.totalorder %s22, 3
      %s314 = scalar_select %p313, %s22, 3
      %p315 = scmp.lt.s32.totalorder %s311, 3
      %s316 = scalar_select %p315, %s311, 3
      %p317 = scmp.lt.s32.totalorder %s312, 1
      %s318 = scalar_select %p317, %s312, 1
      %s319 = smul.addr %s316, 2
      %s320 = sadd.s32 %s318, %s319
      %s321 = smul.addr %s314, 8
      %s322 = sadd.s32 %s320, %s321
      %s323 = smul.addr %s322, 4
      %s324 = scalar_lea.vmem %s0, %s323
      %s325 = smul.u32 4, %s23
      %s326 = smul.u32 2, %s25
      %s327 = smul.u32 32, %s25
      %p328 = scmp.lt.s32.totalorder %s22, 3
      %s329 = scalar_select %p328, %s22, 3
      %p330 = scmp.lt.s32.totalorder %s327, 31
      %s331 = scalar_select %p330, %s327, 31
      %p332 = scmp.lt.s32.totalorder %s24, 0
      %s333 = scalar_select %p332, %s24, 0
      %s334 = sadd.s32 %s333, %s331
      %s335 = smul.addr %s329, 32
      %s336 = sadd.s32 %s334, %s335
      %s337 = smul.addr %s336, 4
      %s338 = scalar_lea.vmem %s1, %s337
      %s339 = smul.u32 32, %s25
      %p340 = scmp.lt.s32.totalorder %s24, 0
      %s341 = scalar_select %p340, %s24, 0
      %s342 = scalar_lea.vmem %s2, %s341
      %s343 = smul.u32 4, %s23
      %p344 = scmp.lt.s32.totalorder %s22, 3
      %s345 = scalar_select %p344, %s22, 3
      %p346 = scmp.lt.s32.totalorder %s343, 3
      %s347 = scalar_select %p346, %s343, 3
      %p348 = scmp.lt.s32.totalorder %s24, 0
      %s349 = scalar_select %p348, %s24, 0
      %s350 = sadd.s32 %s349, %s347
      %s351 = smul.addr %s345, 4
      %s352 = sadd.s32 %s350, %s351
      %s353 = smul.addr %s352, 4
      %s354 = scalar_lea.vmem %s3, %s353
      %s355 = smul.u32 4, %s23
      %p356 = scmp.lt.s32.totalorder %s22, 3
      %s357 = scalar_select %p356, %s22, 3
      %p358 = scmp.lt.s32.totalorder %s23, 0
      %s359 = scalar_select %p358, %s23, 0
      %p360 = scmp.lt.s32.totalorder %s24, 0
      %s361 = scalar_select %p360, %s24, 0
      %s362 = sadd.s32 %s361, %s359
      %s363 = sadd.s32 %s362, %s357
      %s364 = smul.addr %s363, 8
      %s365 = scalar_lea.vmem %s4, %s364
      %v366 = vld [vmem:[%s324] sm:$0xff]
      %v367 = vld [vmem:[%s324 + $0x8] sm:$0xff]
      %v368 = vld [vmem:[%s324 + $0x10] sm:$0xff]
      %v369 = vld [vmem:[%s324 + $0x18] sm:$0xff]
      %v370 = vunpack.c.l.bf16 %v366
      %v371 = vunpack.c.h.bf16 %v366
      %v372 = vunpack.c.l.bf16 %v367
      %v373 = vunpack.c.h.bf16 %v367
      %v374 = vunpack.c.l.bf16 %v368
      %v375 = vunpack.c.h.bf16 %v368
      %v376 = vunpack.c.l.bf16 %v369
      %v377 = vunpack.c.h.bf16 %v369
      %v378 = vmax.f32 %v370, 0.0
      %v379 = vmax.f32 %v371, 0.0
      %v380 = vmax.f32 %v372, 0.0
      %v381 = vmax.f32 %v373, 0.0
      %v382 = vmax.f32 %v374, 0.0
      %v383 = vmax.f32 %v375, 0.0
      %v384 = vmax.f32 %v376, 0.0
      %v385 = vmax.f32 %v377, 0.0
      %v386 = vpack.c.bf16 %v380, %v378
      %v387 = vpack.c.bf16 %v381, %v379
      %v388 = vpack.c.bf16 %v384, %v382
      %v389 = vpack.c.bf16 %v385, %v383
      %v390 = vld [vmem:[%s338] sm:$0xf]
      %v391 = vld [vmem:[%s338 + $0x4] sm:$0xf]
      %v392 = vld [vmem:[%s338 + $0x8] sm:$0xf]
      %v393 = vld [vmem:[%s338 + $0xc] sm:$0xf]
      %v394 = vld [vmem:[%s338 + $0x10] sm:$0xf]
      %v395 = vld [vmem:[%s338 + $0x14] sm:$0xf]
      %v396 = vld [vmem:[%s338 + $0x18] sm:$0xf]
      %v397 = vld [vmem:[%s338 + $0x1c] sm:$0xf]
      %v398 = vld [vmem:[%s338 + $0x20] sm:$0xf]
      %v399 = vld [vmem:[%s338 + $0x24] sm:$0xf]
      %v400 = vld [vmem:[%s338 + $0x28] sm:$0xf]
      %v401 = vld [vmem:[%s338 + $0x2c] sm:$0xf]
      %v402 = vld [vmem:[%s338 + $0x30] sm:$0xf]
      %v403 = vld [vmem:[%s338 + $0x34] sm:$0xf]
      %v404 = vld [vmem:[%s338 + $0x38] sm:$0xf]
      %v405 = vld [vmem:[%s338 + $0x3c] sm:$0xf]
      %v406 = vld [vmem:[%s338 + $0x40] sm:$0xf]
      %v407 = vld [vmem:[%s338 + $0x44] sm:$0xf]
      %v408 = vld [vmem:[%s338 + $0x48] sm:$0xf]
      %v409 = vld [vmem:[%s338 + $0x4c] sm:$0xf]
      %v410 = vld [vmem:[%s338 + $0x50] sm:$0xf]
      %v411 = vld [vmem:[%s338 + $0x54] sm:$0xf]
      %v412 = vld [vmem:[%s338 + $0x58] sm:$0xf]
      %v413 = vld [vmem:[%s338 + $0x5c] sm:$0xf]
      %v414 = vld [vmem:[%s338 + $0x60] sm:$0xf]
      %v415 = vld [vmem:[%s338 + $0x64] sm:$0xf]
      %v416 = vld [vmem:[%s338 + $0x68] sm:$0xf]
      %v417 = vld [vmem:[%s338 + $0x6c] sm:$0xf]
      %v418 = vld [vmem:[%s338 + $0x70] sm:$0xf]
      %v419 = vld [vmem:[%s338 + $0x74] sm:$0xf]
      %v420 = vld [vmem:[%s338 + $0x78] sm:$0xf]
      %v421 = vld [vmem:[%s338 + $0x7c] sm:$0xf]
      %v422 = vld [vmem:[%s342] sm:$0x1]
      %v424 = vperm.slane %v422, 0
      %v458 = vunpack.c.l.b16 %v390
      %v459 = vunpack.c.l.b16 %v391
      %v460 = vunpack.c.l.b16 %v392
      %v461 = vunpack.c.l.b16 %v393
      %v462 = vunpack.c.l.b16 %v394
      %v463 = vunpack.c.l.b16 %v395
      %v464 = vunpack.c.l.b16 %v396
      %v465 = vunpack.c.l.b16 %v397
      %v466 = vunpack.c.l.b16 %v398
      %v467 = vunpack.c.l.b16 %v399
      %v468 = vunpack.c.l.b16 %v400
      %v469 = vunpack.c.l.b16 %v401
      %v470 = vunpack.c.l.b16 %v402
      %v471 = vunpack.c.l.b16 %v403
      %v472 = vunpack.c.l.b16 %v404
      %v473 = vunpack.c.l.b16 %v405
      %v474 = vunpack.c.l.b16 %v406
      %v475 = vunpack.c.l.b16 %v407
      %v476 = vunpack.c.l.b16 %v408
      %v477 = vunpack.c.l.b16 %v409
      %v478 = vunpack.c.l.b16 %v410
      %v479 = vunpack.c.l.b16 %v411
      %v480 = vunpack.c.l.b16 %v412
      %v481 = vunpack.c.l.b16 %v413
      %v482 = vunpack.c.l.b16 %v414
      %v483 = vunpack.c.l.b16 %v415
      %v484 = vunpack.c.l.b16 %v416
      %v485 = vunpack.c.l.b16 %v417
      %v486 = vunpack.c.l.b16 %v418
      %v487 = vunpack.c.l.b16 %v419
      %v488 = vunpack.c.l.b16 %v420
      %v489 = vunpack.c.l.b16 %v421
      %v490 = vpack.c.b16 %v459, %v458
      %v491 = vpack.c.b16 %v461, %v460
      %v492 = vpack.c.b16 %v463, %v462
      %v493 = vpack.c.b16 %v465, %v464
      %v494 = vpack.c.b16 %v467, %v466
      %v495 = vpack.c.b16 %v469, %v468
      %v496 = vpack.c.b16 %v471, %v470
      %v497 = vpack.c.b16 %v473, %v472
      %v498 = vpack.c.b16 %v475, %v474
      %v499 = vpack.c.b16 %v477, %v476
      %v500 = vpack.c.b16 %v479, %v478
      %v501 = vpack.c.b16 %v481, %v480
      %v502 = vpack.c.b16 %v483, %v482
      %v503 = vpack.c.b16 %v485, %v484
      %v504 = vpack.c.b16 %v487, %v486
      %v505 = vpack.c.b16 %v489, %v488
      %522 = vmatpush.bf16.msra.mxu0 %v497
      %523 = vmatpush.bf16.msra.mxu0 %v496
      %524 = vmatpush.bf16.msra.mxu0 %v495
      %525 = vmatpush.bf16.msra.mxu0 %v494
      %526 = vmatpush.bf16.msra.mxu0 %v493
      %527 = vmatpush.bf16.msra.mxu0 %v492
      %528 = vmatpush.bf16.msra.mxu0 %v491
      %529 = vmatpush.bf16.msra.mxu0 %v490
      %530 = vmatmul.bf16.gmra.mxu0 %v386
      %v531 = vpop.f32.mrf.mxu0
      %v532 = vadd.f32 %v424, %v531
      %v533 = vpop.f32.mrf.mxu0
      %v534 = vadd.f32 %v424, %v533
      %535 = vmatmul.bf16.gmra.mxu0 %v388
      %v536 = vpop.f32.mrf.mxu0
      %v537 = vadd.f32 %v424, %v536
      %v538 = vpop.f32.mrf.mxu0
      %v539 = vadd.f32 %v424, %v538
      %540 = vdwg.mxu0
      %541 = vmatpush.bf16.msra.mxu0 %v505
      %542 = vmatpush.bf16.msra.mxu0 %v504
      %543 = vmatpush.bf16.msra.mxu0 %v503
      %544 = vmatpush.bf16.msra.mxu0 %v502
      %545 = vmatpush.bf16.msra.mxu0 %v501
      %546 = vmatpush.bf16.msra.mxu0 %v500
      %547 = vmatpush.bf16.msra.mxu0 %v499
      %548 = vmatpush.bf16.msra.mxu0 %v498
      %549 = vmatmul.bf16.gmra.mxu0 %v387
      %v550 = vpop.f32.mrf.mxu0
      %v551 = vadd.f32 %v532, %v550
      %v552 = vpop.f32.mrf.mxu0
      %v553 = vadd.f32 %v534, %v552
      %554 = vmatmul.bf16.gmra.mxu0 %v389
      %v555 = vpop.f32.mrf.mxu0
      %v556 = vadd.f32 %v537, %v555
      %v557 = vpop.f32.mrf.mxu0
      %v558 = vadd.f32 %v539, %v557
      %559 = vdwg.mxu0
      %v560 = vadd.f32 %v551, %v553
      %v561 = vadd.f32 %v560, %v556
      %v562 = vadd.f32 %v561, %v558
      %v563 = vrot.slane %v562, 4
      %v564 = vadd.f32 %v562, %v563
      %v565 = vrot.slane %v564, 2
      %v566 = vadd.f32 %v564, %v565
      %v567 = vrot.slane %v566, 1
      %v568 = vadd.f32 %v566, %v567
      %569 = vst [vmem:[%s365] sm:$0x1] %v568
      %v570 = vmul.f32 %v551, %v551
      %v571 = vmul.f32 %v553, %v553
      %v572 = vmul.f32 %v556, %v556
      %v573 = vmul.f32 %v558, %v558
      %v574 = vadd.f32 %v570, %v571
      %v575 = vadd.f32 %v574, %v572
      %v576 = vadd.f32 %v575, %v573
      %v577 = vrot.slane %v576, 4
      %v578 = vadd.f32 %v576, %v577
      %v579 = vrot.slane %v578, 2
      %v580 = vadd.f32 %v578, %v579
      %v581 = vrot.slane %v580, 1
      %v582 = vadd.f32 %v580, %v581
      %583 = vst [vmem:[%s365 + $0x1] sm:$0x1] %v582
      %v584 = vpack.c.bf16 %v551, %v551
      %v585 = vpack.c.bf16 %v553, %v553
      %v586 = vpack.c.bf16 %v556, %v556
      %v587 = vpack.c.bf16 %v558, %v558
      %588 = vst [vmem:[%s354] sm:$0xf] %v584
      %589 = vst [vmem:[%s354 + $0x4] sm:$0xf] %v585
      %590 = vst [vmem:[%s354 + $0x8] sm:$0xf] %v586
      %591 = vst [vmem:[%s354 + $0xc] sm:$0xf] %v587
      %s592 = smul.u32 4, %s23
      %p593 = scmp.lt.s32.totalorder %s22, 3
      %s594 = scalar_select %p593, %s22, 3
      %p595 = scmp.lt.s32.totalorder %s592, 3
      %s596 = scalar_select %p595, %s592, 3
      %p597 = scmp.lt.s32.totalorder %s24, 0
      %s598 = scalar_select %p597, %s24, 0
      %s599 = sadd.s32 %s598, %s596
      %s600 = smul.addr %s594, 4
      %s601 = sadd.s32 %s599, %s600
      %s602 = smul.addr %s601, 4
      %s603 = scalar_lea.vmem %s3, %s602
      %p604 = scmp.lt.s32.totalorder %s22, 3
      %s605 = scalar_select %p604, %s22, 3
      %p606 = scmp.lt.s32.totalorder %s23, 0
      %s607 = scalar_select %p606, %s23, 0
      %p608 = scmp.lt.s32.totalorder %s24, 0
      %s609 = scalar_select %p608, %s24, 0
      %s610 = sadd.s32 %s609, %s607
      %s611 = sadd.s32 %s610, %s605
      %s612 = smul.addr %s611, 8
      %s613 = scalar_lea.vmem %s4, %s612
      // Predicated region
      $region33: #{unet_generator_forward.29} parent=31 // pred_check
        %p614 = pneg %p150
      $region34: #{unet_generator_forward.29} parent=31 // pred_check_branch
        %616 = sbr.rel (%p614) target = $region36
      $region35: #{unet_generator_forward.29} parent=31 // pred_region
        %s617 = smul.u32 4, %s23
      $region36: #{unet_generator_forward.29} parent=31 // pred_fallthru
        _
      // Predicated region
      $region37: #{unet_generator_forward.29} parent=31 // pred_check
        %p618 = pneg %p180
      $region38: #{unet_generator_forward.29} parent=31 // pred_check_branch
        %620 = sbr.rel (%p618) target = $region40
      $region39: #{unet_generator_forward.29} parent=31 // pred_region
        _
      $region40: #{unet_generator_forward.29} parent=31 // pred_fallthru
        _
    $region32: #{unet_generator_forward.29} parent=5 // pred_fallthru
      _
    %p621 = scmp.le.s32.totalorder 2, %s11
    // Predicated region
    $region41: #{unet_generator_forward.29} parent=5 // pred_check
      %p622 = pneg %p621
    $region42: #{unet_generator_forward.29} parent=5 // pred_check_branch
      %624 = sbr.rel (%p622) target = $region44
    $region43: #{unet_generator_forward.29} parent=5 // pred_region
      %s625 = ssub.s32 %s11, 2
      // Predicated region
      $region45: #{unet_generator_forward.29} parent=43 // pred_check
        %p626 = pneg %p156
      $region46: #{unet_generator_forward.29} parent=43 // pred_check_branch
        %628 = sbr.rel (%p626) target = $region48
      $region47: #{unet_generator_forward.29} parent=43 // pred_region
        %s629 = smul.u32 4, %s27
        %p630 = scmp.lt.s32.totalorder %s26, 3
        %s631 = scalar_select %p630, %s26, 3
        %p632 = scmp.lt.s32.totalorder %s629, 3
        %s633 = scalar_select %p632, %s629, 3
        %p634 = scmp.lt.s32.totalorder %s28, 0
        %s635 = scalar_select %p634, %s28, 0
        %s636 = sadd.s32 %s635, %s633
        %s637 = smul.addr %s631, 4
        %s638 = sadd.s32 %s636, %s637
        %s639 = smul.addr %s638, 4
        %s640 = scalar_lea.vmem %s3, %s639
      $region48: #{unet_generator_forward.29} parent=43 // pred_fallthru
        _
      // Predicated region
      $region49: #{unet_generator_forward.29} parent=43 // pred_check
        %p641 = pneg %p186
      $region50: #{unet_generator_forward.29} parent=43 // pred_check_branch
        %643 = sbr.rel (%p641) target = $region52
      $region51: #{unet_generator_forward.29} parent=43 // pred_region
        %p644 = scmp.lt.s32.totalorder %s26, 3
        %s645 = scalar_select %p644, %s26, 3
        %p646 = scmp.lt.s32.totalorder %s27, 0
        %s647 = scalar_select %p646, %s27, 0
        %p648 = scmp.lt.s32.totalorder %s28, 0
        %s649 = scalar_select %p648, %s28, 0
        %s650 = sadd.s32 %s649, %s647
        %s651 = sadd.s32 %s650, %s645
        %s652 = smul.addr %s651, 8
        %s653 = scalar_lea.vmem %s4, %s652
      $region52: #{unet_generator_forward.29} parent=43 // pred_fallthru
        _
    $region44: #{unet_generator_forward.29} parent=5 // pred_fallthru
      _
  $region6: #{unet_generator_forward.29} parent=0 // loop_footer
    %s15 = sadd.s32 1, %s11
  $region7: #{unet_generator_forward.29} parent=0 // loop_footer_branch
    %10 = sbr.rel target = $region3
  $region8: #{unet_generator_forward.29} parent=0 // loop_exit
    _

// kernel: tile.133
$region0: #{tile.133}
  #allocation0 [shape = 's32[1]{0}', space=sflag, size = 0x4, scoped, tag = 'scoped memory for tile.133']
  %s0 = inlined_call_operand.vmem [shape: f32[8], index: 0, kind: input, shape index: {}]
  %s1 = inlined_call_operand.vmem [shape: f32[16,8], index: 1, kind: output, shape index: {}]
  // Predicated region
  $region2: #{tile.133} parent=0 // pred_check
    _
  $region3: #{tile.133} parent=0 // pred_check_branch
    %3 = sbr.rel (0) target = $region5
  $region4: #{tile.133} parent=0 // pred_region
    _
  $region5: #{tile.133} parent=0 // pred_fallthru
    _
  %v4 = vld [vmem:[%s0] ss:$0 sm:$0xff]
  %5 = vst [vmem:[%s1] sm:$0xff] %v4
  %s6 = scalar_lea.vmem %s1, 8
  %7 = vst [vmem:[%s6] sm:$0xff] %v4

// kernel: tile.134
$region0: #{tile.134}
  %s0 = inlined_call_operand.vmem [shape: f32[16,8], index: 0, kind: input, shape index: {}]
  %s1 = inlined_call_operand.vmem [shape: f32[1,128], index: 1, kind: output, shape index: {}]
  $region1: #{tile.134} parent=0
    #allocation0 [shape = 'u8[4096]{0}', space=vmem, size = 0x1000, scoped, tag = 'scoped mem for output reshape']
    %v2 = vld [vmem:[%s0] sm:$0x1]
    %vm3 = vcmask 64512
    %4 = vst.msk [vmem:[#allocation0] sm:$0x1] %vm3, %v2
    %s5 = scalar_lea.vmem %s0, 15
    %v6 = vld [vmem:[%s5] sm:$0x1]
    %7 = vrot.lane.b32.xlu0 %v6, 120
    %v8 = vpop.permute.xlu0 %7
    %vm9 = vcmask 1048512
    %10 = vst.msk [vmem:[#allocation0] sm:$0x1] %vm9, %v8
    %s11 = scalar_lea.vmem %s0, 14
    %v12 = vld [vmem:[%s11] sm:$0x1]
    %13 = vrot.lane.b32.xlu0 %v12, 112
    %v14 = vpop.permute.xlu0 %13
    %vm15 = vcmask 982912
    %16 = vst.msk [vmem:[#allocation0] sm:$0x1] %vm15, %v14
    %s17 = scalar_lea.vmem %s0, 13
    %v18 = vld [vmem:[%s17] sm:$0x1]
    %19 = vrot.lane.b32.xlu0 %v18, 104
    %v20 = vpop.permute.xlu0 %19
    %vm21 = vcmask 917312
    %22 = vst.msk [vmem:[#allocation0] sm:$0x1] %vm21, %v20
    %s23 = scalar_lea.vmem %s0, 12
    %v24 = vld [vmem:[%s23] sm:$0x1]
    %25 = vrot.lane.b32.xlu0 %v24, 96
    %v26 = vpop.permute.xlu0 %25
    %vm27 = vcmask 851712
    %28 = vst.msk [vmem:[#allocation0] sm:$0x1] %vm27, %v26
    %s29 = scalar_lea.vmem %s0, 11
    %v30 = vld [vmem:[%s29] sm:$0x1]
    %31 = vrot.lane.b32.xlu0 %v30, 88
    %v32 = vpop.permute.xlu0 %31
    %vm33 = vcmask 786112
    %34 = vst.msk [vmem:[#allocation0] sm:$0x1] %vm33, %v32
    %s35 = scalar_lea.vmem %s0, 10
    %v36 = vld [vmem:[%s35] sm:$0x1]
    %37 = vrot.lane.b32.xlu0 %v36, 80
    %v38 = vpop.permute.xlu0 %37
    %vm39 = vcmask 720512
    %40 = vst.msk [vmem:[#allocation0] sm:$0x1] %vm39, %v38
    %s41 = scalar_lea.vmem %s0, 9
    %v42 = vld [vmem:[%s41] sm:$0x1]
    %43 = vrot.lane.b32.xlu0 %v42, 72
    %v44 = vpop.permute.xlu0 %43
    %vm45 = vcmask 654912
    %46 = vst.msk [vmem:[#allocation0] sm:$0x1] %vm45, %v44
    %s47 = scalar_lea.vmem %s0, 8
    %v48 = vld [vmem:[%s47] sm:$0x1]
    %49 = vrot.lane.b32.xlu0 %v48, 64
    %v50 = vpop.permute.xlu0 %49
    %vm51 = vcmask 589312
    %52 = vst.msk [vmem:[#allocation0] sm:$0x1] %vm51, %v50
    %s53 = scalar_lea.vmem %s0, 7
    %v54 = vld [vmem:[%s53] sm:$0x1]
    %55 = vrot.lane.b32.xlu0 %v54, 56
    %v56 = vpop.permute.xlu0 %55
    %vm57 = vcmask 523712
    %58 = vst.msk [vmem:[#allocation0] sm:$0x1] %vm57, %v56
    %s59 = scalar_lea.vmem %s0, 6
    %v60 = vld [vmem:[%s59] sm:$0x1]
    %61 = vrot.lane.b32.xlu0 %v60, 48
    %v62 = vpop.permute.xlu0 %61
    %vm63 = vcmask 458112
    %64 = vst.msk [vmem:[#allocation0] sm:$0x1] %vm63, %v62
    %s65 = scalar_lea.vmem %s0, 5
    %v66 = vld [vmem:[%s65] sm:$0x1]
    %67 = vrot.lane.b32.xlu0 %v66, 40
    %v68 = vpop.permute.xlu0 %67
    %vm69 = vcmask 392512
    %70 = vst.msk [vmem:[#allocation0] sm:$0x1] %vm69, %v68
    %s71 = scalar_lea.vmem %s0, 4
    %v72 = vld [vmem:[%s71] sm:$0x1]
    %73 = vrot.lane.b32.xlu0 %v72, 32
    %v74 = vpop.permute.xlu0 %73
    %vm75 = vcmask 326912
    %76 = vst.msk [vmem:[#allocation0] sm:$0x1] %vm75, %v74
    %s77 = scalar_lea.vmem %s0, 3
    %v78 = vld [vmem:[%s77] sm:$0x1]
    %79 = vrot.lane.b32.xlu0 %v78, 24
    %v80 = vpop.permute.xlu0 %79
    %vm81 = vcmask 261312
    %82 = vst.msk [vmem:[#allocation0] sm:$0x1] %vm81, %v80
    %s83 = scalar_lea.vmem %s0, 2
    %v84 = vld [vmem:[%s83] sm:$0x1]
    %85 = vrot.lane.b32.xlu0 %v84, 16
    %v86 = vpop.permute.xlu0 %85
    %vm87 = vcmask 195712
    %88 = vst.msk [vmem:[#allocation0] sm:$0x1] %vm87, %v86
    %s89 = scalar_lea.vmem %s0, 1
    %v90 = vld [vmem:[%s89] sm:$0x1]
    %91 = vrot.lane.b32.xlu0 %v90, 8
    %v92 = vpop.permute.xlu0 %91
    %vm93 = vcmask 130112
    %94 = vst.msk [vmem:[#allocation0] sm:$0x1] %vm93, %v92
    %s96 = ssub.s32 2, 1
    %v97 = vld [vmem:[#allocation0] sm:%s96]
    %s99 = ssub.s32 2, 1
    %100 = vst [vmem:[%s1] sm:%s99] %v97

// kernel: unet_generator_forward.31
$region0: #{unet_generator_forward.31}
  #allocation0 [shape = 'u32[]', space=smem, size = 0x4, offset = 0x4, fixed_abs, tag = 'smem constant byte address 0x4 - core index']
  #allocation1 [shape = 'u32[72,128]{1,0:T(1,128)}', space=vmem, size = 0x9000, scoped, tag = 'internal scratch']
  %s0 = inlined_call_operand.vmem [shape: bf16[4,128,128], index: 0, kind: input, shape index: {}]
  %s1 = inlined_call_operand.vmem [shape: bf16[4,128,128], index: 1, kind: input, shape index: {}]
  %s2 = inlined_call_operand.vmem [shape: f32[1,128], index: 2, kind: input, shape index: {}]
  %s3 = inlined_call_operand.vmem [shape: bf16[4,128,128], index: 3, kind: output, shape index: {0}]
  %s4 = inlined_call_operand.vmem [shape: f32[4,1,8,128], index: 4, kind: output, shape index: {1}]
  %5 = xla_tuple %s3, %s4
  %s6 = sld [smem:[#allocation0]]
  $region53: #{unet_generator_forward.31} parent=0
    _
  %s8 = ssub.s32 1, %s6
  %s9 = scalar_select 0, %s8, %s6
  loop: start=0, step=1, limit=6
  $region2: #{unet_generator_forward.31} parent=0 // loop_pre_header
    _
  $region3: #{unet_generator_forward.31} parent=0 // loop_header
    %s11 = sphi 0, %s15
    %p12 = scmp.ge.s32.totalorder %s11, 6
    %s18 = sphi 0, %s44
    %s19 = sphi 0, %s40
    %s20 = sphi 0, %s36
    %s21 = sphi 0, %s32
    %s22 = sphi 0, %s18
    %s23 = sphi 0, %s19
    %s24 = sphi 0, %s20
    %s25 = sphi 0, %s21
    %s26 = sphi 0, %s22
    %s27 = sphi 0, %s23
    %s28 = sphi 0, %s24
    %s29 = sphi 0, %s25
    %s51 = sphi 0, %s53
    %s54 = sphi 0, %s51
    %s55 = sphi 0, %s54
    %s71 = sphi 0, %s55
    %s81 = sphi 0, %s83
    %s84 = sphi 0, %s81
    %s85 = sphi 0, %s84
    %s101 = sphi 0, %s85
    %s107 = sphi 0, %s109
    %s110 = sphi 0, %s107
    %s111 = sphi 0, %s110
    %s127 = sphi 0, %s111
    %s137 = sphi 0, %s139
    %s140 = sphi 0, %s137
    %s141 = sphi 0, %s140
    %s157 = sphi 0, %s141
    %s167 = sphi 0, %s169
    %s170 = sphi 0, %s167
    %s171 = sphi 0, %s170
    %s187 = sphi 0, %s171
  $region4: #{unet_generator_forward.31} parent=0 // loop_header_branch
    %14 = sbr.rel (%p12) target = $region8
  $region5: #{unet_generator_forward.31} parent=0 // loop_body
    %s16 = ssub.s32 %s11, 1
    %s17 = ssub.s32 %s11, 2
    %s30 = sadd.s32 1, %s21
    %p31 = scmp.ge.s32.totalorder %s30, 1
    %s32 = scalar_select %p31, 0, %s30
    %s33 = sadd.s32 1, %s20
    %s34 = scalar_select %p31, %s33, %s20
    %p35 = scmp.ge.s32.totalorder %s34, 1
    %s36 = scalar_select %p35, 0, %s34
    %s37 = sadd.s32 1, %s19
    %s38 = scalar_select %p35, %s37, %s19
    %p39 = scmp.ge.s32.totalorder %s38, 1
    %s40 = scalar_select %p39, 0, %s38
    %s41 = sadd.s32 1, %s18
    %s42 = scalar_select %p39, %s41, %s18
    %p43 = scmp.ge.s32.totalorder %s42, 4
    %s44 = scalar_select %p43, 0, %s42
    %s45 = ssub.s32 %s18, %s44
    %s46 = ssub.s32 %s19, %s40
    %s47 = sor.u32 %s45, %s46
    %s48 = ssub.s32 %s21, %s32
    %s49 = sor.u32 %s47, %s48
    %p50 = scmp.eq.s32.totalorder %s49, 0
    %s52 = sadd.s32 %s51, 1
    %s53 = scalar_select %p50, %s51, %s52
    %p56 = pneg %p50
    %p57 = scmp.eq.s32.totalorder %s11, 3
    %p58 = por %p56, %p57
    %p59 = scmp.ne.s32.totalorder %s51, %s54
    %p60 = scmp.eq.s32.totalorder %s11, 0
    %p61 = por %p59, %p60
    %p62 = scmp.ne.s32.totalorder %s51, %s54
    %p63 = scmp.eq.s32.totalorder %s16, 3
    %p64 = por %p62, %p63
    %p65 = scmp.ne.s32.totalorder %s54, %s55
    %p66 = scmp.eq.s32.totalorder %s16, 0
    %p67 = por %p65, %p66
    %p68 = scmp.ne.s32.totalorder %s54, %s55
    %p69 = scmp.eq.s32.totalorder %s17, 3
    %p70 = por %p68, %p69
    %p72 = scmp.ne.s32.totalorder %s55, %s71
    %p73 = scmp.eq.s32.totalorder %s17, 0
    %p74 = por %p72, %p73
    %s75 = ssub.s32 %s18, %s44
    %s76 = ssub.s32 %s21, %s32
    %s77 = sor.u32 %s75, %s76
    %s78 = ssub.s32 %s20, %s36
    %s79 = sor.u32 %s77, %s78
    %p80 = scmp.eq.s32.totalorder %s79, 0
    %s82 = sadd.s32 %s81, 1
    %s83 = scalar_select %p80, %s81, %s82
    %p86 = pneg %p80
    %p87 = scmp.eq.s32.totalorder %s11, 3
    %p88 = por %p86, %p87
    %p89 = scmp.ne.s32.totalorder %s81, %s84
    %p90 = scmp.eq.s32.totalorder %s11, 0
    %p91 = por %p89, %p90
    %p92 = scmp.ne.s32.totalorder %s81, %s84
    %p93 = scmp.eq.s32.totalorder %s16, 3
    %p94 = por %p92, %p93
    %p95 = scmp.ne.s32.totalorder %s84, %s85
    %p96 = scmp.eq.s32.totalorder %s16, 0
    %p97 = por %p95, %p96
    %p98 = scmp.ne.s32.totalorder %s84, %s85
    %p99 = scmp.eq.s32.totalorder %s17, 3
    %p100 = por %p98, %p99
    %p102 = scmp.ne.s32.totalorder %s85, %s101
    %p103 = scmp.eq.s32.totalorder %s17, 0
    %p104 = por %p102, %p103
    %s105 = ssub.s32 %s20, %s36
    %p106 = scmp.eq.s32.totalorder %s105, 0
    %s108 = sadd.s32 %s107, 1
    %s109 = scalar_select %p106, %s107, %s108
    %p112 = pneg %p106
    %p113 = scmp.eq.s32.totalorder %s11, 3
    %p114 = por %p112, %p113
    %p115 = scmp.ne.s32.totalorder %s107, %s110
    %p116 = scmp.eq.s32.totalorder %s11, 0
    %p117 = por %p115, %p116
    %p118 = scmp.ne.s32.totalorder %s107, %s110
    %p119 = scmp.eq.s32.totalorder %s16, 3
    %p120 = por %p118, %p119
    %p121 = scmp.ne.s32.totalorder %s110, %s111
    %p122 = scmp.eq.s32.totalorder %s16, 0
    %p123 = por %p121, %p122
    %p124 = scmp.ne.s32.totalorder %s110, %s111
    %p125 = scmp.eq.s32.totalorder %s17, 3
    %p126 = por %p124, %p125
    %p128 = scmp.ne.s32.totalorder %s111, %s127
    %p129 = scmp.eq.s32.totalorder %s17, 0
    %p130 = por %p128, %p129
    %s131 = ssub.s32 %s18, %s44
    %s132 = ssub.s32 %s19, %s40
    %s133 = sor.u32 %s131, %s132
    %s134 = ssub.s32 %s20, %s36
    %s135 = sor.u32 %s133, %s134
    %p136 = scmp.eq.s32.totalorder %s135, 0
    %s138 = sadd.s32 %s137, 1
    %s139 = scalar_select %p136, %s137, %s138
    %p142 = pneg %p136
    %p143 = scmp.eq.s32.totalorder %s11, 3
    %p144 = por %p142, %p143
    %p145 = scmp.ne.s32.totalorder %s137, %s140
    %p146 = scmp.eq.s32.totalorder %s11, 0
    %p147 = por %p145, %p146
    %p148 = scmp.ne.s32.totalorder %s137, %s140
    %p149 = scmp.eq.s32.totalorder %s16, 3
    %p150 = por %p148, %p149
    %p151 = scmp.ne.s32.totalorder %s140, %s141
    %p152 = scmp.eq.s32.totalorder %s16, 0
    %p153 = por %p151, %p152
    %p154 = scmp.ne.s32.totalorder %s140, %s141
    %p155 = scmp.eq.s32.totalorder %s17, 3
    %p156 = por %p154, %p155
    %p158 = scmp.ne.s32.totalorder %s141, %s157
    %p159 = scmp.eq.s32.totalorder %s17, 0
    %p160 = por %p158, %p159
    %s161 = ssub.s32 %s18, %s44
    %s162 = ssub.s32 %s19, %s40
    %s163 = sor.u32 %s161, %s162
    %s164 = ssub.s32 %s20, %s36
    %s165 = sor.u32 %s163, %s164
    %p166 = scmp.eq.s32.totalorder %s165, 0
    %s168 = sadd.s32 %s167, 1
    %s169 = scalar_select %p166, %s167, %s168
    %p172 = pneg %p166
    %p173 = scmp.eq.s32.totalorder %s11, 3
    %p174 = por %p172, %p173
    %p175 = scmp.ne.s32.totalorder %s167, %s170
    %p176 = scmp.eq.s32.totalorder %s11, 0
    %p177 = por %p175, %p176
    %p178 = scmp.ne.s32.totalorder %s167, %s170
    %p179 = scmp.eq.s32.totalorder %s16, 3
    %p180 = por %p178, %p179
    %p181 = scmp.ne.s32.totalorder %s170, %s171
    %p182 = scmp.eq.s32.totalorder %s16, 0
    %p183 = por %p181, %p182
    %p184 = scmp.ne.s32.totalorder %s170, %s171
    %p185 = scmp.eq.s32.totalorder %s17, 3
    %p186 = por %p184, %p185
    %p188 = scmp.ne.s32.totalorder %s171, %s187
    %p189 = scmp.eq.s32.totalorder %s17, 0
    %p190 = por %p188, %p189
    %p191 = scmp.le.s32.totalorder 1, %s11
    %p192 = scmp.lt.s32.totalorder %s11, 5
    %p193 = pnand %p191, %p192
    %p194 = pneg %p193
    // Predicated region
    $region9: #{unet_generator_forward.31} parent=5 // pred_check
      _
    $region10: #{unet_generator_forward.31} parent=5 // pred_check_branch
      %196 = sbr.rel (%p193) target = $region12
    $region11: #{unet_generator_forward.31} parent=5 // pred_region
      %s197 = ssub.s32 %s11, 1
      // Predicated region
      $region13: #{unet_generator_forward.31} parent=11 // pred_check
        %p198 = pneg %p123
      $region14: #{unet_generator_forward.31} parent=11 // pred_check_branch
        %200 = sbr.rel (%p198) target = $region16
      $region15: #{unet_generator_forward.31} parent=11 // pred_region
        %p201 = scmp.lt.s32.totalorder %s24, 0
        %s202 = scalar_select %p201, %s24, 0
        %s203 = scalar_lea.vmem %s2, %s202
      $region16: #{unet_generator_forward.31} parent=11 // pred_fallthru
        _
    $region12: #{unet_generator_forward.31} parent=5 // pred_fallthru
      _
    %p204 = scmp.lt.s32.totalorder %s11, 4
    // Predicated region
    $region17: #{unet_generator_forward.31} parent=5 // pred_check
      %p205 = pneg %p204
    $region18: #{unet_generator_forward.31} parent=5 // pred_check_branch
      %207 = sbr.rel (%p205) target = $region20
    $region19: #{unet_generator_forward.31} parent=5 // pred_region
      // Predicated region
      $region21: #{unet_generator_forward.31} parent=19 // pred_check
        %p208 = pneg %p61
      $region22: #{unet_generator_forward.31} parent=19 // pred_check_branch
        %210 = sbr.rel (%p208) target = $region24
      $region23: #{unet_generator_forward.31} parent=19 // pred_region
        %s211 = smul.u32 16, %s19
        %p212 = scmp.lt.s32.totalorder %s18, 3
        %s213 = scalar_select %p212, %s18, 3
        %p214 = scmp.lt.s32.totalorder %s211, 15
        %s215 = scalar_select %p214, %s211, 15
        %p216 = scmp.lt.s32.totalorder %s21, 0
        %s217 = scalar_select %p216, %s21, 0
        %s218 = sadd.s32 %s217, %s215
        %s219 = smul.addr %s213, 16
        %s220 = sadd.s32 %s218, %s219
        %s221 = smul.addr %s220, 4
        %s222 = scalar_lea.vmem %s0, %s221
        %s223 = smul.u32 16, %s19
      $region24: #{unet_generator_forward.31} parent=19 // pred_fallthru
        _
      // Predicated region
      $region25: #{unet_generator_forward.31} parent=19 // pred_check
        %p224 = pneg %p91
      $region26: #{unet_generator_forward.31} parent=19 // pred_check_branch
        %226 = sbr.rel (%p224) target = $region28
      $region27: #{unet_generator_forward.31} parent=19 // pred_region
        %s227 = smul.u32 16, %s21
        %p228 = scmp.lt.s32.totalorder %s18, 3
        %s229 = scalar_select %p228, %s18, 3
        %p230 = scmp.lt.s32.totalorder %s227, 15
        %s231 = scalar_select %p230, %s227, 15
        %p232 = scmp.lt.s32.totalorder %s20, 0
        %s233 = scalar_select %p232, %s20, 0
        %s234 = sadd.s32 %s233, %s231
        %s235 = smul.addr %s229, 16
        %s236 = sadd.s32 %s234, %s235
        %s237 = smul.addr %s236, 4
        %s238 = scalar_lea.vmem %s1, %s237
        %s239 = smul.u32 16, %s21
      $region28: #{unet_generator_forward.31} parent=19 // pred_fallthru
        _
    $region20: #{unet_generator_forward.31} parent=5 // pred_fallthru
      _
    %p240 = scmp.le.s32.totalorder 1, %s11
    %p241 = scmp.lt.s32.totalorder %s11, 5
    %p242 = pnand %p240, %p241
    %p243 = pneg %p242
    // Predicated region
    $region29: #{unet_generator_forward.31} parent=5 // pred_check
      _
    $region30: #{unet_generator_forward.31} parent=5 // pred_check_branch
      %245 = sbr.rel (%p242) target = $region32
    $region31: #{unet_generator_forward.31} parent=5 // pred_region
      %s246 = ssub.s32 %s11, 1
      %s247 = smul.u32 16, %s23
      %p248 = scmp.lt.s32.totalorder %s22, 3
      %s249 = scalar_select %p248, %s22, 3
      %p250 = scmp.lt.s32.totalorder %s247, 15
      %s251 = scalar_select %p250, %s247, 15
      %p252 = scmp.lt.s32.totalorder %s25, 0
      %s253 = scalar_select %p252, %s25, 0
      %s254 = sadd.s32 %s253, %s251
      %s255 = smul.addr %s249, 16
      %s256 = sadd.s32 %s254, %s255
      %s257 = smul.addr %s256, 4
      %s258 = scalar_lea.vmem %s0, %s257
      %p259 = pneg %p67
      %p260 = pneg %p64
      %s261 = smul.u32 16, %s25
      %p262 = scmp.lt.s32.totalorder %s22, 3
      %s263 = scalar_select %p262, %s22, 3
      %p264 = scmp.lt.s32.totalorder %s261, 15
      %s265 = scalar_select %p264, %s261, 15
      %p266 = scmp.lt.s32.totalorder %s24, 0
      %s267 = scalar_select %p266, %s24, 0
      %s268 = sadd.s32 %s267, %s265
      %s269 = smul.addr %s263, 16
      %s270 = sadd.s32 %s268, %s269
      %s271 = smul.addr %s270, 4
      %s272 = scalar_lea.vmem %s1, %s271
      %p273 = pneg %p97
      %p274 = pneg %p94
      %p275 = scmp.lt.s32.totalorder %s24, 0
      %s276 = scalar_select %p275, %s24, 0
      %s277 = scalar_lea.vmem %s2, %s276
      %p278 = pneg %p123
      %p279 = pneg %p120
      %p280 = pneg %p153
      %p281 = pneg %p150
      %s282 = smul.u32 16, %s23
      %p283 = scmp.lt.s32.totalorder %s22, 3
      %s284 = scalar_select %p283, %s22, 3
      %p285 = scmp.lt.s32.totalorder %s282, 15
      %s286 = scalar_select %p285, %s282, 15
      %p287 = scmp.lt.s32.totalorder %s24, 0
      %s288 = scalar_select %p287, %s24, 0
      %s289 = sadd.s32 %s288, %s286
      %s290 = smul.addr %s284, 16
      %s291 = sadd.s32 %s289, %s290
      %s292 = smul.addr %s291, 4
      %s293 = scalar_lea.vmem %s3, %s292
      %p294 = pneg %p183
      %p295 = pneg %p180
      %p296 = scmp.lt.s32.totalorder %s22, 3
      %s297 = scalar_select %p296, %s22, 3
      %p298 = scmp.lt.s32.totalorder %s23, 0
      %s299 = scalar_select %p298, %s23, 0
      %p300 = scmp.lt.s32.totalorder %s24, 0
      %s301 = scalar_select %p300, %s24, 0
      %s302 = sadd.s32 %s301, %s299
      %s303 = sadd.s32 %s302, %s297
      %s304 = smul.addr %s303, 8
      %s305 = scalar_lea.vmem %s4, %s304
      %s306 = smul.u32 16, %s23
      %p307 = scmp.lt.s32.totalorder %s22, 3
      %s308 = scalar_select %p307, %s22, 3
      %p309 = scmp.lt.s32.totalorder %s306, 15
      %s310 = scalar_select %p309, %s306, 15
      %p311 = scmp.lt.s32.totalorder %s25, 0
      %s312 = scalar_select %p311, %s25, 0
      %s313 = sadd.s32 %s312, %s310
      %s314 = smul.addr %s308, 16
      %s315 = sadd.s32 %s313, %s314
      %s316 = smul.addr %s315, 4
      %s317 = scalar_lea.vmem %s0, %s316
      %s318 = smul.u32 16, %s23
      %s319 = smul.u32 16, %s25
      %p320 = scmp.lt.s32.totalorder %s22, 3
      %s321 = scalar_select %p320, %s22, 3
      %p322 = scmp.lt.s32.totalorder %s319, 15
      %s323 = scalar_select %p322, %s319, 15
      %p324 = scmp.lt.s32.totalorder %s24, 0
      %s325 = scalar_select %p324, %s24, 0
      %s326 = sadd.s32 %s325, %s323
      %s327 = smul.addr %s321, 16
      %s328 = sadd.s32 %s326, %s327
      %s329 = smul.addr %s328, 4
      %s330 = scalar_lea.vmem %s1, %s329
      %s331 = smul.u32 16, %s25
      %p332 = scmp.lt.s32.totalorder %s24, 0
      %s333 = scalar_select %p332, %s24, 0
      %s334 = scalar_lea.vmem %s2, %s333
      %s335 = smul.u32 16, %s23
      %p336 = scmp.lt.s32.totalorder %s22, 3
      %s337 = scalar_select %p336, %s22, 3
      %p338 = scmp.lt.s32.totalorder %s335, 15
      %s339 = scalar_select %p338, %s335, 15
      %p340 = scmp.lt.s32.totalorder %s24, 0
      %s341 = scalar_select %p340, %s24, 0
      %s342 = sadd.s32 %s341, %s339
      %s343 = smul.addr %s337, 16
      %s344 = sadd.s32 %s342, %s343
      %s345 = smul.addr %s344, 4
      %s346 = scalar_lea.vmem %s3, %s345
      %s347 = smul.u32 16, %s23
      %p348 = scmp.lt.s32.totalorder %s22, 3
      %s349 = scalar_select %p348, %s22, 3
      %p350 = scmp.lt.s32.totalorder %s23, 0
      %s351 = scalar_select %p350, %s23, 0
      %p352 = scmp.lt.s32.totalorder %s24, 0
      %s353 = scalar_select %p352, %s24, 0
      %s354 = sadd.s32 %s353, %s351
      %s355 = sadd.s32 %s354, %s349
      %s356 = smul.addr %s355, 8
      %s357 = scalar_lea.vmem %s4, %s356
      %v358 = vld [vmem:[%s317] sm:$0xf]
      %v359 = vld [vmem:[%s317 + $0x4] sm:$0xf]
      %v360 = vld [vmem:[%s317 + $0x8] sm:$0xf]
      %v361 = vld [vmem:[%s317 + $0xc] sm:$0xf]
      %v362 = vld [vmem:[%s317 + $0x10] sm:$0xf]
      %v363 = vld [vmem:[%s317 + $0x14] sm:$0xf]
      %v364 = vld [vmem:[%s317 + $0x18] sm:$0xf]
      %v365 = vld [vmem:[%s317 + $0x1c] sm:$0xf]
      %v366 = vld [vmem:[%s317 + $0x20] sm:$0xf]
      %v367 = vld [vmem:[%s317 + $0x24] sm:$0xf]
      %v368 = vld [vmem:[%s317 + $0x28] sm:$0xf]
      %v369 = vld [vmem:[%s317 + $0x2c] sm:$0xf]
      %v370 = vld [vmem:[%s317 + $0x30] sm:$0xf]
      %v371 = vld [vmem:[%s317 + $0x34] sm:$0xf]
      %v372 = vld [vmem:[%s317 + $0x38] sm:$0xf]
      %v373 = vld [vmem:[%s317 + $0x3c] sm:$0xf]
      %v374 = vunpack.c.l.bf16 %v358
      %v375 = vunpack.c.l.bf16 %v359
      %v376 = vunpack.c.l.bf16 %v360
      %v377 = vunpack.c.l.bf16 %v361
      %v378 = vunpack.c.l.bf16 %v362
      %v379 = vunpack.c.l.bf16 %v363
      %v380 = vunpack.c.l.bf16 %v364
      %v381 = vunpack.c.l.bf16 %v365
      %v382 = vunpack.c.l.bf16 %v366
      %v383 = vunpack.c.l.bf16 %v367
      %v384 = vunpack.c.l.bf16 %v368
      %v385 = vunpack.c.l.bf16 %v369
      %v386 = vunpack.c.l.bf16 %v370
      %v387 = vunpack.c.l.bf16 %v371
      %v388 = vunpack.c.l.bf16 %v372
      %v389 = vunpack.c.l.bf16 %v373
      %v390 = vmax.f32 %v374, 0.0
      %v391 = vmax.f32 %v375, 0.0
      %v392 = vmax.f32 %v376, 0.0
      %v393 = vmax.f32 %v377, 0.0
      %v394 = vmax.f32 %v378, 0.0
      %v395 = vmax.f32 %v379, 0.0
      %v396 = vmax.f32 %v380, 0.0
      %v397 = vmax.f32 %v381, 0.0
      %v398 = vmax.f32 %v382, 0.0
      %v399 = vmax.f32 %v383, 0.0
      %v400 = vmax.f32 %v384, 0.0
      %v401 = vmax.f32 %v385, 0.0
      %v402 = vmax.f32 %v386, 0.0
      %v403 = vmax.f32 %v387, 0.0
      %v404 = vmax.f32 %v388, 0.0
      %v405 = vmax.f32 %v389, 0.0
      %v406 = vpack.c.bf16 %v391, %v390
      %v407 = vpack.c.bf16 %v393, %v392
      %v408 = vpack.c.bf16 %v395, %v394
      %v409 = vpack.c.bf16 %v397, %v396
      %v410 = vpack.c.bf16 %v399, %v398
      %v411 = vpack.c.bf16 %v401, %v400
      %v412 = vpack.c.bf16 %v403, %v402
      %v413 = vpack.c.bf16 %v405, %v404
      %v414 = vld [vmem:[%s330] sm:$0xf]
      %v415 = vld [vmem:[%s330 + $0x4] sm:$0xf]
      %v416 = vld [vmem:[%s330 + $0x8] sm:$0xf]
      %v417 = vld [vmem:[%s330 + $0xc] sm:$0xf]
      %v418 = vld [vmem:[%s330 + $0x10] sm:$0xf]
      %v419 = vld [vmem:[%s330 + $0x14] sm:$0xf]
      %v420 = vld [vmem:[%s330 + $0x18] sm:$0xf]
      %v421 = vld [vmem:[%s330 + $0x1c] sm:$0xf]
      %v422 = vld [vmem:[%s330 + $0x20] sm:$0xf]
      %v423 = vld [vmem:[%s330 + $0x24] sm:$0xf]
      %v424 = vld [vmem:[%s330 + $0x28] sm:$0xf]
      %v425 = vld [vmem:[%s330 + $0x2c] sm:$0xf]
      %v426 = vld [vmem:[%s330 + $0x30] sm:$0xf]
      %v427 = vld [vmem:[%s330 + $0x34] sm:$0xf]
      %v428 = vld [vmem:[%s330 + $0x38] sm:$0xf]
      %v429 = vld [vmem:[%s330 + $0x3c] sm:$0xf]
      %v430 = vld [vmem:[%s334] sm:$0x1]
      %v432 = vperm.slane %v430, 0
      %v450 = vunpack.c.l.b16 %v414
      %v451 = vunpack.c.l.b16 %v415
      %v452 = vunpack.c.l.b16 %v416
      %v453 = vunpack.c.l.b16 %v417
      %v454 = vunpack.c.l.b16 %v418
      %v455 = vunpack.c.l.b16 %v419
      %v456 = vunpack.c.l.b16 %v420
      %v457 = vunpack.c.l.b16 %v421
      %v458 = vunpack.c.l.b16 %v422
      %v459 = vunpack.c.l.b16 %v423
      %v460 = vunpack.c.l.b16 %v424
      %v461 = vunpack.c.l.b16 %v425
      %v462 = vunpack.c.l.b16 %v426
      %v463 = vunpack.c.l.b16 %v427
      %v464 = vunpack.c.l.b16 %v428
      %v465 = vunpack.c.l.b16 %v429
      %v466 = vpack.c.b16 %v451, %v450
      %v467 = vpack.c.b16 %v453, %v452
      %v468 = vpack.c.b16 %v455, %v454
      %v469 = vpack.c.b16 %v457, %v456
      %v470 = vpack.c.b16 %v459, %v458
      %v471 = vpack.c.b16 %v461, %v460
      %v472 = vpack.c.b16 %v463, %v462
      %v473 = vpack.c.b16 %v465, %v464
      %482 = vmatpush.bf16.msra.mxu0 %v473
      %483 = vmatpush.bf16.msra.mxu0 %v472
      %484 = vmatpush.bf16.msra.mxu0 %v471
      %485 = vmatpush.bf16.msra.mxu0 %v470
      %486 = vmatpush.bf16.msra.mxu0 %v469
      %487 = vmatpush.bf16.msra.mxu0 %v468
      %488 = vmatpush.bf16.msra.mxu0 %v467
      %489 = vmatpush.bf16.msra.mxu0 %v466
      %490 = vmatmul.bf16.gmra.mxu0 %v406
      %v491 = vpop.f32.mrf.mxu0
      %v492 = vadd.f32 %v432, %v491
      %v493 = vpop.f32.mrf.mxu0
      %v494 = vadd.f32 %v432, %v493
      %495 = vmatmul.bf16.gmra.mxu0 %v407
      %v496 = vpop.f32.mrf.mxu0
      %v497 = vadd.f32 %v432, %v496
      %v498 = vpop.f32.mrf.mxu0
      %v499 = vadd.f32 %v432, %v498
      %500 = vmatmul.bf16.gmra.mxu0 %v408
      %v501 = vpop.f32.mrf.mxu0
      %v502 = vadd.f32 %v432, %v501
      %v503 = vpop.f32.mrf.mxu0
      %v504 = vadd.f32 %v432, %v503
      %505 = vmatmul.bf16.gmra.mxu0 %v409
      %v506 = vpop.f32.mrf.mxu0
      %v507 = vadd.f32 %v432, %v506
      %v508 = vpop.f32.mrf.mxu0
      %v509 = vadd.f32 %v432, %v508
      %510 = vmatmul.bf16.gmra.mxu0 %v410
      %v511 = vpop.f32.mrf.mxu0
      %v512 = vadd.f32 %v432, %v511
      %v513 = vpop.f32.mrf.mxu0
      %v514 = vadd.f32 %v432, %v513
      %515 = vmatmul.bf16.gmra.mxu0 %v411
      %v516 = vpop.f32.mrf.mxu0
      %v517 = vadd.f32 %v432, %v516
      %v518 = vpop.f32.mrf.mxu0
      %v519 = vadd.f32 %v432, %v518
      %520 = vmatmul.bf16.gmra.mxu0 %v412
      %v521 = vpop.f32.mrf.mxu0
      %v522 = vadd.f32 %v432, %v521
      %v523 = vpop.f32.mrf.mxu0
      %v524 = vadd.f32 %v432, %v523
      %525 = vmatmul.bf16.gmra.mxu0 %v413
      %v526 = vpop.f32.mrf.mxu0
      %v527 = vadd.f32 %v432, %v526
      %v528 = vpop.f32.mrf.mxu0
      %v529 = vadd.f32 %v432, %v528
      %530 = vdwg.mxu0
      %v531 = vadd.f32 %v492, %v494
      %v532 = vadd.f32 %v531, %v497
      %v533 = vadd.f32 %v532, %v499
      %v534 = vadd.f32 %v533, %v502
      %v535 = vadd.f32 %v534, %v504
      %v536 = vadd.f32 %v535, %v507
      %v537 = vadd.f32 %v536, %v509
      %v538 = vadd.f32 %v537, %v512
      %v539 = vadd.f32 %v538, %v514
      %v540 = vadd.f32 %v539, %v517
      %v541 = vadd.f32 %v540, %v519
      %v542 = vadd.f32 %v541, %v522
      %v543 = vadd.f32 %v542, %v524
      %v544 = vadd.f32 %v543, %v527
      %v545 = vadd.f32 %v544, %v529
      %v546 = vrot.slane %v545, 4
      %v547 = vadd.f32 %v545, %v546
      %v548 = vrot.slane %v547, 2
      %v549 = vadd.f32 %v547, %v548
      %v550 = vrot.slane %v549, 1
      %v551 = vadd.f32 %v549, %v550
      %552 = vst [vmem:[%s357] sm:$0x1] %v551
      %v553 = vmul.f32 %v492, %v492
      %v554 = vmul.f32 %v494, %v494
      %v555 = vmul.f32 %v497, %v497
      %v556 = vmul.f32 %v499, %v499
      %v557 = vmul.f32 %v502, %v502
      %v558 = vmul.f32 %v504, %v504
      %v559 = vmul.f32 %v507, %v507
      %v560 = vmul.f32 %v509, %v509
      %v561 = vmul.f32 %v512, %v512
      %v562 = vmul.f32 %v514, %v514
      %v563 = vmul.f32 %v517, %v517
      %v564 = vmul.f32 %v519, %v519
      %v565 = vmul.f32 %v522, %v522
      %v566 = vmul.f32 %v524, %v524
      %v567 = vmul.f32 %v527, %v527
      %v568 = vmul.f32 %v529, %v529
      %v569 = vadd.f32 %v553, %v554
      %v570 = vadd.f32 %v569, %v555
      %v571 = vadd.f32 %v570, %v556
      %v572 = vadd.f32 %v571, %v557
      %v573 = vadd.f32 %v572, %v558
      %v574 = vadd.f32 %v573, %v559
      %v575 = vadd.f32 %v574, %v560
      %v576 = vadd.f32 %v575, %v561
      %v577 = vadd.f32 %v576, %v562
      %v578 = vadd.f32 %v577, %v563
      %v579 = vadd.f32 %v578, %v564
      %v580 = vadd.f32 %v579, %v565
      %v581 = vadd.f32 %v580, %v566
      %v582 = vadd.f32 %v581, %v567
      %v583 = vadd.f32 %v582, %v568
      %v584 = vrot.slane %v583, 4
      %v585 = vadd.f32 %v583, %v584
      %v586 = vrot.slane %v585, 2
      %v587 = vadd.f32 %v585, %v586
      %v588 = vrot.slane %v587, 1
      %v589 = vadd.f32 %v587, %v588
      %590 = vst [vmem:[%s357 + $0x1] sm:$0x1] %v589
      %v591 = vpack.c.bf16 %v492, %v492
      %v592 = vpack.c.bf16 %v494, %v494
      %v593 = vpack.c.bf16 %v497, %v497
      %v594 = vpack.c.bf16 %v499, %v499
      %v595 = vpack.c.bf16 %v502, %v502
      %v596 = vpack.c.bf16 %v504, %v504
      %v597 = vpack.c.bf16 %v507, %v507
      %v598 = vpack.c.bf16 %v509, %v509
      %v599 = vpack.c.bf16 %v512, %v512
      %v600 = vpack.c.bf16 %v514, %v514
      %v601 = vpack.c.bf16 %v517, %v517
      %v602 = vpack.c.bf16 %v519, %v519
      %v603 = vpack.c.bf16 %v522, %v522
      %v604 = vpack.c.bf16 %v524, %v524
      %v605 = vpack.c.bf16 %v527, %v527
      %v606 = vpack.c.bf16 %v529, %v529
      %607 = vst [vmem:[%s346] sm:$0xf] %v591
      %608 = vst [vmem:[%s346 + $0x4] sm:$0xf] %v592
      %609 = vst [vmem:[%s346 + $0x8] sm:$0xf] %v593
      %610 = vst [vmem:[%s346 + $0xc] sm:$0xf] %v594
      %611 = vst [vmem:[%s346 + $0x10] sm:$0xf] %v595
      %612 = vst [vmem:[%s346 + $0x14] sm:$0xf] %v596
      %613 = vst [vmem:[%s346 + $0x18] sm:$0xf] %v597
      %614 = vst [vmem:[%s346 + $0x1c] sm:$0xf] %v598
      %615 = vst [vmem:[%s346 + $0x20] sm:$0xf] %v599
      %616 = vst [vmem:[%s346 + $0x24] sm:$0xf] %v600
      %617 = vst [vmem:[%s346 + $0x28] sm:$0xf] %v601
      %618 = vst [vmem:[%s346 + $0x2c] sm:$0xf] %v602
      %619 = vst [vmem:[%s346 + $0x30] sm:$0xf] %v603
      %620 = vst [vmem:[%s346 + $0x34] sm:$0xf] %v604
      %621 = vst [vmem:[%s346 + $0x38] sm:$0xf] %v605
      %622 = vst [vmem:[%s346 + $0x3c] sm:$0xf] %v606
      %s623 = smul.u32 16, %s23
      %p624 = scmp.lt.s32.totalorder %s22, 3
      %s625 = scalar_select %p624, %s22, 3
      %p626 = scmp.lt.s32.totalorder %s623, 15
      %s627 = scalar_select %p626, %s623, 15
      %p628 = scmp.lt.s32.totalorder %s24, 0
      %s629 = scalar_select %p628, %s24, 0
      %s630 = sadd.s32 %s629, %s627
      %s631 = smul.addr %s625, 16
      %s632 = sadd.s32 %s630, %s631
      %s633 = smul.addr %s632, 4
      %s634 = scalar_lea.vmem %s3, %s633
      %p635 = scmp.lt.s32.totalorder %s22, 3
      %s636 = scalar_select %p635, %s22, 3
      %p637 = scmp.lt.s32.totalorder %s23, 0
      %s638 = scalar_select %p637, %s23, 0
      %p639 = scmp.lt.s32.totalorder %s24, 0
      %s640 = scalar_select %p639, %s24, 0
      %s641 = sadd.s32 %s640, %s638
      %s642 = sadd.s32 %s641, %s636
      %s643 = smul.addr %s642, 8
      %s644 = scalar_lea.vmem %s4, %s643
      // Predicated region
      $region33: #{unet_generator_forward.31} parent=31 // pred_check
        %p645 = pneg %p150
      $region34: #{unet_generator_forward.31} parent=31 // pred_check_branch
        %647 = sbr.rel (%p645) target = $region36
      $region35: #{unet_generator_forward.31} parent=31 // pred_region
        %s648 = smul.u32 16, %s23
      $region36: #{unet_generator_forward.31} parent=31 // pred_fallthru
        _
      // Predicated region
      $region37: #{unet_generator_forward.31} parent=31 // pred_check
        %p649 = pneg %p180
      $region38: #{unet_generator_forward.31} parent=31 // pred_check_branch
        %651 = sbr.rel (%p649) target = $region40
      $region39: #{unet_generator_forward.31} parent=31 // pred_region
        _
      $region40: #{unet_generator_forward.31} parent=31 // pred_fallthru
        _
    $region32: #{unet_generator_forward.31} parent=5 // pred_fallthru
      _
    %p652 = scmp.le.s32.totalorder 2, %s11
    // Predicated region
    $region41: #{unet_generator_forward.31} parent=5 // pred_check
      %p653 = pneg %p652
    $region42: #{unet_generator_forward.31} parent=5 // pred_check_branch
      %655 = sbr.rel (%p653) target = $region44
    $region43: #{unet_generator_forward.31} parent=5 // pred_region
      %s656 = ssub.s32 %s11, 2
      // Predicated region
      $region45: #{unet_generator_forward.31} parent=43 // pred_check
        %p657 = pneg %p156
      $region46: #{unet_generator_forward.31} parent=43 // pred_check_branch
        %659 = sbr.rel (%p657) target = $region48
      $region47: #{unet_generator_forward.31} parent=43 // pred_region
        %s660 = smul.u32 16, %s27
        %p661 = scmp.lt.s32.totalorder %s26, 3
        %s662 = scalar_select %p661, %s26, 3
        %p663 = scmp.lt.s32.totalorder %s660, 15
        %s664 = scalar_select %p663, %s660, 15
        %p665 = scmp.lt.s32.totalorder %s28, 0
        %s666 = scalar_select %p665, %s28, 0
        %s667 = sadd.s32 %s666, %s664
        %s668 = smul.addr %s662, 16
        %s669 = sadd.s32 %s667, %s668
        %s670 = smul.addr %s669, 4
        %s671 = scalar_lea.vmem %s3, %s670
      $region48: #{unet_generator_forward.31} parent=43 // pred_fallthru
        _
      // Predicated region
      $region49: #{unet_generator_forward.31} parent=43 // pred_check
        %p672 = pneg %p186
      $region50: #{unet_generator_forward.31} parent=43 // pred_check_branch
        %674 = sbr.rel (%p672) target = $region52
      $region51: #{unet_generator_forward.31} parent=43 // pred_region
        %p675 = scmp.lt.s32.totalorder %s26, 3
        %s676 = scalar_select %p675, %s26, 3
        %p677 = scmp.lt.s32.totalorder %s27, 0
        %s678 = scalar_select %p677, %s27, 0
        %p679 = scmp.lt.s32.totalorder %s28, 0
        %s680 = scalar_select %p679, %s28, 0
        %s681 = sadd.s32 %s680, %s678
        %s682 = sadd.s32 %s681, %s676
        %s683 = smul.addr %s682, 8
        %s684 = scalar_lea.vmem %s4, %s683
      $region52: #{unet_generator_forward.31} parent=43 // pred_fallthru
        _
    $region44: #{unet_generator_forward.31} parent=5 // pred_fallthru
      _
  $region6: #{unet_generator_forward.31} parent=0 // loop_footer
    %s15 = sadd.s32 1, %s11
  $region7: #{unet_generator_forward.31} parent=0 // loop_footer_branch
    %10 = sbr.rel target = $region3
  $region8: #{unet_generator_forward.31} parent=0 // loop_exit
    _

// kernel: unet_generator_forward.32
$region0: #{unet_generator_forward.32}
  #allocation0 [shape = 'u32[]', space=smem, size = 0x4, offset = 0x4, fixed_abs, tag = 'smem constant byte address 0x4 - core index']
  #allocation1 [shape = 'u32[72,128]{1,0:T(1,128)}', space=vmem, size = 0x9000, scoped, tag = 'internal scratch']
  %s0 = inlined_call_operand.vmem [shape: bf16[32,128], index: 0, kind: input, shape index: {}]
  %s1 = inlined_call_operand.vmem [shape: f32[1,128], index: 1, kind: input, shape index: {}]
  %s2 = inlined_call_operand.vmem [shape: f32[1,128], index: 2, kind: input, shape index: {}]
  %s3 = inlined_call_operand.vmem [shape: bf16[32,128], index: 3, kind: output, shape index: {}]
  %s4 = sld [smem:[#allocation0]]
  $region22: #{unet_generator_forward.32} parent=0
    _
  %s6 = ssub.s32 1, %s4
  %s7 = scalar_select 0, %s6, %s4
  // Predicated region
  $region2: #{unet_generator_forward.32} parent=0 // pred_check
    _
  $region3: #{unet_generator_forward.32} parent=0 // pred_check_branch
    %9 = sbr.rel (0) target = $region5
  $region4: #{unet_generator_forward.32} parent=0 // pred_region
    _
  $region5: #{unet_generator_forward.32} parent=0 // pred_fallthru
    _
  // Predicated region
  $region6: #{unet_generator_forward.32} parent=0 // pred_check
    _
  $region7: #{unet_generator_forward.32} parent=0 // pred_check_branch
    %11 = sbr.rel (0) target = $region9
  $region8: #{unet_generator_forward.32} parent=0 // pred_region
    _
  $region9: #{unet_generator_forward.32} parent=0 // pred_fallthru
    _
  // Predicated region
  $region10: #{unet_generator_forward.32} parent=0 // pred_check
    _
  $region11: #{unet_generator_forward.32} parent=0 // pred_check_branch
    %13 = sbr.rel (0) target = $region13
  $region12: #{unet_generator_forward.32} parent=0 // pred_region
    _
  $region13: #{unet_generator_forward.32} parent=0 // pred_fallthru
    _
  %v14 = vld [vmem:[%s0] sm:$0xf]
  %v15 = vld [vmem:[%s0 + $0x4] sm:$0xf]
  %v16 = vld [vmem:[%s0 + $0x8] sm:$0xf]
  %v17 = vld [vmem:[%s0 + $0xc] sm:$0xf]
  %v18 = vunpack.c.l.bf16 %v14
  %v19 = vunpack.c.l.bf16 %v15
  %v20 = vunpack.c.l.bf16 %v16
  %v21 = vunpack.c.l.bf16 %v17
  %v22 = vld [vmem:[%s1] sm:$0x1]
  %v24 = vperm.slane %v22, 0
  %v26 = vmul.f32 %v18, %v24
  %v27 = vmul.f32 %v19, %v24
  %v28 = vmul.f32 %v20, %v24
  %v29 = vmul.f32 %v21, %v24
  %v30 = vld [vmem:[%s2] sm:$0x1]
  %v32 = vperm.slane %v30, 0
  %v34 = vadd.f32 %v26, %v32
  %v35 = vadd.f32 %v27, %v32
  %v36 = vadd.f32 %v28, %v32
  %v37 = vadd.f32 %v29, %v32
  %v38 = vpack.c.bf16 %v34, %v34
  %v39 = vpack.c.bf16 %v35, %v35
  %v40 = vpack.c.bf16 %v36, %v36
  %v41 = vpack.c.bf16 %v37, %v37
  %42 = vst [vmem:[%s3] sm:$0xf] %v38
  %43 = vst [vmem:[%s3 + $0x4] sm:$0xf] %v39
  %44 = vst [vmem:[%s3 + $0x8] sm:$0xf] %v40
  %45 = vst [vmem:[%s3 + $0xc] sm:$0xf] %v41
  // Predicated region
  $region14: #{unet_generator_forward.32} parent=0 // pred_check
    _
  $region15: #{unet_generator_forward.32} parent=0 // pred_check_branch
    %47 = sbr.rel (0) target = $region17
  $region16: #{unet_generator_forward.32} parent=0 // pred_region
    _
  $region17: #{unet_generator_forward.32} parent=0 // pred_fallthru
    _
  // Predicated region
  $region18: #{unet_generator_forward.32} parent=0 // pred_check
    _
  $region19: #{unet_generator_forward.32} parent=0 // pred_check_branch
    %49 = sbr.rel (0) target = $region21
  $region20: #{unet_generator_forward.32} parent=0 // pred_region
    _
  $region21: #{unet_generator_forward.32} parent=0 // pred_fallthru
    _

// kernel: unet_generator_forward.33
$region0: #{unet_generator_forward.33}
  #allocation0 [shape = 'u32[]', space=smem, size = 0x4, offset = 0x4, fixed_abs, tag = 'smem constant byte address 0x4 - core index']
  #allocation1 [shape = 'u32[72,128]{1,0:T(1,128)}', space=vmem, size = 0x9000, scoped, tag = 'internal scratch']
  %s0 = inlined_call_operand.vmem [shape: bf16[4,512,128], index: 0, kind: input, shape index: {}]
  %s1 = inlined_call_operand.vmem [shape: bf16[4,128,128], index: 1, kind: input, shape index: {}]
  %s2 = inlined_call_operand.vmem [shape: f32[1,128], index: 2, kind: input, shape index: {}]
  %s3 = inlined_call_operand.vmem [shape: bf16[4,512,128], index: 3, kind: output, shape index: {}]
  %s4 = sld [smem:[#allocation0]]
  $region45: #{unet_generator_forward.33} parent=0
    _
  %s6 = ssub.s32 1, %s4
  %s7 = scalar_select 0, %s6, %s4
  loop: start=0, step=1, limit=10
  $region2: #{unet_generator_forward.33} parent=0 // loop_pre_header
    _
  $region3: #{unet_generator_forward.33} parent=0 // loop_header
    %s9 = sphi 0, %s13
    %p10 = scmp.ge.s32.totalorder %s9, 10
    %s16 = sphi 0, %s42
    %s17 = sphi 0, %s38
    %s18 = sphi 0, %s34
    %s19 = sphi 0, %s30
    %s20 = sphi 0, %s16
    %s21 = sphi 0, %s17
    %s22 = sphi 0, %s18
    %s23 = sphi 0, %s19
    %s24 = sphi 0, %s20
    %s25 = sphi 0, %s21
    %s26 = sphi 0, %s22
    %s27 = sphi 0, %s23
    %s49 = sphi 0, %s51
    %s52 = sphi 0, %s49
    %s53 = sphi 0, %s52
    %s69 = sphi 0, %s53
    %s79 = sphi 0, %s81
    %s82 = sphi 0, %s79
    %s83 = sphi 0, %s82
    %s99 = sphi 0, %s83
    %s105 = sphi 0, %s107
    %s108 = sphi 0, %s105
    %s109 = sphi 0, %s108
    %s125 = sphi 0, %s109
    %s135 = sphi 0, %s137
    %s138 = sphi 0, %s135
    %s139 = sphi 0, %s138
    %s155 = sphi 0, %s139
  $region4: #{unet_generator_forward.33} parent=0 // loop_header_branch
    %12 = sbr.rel (%p10) target = $region8
  $region5: #{unet_generator_forward.33} parent=0 // loop_body
    %s14 = ssub.s32 %s9, 1
    %s15 = ssub.s32 %s9, 2
    %s28 = sadd.s32 1, %s19
    %p29 = scmp.ge.s32.totalorder %s28, 1
    %s30 = scalar_select %p29, 0, %s28
    %s31 = sadd.s32 1, %s18
    %s32 = scalar_select %p29, %s31, %s18
    %p33 = scmp.ge.s32.totalorder %s32, 1
    %s34 = scalar_select %p33, 0, %s32
    %s35 = sadd.s32 1, %s17
    %s36 = scalar_select %p33, %s35, %s17
    %p37 = scmp.ge.s32.totalorder %s36, 2
    %s38 = scalar_select %p37, 0, %s36
    %s39 = sadd.s32 1, %s16
    %s40 = scalar_select %p37, %s39, %s16
    %p41 = scmp.ge.s32.totalorder %s40, 4
    %s42 = scalar_select %p41, 0, %s40
    %s43 = ssub.s32 %s16, %s42
    %s44 = ssub.s32 %s17, %s38
    %s45 = sor.u32 %s43, %s44
    %s46 = ssub.s32 %s19, %s30
    %s47 = sor.u32 %s45, %s46
    %p48 = scmp.eq.s32.totalorder %s47, 0
    %s50 = sadd.s32 %s49, 1
    %s51 = scalar_select %p48, %s49, %s50
    %p54 = pneg %p48
    %p55 = scmp.eq.s32.totalorder %s9, 7
    %p56 = por %p54, %p55
    %p57 = scmp.ne.s32.totalorder %s49, %s52
    %p58 = scmp.eq.s32.totalorder %s9, 0
    %p59 = por %p57, %p58
    %p60 = scmp.ne.s32.totalorder %s49, %s52
    %p61 = scmp.eq.s32.totalorder %s14, 7
    %p62 = por %p60, %p61
    %p63 = scmp.ne.s32.totalorder %s52, %s53
    %p64 = scmp.eq.s32.totalorder %s14, 0
    %p65 = por %p63, %p64
    %p66 = scmp.ne.s32.totalorder %s52, %s53
    %p67 = scmp.eq.s32.totalorder %s15, 7
    %p68 = por %p66, %p67
    %p70 = scmp.ne.s32.totalorder %s53, %s69
    %p71 = scmp.eq.s32.totalorder %s15, 0
    %p72 = por %p70, %p71
    %s73 = ssub.s32 %s16, %s42
    %s74 = ssub.s32 %s19, %s30
    %s75 = sor.u32 %s73, %s74
    %s76 = ssub.s32 %s18, %s34
    %s77 = sor.u32 %s75, %s76
    %p78 = scmp.eq.s32.totalorder %s77, 0
    %s80 = sadd.s32 %s79, 1
    %s81 = scalar_select %p78, %s79, %s80
    %p84 = pneg %p78
    %p85 = scmp.eq.s32.totalorder %s9, 7
    %p86 = por %p84, %p85
    %p87 = scmp.ne.s32.totalorder %s79, %s82
    %p88 = scmp.eq.s32.totalorder %s9, 0
    %p89 = por %p87, %p88
    %p90 = scmp.ne.s32.totalorder %s79, %s82
    %p91 = scmp.eq.s32.totalorder %s14, 7
    %p92 = por %p90, %p91
    %p93 = scmp.ne.s32.totalorder %s82, %s83
    %p94 = scmp.eq.s32.totalorder %s14, 0
    %p95 = por %p93, %p94
    %p96 = scmp.ne.s32.totalorder %s82, %s83
    %p97 = scmp.eq.s32.totalorder %s15, 7
    %p98 = por %p96, %p97
    %p100 = scmp.ne.s32.totalorder %s83, %s99
    %p101 = scmp.eq.s32.totalorder %s15, 0
    %p102 = por %p100, %p101
    %s103 = ssub.s32 %s18, %s34
    %p104 = scmp.eq.s32.totalorder %s103, 0
    %s106 = sadd.s32 %s105, 1
    %s107 = scalar_select %p104, %s105, %s106
    %p110 = pneg %p104
    %p111 = scmp.eq.s32.totalorder %s9, 7
    %p112 = por %p110, %p111
    %p113 = scmp.ne.s32.totalorder %s105, %s108
    %p114 = scmp.eq.s32.totalorder %s9, 0
    %p115 = por %p113, %p114
    %p116 = scmp.ne.s32.totalorder %s105, %s108
    %p117 = scmp.eq.s32.totalorder %s14, 7
    %p118 = por %p116, %p117
    %p119 = scmp.ne.s32.totalorder %s108, %s109
    %p120 = scmp.eq.s32.totalorder %s14, 0
    %p121 = por %p119, %p120
    %p122 = scmp.ne.s32.totalorder %s108, %s109
    %p123 = scmp.eq.s32.totalorder %s15, 7
    %p124 = por %p122, %p123
    %p126 = scmp.ne.s32.totalorder %s109, %s125
    %p127 = scmp.eq.s32.totalorder %s15, 0
    %p128 = por %p126, %p127
    %s129 = ssub.s32 %s16, %s42
    %s130 = ssub.s32 %s17, %s38
    %s131 = sor.u32 %s129, %s130
    %s132 = ssub.s32 %s18, %s34
    %s133 = sor.u32 %s131, %s132
    %p134 = scmp.eq.s32.totalorder %s133, 0
    %s136 = sadd.s32 %s135, 1
    %s137 = scalar_select %p134, %s135, %s136
    %p140 = pneg %p134
    %p141 = scmp.eq.s32.totalorder %s9, 7
    %p142 = por %p140, %p141
    %p143 = scmp.ne.s32.totalorder %s135, %s138
    %p144 = scmp.eq.s32.totalorder %s9, 0
    %p145 = por %p143, %p144
    %p146 = scmp.ne.s32.totalorder %s135, %s138
    %p147 = scmp.eq.s32.totalorder %s14, 7
    %p148 = por %p146, %p147
    %p149 = scmp.ne.s32.totalorder %s138, %s139
    %p150 = scmp.eq.s32.totalorder %s14, 0
    %p151 = por %p149, %p150
    %p152 = scmp.ne.s32.totalorder %s138, %s139
    %p153 = scmp.eq.s32.totalorder %s15, 7
    %p154 = por %p152, %p153
    %p156 = scmp.ne.s32.totalorder %s139, %s155
    %p157 = scmp.eq.s32.totalorder %s15, 0
    %p158 = por %p156, %p157
    %p159 = scmp.le.s32.totalorder 1, %s9
    %p160 = scmp.lt.s32.totalorder %s9, 9
    %p161 = pnand %p159, %p160
    %p162 = pneg %p161
    // Predicated region
    $region9: #{unet_generator_forward.33} parent=5 // pred_check
      _
    $region10: #{unet_generator_forward.33} parent=5 // pred_check_branch
      %164 = sbr.rel (%p161) target = $region12
    $region11: #{unet_generator_forward.33} parent=5 // pred_region
      %s165 = ssub.s32 %s9, 1
      // Predicated region
      $region13: #{unet_generator_forward.33} parent=11 // pred_check
        %p166 = pneg %p121
      $region14: #{unet_generator_forward.33} parent=11 // pred_check_branch
        %168 = sbr.rel (%p166) target = $region16
      $region15: #{unet_generator_forward.33} parent=11 // pred_region
        %p169 = scmp.lt.s32.totalorder %s22, 0
        %s170 = scalar_select %p169, %s22, 0
        %s171 = scalar_lea.vmem %s2, %s170
      $region16: #{unet_generator_forward.33} parent=11 // pred_fallthru
        _
    $region12: #{unet_generator_forward.33} parent=5 // pred_fallthru
      _
    %p172 = scmp.lt.s32.totalorder %s9, 8
    // Predicated region
    $region17: #{unet_generator_forward.33} parent=5 // pred_check
      %p173 = pneg %p172
    $region18: #{unet_generator_forward.33} parent=5 // pred_check_branch
      %175 = sbr.rel (%p173) target = $region20
    $region19: #{unet_generator_forward.33} parent=5 // pred_region
      // Predicated region
      $region21: #{unet_generator_forward.33} parent=19 // pred_check
        %p176 = pneg %p59
      $region22: #{unet_generator_forward.33} parent=19 // pred_check_branch
        %178 = sbr.rel (%p176) target = $region24
      $region23: #{unet_generator_forward.33} parent=19 // pred_region
        %s179 = smul.u32 32, %s17
        %p180 = scmp.lt.s32.totalorder %s16, 3
        %s181 = scalar_select %p180, %s16, 3
        %p182 = scmp.lt.s32.totalorder %s179, 63
        %s183 = scalar_select %p182, %s179, 63
        %p184 = scmp.lt.s32.totalorder %s19, 0
        %s185 = scalar_select %p184, %s19, 0
        %s186 = sadd.s32 %s185, %s183
        %s187 = smul.addr %s181, 64
        %s188 = sadd.s32 %s186, %s187
        %s189 = smul.addr %s188, 4
        %s190 = scalar_lea.vmem %s0, %s189
        %s191 = smul.u32 32, %s17
      $region24: #{unet_generator_forward.33} parent=19 // pred_fallthru
        _
      // Predicated region
      $region25: #{unet_generator_forward.33} parent=19 // pred_check
        %p192 = pneg %p89
      $region26: #{unet_generator_forward.33} parent=19 // pred_check_branch
        %194 = sbr.rel (%p192) target = $region28
      $region27: #{unet_generator_forward.33} parent=19 // pred_region
        %s195 = smul.u32 16, %s19
        %p196 = scmp.lt.s32.totalorder %s16, 3
        %s197 = scalar_select %p196, %s16, 3
        %p198 = scmp.lt.s32.totalorder %s195, 15
        %s199 = scalar_select %p198, %s195, 15
        %p200 = scmp.lt.s32.totalorder %s18, 0
        %s201 = scalar_select %p200, %s18, 0
        %s202 = sadd.s32 %s201, %s199
        %s203 = smul.addr %s197, 16
        %s204 = sadd.s32 %s202, %s203
        %s205 = smul.addr %s204, 4
        %s206 = scalar_lea.vmem %s1, %s205
        %s207 = smul.u32 16, %s19
      $region28: #{unet_generator_forward.33} parent=19 // pred_fallthru
        _
    $region20: #{unet_generator_forward.33} parent=5 // pred_fallthru
      _
    %p208 = scmp.le.s32.totalorder 1, %s9
    %p209 = scmp.lt.s32.totalorder %s9, 9
    %p210 = pnand %p208, %p209
    %p211 = pneg %p210
    // Predicated region
    $region29: #{unet_generator_forward.33} parent=5 // pred_check
      _
    $region30: #{unet_generator_forward.33} parent=5 // pred_check_branch
      %213 = sbr.rel (%p210) target = $region32
    $region31: #{unet_generator_forward.33} parent=5 // pred_region
      %s214 = ssub.s32 %s9, 1
      %s215 = smul.u32 32, %s21
      %p216 = scmp.lt.s32.totalorder %s20, 3
      %s217 = scalar_select %p216, %s20, 3
      %p218 = scmp.lt.s32.totalorder %s215, 63
      %s219 = scalar_select %p218, %s215, 63
      %p220 = scmp.lt.s32.totalorder %s23, 0
      %s221 = scalar_select %p220, %s23, 0
      %s222 = sadd.s32 %s221, %s219
      %s223 = smul.addr %s217, 64
      %s224 = sadd.s32 %s222, %s223
      %s225 = smul.addr %s224, 4
      %s226 = scalar_lea.vmem %s0, %s225
      %p227 = pneg %p65
      %p228 = pneg %p62
      %s229 = smul.u32 16, %s23
      %p230 = scmp.lt.s32.totalorder %s20, 3
      %s231 = scalar_select %p230, %s20, 3
      %p232 = scmp.lt.s32.totalorder %s229, 15
      %s233 = scalar_select %p232, %s229, 15
      %p234 = scmp.lt.s32.totalorder %s22, 0
      %s235 = scalar_select %p234, %s22, 0
      %s236 = sadd.s32 %s235, %s233
      %s237 = smul.addr %s231, 16
      %s238 = sadd.s32 %s236, %s237
      %s239 = smul.addr %s238, 4
      %s240 = scalar_lea.vmem %s1, %s239
      %p241 = pneg %p95
      %p242 = pneg %p92
      %p243 = scmp.lt.s32.totalorder %s22, 0
      %s244 = scalar_select %p243, %s22, 0
      %s245 = scalar_lea.vmem %s2, %s244
      %p246 = pneg %p121
      %p247 = pneg %p118
      %p248 = pneg %p151
      %p249 = pneg %p148
      %s250 = smul.u32 32, %s21
      %p251 = scmp.lt.s32.totalorder %s20, 3
      %s252 = scalar_select %p251, %s20, 3
      %p253 = scmp.lt.s32.totalorder %s250, 63
      %s254 = scalar_select %p253, %s250, 63
      %p255 = scmp.lt.s32.totalorder %s22, 0
      %s256 = scalar_select %p255, %s22, 0
      %s257 = sadd.s32 %s256, %s254
      %s258 = smul.addr %s252, 64
      %s259 = sadd.s32 %s257, %s258
      %s260 = smul.addr %s259, 4
      %s261 = scalar_lea.vmem %s3, %s260
      %s262 = smul.u32 32, %s21
      %p263 = scmp.lt.s32.totalorder %s20, 3
      %s264 = scalar_select %p263, %s20, 3
      %p265 = scmp.lt.s32.totalorder %s262, 63
      %s266 = scalar_select %p265, %s262, 63
      %p267 = scmp.lt.s32.totalorder %s23, 0
      %s268 = scalar_select %p267, %s23, 0
      %s269 = sadd.s32 %s268, %s266
      %s270 = smul.addr %s264, 64
      %s271 = sadd.s32 %s269, %s270
      %s272 = smul.addr %s271, 4
      %s273 = scalar_lea.vmem %s0, %s272
      %s274 = smul.u32 32, %s21
      %s275 = smul.u32 16, %s23
      %p276 = scmp.lt.s32.totalorder %s20, 3
      %s277 = scalar_select %p276, %s20, 3
      %p278 = scmp.lt.s32.totalorder %s275, 15
      %s279 = scalar_select %p278, %s275, 15
      %p280 = scmp.lt.s32.totalorder %s22, 0
      %s281 = scalar_select %p280, %s22, 0
      %s282 = sadd.s32 %s281, %s279
      %s283 = smul.addr %s277, 16
      %s284 = sadd.s32 %s282, %s283
      %s285 = smul.addr %s284, 4
      %s286 = scalar_lea.vmem %s1, %s285
      %s287 = smul.u32 16, %s23
      %p288 = scmp.lt.s32.totalorder %s22, 0
      %s289 = scalar_select %p288, %s22, 0
      %s290 = scalar_lea.vmem %s2, %s289
      %s291 = smul.u32 32, %s21
      %p292 = scmp.lt.s32.totalorder %s20, 3
      %s293 = scalar_select %p292, %s20, 3
      %p294 = scmp.lt.s32.totalorder %s291, 63
      %s295 = scalar_select %p294, %s291, 63
      %p296 = scmp.lt.s32.totalorder %s22, 0
      %s297 = scalar_select %p296, %s22, 0
      %s298 = sadd.s32 %s297, %s295
      %s299 = smul.addr %s293, 64
      %s300 = sadd.s32 %s298, %s299
      %s301 = smul.addr %s300, 4
      %s302 = scalar_lea.vmem %s3, %s301
      %s303 = smul.u32 32, %s21
      %v304 = vld [vmem:[%s273] sm:$0xf]
      %v305 = vld [vmem:[%s273 + $0x4] sm:$0xf]
      %v306 = vld [vmem:[%s273 + $0x8] sm:$0xf]
      %v307 = vld [vmem:[%s273 + $0xc] sm:$0xf]
      %v308 = vld [vmem:[%s273 + $0x10] sm:$0xf]
      %v309 = vld [vmem:[%s273 + $0x14] sm:$0xf]
      %v310 = vld [vmem:[%s273 + $0x18] sm:$0xf]
      %v311 = vld [vmem:[%s273 + $0x1c] sm:$0xf]
      %v312 = vld [vmem:[%s273 + $0x20] sm:$0xf]
      %v313 = vld [vmem:[%s273 + $0x24] sm:$0xf]
      %v314 = vld [vmem:[%s273 + $0x28] sm:$0xf]
      %v315 = vld [vmem:[%s273 + $0x2c] sm:$0xf]
      %v316 = vld [vmem:[%s273 + $0x30] sm:$0xf]
      %v317 = vld [vmem:[%s273 + $0x34] sm:$0xf]
      %v318 = vld [vmem:[%s273 + $0x38] sm:$0xf]
      %v319 = vld [vmem:[%s273 + $0x3c] sm:$0xf]
      %v320 = vld [vmem:[%s273 + $0x40] sm:$0xf]
      %v321 = vld [vmem:[%s273 + $0x44] sm:$0xf]
      %v322 = vld [vmem:[%s273 + $0x48] sm:$0xf]
      %v323 = vld [vmem:[%s273 + $0x4c] sm:$0xf]
      %v324 = vld [vmem:[%s273 + $0x50] sm:$0xf]
      %v325 = vld [vmem:[%s273 + $0x54] sm:$0xf]
      %v326 = vld [vmem:[%s273 + $0x58] sm:$0xf]
      %v327 = vld [vmem:[%s273 + $0x5c] sm:$0xf]
      %v328 = vld [vmem:[%s273 + $0x60] sm:$0xf]
      %v329 = vld [vmem:[%s273 + $0x64] sm:$0xf]
      %v330 = vld [vmem:[%s273 + $0x68] sm:$0xf]
      %v331 = vld [vmem:[%s273 + $0x6c] sm:$0xf]
      %v332 = vld [vmem:[%s273 + $0x70] sm:$0xf]
      %v333 = vld [vmem:[%s273 + $0x74] sm:$0xf]
      %v334 = vld [vmem:[%s273 + $0x78] sm:$0xf]
      %v335 = vld [vmem:[%s273 + $0x7c] sm:$0xf]
      %v336 = vunpack.c.l.bf16 %v304
      %v337 = vunpack.c.l.bf16 %v305
      %v338 = vunpack.c.l.bf16 %v306
      %v339 = vunpack.c.l.bf16 %v307
      %v340 = vunpack.c.l.bf16 %v308
      %v341 = vunpack.c.l.bf16 %v309
      %v342 = vunpack.c.l.bf16 %v310
      %v343 = vunpack.c.l.bf16 %v311
      %v344 = vunpack.c.l.bf16 %v312
      %v345 = vunpack.c.l.bf16 %v313
      %v346 = vunpack.c.l.bf16 %v314
      %v347 = vunpack.c.l.bf16 %v315
      %v348 = vunpack.c.l.bf16 %v316
      %v349 = vunpack.c.l.bf16 %v317
      %v350 = vunpack.c.l.bf16 %v318
      %v351 = vunpack.c.l.bf16 %v319
      %v352 = vunpack.c.l.bf16 %v320
      %v353 = vunpack.c.l.bf16 %v321
      %v354 = vunpack.c.l.bf16 %v322
      %v355 = vunpack.c.l.bf16 %v323
      %v356 = vunpack.c.l.bf16 %v324
      %v357 = vunpack.c.l.bf16 %v325
      %v358 = vunpack.c.l.bf16 %v326
      %v359 = vunpack.c.l.bf16 %v327
      %v360 = vunpack.c.l.bf16 %v328
      %v361 = vunpack.c.l.bf16 %v329
      %v362 = vunpack.c.l.bf16 %v330
      %v363 = vunpack.c.l.bf16 %v331
      %v364 = vunpack.c.l.bf16 %v332
      %v365 = vunpack.c.l.bf16 %v333
      %v366 = vunpack.c.l.bf16 %v334
      %v367 = vunpack.c.l.bf16 %v335
      %v368 = vmax.f32 %v336, 0.0
      %v369 = vmax.f32 %v337, 0.0
      %v370 = vmax.f32 %v338, 0.0
      %v371 = vmax.f32 %v339, 0.0
      %v372 = vmax.f32 %v340, 0.0
      %v373 = vmax.f32 %v341, 0.0
      %v374 = vmax.f32 %v342, 0.0
      %v375 = vmax.f32 %v343, 0.0
      %v376 = vmax.f32 %v344, 0.0
      %v377 = vmax.f32 %v345, 0.0
      %v378 = vmax.f32 %v346, 0.0
      %v379 = vmax.f32 %v347, 0.0
      %v380 = vmax.f32 %v348, 0.0
      %v381 = vmax.f32 %v349, 0.0
      %v382 = vmax.f32 %v350, 0.0
      %v383 = vmax.f32 %v351, 0.0
      %v384 = vmax.f32 %v352, 0.0
      %v385 = vmax.f32 %v353, 0.0
      %v386 = vmax.f32 %v354, 0.0
      %v387 = vmax.f32 %v355, 0.0
      %v388 = vmax.f32 %v356, 0.0
      %v389 = vmax.f32 %v357, 0.0
      %v390 = vmax.f32 %v358, 0.0
      %v391 = vmax.f32 %v359, 0.0
      %v392 = vmax.f32 %v360, 0.0
      %v393 = vmax.f32 %v361, 0.0
      %v394 = vmax.f32 %v362, 0.0
      %v395 = vmax.f32 %v363, 0.0
      %v396 = vmax.f32 %v364, 0.0
      %v397 = vmax.f32 %v365, 0.0
      %v398 = vmax.f32 %v366, 0.0
      %v399 = vmax.f32 %v367, 0.0
      %v400 = vpack.c.bf16 %v369, %v368
      %v401 = vpack.c.bf16 %v371, %v370
      %v402 = vpack.c.bf16 %v373, %v372
      %v403 = vpack.c.bf16 %v375, %v374
      %v404 = vpack.c.bf16 %v377, %v376
      %v405 = vpack.c.bf16 %v379, %v378
      %v406 = vpack.c.bf16 %v381, %v380
      %v407 = vpack.c.bf16 %v383, %v382
      %v408 = vpack.c.bf16 %v385, %v384
      %v409 = vpack.c.bf16 %v387, %v386
      %v410 = vpack.c.bf16 %v389, %v388
      %v411 = vpack.c.bf16 %v391, %v390
      %v412 = vpack.c.bf16 %v393, %v392
      %v413 = vpack.c.bf16 %v395, %v394
      %v414 = vpack.c.bf16 %v397, %v396
      %v415 = vpack.c.bf16 %v399, %v398
      %v416 = vld [vmem:[%s286] sm:$0xf]
      %v417 = vld [vmem:[%s286 + $0x4] sm:$0xf]
      %v418 = vld [vmem:[%s286 + $0x8] sm:$0xf]
      %v419 = vld [vmem:[%s286 + $0xc] sm:$0xf]
      %v420 = vld [vmem:[%s286 + $0x10] sm:$0xf]
      %v421 = vld [vmem:[%s286 + $0x14] sm:$0xf]
      %v422 = vld [vmem:[%s286 + $0x18] sm:$0xf]
      %v423 = vld [vmem:[%s286 + $0x1c] sm:$0xf]
      %v424 = vld [vmem:[%s286 + $0x20] sm:$0xf]
      %v425 = vld [vmem:[%s286 + $0x24] sm:$0xf]
      %v426 = vld [vmem:[%s286 + $0x28] sm:$0xf]
      %v427 = vld [vmem:[%s286 + $0x2c] sm:$0xf]
      %v428 = vld [vmem:[%s286 + $0x30] sm:$0xf]
      %v429 = vld [vmem:[%s286 + $0x34] sm:$0xf]
      %v430 = vld [vmem:[%s286 + $0x38] sm:$0xf]
      %v431 = vld [vmem:[%s286 + $0x3c] sm:$0xf]
      %v432 = vld [vmem:[%s290] sm:$0x1]
      %v434 = vperm.slane %v432, 0
      %v452 = vunpack.c.l.b16 %v416
      %v453 = vunpack.c.l.b16 %v417
      %v454 = vunpack.c.l.b16 %v418
      %v455 = vunpack.c.l.b16 %v419
      %v456 = vunpack.c.l.b16 %v420
      %v457 = vunpack.c.l.b16 %v421
      %v458 = vunpack.c.l.b16 %v422
      %v459 = vunpack.c.l.b16 %v423
      %v460 = vunpack.c.l.b16 %v424
      %v461 = vunpack.c.l.b16 %v425
      %v462 = vunpack.c.l.b16 %v426
      %v463 = vunpack.c.l.b16 %v427
      %v464 = vunpack.c.l.b16 %v428
      %v465 = vunpack.c.l.b16 %v429
      %v466 = vunpack.c.l.b16 %v430
      %v467 = vunpack.c.l.b16 %v431
      %v468 = vpack.c.b16 %v453, %v452
      %v469 = vpack.c.b16 %v455, %v454
      %v470 = vpack.c.b16 %v457, %v456
      %v471 = vpack.c.b16 %v459, %v458
      %v472 = vpack.c.b16 %v461, %v460
      %v473 = vpack.c.b16 %v463, %v462
      %v474 = vpack.c.b16 %v465, %v464
      %v475 = vpack.c.b16 %v467, %v466
      %484 = vmatpush.bf16.msra.mxu0 %v475
      %485 = vmatpush.bf16.msra.mxu0 %v474
      %486 = vmatpush.bf16.msra.mxu0 %v473
      %487 = vmatpush.bf16.msra.mxu0 %v472
      %488 = vmatpush.bf16.msra.mxu0 %v471
      %489 = vmatpush.bf16.msra.mxu0 %v470
      %490 = vmatpush.bf16.msra.mxu0 %v469
      %491 = vmatpush.bf16.msra.mxu0 %v468
      %492 = vmatmul.bf16.gmra.mxu0 %v400
      %v493 = vpop.f32.mrf.mxu0
      %v494 = vadd.f32 %v434, %v493
      %v495 = vpop.f32.mrf.mxu0
      %v496 = vadd.f32 %v434, %v495
      %497 = vmatmul.bf16.gmra.mxu0 %v401
      %v498 = vpop.f32.mrf.mxu0
      %v499 = vadd.f32 %v434, %v498
      %v500 = vpop.f32.mrf.mxu0
      %v501 = vadd.f32 %v434, %v500
      %502 = vmatmul.bf16.gmra.mxu0 %v402
      %v503 = vpop.f32.mrf.mxu0
      %v504 = vadd.f32 %v434, %v503
      %v505 = vpop.f32.mrf.mxu0
      %v506 = vadd.f32 %v434, %v505
      %507 = vmatmul.bf16.gmra.mxu0 %v403
      %v508 = vpop.f32.mrf.mxu0
      %v509 = vadd.f32 %v434, %v508
      %v510 = vpop.f32.mrf.mxu0
      %v511 = vadd.f32 %v434, %v510
      %512 = vmatmul.bf16.gmra.mxu0 %v404
      %v513 = vpop.f32.mrf.mxu0
      %v514 = vadd.f32 %v434, %v513
      %v515 = vpop.f32.mrf.mxu0
      %v516 = vadd.f32 %v434, %v515
      %517 = vmatmul.bf16.gmra.mxu0 %v405
      %v518 = vpop.f32.mrf.mxu0
      %v519 = vadd.f32 %v434, %v518
      %v520 = vpop.f32.mrf.mxu0
      %v521 = vadd.f32 %v434, %v520
      %522 = vmatmul.bf16.gmra.mxu0 %v406
      %v523 = vpop.f32.mrf.mxu0
      %v524 = vadd.f32 %v434, %v523
      %v525 = vpop.f32.mrf.mxu0
      %v526 = vadd.f32 %v434, %v525
      %527 = vmatmul.bf16.gmra.mxu0 %v407
      %v528 = vpop.f32.mrf.mxu0
      %v529 = vadd.f32 %v434, %v528
      %v530 = vpop.f32.mrf.mxu0
      %v531 = vadd.f32 %v434, %v530
      %532 = vmatmul.bf16.gmra.mxu0 %v408
      %v533 = vpop.f32.mrf.mxu0
      %v534 = vadd.f32 %v434, %v533
      %v535 = vpop.f32.mrf.mxu0
      %v536 = vadd.f32 %v434, %v535
      %537 = vmatmul.bf16.gmra.mxu0 %v409
      %v538 = vpop.f32.mrf.mxu0
      %v539 = vadd.f32 %v434, %v538
      %v540 = vpop.f32.mrf.mxu0
      %v541 = vadd.f32 %v434, %v540
      %542 = vmatmul.bf16.gmra.mxu0 %v410
      %v543 = vpop.f32.mrf.mxu0
      %v544 = vadd.f32 %v434, %v543
      %v545 = vpop.f32.mrf.mxu0
      %v546 = vadd.f32 %v434, %v545
      %547 = vmatmul.bf16.gmra.mxu0 %v411
      %v548 = vpop.f32.mrf.mxu0
      %v549 = vadd.f32 %v434, %v548
      %v550 = vpop.f32.mrf.mxu0
      %v551 = vadd.f32 %v434, %v550
      %552 = vmatmul.bf16.gmra.mxu0 %v412
      %v553 = vpop.f32.mrf.mxu0
      %v554 = vadd.f32 %v434, %v553
      %v555 = vpop.f32.mrf.mxu0
      %v556 = vadd.f32 %v434, %v555
      %557 = vmatmul.bf16.gmra.mxu0 %v413
      %v558 = vpop.f32.mrf.mxu0
      %v559 = vadd.f32 %v434, %v558
      %v560 = vpop.f32.mrf.mxu0
      %v561 = vadd.f32 %v434, %v560
      %562 = vmatmul.bf16.gmra.mxu0 %v414
      %v563 = vpop.f32.mrf.mxu0
      %v564 = vadd.f32 %v434, %v563
      %v565 = vpop.f32.mrf.mxu0
      %v566 = vadd.f32 %v434, %v565
      %567 = vmatmul.bf16.gmra.mxu0 %v415
      %v568 = vpop.f32.mrf.mxu0
      %v569 = vadd.f32 %v434, %v568
      %v570 = vpop.f32.mrf.mxu0
      %v571 = vadd.f32 %v434, %v570
      %572 = vdwg.mxu0
      %v573 = vtanh.pop %v494
      %v574 = vtanh.pop %v496
      %v575 = vtanh.pop %v499
      %v576 = vtanh.pop %v501
      %v577 = vtanh.pop %v504
      %v578 = vtanh.pop %v506
      %v579 = vtanh.pop %v509
      %v580 = vtanh.pop %v511
      %v581 = vtanh.pop %v514
      %v582 = vtanh.pop %v516
      %v583 = vtanh.pop %v519
      %v584 = vtanh.pop %v521
      %v585 = vtanh.pop %v524
      %v586 = vtanh.pop %v526
      %v587 = vtanh.pop %v529
      %v588 = vtanh.pop %v531
      %v589 = vtanh.pop %v534
      %v590 = vtanh.pop %v536
      %v591 = vtanh.pop %v539
      %v592 = vtanh.pop %v541
      %v593 = vtanh.pop %v544
      %v594 = vtanh.pop %v546
      %v595 = vtanh.pop %v549
      %v596 = vtanh.pop %v551
      %v597 = vtanh.pop %v554
      %v598 = vtanh.pop %v556
      %v599 = vtanh.pop %v559
      %v600 = vtanh.pop %v561
      %v601 = vtanh.pop %v564
      %v602 = vtanh.pop %v566
      %v603 = vtanh.pop %v569
      %v604 = vtanh.pop %v571
      %v605 = vpack.c.bf16 %v573, %v573
      %v606 = vpack.c.bf16 %v574, %v574
      %v607 = vpack.c.bf16 %v575, %v575
      %v608 = vpack.c.bf16 %v576, %v576
      %v609 = vpack.c.bf16 %v577, %v577
      %v610 = vpack.c.bf16 %v578, %v578
      %v611 = vpack.c.bf16 %v579, %v579
      %v612 = vpack.c.bf16 %v580, %v580
      %v613 = vpack.c.bf16 %v581, %v581
      %v614 = vpack.c.bf16 %v582, %v582
      %v615 = vpack.c.bf16 %v583, %v583
      %v616 = vpack.c.bf16 %v584, %v584
      %v617 = vpack.c.bf16 %v585, %v585
      %v618 = vpack.c.bf16 %v586, %v586
      %v619 = vpack.c.bf16 %v587, %v587
      %v620 = vpack.c.bf16 %v588, %v588
      %v621 = vpack.c.bf16 %v589, %v589
      %v622 = vpack.c.bf16 %v590, %v590
      %v623 = vpack.c.bf16 %v591, %v591
      %v624 = vpack.c.bf16 %v592, %v592
      %v625 = vpack.c.bf16 %v593, %v593
      %v626 = vpack.c.bf16 %v594, %v594
      %v627 = vpack.c.bf16 %v595, %v595
      %v628 = vpack.c.bf16 %v596, %v596
      %v629 = vpack.c.bf16 %v597, %v597
      %v630 = vpack.c.bf16 %v598, %v598
      %v631 = vpack.c.bf16 %v599, %v599
      %v632 = vpack.c.bf16 %v600, %v600
      %v633 = vpack.c.bf16 %v601, %v601
      %v634 = vpack.c.bf16 %v602, %v602
      %v635 = vpack.c.bf16 %v603, %v603
      %v636 = vpack.c.bf16 %v604, %v604
      %637 = vst [vmem:[%s302] sm:$0xf] %v605
      %638 = vst [vmem:[%s302 + $0x4] sm:$0xf] %v606
      %639 = vst [vmem:[%s302 + $0x8] sm:$0xf] %v607
      %640 = vst [vmem:[%s302 + $0xc] sm:$0xf] %v608
      %641 = vst [vmem:[%s302 + $0x10] sm:$0xf] %v609
      %642 = vst [vmem:[%s302 + $0x14] sm:$0xf] %v610
      %643 = vst [vmem:[%s302 + $0x18] sm:$0xf] %v611
      %644 = vst [vmem:[%s302 + $0x1c] sm:$0xf] %v612
      %645 = vst [vmem:[%s302 + $0x20] sm:$0xf] %v613
      %646 = vst [vmem:[%s302 + $0x24] sm:$0xf] %v614
      %647 = vst [vmem:[%s302 + $0x28] sm:$0xf] %v615
      %648 = vst [vmem:[%s302 + $0x2c] sm:$0xf] %v616
      %649 = vst [vmem:[%s302 + $0x30] sm:$0xf] %v617
      %650 = vst [vmem:[%s302 + $0x34] sm:$0xf] %v618
      %651 = vst [vmem:[%s302 + $0x38] sm:$0xf] %v619
      %652 = vst [vmem:[%s302 + $0x3c] sm:$0xf] %v620
      %653 = vst [vmem:[%s302 + $0x40] sm:$0xf] %v621
      %654 = vst [vmem:[%s302 + $0x44] sm:$0xf] %v622
      %655 = vst [vmem:[%s302 + $0x48] sm:$0xf] %v623
      %656 = vst [vmem:[%s302 + $0x4c] sm:$0xf] %v624
      %657 = vst [vmem:[%s302 + $0x50] sm:$0xf] %v625
      %658 = vst [vmem:[%s302 + $0x54] sm:$0xf] %v626
      %659 = vst [vmem:[%s302 + $0x58] sm:$0xf] %v627
      %660 = vst [vmem:[%s302 + $0x5c] sm:$0xf] %v628
      %661 = vst [vmem:[%s302 + $0x60] sm:$0xf] %v629
      %662 = vst [vmem:[%s302 + $0x64] sm:$0xf] %v630
      %663 = vst [vmem:[%s302 + $0x68] sm:$0xf] %v631
      %664 = vst [vmem:[%s302 + $0x6c] sm:$0xf] %v632
      %665 = vst [vmem:[%s302 + $0x70] sm:$0xf] %v633
      %666 = vst [vmem:[%s302 + $0x74] sm:$0xf] %v634
      %667 = vst [vmem:[%s302 + $0x78] sm:$0xf] %v635
      %668 = vst [vmem:[%s302 + $0x7c] sm:$0xf] %v636
      %s669 = smul.u32 32, %s21
      %p670 = scmp.lt.s32.totalorder %s20, 3
      %s671 = scalar_select %p670, %s20, 3
      %p672 = scmp.lt.s32.totalorder %s669, 63
      %s673 = scalar_select %p672, %s669, 63
      %p674 = scmp.lt.s32.totalorder %s22, 0
      %s675 = scalar_select %p674, %s22, 0
      %s676 = sadd.s32 %s675, %s673
      %s677 = smul.addr %s671, 64
      %s678 = sadd.s32 %s676, %s677
      %s679 = smul.addr %s678, 4
      %s680 = scalar_lea.vmem %s3, %s679
      // Predicated region
      $region33: #{unet_generator_forward.33} parent=31 // pred_check
        %p681 = pneg %p148
      $region34: #{unet_generator_forward.33} parent=31 // pred_check_branch
        %683 = sbr.rel (%p681) target = $region36
      $region35: #{unet_generator_forward.33} parent=31 // pred_region
        %s684 = smul.u32 32, %s21
      $region36: #{unet_generator_forward.33} parent=31 // pred_fallthru
        _
    $region32: #{unet_generator_forward.33} parent=5 // pred_fallthru
      _
    %p685 = scmp.le.s32.totalorder 2, %s9
    // Predicated region
    $region37: #{unet_generator_forward.33} parent=5 // pred_check
      %p686 = pneg %p685
    $region38: #{unet_generator_forward.33} parent=5 // pred_check_branch
      %688 = sbr.rel (%p686) target = $region40
    $region39: #{unet_generator_forward.33} parent=5 // pred_region
      %s689 = ssub.s32 %s9, 2
      // Predicated region
      $region41: #{unet_generator_forward.33} parent=39 // pred_check
        %p690 = pneg %p154
      $region42: #{unet_generator_forward.33} parent=39 // pred_check_branch
        %692 = sbr.rel (%p690) target = $region44
      $region43: #{unet_generator_forward.33} parent=39 // pred_region
        %s693 = smul.u32 32, %s25
        %p694 = scmp.lt.s32.totalorder %s24, 3
        %s695 = scalar_select %p694, %s24, 3
        %p696 = scmp.lt.s32.totalorder %s693, 63
        %s697 = scalar_select %p696, %s693, 63
        %p698 = scmp.lt.s32.totalorder %s26, 0
        %s699 = scalar_select %p698, %s26, 0
        %s700 = sadd.s32 %s699, %s697
        %s701 = smul.addr %s695, 64
        %s702 = sadd.s32 %s700, %s701
        %s703 = smul.addr %s702, 4
        %s704 = scalar_lea.vmem %s3, %s703
      $region44: #{unet_generator_forward.33} parent=39 // pred_fallthru
        _
    $region40: #{unet_generator_forward.33} parent=5 // pred_fallthru
      _
  $region6: #{unet_generator_forward.33} parent=0 // loop_footer
    %s13 = sadd.s32 1, %s9
  $region7: #{unet_generator_forward.33} parent=0 // loop_footer_branch
    %8 = sbr.rel target = $region3
  $region8: #{unet_generator_forward.33} parent=0 // loop_exit
    _

</llo_original>
